<compile_context>
chip_gen: v7x
topology: tpu7x:2x2x1
jax: 0.10.0
libtpu: 0.0.40
codegen_flags: <defaults>
</compile_context>

<pallas_src>
from functools import partial

import jax
import jax.numpy as jnp
from jax.experimental import pallas as pl
from jax.experimental.pallas import tpu as pltpu

EPS = 1e-5
_SQRT_2_OVER_PI = 0.7978845608028654


def _gelu_tanh(x):
    return 0.5 * x * (1.0 + jnp.tanh(_SQRT_2_OVER_PI * (x + 0.044715 * x * x * x)))


def _tpu_budget():
    """Generation-aware (token-tile target, vmem_limit_bytes)."""
    try:
        cap = pltpu.get_tpu_info().vmem_capacity_bytes
    except Exception:
        cap = 64 * 1024 * 1024
    if cap >= 96 * 1024 * 1024:              # v5e / v6e: 128 MiB VMEM
        return 1024, 96 * 1024 * 1024
    return 512, 40 * 1024 * 1024             # v7x (64 MiB) or unknown


_TOKEN_TARGET, _VMEM_LIMIT = _tpu_budget()


# ---------------------------------------------------------------------------
# Fused kernel AB: LN1 + conv1 (1x1) + depthwise 5x5 conv, one image per step.
# Works on the flat token view (HW, C); spatial structure is handled by
# constant row offsets (dh*W + dw) into a zero-padded VMEM scratch plus a
# column-validity mask (w + dw in [0, W)).
# ---------------------------------------------------------------------------
def ln1_conv1_dwconv_kernel(x_ref, g1_ref, be1_ref, w1_ref, b1_ref,
                            wdw_ref, bdw_ref, o_ref, ypad_ref, *, H, W):
    HW, C = x_ref.shape[1], x_ref.shape[2]

    # LN1 over channels + 1x1 conv (bf16 MXU operands, f32 accumulation).
    x = x_ref[0].astype(jnp.float32)                               # (HW, C)
    mu = jnp.mean(x, axis=-1, keepdims=True)
    var = jnp.mean(jnp.square(x - mu), axis=-1, keepdims=True)
    xn = (x - mu) * jax.lax.rsqrt(var + EPS) * g1_ref[...] + be1_ref[...]
    y1 = jnp.dot(xn.astype(jnp.bfloat16), w1_ref[...],
                 preferred_element_type=jnp.float32) + b1_ref[...]

    # Store conv1 output into the zero-padded bf16 scratch.
    # Scratch layout (rows): [0, pad) zeros | [pad, pad+HW) y1 | [pad+HW, +pad) zeros,
    # with pad = 2*W + 2 so token r' = r + dh*W + dw lands at row kh*W + kw + r.
    pad = 2 * W + 2
    ypad_ref[0:pad, :] = jnp.zeros((pad, C), jnp.bfloat16)
    ypad_ref[pad + HW:pad + HW + pad, :] = jnp.zeros((pad, C), jnp.bfloat16)
    ypad_ref[pad:pad + HW, :] = y1.astype(jnp.bfloat16)

    wdw = wdw_ref[...]                                             # (5, 5, C) f32
    w_of_r = jax.lax.broadcasted_iota(jnp.int32, (HW, 1), 0) % W   # column index
    acc = jnp.zeros((HW, C), jnp.float32)
    for kw in range(5):                     # one offset window load per column tap
        dw = kw - 2
        colw = ypad_ref[kw:kw + (H + 4) * W, :].astype(jnp.float32)
        part = colw[0:HW] * wdw[0, kw]
        for kh in range(1, 5):              # row taps: aligned value slices (free)
            part = part + colw[kh * W:kh * W + HW] * wdw[kh, kw]
        if dw != 0:                         # mask tokens whose w+dw wraps a row edge
            valid = jnp.logical_and(w_of_r + dw >= 0, w_of_r + dw < W)
            part = jnp.where(valid, part, 0.0)
        acc = acc + part
    o_ref[0] = (acc + bdw_ref[...]).astype(o_ref.dtype)


# ---------------------------------------------------------------------------
# Kernel C: conv2 (1x1) + residual, then LN2 + MLP (fc1 -> GELU -> fc2) +
# residual, on (T, C) token tiles; MLP hidden dim processed in chunks.
# ---------------------------------------------------------------------------
def conv2_ln2_mlp_kernel(x_ref, y2_ref, w2_ref, b2_ref, g_ref, be_ref,
                         w3_ref, b3_ref, w4_ref, b4_ref, o_ref, *, hidden_chunk):
    x = x_ref[0].astype(jnp.float32)                               # (T, C)
    x1 = x + jnp.dot(y2_ref[0], w2_ref[...],                       # y2 already bf16
                     preferred_element_type=jnp.float32) + b2_ref[...]

    mu = jnp.mean(x1, axis=-1, keepdims=True)
    var = jnp.mean(jnp.square(x1 - mu), axis=-1, keepdims=True)
    z = ((x1 - mu) * jax.lax.rsqrt(var + EPS) * g_ref[...] + be_ref[...]
         ).astype(jnp.bfloat16)

    hidden = w3_ref.shape[1]
    mlp = jnp.zeros(x1.shape, jnp.float32)
    for c0 in range(0, hidden, hidden_chunk):                      # bound (T, 4C) temp
        c1 = c0 + hidden_chunk
        h = jnp.dot(z, w3_ref[:, c0:c1],
                    preferred_element_type=jnp.float32) + b3_ref[:, c0:c1]
        h = _gelu_tanh(h)
        mlp = mlp + jnp.dot(h.astype(jnp.bfloat16), w4_ref[c0:c1, :],
                            preferred_element_type=jnp.float32)
    o_ref[0] = (x1 + mlp + b4_ref[...]).astype(o_ref.dtype)


# ---------------------------------------------------------------------------
# Wrapper
# ---------------------------------------------------------------------------
def _bc(arr, grid_ndim):
    """Broadcast (untiled) BlockSpec for a small parameter array."""
    nd = arr.ndim
    if grid_ndim == 1:
        return pl.BlockSpec(arr.shape, lambda n: (0,) * nd)
    return pl.BlockSpec(arr.shape, lambda n, t: (0,) * nd)


def _pick_token_tile(hw, target):
    """Largest divisor of hw <= target (prefer multiples of 8); never falls back to hw>target."""
    if hw <= target:
        return hw
    best = 1
    for t in range(target, 0, -1):
        if hw % t == 0:
            if t % 8 == 0:
                return t
            if best == 1:
                best = t
    return best


def _pick_hidden_chunk(hidden, target=512):
    if hidden <= target:
        return hidden
    for t in range(target, 0, -1):
        if hidden % t == 0:
            return t
    return hidden


@partial(jax.jit, static_argnames=("token_tile",))
def cblock_forward_nhwc(x_nhwc, p, token_tile=None):
    """CBlock forward, channels-last (preferred entry point: no layout transposes).

    Note: real ConvMAE dims (C=256/384/768) are lane-aligned (multiple of 128);
    the dim=8 toy size below is only a correctness test, not a perf config.
    """
    N, H, W, C = x_nhwc.shape
    HW = H * W
    dt = x_nhwc.dtype

    T = _pick_token_tile(HW, _TOKEN_TARGET) if token_tile is None else int(token_tile)
    if HW % T != 0:
        raise ValueError("token_tile must divide H*W")
    nT = HW // T
    hc = _pick_hidden_chunk(p["w_fc1"].shape[1])

    # bf16 operands for MXU matmuls (accumulation stays f32 in-kernel).
    w1b = p["w1"].astype(jnp.bfloat16)
    w2b = p["w2"].astype(jnp.bfloat16)
    w3b = p["w_fc1"].astype(jnp.bfloat16)
    w4b = p["w_fc2"].astype(jnp.bfloat16)

    x_tok = x_nhwc.reshape(N, HW, C)                    # free (same layout)

    # --- fused LN1 + conv1 + depthwise 5x5, one image per grid step ----------
    img_spec = pl.BlockSpec((1, HW, C), lambda n: (n, 0, 0))
    y2_tok = pl.pallas_call(
        partial(ln1_conv1_dwconv_kernel, H=H, W=W),
        out_shape=jax.ShapeDtypeStruct((N, HW, C), jnp.bfloat16),   # bf16 intermediate
        grid=(N,),
        in_specs=[img_spec, _bc(p["g1"], 1), _bc(p["be1"], 1),
                  _bc(w1b, 1), _bc(p["b1"], 1),
                  _bc(p["w_dw"], 1), _bc(p["b_dw"], 1)],
        out_specs=img_spec,
        scratch_shapes=[pltpu.VMEM(((H + 4) * W + 4, C), jnp.bfloat16)],
        compiler_params=pltpu.CompilerParams(
            dimension_semantics=("parallel",), vmem_limit_bytes=_VMEM_LIMIT),
    )(x_tok, p["g1"], p["be1"], w1b, p["b1"], p["w_dw"], p["b_dw"])

    # --- conv2 + residual + LN2 + MLP + residual, tiled over tokens ----------
    tok_spec = pl.BlockSpec((1, T, C), lambda n, t: (n, t, 0))
    out_tok = pl.pallas_call(
        partial(conv2_ln2_mlp_kernel, hidden_chunk=hc),
        out_shape=jax.ShapeDtypeStruct((N, HW, C), dt),
        grid=(N, nT),
        in_specs=[tok_spec, tok_spec,
                  _bc(w2b, 2), _bc(p["b2"], 2),
                  _bc(p["g2"], 2), _bc(p["be2"], 2),
                  _bc(w3b, 2), _bc(p["b_fc1"], 2),
                  _bc(w4b, 2), _bc(p["b_fc2"], 2)],
        out_specs=tok_spec,
        compiler_params=pltpu.CompilerParams(
            dimension_semantics=("parallel", "parallel"),
            vmem_limit_bytes=_VMEM_LIMIT),
    )(x_tok, y2_tok, w2b, p["b2"], p["g2"], p["be2"],
      w3b, p["b_fc1"], w4b, p["b_fc2"])

    return out_tok.reshape(N, H, W, C)


@partial(jax.jit, static_argnames=("token_tile",))
def cblock_forward(x_nchw, p, token_tile=None):
    """NCHW compatibility shim matching the PyTorch module interface.

    The two transposes are extra HBM round trips handled by XLA; prefer
    cblock_forward_nhwc if the surrounding model is channels-last.
    """
    x = jnp.transpose(x_nchw, (0, 2, 3, 1))
    y = cblock_forward_nhwc(x, p, token_tile=token_tile)
    return jnp.transpose(y, (0, 3, 1, 2)).astype(x_nchw.dtype)


def init_params(key, dim, mlp_ratio=4.0):
    """Deterministic synthetic parameters.

    1x1-conv weights stored as (in, out) (= transpose of PyTorch (out,in,1,1));
    depthwise weight as (5,5,C) (= PyTorch W[c,0,kh,kw] -> [kh,kw,c]).
    """
    hidden = int(dim * mlp_ratio)
    ks = jax.random.split(key, 10)
    s = 0.1
    return {
        "g1":    jnp.ones((1, dim), jnp.float32),
        "be1":   jnp.zeros((1, dim), jnp.float32),
        "w1":    s * jax.random.normal(ks[0], (dim, dim), jnp.float32),
        "b1":    s * jax.random.normal(ks[1], (1, dim), jnp.float32),
        "w_dw":  s * jax.random.normal(ks[2], (5, 5, dim), jnp.float32),
        "b_dw":  s * jax.random.normal(ks[3], (1, dim), jnp.float32),
        "w2":    s * jax.random.normal(ks[4], (dim, dim), jnp.float32),
        "b2":    s * jax.random.normal(ks[5], (1, dim), jnp.float32),
        "g2":    jnp.ones((1, dim), jnp.float32),
        "be2":   jnp.zeros((1, dim), jnp.float32),
        "w_fc1": s * jax.random.normal(ks[6], (dim, hidden), jnp.float32),
        "b_fc1": s * jax.random.normal(ks[7], (1, hidden), jnp.float32),
        "w_fc2": s * jax.random.normal(ks[8], (hidden, dim), jnp.float32),
        "b_fc2": s * jax.random.normal(ks[9], (1, dim), jnp.float32),
    }


def cblock_reference(x_nchw, p):
    """Pure-JAX (f32) reference of the same forward (tanh GELU, see TODO)."""
    x = jnp.transpose(x_nchw, (0, 2, 3, 1)).astype(jnp.float32)     # NHWC
    C = x.shape[-1]
    mu = jnp.mean(x, -1, keepdims=True)
    var = jnp.var(x, -1, keepdims=True)
    xn = (x - mu) / jnp.sqrt(var + EPS) * p["g1"].reshape(-1) + p["be1"].reshape(-1)
    y1 = xn @ p["w1"] + p["b1"].reshape(-1)
    y2 = jax.lax.conv_general_dilated(
        y1, p["w_dw"].reshape(5, 5, 1, C), (1, 1), ((2, 2), (2, 2)),
        dimension_numbers=("NHWC", "HWIO", "NHWC"),
        feature_group_count=C) + p["b_dw"].reshape(-1)
    x1 = x + y2 @ p["w2"] + p["b2"].reshape(-1)
    mu2 = jnp.mean(x1, -1, keepdims=True)
    var2 = jnp.var(x1, -1, keepdims=True)
    z = (x1 - mu2) / jnp.sqrt(var2 + EPS) * p["g2"].reshape(-1) + p["be2"].reshape(-1)
    h = _gelu_tanh(z @ p["w_fc1"] + p["b_fc1"].reshape(-1))
    out = x1 + h @ p["w_fc2"] + p["b_fc2"].reshape(-1)
    return jnp.transpose(out, (0, 3, 1, 2)).astype(x_nchw.dtype)


if __name__ == "__main__":
    key = jax.random.PRNGKey(0)
    kx, kp = jax.random.split(key)

    N, dim, H, W = 2, 8, 16, 16            # CBlock(dim=8, num_heads=2, mlp_ratio=4.0)
    x = jax.random.normal(kx, (N, dim, H, W), jnp.float32)   # NCHW, like PyTorch
    params = init_params(kp, dim, mlp_ratio=4.0)

    # token_tile=64 exercises the tiled (N, HW//T) grid path at this small size;
    # at real ConvMAE sizes the generation-aware picker chooses T ~ 512-1024.
    out = cblock_forward(x, params, token_tile=64)
    out = jax.block_until_ready(out)
    assert out.shape == (N, dim, H, W) and out.dtype == x.dtype
    assert bool(jnp.all(jnp.isfinite(out)))

    # Validate against the pure-JAX reference (bf16 matmul operands -> small diffs).
    ref = cblock_reference(x, params)
    max_err = float(jnp.max(jnp.abs(out - ref)))
    assert max_err < 3e-2, f"max |kernel - reference| = {max_err}"

    print("KERNEL_OK")
</pallas_src>

<mosaic_0001>
module attributes {stable_mosaic.version = 11 : i64} {
  func.func @conv2_ln2_mlp_kernel(%arg0: i32, %arg1: i32, %arg2: memref<1x64x8xf32, #tpu.memory_space<vmem>>, %arg3: memref<1x64x8xbf16, #tpu.memory_space<vmem>>, %arg4: memref<8x8xbf16, #tpu.memory_space<vmem>>, %arg5: memref<1x8xf32, #tpu.memory_space<vmem>>, %arg6: memref<1x8xf32, #tpu.memory_space<vmem>>, %arg7: memref<1x8xf32, #tpu.memory_space<vmem>>, %arg8: memref<8x32xbf16, #tpu.memory_space<vmem>>, %arg9: memref<1x32xf32, #tpu.memory_space<vmem>>, %arg10: memref<32x8xbf16, #tpu.memory_space<vmem>>, %arg11: memref<1x8xf32, #tpu.memory_space<vmem>>, %arg12: memref<1x64x8xf32, #tpu.memory_space<vmem>>) attributes {dimension_semantics = [#tpu.dimension_semantics<parallel>, #tpu.dimension_semantics<parallel>], iteration_bounds = array<i64: 2, 4>, scalar_prefetch = 0 : i64, scratch_operands = 0 : i64, tpu.core_type = #tpu.core_type<tc>, window_params = [{transform_indices = @transform_0, window_bounds = array<i64: 1, 64, 8>}, {transform_indices = @transform_1, window_bounds = array<i64: 1, 64, 8>}, {pipeline_mode = #tpu.pipeline_mode<synchronous>, transform_indices = @transform_2, window_bounds = array<i64: 8, 8>}, {pipeline_mode = #tpu.pipeline_mode<synchronous>, transform_indices = @transform_3, window_bounds = array<i64: 1, 8>}, {pipeline_mode = #tpu.pipeline_mode<synchronous>, transform_indices = @transform_4, window_bounds = array<i64: 1, 8>}, {pipeline_mode = #tpu.pipeline_mode<synchronous>, transform_indices = @transform_5, window_bounds = array<i64: 1, 8>}, {pipeline_mode = #tpu.pipeline_mode<synchronous>, transform_indices = @transform_6, window_bounds = array<i64: 8, 32>}, {pipeline_mode = #tpu.pipeline_mode<synchronous>, transform_indices = @transform_7, window_bounds = array<i64: 1, 32>}, {pipeline_mode = #tpu.pipeline_mode<synchronous>, transform_indices = @transform_8, window_bounds = array<i64: 32, 8>}, {pipeline_mode = #tpu.pipeline_mode<synchronous>, transform_indices = @transform_9, window_bounds = array<i64: 1, 8>}, {transform_indices = @transform_10, window_bounds = array<i64: 1, 64, 8>}]} {
    %c0 = arith.constant 0 : index
    %c0_0 = arith.constant 0 : index
    %c0_1 = arith.constant 0 : index
    %0 = vector.load %arg2[%c0, %c0_0, %c0_1] : memref<1x64x8xf32, #tpu.memory_space<vmem>>, vector<1x64x8xf32>
    %1 = vector.shape_cast %0 : vector<1x64x8xf32> to vector<64x8xf32>
    %c0_2 = arith.constant 0 : index
    %c0_3 = arith.constant 0 : index
    %c0_4 = arith.constant 0 : index
    %2 = vector.load %arg3[%c0_2, %c0_3, %c0_4] : memref<1x64x8xbf16, #tpu.memory_space<vmem>>, vector<1x64x8xbf16>
    %3 = vector.shape_cast %2 : vector<1x64x8xbf16> to vector<64x8xbf16>
    %c0_5 = arith.constant 0 : index
    %c0_6 = arith.constant 0 : index
    %4 = vector.load %arg4[%c0_5, %c0_6] : memref<8x8xbf16, #tpu.memory_space<vmem>>, vector<8x8xbf16>
    %cst = arith.constant dense<0.000000e+00> : vector<64x8xf32>
    %5 = tpu.matmul %3, %4, %cst {dimension_numbers = #tpu.dot_dimension_numbers<[1], [0], [0], [1], [0, 0, 1, 1], [], []>} : vector<64x8xbf16>, vector<8x8xbf16>, vector<64x8xf32> -> vector<64x8xf32>
    %6 = arith.addf %1, %5 : vector<64x8xf32>
    %c0_7 = arith.constant 0 : index
    %c0_8 = arith.constant 0 : index
    %7 = vector.load %arg5[%c0_7, %c0_8] : memref<1x8xf32, #tpu.memory_space<vmem>>, vector<1x8xf32>
    %8 = vector.broadcast %7 : vector<1x8xf32> to vector<64x8xf32>
    %9 = arith.addf %6, %8 : vector<64x8xf32>
    %cst_9 = arith.constant dense<0.000000e+00> : vector<64xf32>
    %10 = vector.multi_reduction <add>, %9, %cst_9 [1] : vector<64x8xf32> to vector<64xf32>
    %11 = vector.shape_cast %10 : vector<64xf32> to vector<64x1xf32>
    %cst_10 = arith.constant 8.000000e+00 : f32
    %12 = vector.broadcast %cst_10 : f32 to vector<64x1xf32>
    %13 = arith.divf %11, %12 : vector<64x1xf32>
    %14 = vector.broadcast %13 : vector<64x1xf32> to vector<64x8xf32>
    %15 = arith.subf %9, %14 : vector<64x8xf32>
    %16 = arith.mulf %15, %15 : vector<64x8xf32>
    %cst_11 = arith.constant dense<0.000000e+00> : vector<64xf32>
    %17 = vector.multi_reduction <add>, %16, %cst_11 [1] : vector<64x8xf32> to vector<64xf32>
    %18 = vector.shape_cast %17 : vector<64xf32> to vector<64x1xf32>
    %cst_12 = arith.constant 8.000000e+00 : f32
    %19 = vector.broadcast %cst_12 : f32 to vector<64x1xf32>
    %20 = arith.divf %18, %19 : vector<64x1xf32>
    %21 = vector.broadcast %13 : vector<64x1xf32> to vector<64x8xf32>
    %22 = arith.subf %9, %21 : vector<64x8xf32>
    %cst_13 = arith.constant 9.99999974E-6 : f32
    %23 = vector.broadcast %cst_13 : f32 to vector<64x1xf32>
    %24 = arith.addf %20, %23 : vector<64x1xf32>
    %25 = math.rsqrt %24 : vector<64x1xf32>
    %26 = vector.broadcast %25 : vector<64x1xf32> to vector<64x8xf32>
    %27 = arith.mulf %22, %26 : vector<64x8xf32>
    %c0_14 = arith.constant 0 : index
    %c0_15 = arith.constant 0 : index
    %28 = vector.load %arg6[%c0_14, %c0_15] : memref<1x8xf32, #tpu.memory_space<vmem>>, vector<1x8xf32>
    %29 = vector.broadcast %28 : vector<1x8xf32> to vector<64x8xf32>
    %30 = arith.mulf %27, %29 : vector<64x8xf32>
    %c0_16 = arith.constant 0 : index
    %c0_17 = arith.constant 0 : index
    %31 = vector.load %arg7[%c0_16, %c0_17] : memref<1x8xf32, #tpu.memory_space<vmem>>, vector<1x8xf32>
    %32 = vector.broadcast %31 : vector<1x8xf32> to vector<64x8xf32>
    %33 = arith.addf %30, %32 : vector<64x8xf32>
    %34 = arith.truncf %33 : vector<64x8xf32> to vector<64x8xbf16>
    %cst_18 = arith.constant 0.000000e+00 : f32
    %35 = vector.broadcast %cst_18 : f32 to vector<64x8xf32>
    %c0_19 = arith.constant 0 : index
    %c0_20 = arith.constant 0 : index
    %36 = vector.load %arg8[%c0_19, %c0_20] : memref<8x32xbf16, #tpu.memory_space<vmem>>, vector<8x32xbf16>
    %cst_21 = arith.constant dense<0.000000e+00> : vector<64x32xf32>
    %37 = tpu.matmul %34, %36, %cst_21 {dimension_numbers = #tpu.dot_dimension_numbers<[1], [0], [0], [1], [0, 0, 1, 1], [], []>} : vector<64x8xbf16>, vector<8x32xbf16>, vector<64x32xf32> -> vector<64x32xf32>
    %c0_22 = arith.constant 0 : index
    %c0_23 = arith.constant 0 : index
    %38 = vector.load %arg9[%c0_22, %c0_23] : memref<1x32xf32, #tpu.memory_space<vmem>>, vector<1x32xf32>
    %39 = vector.broadcast %38 : vector<1x32xf32> to vector<64x32xf32>
    %40 = arith.addf %37, %39 : vector<64x32xf32>
    %cst_24 = arith.constant 5.000000e-01 : f32
    %41 = vector.broadcast %cst_24 : f32 to vector<64x32xf32>
    %42 = arith.mulf %41, %40 : vector<64x32xf32>
    %cst_25 = arith.constant 4.471500e-02 : f32
    %43 = vector.broadcast %cst_25 : f32 to vector<64x32xf32>
    %44 = arith.mulf %43, %40 : vector<64x32xf32>
    %45 = arith.mulf %44, %40 : vector<64x32xf32>
    %46 = arith.mulf %45, %40 : vector<64x32xf32>
    %47 = arith.addf %40, %46 : vector<64x32xf32>
    %cst_26 = arith.constant 0.797884583 : f32
    %48 = vector.broadcast %cst_26 : f32 to vector<64x32xf32>
    %49 = arith.mulf %48, %47 : vector<64x32xf32>
    %50 = math.tanh %49 : vector<64x32xf32>
    %cst_27 = arith.constant 1.000000e+00 : f32
    %51 = vector.broadcast %cst_27 : f32 to vector<64x32xf32>
    %52 = arith.addf %51, %50 : vector<64x32xf32>
    %53 = arith.mulf %42, %52 : vector<64x32xf32>
    %54 = arith.truncf %53 : vector<64x32xf32> to vector<64x32xbf16>
    %c0_28 = arith.constant 0 : index
    %c0_29 = arith.constant 0 : index
    %55 = vector.load %arg10[%c0_28, %c0_29] : memref<32x8xbf16, #tpu.memory_space<vmem>>, vector<32x8xbf16>
    %cst_30 = arith.constant dense<0.000000e+00> : vector<64x8xf32>
    %56 = tpu.matmul %54, %55, %cst_30 {dimension_numbers = #tpu.dot_dimension_numbers<[1], [0], [0], [1], [0, 0, 1, 1], [], []>} : vector<64x32xbf16>, vector<32x8xbf16>, vector<64x8xf32> -> vector<64x8xf32>
    %57 = arith.addf %35, %56 : vector<64x8xf32>
    %58 = arith.addf %9, %57 : vector<64x8xf32>
    %c0_31 = arith.constant 0 : index
    %c0_32 = arith.constant 0 : index
    %59 = vector.load %arg11[%c0_31, %c0_32] : memref<1x8xf32, #tpu.memory_space<vmem>>, vector<1x8xf32>
    %60 = vector.broadcast %59 : vector<1x8xf32> to vector<64x8xf32>
    %61 = arith.addf %58, %60 : vector<64x8xf32>
    %c0_33 = arith.constant 0 : index
    %c0_34 = arith.constant 0 : index
    %c0_35 = arith.constant 0 : index
    %62 = vector.load %arg12[%c0_33, %c0_34, %c0_35] : memref<1x64x8xf32, #tpu.memory_space<vmem>>, vector<1x64x8xf32>
    %63 = vector.shape_cast %62 : vector<1x64x8xf32> to vector<64x8xf32>
    %64 = vector.shape_cast %61 : vector<64x8xf32> to vector<1x64x8xf32>
    tpu.vector_store %arg12[%c0_33, %c0_34, %c0_35], %64 {strides = array<i32>} : memref<1x64x8xf32, #tpu.memory_space<vmem>>, vector<1x64x8xf32>,
    return
  }
  func.func @transform_0(%arg0: i32, %arg1: i32) -> (i32, i32, i32) {
    %c0_i32 = arith.constant 0 : i32
    %c0_i32_0 = arith.constant 0 : i32
    return %arg0, %arg1, %c0_i32 : i32, i32, i32
  }
  func.func @transform_1(%arg0: i32, %arg1: i32) -> (i32, i32, i32) {
    %c0_i32 = arith.constant 0 : i32
    %c0_i32_0 = arith.constant 0 : i32
    return %arg0, %arg1, %c0_i32 : i32, i32, i32
  }
  func.func @transform_2(%arg0: i32, %arg1: i32) -> (i32, i32) {
    %c0_i32 = arith.constant 0 : i32
    %c0_i32_0 = arith.constant 0 : i32
    %c0_i32_1 = arith.constant 0 : i32
    return %c0_i32, %c0_i32_0 : i32, i32
  }
  func.func @transform_3(%arg0: i32, %arg1: i32) -> (i32, i32) {
    %c0_i32 = arith.constant 0 : i32
    %c0_i32_0 = arith.constant 0 : i32
    %c0_i32_1 = arith.constant 0 : i32
    return %c0_i32, %c0_i32_0 : i32, i32
  }
  func.func @transform_4(%arg0: i32, %arg1: i32) -> (i32, i32) {
    %c0_i32 = arith.constant 0 : i32
    %c0_i32_0 = arith.constant 0 : i32
    %c0_i32_1 = arith.constant 0 : i32
    return %c0_i32, %c0_i32_0 : i32, i32
  }
  func.func @transform_5(%arg0: i32, %arg1: i32) -> (i32, i32) {
    %c0_i32 = arith.constant 0 : i32
    %c0_i32_0 = arith.constant 0 : i32
    %c0_i32_1 = arith.constant 0 : i32
    return %c0_i32, %c0_i32_0 : i32, i32
  }
  func.func @transform_6(%arg0: i32, %arg1: i32) -> (i32, i32) {
    %c0_i32 = arith.constant 0 : i32
    %c0_i32_0 = arith.constant 0 : i32
    %c0_i32_1 = arith.constant 0 : i32
    return %c0_i32, %c0_i32_0 : i32, i32
  }
  func.func @transform_7(%arg0: i32, %arg1: i32) -> (i32, i32) {
    %c0_i32 = arith.constant 0 : i32
    %c0_i32_0 = arith.constant 0 : i32
    %c0_i32_1 = arith.constant 0 : i32
    return %c0_i32, %c0_i32_0 : i32, i32
  }
  func.func @transform_8(%arg0: i32, %arg1: i32) -> (i32, i32) {
    %c0_i32 = arith.constant 0 : i32
    %c0_i32_0 = arith.constant 0 : i32
    %c0_i32_1 = arith.constant 0 : i32
    return %c0_i32, %c0_i32_0 : i32, i32
  }
  func.func @transform_9(%arg0: i32, %arg1: i32) -> (i32, i32) {
    %c0_i32 = arith.constant 0 : i32
    %c0_i32_0 = arith.constant 0 : i32
    %c0_i32_1 = arith.constant 0 : i32
    return %c0_i32, %c0_i32_0 : i32, i32
  }
  func.func @transform_10(%arg0: i32, %arg1: i32) -> (i32, i32, i32) {
    %c0_i32 = arith.constant 0 : i32
    %c0_i32_0 = arith.constant 0 : i32
    return %arg0, %arg1, %c0_i32 : i32, i32, i32
  }
}

module attributes {stable_mosaic.version = 11 : i64} {
  func.func @ln1_conv1_dwconv_kernel(%arg0: i32, %arg1: memref<1x256x8xf32, #tpu.memory_space<vmem>>, %arg2: memref<1x8xf32, #tpu.memory_space<vmem>>, %arg3: memref<1x8xf32, #tpu.memory_space<vmem>>, %arg4: memref<8x8xbf16, #tpu.memory_space<vmem>>, %arg5: memref<1x8xf32, #tpu.memory_space<vmem>>, %arg6: memref<5x5x8xf32, #tpu.memory_space<vmem>>, %arg7: memref<1x8xf32, #tpu.memory_space<vmem>>, %arg8: memref<1x256x8xbf16, #tpu.memory_space<vmem>>, %arg9: memref<324x8xbf16, #tpu.memory_space<vmem>>) attributes {dimension_semantics = [#tpu.dimension_semantics<parallel>], iteration_bounds = array<i64: 2>, scalar_prefetch = 0 : i64, scratch_operands = 1 : i64, tpu.core_type = #tpu.core_type<tc>, window_params = [{transform_indices = @transform_0, window_bounds = array<i64: 1, 256, 8>}, {pipeline_mode = #tpu.pipeline_mode<synchronous>, transform_indices = @transform_1, window_bounds = array<i64: 1, 8>}, {pipeline_mode = #tpu.pipeline_mode<synchronous>, transform_indices = @transform_2, window_bounds = array<i64: 1, 8>}, {pipeline_mode = #tpu.pipeline_mode<synchronous>, transform_indices = @transform_3, window_bounds = array<i64: 8, 8>}, {pipeline_mode = #tpu.pipeline_mode<synchronous>, transform_indices = @transform_4, window_bounds = array<i64: 1, 8>}, {pipeline_mode = #tpu.pipeline_mode<synchronous>, transform_indices = @transform_5, window_bounds = array<i64: 5, 5, 8>}, {pipeline_mode = #tpu.pipeline_mode<synchronous>, transform_indices = @transform_6, window_bounds = array<i64: 1, 8>}, {transform_indices = @transform_7, window_bounds = array<i64: 1, 256, 8>}]} {
    %c0 = arith.constant 0 : index
    %c0_0 = arith.constant 0 : index
    %c0_1 = arith.constant 0 : index
    %0 = vector.load %arg1[%c0, %c0_0, %c0_1] : memref<1x256x8xf32, #tpu.memory_space<vmem>>, vector<1x256x8xf32>
    %1 = vector.shape_cast %0 : vector<1x256x8xf32> to vector<256x8xf32>
    %cst = arith.constant dense<0.000000e+00> : vector<256xf32>
    %2 = vector.multi_reduction <add>, %1, %cst [1] : vector<256x8xf32> to vector<256xf32>
    %3 = vector.shape_cast %2 : vector<256xf32> to vector<256x1xf32>
    %cst_2 = arith.constant 8.000000e+00 : f32
    %4 = vector.broadcast %cst_2 : f32 to vector<256x1xf32>
    %5 = arith.divf %3, %4 : vector<256x1xf32>
    %6 = vector.broadcast %5 : vector<256x1xf32> to vector<256x8xf32>
    %7 = arith.subf %1, %6 : vector<256x8xf32>
    %8 = arith.mulf %7, %7 : vector<256x8xf32>
    %cst_3 = arith.constant dense<0.000000e+00> : vector<256xf32>
    %9 = vector.multi_reduction <add>, %8, %cst_3 [1] : vector<256x8xf32> to vector<256xf32>
    %10 = vector.shape_cast %9 : vector<256xf32> to vector<256x1xf32>
    %cst_4 = arith.constant 8.000000e+00 : f32
    %11 = vector.broadcast %cst_4 : f32 to vector<256x1xf32>
    %12 = arith.divf %10, %11 : vector<256x1xf32>
    %13 = vector.broadcast %5 : vector<256x1xf32> to vector<256x8xf32>
    %14 = arith.subf %1, %13 : vector<256x8xf32>
    %cst_5 = arith.constant 9.99999974E-6 : f32
    %15 = vector.broadcast %cst_5 : f32 to vector<256x1xf32>
    %16 = arith.addf %12, %15 : vector<256x1xf32>
    %17 = math.rsqrt %16 : vector<256x1xf32>
    %18 = vector.broadcast %17 : vector<256x1xf32> to vector<256x8xf32>
    %19 = arith.mulf %14, %18 : vector<256x8xf32>
    %c0_6 = arith.constant 0 : index
    %c0_7 = arith.constant 0 : index
    %20 = vector.load %arg2[%c0_6, %c0_7] : memref<1x8xf32, #tpu.memory_space<vmem>>, vector<1x8xf32>
    %21 = vector.broadcast %20 : vector<1x8xf32> to vector<256x8xf32>
    %22 = arith.mulf %19, %21 : vector<256x8xf32>
    %c0_8 = arith.constant 0 : index
    %c0_9 = arith.constant 0 : index
    %23 = vector.load %arg3[%c0_8, %c0_9] : memref<1x8xf32, #tpu.memory_space<vmem>>, vector<1x8xf32>
    %24 = vector.broadcast %23 : vector<1x8xf32> to vector<256x8xf32>
    %25 = arith.addf %22, %24 : vector<256x8xf32>
    %26 = arith.truncf %25 : vector<256x8xf32> to vector<256x8xbf16>
    %c0_10 = arith.constant 0 : index
    %c0_11 = arith.constant 0 : index
    %27 = vector.load %arg4[%c0_10, %c0_11] : memref<8x8xbf16, #tpu.memory_space<vmem>>, vector<8x8xbf16>
    %cst_12 = arith.constant dense<0.000000e+00> : vector<256x8xf32>
    %28 = tpu.matmul %26, %27, %cst_12 {dimension_numbers = #tpu.dot_dimension_numbers<[1], [0], [0], [1], [0, 0, 1, 1], [], []>} : vector<256x8xbf16>, vector<8x8xbf16>, vector<256x8xf32> -> vector<256x8xf32>
    %c0_13 = arith.constant 0 : index
    %c0_14 = arith.constant 0 : index
    %29 = vector.load %arg5[%c0_13, %c0_14] : memref<1x8xf32, #tpu.memory_space<vmem>>, vector<1x8xf32>
    %30 = vector.broadcast %29 : vector<1x8xf32> to vector<256x8xf32>
    %31 = arith.addf %28, %30 : vector<256x8xf32>
    %cst_15 = arith.constant 0.000000e+00 : bf16
    %32 = vector.broadcast %cst_15 : bf16 to vector<34x8xbf16>
    %c0_16 = arith.constant 0 : index
    %c0_17 = arith.constant 0 : index
    %33 = vector.load %arg9[%c0_16, %c0_17] : memref<324x8xbf16, #tpu.memory_space<vmem>>, vector<34x8xbf16>
    tpu.vector_store %arg9[%c0_16, %c0_17], %32 {strides = array<i32>} : memref<324x8xbf16, #tpu.memory_space<vmem>>, vector<34x8xbf16>,
    %cst_18 = arith.constant 0.000000e+00 : bf16
    %34 = vector.broadcast %cst_18 : bf16 to vector<34x8xbf16>
    %c290 = arith.constant 290 : index
    %c0_19 = arith.constant 0 : index
    %35 = vector.load %arg9[%c290, %c0_19] : memref<324x8xbf16, #tpu.memory_space<vmem>>, vector<34x8xbf16>
    tpu.vector_store %arg9[%c290, %c0_19], %34 {strides = array<i32>} : memref<324x8xbf16, #tpu.memory_space<vmem>>, vector<34x8xbf16>,
    %36 = arith.truncf %31 : vector<256x8xf32> to vector<256x8xbf16>
    %c34 = arith.constant 34 : index
    %c0_20 = arith.constant 0 : index
    %37 = vector.load %arg9[%c34, %c0_20] : memref<324x8xbf16, #tpu.memory_space<vmem>>, vector<256x8xbf16>
    tpu.vector_store %arg9[%c34, %c0_20], %36 {strides = array<i32>} : memref<324x8xbf16, #tpu.memory_space<vmem>>, vector<256x8xbf16>,
    %c0_21 = arith.constant 0 : index
    %c0_22 = arith.constant 0 : index
    %c0_23 = arith.constant 0 : index
    %38 = vector.load %arg6[%c0_21, %c0_22, %c0_23] : memref<5x5x8xf32, #tpu.memory_space<vmem>>, vector<5x5x8xf32>
    %39 = tpu.iota {dimensions = array<i32: 0>} : vector<256x1xi32>
    %c16_i32 = arith.constant 16 : i32
    %c0_i32 = arith.constant 0 : i32
    %40 = arith.cmpi eq, %c16_i32, %c0_i32 : i32
    %c1_i32 = arith.constant 1 : i32
    %41 = arith.select %40, %c1_i32, %c16_i32 : i32
    %42 = vector.broadcast %41 : i32 to vector<256x1xi32>
    %43 = arith.remsi %39, %42 : vector<256x1xi32>
    %c0_i32_24 = arith.constant 0 : i32
    %44 = vector.broadcast %c0_i32_24 : i32 to vector<256x1xi32>
    %45 = arith.cmpi ne, %43, %44 : vector<256x1xi32>
    %c0_i32_25 = arith.constant 0 : i32
    %46 = vector.broadcast %c0_i32_25 : i32 to vector<256x1xi32>
    %47 = arith.cmpi slt, %43, %46 : vector<256x1xi32>
    %c0_i32_26 = arith.constant 0 : i32
    %48 = arith.cmpi slt, %41, %c0_i32_26 : i32
    %49 = vector.broadcast %48 : i1 to vector<256x1xi1>
    %50 = vector.broadcast %49 : vector<256x1xi1> to vector<256x1xi1>
    %51 = arith.xori %47, %50 : vector<256x1xi1>
    %52 = arith.andi %51, %45 : vector<256x1xi1>
    %53 = vector.broadcast %41 : i32 to vector<256x1xi32>
    %54 = arith.addi %43, %53 : vector<256x1xi32>
    %55 = arith.select %52, %54, %43 : vector<256x1xi1>, vector<256x1xi32>
    %cst_27 = arith.constant 0.000000e+00 : f32
    %56 = vector.broadcast %cst_27 : f32 to vector<256x8xf32>
    %c0_28 = arith.constant 0 : index
    %c0_29 = arith.constant 0 : index
    %57 = vector.load %arg9[%c0_28, %c0_29] : memref<324x8xbf16, #tpu.memory_space<vmem>>, vector<320x8xbf16>
    %58 = arith.extf %57 : vector<320x8xbf16> to vector<320x8xf32>
    %59 = vector.extract_strided_slice %58 {offsets = [0, 0], sizes = [256, 8], strides = [1, 1]} : vector<320x8xf32> to vector<256x8xf32>
    %60 = vector.extract_strided_slice %38 {offsets = [0, 0, 0], sizes = [1, 1, 8], strides = [1, 1, 1]} : vector<5x5x8xf32> to vector<1x1x8xf32>
    %61 = vector.shape_cast %60 : vector<1x1x8xf32> to vector<8xf32>
    %62 = vector.shape_cast %61 : vector<8xf32> to vector<1x8xf32>
    %63 = vector.broadcast %62 : vector<1x8xf32> to vector<256x8xf32>
    %64 = arith.mulf %59, %63 : vector<256x8xf32>
    %65 = vector.extract_strided_slice %58 {offsets = [16, 0], sizes = [256, 8], strides = [1, 1]} : vector<320x8xf32> to vector<256x8xf32>
    %66 = vector.extract_strided_slice %38 {offsets = [1, 0, 0], sizes = [1, 1, 8], strides = [1, 1, 1]} : vector<5x5x8xf32> to vector<1x1x8xf32>
    %67 = vector.shape_cast %66 : vector<1x1x8xf32> to vector<8xf32>
    %68 = vector.shape_cast %67 : vector<8xf32> to vector<1x8xf32>
    %69 = vector.broadcast %68 : vector<1x8xf32> to vector<256x8xf32>
    %70 = arith.mulf %65, %69 : vector<256x8xf32>
    %71 = arith.addf %64, %70 : vector<256x8xf32>
    %72 = vector.extract_strided_slice %58 {offsets = [32, 0], sizes = [256, 8], strides = [1, 1]} : vector<320x8xf32> to vector<256x8xf32>
    %73 = vector.extract_strided_slice %38 {offsets = [2, 0, 0], sizes = [1, 1, 8], strides = [1, 1, 1]} : vector<5x5x8xf32> to vector<1x1x8xf32>
    %74 = vector.shape_cast %73 : vector<1x1x8xf32> to vector<8xf32>
    %75 = vector.shape_cast %74 : vector<8xf32> to vector<1x8xf32>
    %76 = vector.broadcast %75 : vector<1x8xf32> to vector<256x8xf32>
    %77 = arith.mulf %72, %76 : vector<256x8xf32>
    %78 = arith.addf %71, %77 : vector<256x8xf32>
    %79 = vector.extract_strided_slice %58 {offsets = [48, 0], sizes = [256, 8], strides = [1, 1]} : vector<320x8xf32> to vector<256x8xf32>
    %80 = vector.extract_strided_slice %38 {offsets = [3, 0, 0], sizes = [1, 1, 8], strides = [1, 1, 1]} : vector<5x5x8xf32> to vector<1x1x8xf32>
    %81 = vector.shape_cast %80 : vector<1x1x8xf32> to vector<8xf32>
    %82 = vector.shape_cast %81 : vector<8xf32> to vector<1x8xf32>
    %83 = vector.broadcast %82 : vector<1x8xf32> to vector<256x8xf32>
    %84 = arith.mulf %79, %83 : vector<256x8xf32>
    %85 = arith.addf %78, %84 : vector<256x8xf32>
    %86 = vector.extract_strided_slice %58 {offsets = [64, 0], sizes = [256, 8], strides = [1, 1]} : vector<320x8xf32> to vector<256x8xf32>
    %87 = vector.extract_strided_slice %38 {offsets = [4, 0, 0], sizes = [1, 1, 8], strides = [1, 1, 1]} : vector<5x5x8xf32> to vector<1x1x8xf32>
    %88 = vector.shape_cast %87 : vector<1x1x8xf32> to vector<8xf32>
    %89 = vector.shape_cast %88 : vector<8xf32> to vector<1x8xf32>
    %90 = vector.broadcast %89 : vector<1x8xf32> to vector<256x8xf32>
    %91 = arith.mulf %86, %90 : vector<256x8xf32>
    %92 = arith.addf %85, %91 : vector<256x8xf32>
    %c-2_i32 = arith.constant -2 : i32
    %93 = vector.broadcast %c-2_i32 : i32 to vector<256x1xi32>
    %94 = arith.addi %55, %93 : vector<256x1xi32>
    %c0_i32_30 = arith.constant 0 : i32
    %95 = vector.broadcast %c0_i32_30 : i32 to vector<256x1xi32>
    %96 = arith.cmpi sge, %94, %95 : vector<256x1xi32>
    %c-2_i32_31 = arith.constant -2 : i32
    %97 = vector.broadcast %c-2_i32_31 : i32 to vector<256x1xi32>
    %98 = arith.addi %55, %97 : vector<256x1xi32>
    %c16_i32_32 = arith.constant 16 : i32
    %99 = vector.broadcast %c16_i32_32 : i32 to vector<256x1xi32>
    %100 = arith.cmpi slt, %98, %99 : vector<256x1xi32>
    %101 = arith.andi %96, %100 : vector<256x1xi1>
    %cst_33 = arith.constant 0.000000e+00 : f32
    %102 = vector.shape_cast %101 : vector<256x1xi1> to vector<256x1xi1>
    %103 = vector.broadcast %102 : vector<256x1xi1> to vector<256x8xi1>
    %104 = vector.broadcast %cst_33 : f32 to vector<256x8xf32>
    %105 = arith.select %103, %92, %104 : vector<256x8xi1>, vector<256x8xf32>
    %106 = arith.addf %56, %105 : vector<256x8xf32>
    %c1 = arith.constant 1 : index
    %c0_34 = arith.constant 0 : index
    %107 = vector.load %arg9[%c1, %c0_34] : memref<324x8xbf16, #tpu.memory_space<vmem>>, vector<320x8xbf16>
    %108 = arith.extf %107 : vector<320x8xbf16> to vector<320x8xf32>
    %109 = vector.extract_strided_slice %108 {offsets = [0, 0], sizes = [256, 8], strides = [1, 1]} : vector<320x8xf32> to vector<256x8xf32>
    %110 = vector.extract_strided_slice %38 {offsets = [0, 1, 0], sizes = [1, 1, 8], strides = [1, 1, 1]} : vector<5x5x8xf32> to vector<1x1x8xf32>
    %111 = vector.shape_cast %110 : vector<1x1x8xf32> to vector<8xf32>
    %112 = vector.shape_cast %111 : vector<8xf32> to vector<1x8xf32>
    %113 = vector.broadcast %112 : vector<1x8xf32> to vector<256x8xf32>
    %114 = arith.mulf %109, %113 : vector<256x8xf32>
    %115 = vector.extract_strided_slice %108 {offsets = [16, 0], sizes = [256, 8], strides = [1, 1]} : vector<320x8xf32> to vector<256x8xf32>
    %116 = vector.extract_strided_slice %38 {offsets = [1, 1, 0], sizes = [1, 1, 8], strides = [1, 1, 1]} : vector<5x5x8xf32> to vector<1x1x8xf32>
    %117 = vector.shape_cast %116 : vector<1x1x8xf32> to vector<8xf32>
    %118 = vector.shape_cast %117 : vector<8xf32> to vector<1x8xf32>
    %119 = vector.broadcast %118 : vector<1x8xf32> to vector<256x8xf32>
    %120 = arith.mulf %115, %119 : vector<256x8xf32>
    %121 = arith.addf %114, %120 : vector<256x8xf32>
    %122 = vector.extract_strided_slice %108 {offsets = [32, 0], sizes = [256, 8], strides = [1, 1]} : vector<320x8xf32> to vector<256x8xf32>
    %123 = vector.extract_strided_slice %38 {offsets = [2, 1, 0], sizes = [1, 1, 8], strides = [1, 1, 1]} : vector<5x5x8xf32> to vector<1x1x8xf32>
    %124 = vector.shape_cast %123 : vector<1x1x8xf32> to vector<8xf32>
    %125 = vector.shape_cast %124 : vector<8xf32> to vector<1x8xf32>
    %126 = vector.broadcast %125 : vector<1x8xf32> to vector<256x8xf32>
    %127 = arith.mulf %122, %126 : vector<256x8xf32>
    %128 = arith.addf %121, %127 : vector<256x8xf32>
    %129 = vector.extract_strided_slice %108 {offsets = [48, 0], sizes = [256, 8], strides = [1, 1]} : vector<320x8xf32> to vector<256x8xf32>
    %130 = vector.extract_strided_slice %38 {offsets = [3, 1, 0], sizes = [1, 1, 8], strides = [1, 1, 1]} : vector<5x5x8xf32> to vector<1x1x8xf32>
    %131 = vector.shape_cast %130 : vector<1x1x8xf32> to vector<8xf32>
    %132 = vector.shape_cast %131 : vector<8xf32> to vector<1x8xf32>
    %133 = vector.broadcast %132 : vector<1x8xf32> to vector<256x8xf32>
    %134 = arith.mulf %129, %133 : vector<256x8xf32>
    %135 = arith.addf %128, %134 : vector<256x8xf32>
    %136 = vector.extract_strided_slice %108 {offsets = [64, 0], sizes = [256, 8], strides = [1, 1]} : vector<320x8xf32> to vector<256x8xf32>
    %137 = vector.extract_strided_slice %38 {offsets = [4, 1, 0], sizes = [1, 1, 8], strides = [1, 1, 1]} : vector<5x5x8xf32> to vector<1x1x8xf32>
    %138 = vector.shape_cast %137 : vector<1x1x8xf32> to vector<8xf32>
    %139 = vector.shape_cast %138 : vector<8xf32> to vector<1x8xf32>
    %140 = vector.broadcast %139 : vector<1x8xf32> to vector<256x8xf32>
    %141 = arith.mulf %136, %140 : vector<256x8xf32>
    %142 = arith.addf %135, %141 : vector<256x8xf32>
    %c-1_i32 = arith.constant -1 : i32
    %143 = vector.broadcast %c-1_i32 : i32 to vector<256x1xi32>
    %144 = arith.addi %55, %143 : vector<256x1xi32>
    %c0_i32_35 = arith.constant 0 : i32
    %145 = vector.broadcast %c0_i32_35 : i32 to vector<256x1xi32>
    %146 = arith.cmpi sge, %144, %145 : vector<256x1xi32>
    %c-1_i32_36 = arith.constant -1 : i32
    %147 = vector.broadcast %c-1_i32_36 : i32 to vector<256x1xi32>
    %148 = arith.addi %55, %147 : vector<256x1xi32>
    %c16_i32_37 = arith.constant 16 : i32
    %149 = vector.broadcast %c16_i32_37 : i32 to vector<256x1xi32>
    %150 = arith.cmpi slt, %148, %149 : vector<256x1xi32>
    %151 = arith.andi %146, %150 : vector<256x1xi1>
    %cst_38 = arith.constant 0.000000e+00 : f32
    %152 = vector.shape_cast %151 : vector<256x1xi1> to vector<256x1xi1>
    %153 = vector.broadcast %152 : vector<256x1xi1> to vector<256x8xi1>
    %154 = vector.broadcast %cst_38 : f32 to vector<256x8xf32>
    %155 = arith.select %153, %142, %154 : vector<256x8xi1>, vector<256x8xf32>
    %156 = arith.addf %106, %155 : vector<256x8xf32>
    %c2 = arith.constant 2 : index
    %c0_39 = arith.constant 0 : index
    %157 = vector.load %arg9[%c2, %c0_39] : memref<324x8xbf16, #tpu.memory_space<vmem>>, vector<320x8xbf16>
    %158 = arith.extf %157 : vector<320x8xbf16> to vector<320x8xf32>
    %159 = vector.extract_strided_slice %158 {offsets = [0, 0], sizes = [256, 8], strides = [1, 1]} : vector<320x8xf32> to vector<256x8xf32>
    %160 = vector.extract_strided_slice %38 {offsets = [0, 2, 0], sizes = [1, 1, 8], strides = [1, 1, 1]} : vector<5x5x8xf32> to vector<1x1x8xf32>
    %161 = vector.shape_cast %160 : vector<1x1x8xf32> to vector<8xf32>
    %162 = vector.shape_cast %161 : vector<8xf32> to vector<1x8xf32>
    %163 = vector.broadcast %162 : vector<1x8xf32> to vector<256x8xf32>
    %164 = arith.mulf %159, %163 : vector<256x8xf32>
    %165 = vector.extract_strided_slice %158 {offsets = [16, 0], sizes = [256, 8], strides = [1, 1]} : vector<320x8xf32> to vector<256x8xf32>
    %166 = vector.extract_strided_slice %38 {offsets = [1, 2, 0], sizes = [1, 1, 8], strides = [1, 1, 1]} : vector<5x5x8xf32> to vector<1x1x8xf32>
    %167 = vector.shape_cast %166 : vector<1x1x8xf32> to vector<8xf32>
    %168 = vector.shape_cast %167 : vector<8xf32> to vector<1x8xf32>
    %169 = vector.broadcast %168 : vector<1x8xf32> to vector<256x8xf32>
    %170 = arith.mulf %165, %169 : vector<256x8xf32>
    %171 = arith.addf %164, %170 : vector<256x8xf32>
    %172 = vector.extract_strided_slice %158 {offsets = [32, 0], sizes = [256, 8], strides = [1, 1]} : vector<320x8xf32> to vector<256x8xf32>
    %173 = vector.extract_strided_slice %38 {offsets = [2, 2, 0], sizes = [1, 1, 8], strides = [1, 1, 1]} : vector<5x5x8xf32> to vector<1x1x8xf32>
    %174 = vector.shape_cast %173 : vector<1x1x8xf32> to vector<8xf32>
    %175 = vector.shape_cast %174 : vector<8xf32> to vector<1x8xf32>
    %176 = vector.broadcast %175 : vector<1x8xf32> to vector<256x8xf32>
    %177 = arith.mulf %172, %176 : vector<256x8xf32>
    %178 = arith.addf %171, %177 : vector<256x8xf32>
    %179 = vector.extract_strided_slice %158 {offsets = [48, 0], sizes = [256, 8], strides = [1, 1]} : vector<320x8xf32> to vector<256x8xf32>
    %180 = vector.extract_strided_slice %38 {offsets = [3, 2, 0], sizes = [1, 1, 8], strides = [1, 1, 1]} : vector<5x5x8xf32> to vector<1x1x8xf32>
    %181 = vector.shape_cast %180 : vector<1x1x8xf32> to vector<8xf32>
    %182 = vector.shape_cast %181 : vector<8xf32> to vector<1x8xf32>
    %183 = vector.broadcast %182 : vector<1x8xf32> to vector<256x8xf32>
    %184 = arith.mulf %179, %183 : vector<256x8xf32>
    %185 = arith.addf %178, %184 : vector<256x8xf32>
    %186 = vector.extract_strided_slice %158 {offsets = [64, 0], sizes = [256, 8], strides = [1, 1]} : vector<320x8xf32> to vector<256x8xf32>
    %187 = vector.extract_strided_slice %38 {offsets = [4, 2, 0], sizes = [1, 1, 8], strides = [1, 1, 1]} : vector<5x5x8xf32> to vector<1x1x8xf32>
    %188 = vector.shape_cast %187 : vector<1x1x8xf32> to vector<8xf32>
    %189 = vector.shape_cast %188 : vector<8xf32> to vector<1x8xf32>
    %190 = vector.broadcast %189 : vector<1x8xf32> to vector<256x8xf32>
    %191 = arith.mulf %186, %190 : vector<256x8xf32>
    %192 = arith.addf %185, %191 : vector<256x8xf32>
    %193 = arith.addf %156, %192 : vector<256x8xf32>
    %c3 = arith.constant 3 : index
    %c0_40 = arith.constant 0 : index
    %194 = vector.load %arg9[%c3, %c0_40] : memref<324x8xbf16, #tpu.memory_space<vmem>>, vector<320x8xbf16>
    %195 = arith.extf %194 : vector<320x8xbf16> to vector<320x8xf32>
    %196 = vector.extract_strided_slice %195 {offsets = [0, 0], sizes = [256, 8], strides = [1, 1]} : vector<320x8xf32> to vector<256x8xf32>
    %197 = vector.extract_strided_slice %38 {offsets = [0, 3, 0], sizes = [1, 1, 8], strides = [1, 1, 1]} : vector<5x5x8xf32> to vector<1x1x8xf32>
    %198 = vector.shape_cast %197 : vector<1x1x8xf32> to vector<8xf32>
    %199 = vector.shape_cast %198 : vector<8xf32> to vector<1x8xf32>
    %200 = vector.broadcast %199 : vector<1x8xf32> to vector<256x8xf32>
    %201 = arith.mulf %196, %200 : vector<256x8xf32>
    %202 = vector.extract_strided_slice %195 {offsets = [16, 0], sizes = [256, 8], strides = [1, 1]} : vector<320x8xf32> to vector<256x8xf32>
    %203 = vector.extract_strided_slice %38 {offsets = [1, 3, 0], sizes = [1, 1, 8], strides = [1, 1, 1]} : vector<5x5x8xf32> to vector<1x1x8xf32>
    %204 = vector.shape_cast %203 : vector<1x1x8xf32> to vector<8xf32>
    %205 = vector.shape_cast %204 : vector<8xf32> to vector<1x8xf32>
    %206 = vector.broadcast %205 : vector<1x8xf32> to vector<256x8xf32>
    %207 = arith.mulf %202, %206 : vector<256x8xf32>
    %208 = arith.addf %201, %207 : vector<256x8xf32>
    %209 = vector.extract_strided_slice %195 {offsets = [32, 0], sizes = [256, 8], strides = [1, 1]} : vector<320x8xf32> to vector<256x8xf32>
    %210 = vector.extract_strided_slice %38 {offsets = [2, 3, 0], sizes = [1, 1, 8], strides = [1, 1, 1]} : vector<5x5x8xf32> to vector<1x1x8xf32>
    %211 = vector.shape_cast %210 : vector<1x1x8xf32> to vector<8xf32>
    %212 = vector.shape_cast %211 : vector<8xf32> to vector<1x8xf32>
    %213 = vector.broadcast %212 : vector<1x8xf32> to vector<256x8xf32>
    %214 = arith.mulf %209, %213 : vector<256x8xf32>
    %215 = arith.addf %208, %214 : vector<256x8xf32>
    %216 = vector.extract_strided_slice %195 {offsets = [48, 0], sizes = [256, 8], strides = [1, 1]} : vector<320x8xf32> to vector<256x8xf32>
    %217 = vector.extract_strided_slice %38 {offsets = [3, 3, 0], sizes = [1, 1, 8], strides = [1, 1, 1]} : vector<5x5x8xf32> to vector<1x1x8xf32>
    %218 = vector.shape_cast %217 : vector<1x1x8xf32> to vector<8xf32>
    %219 = vector.shape_cast %218 : vector<8xf32> to vector<1x8xf32>
    %220 = vector.broadcast %219 : vector<1x8xf32> to vector<256x8xf32>
    %221 = arith.mulf %216, %220 : vector<256x8xf32>
    %222 = arith.addf %215, %221 : vector<256x8xf32>
    %223 = vector.extract_strided_slice %195 {offsets = [64, 0], sizes = [256, 8], strides = [1, 1]} : vector<320x8xf32> to vector<256x8xf32>
    %224 = vector.extract_strided_slice %38 {offsets = [4, 3, 0], sizes = [1, 1, 8], strides = [1, 1, 1]} : vector<5x5x8xf32> to vector<1x1x8xf32>
    %225 = vector.shape_cast %224 : vector<1x1x8xf32> to vector<8xf32>
    %226 = vector.shape_cast %225 : vector<8xf32> to vector<1x8xf32>
    %227 = vector.broadcast %226 : vector<1x8xf32> to vector<256x8xf32>
    %228 = arith.mulf %223, %227 : vector<256x8xf32>
    %229 = arith.addf %222, %228 : vector<256x8xf32>
    %c1_i32_41 = arith.constant 1 : i32
    %230 = vector.broadcast %c1_i32_41 : i32 to vector<256x1xi32>
    %231 = arith.addi %55, %230 : vector<256x1xi32>
    %c0_i32_42 = arith.constant 0 : i32
    %232 = vector.broadcast %c0_i32_42 : i32 to vector<256x1xi32>
    %233 = arith.cmpi sge, %231, %232 : vector<256x1xi32>
    %c1_i32_43 = arith.constant 1 : i32
    %234 = vector.broadcast %c1_i32_43 : i32 to vector<256x1xi32>
    %235 = arith.addi %55, %234 : vector<256x1xi32>
    %c16_i32_44 = arith.constant 16 : i32
    %236 = vector.broadcast %c16_i32_44 : i32 to vector<256x1xi32>
    %237 = arith.cmpi slt, %235, %236 : vector<256x1xi32>
    %238 = arith.andi %233, %237 : vector<256x1xi1>
    %cst_45 = arith.constant 0.000000e+00 : f32
    %239 = vector.shape_cast %238 : vector<256x1xi1> to vector<256x1xi1>
    %240 = vector.broadcast %239 : vector<256x1xi1> to vector<256x8xi1>
    %241 = vector.broadcast %cst_45 : f32 to vector<256x8xf32>
    %242 = arith.select %240, %229, %241 : vector<256x8xi1>, vector<256x8xf32>
    %243 = arith.addf %193, %242 : vector<256x8xf32>
    %c4 = arith.constant 4 : index
    %c0_46 = arith.constant 0 : index
    %244 = vector.load %arg9[%c4, %c0_46] : memref<324x8xbf16, #tpu.memory_space<vmem>>, vector<320x8xbf16>
    %245 = arith.extf %244 : vector<320x8xbf16> to vector<320x8xf32>
    %246 = vector.extract_strided_slice %245 {offsets = [0, 0], sizes = [256, 8], strides = [1, 1]} : vector<320x8xf32> to vector<256x8xf32>
    %247 = vector.extract_strided_slice %38 {offsets = [0, 4, 0], sizes = [1, 1, 8], strides = [1, 1, 1]} : vector<5x5x8xf32> to vector<1x1x8xf32>
    %248 = vector.shape_cast %247 : vector<1x1x8xf32> to vector<8xf32>
    %249 = vector.shape_cast %248 : vector<8xf32> to vector<1x8xf32>
    %250 = vector.broadcast %249 : vector<1x8xf32> to vector<256x8xf32>
    %251 = arith.mulf %246, %250 : vector<256x8xf32>
    %252 = vector.extract_strided_slice %245 {offsets = [16, 0], sizes = [256, 8], strides = [1, 1]} : vector<320x8xf32> to vector<256x8xf32>
    %253 = vector.extract_strided_slice %38 {offsets = [1, 4, 0], sizes = [1, 1, 8], strides = [1, 1, 1]} : vector<5x5x8xf32> to vector<1x1x8xf32>
    %254 = vector.shape_cast %253 : vector<1x1x8xf32> to vector<8xf32>
    %255 = vector.shape_cast %254 : vector<8xf32> to vector<1x8xf32>
    %256 = vector.broadcast %255 : vector<1x8xf32> to vector<256x8xf32>
    %257 = arith.mulf %252, %256 : vector<256x8xf32>
    %258 = arith.addf %251, %257 : vector<256x8xf32>
    %259 = vector.extract_strided_slice %245 {offsets = [32, 0], sizes = [256, 8], strides = [1, 1]} : vector<320x8xf32> to vector<256x8xf32>
    %260 = vector.extract_strided_slice %38 {offsets = [2, 4, 0], sizes = [1, 1, 8], strides = [1, 1, 1]} : vector<5x5x8xf32> to vector<1x1x8xf32>
    %261 = vector.shape_cast %260 : vector<1x1x8xf32> to vector<8xf32>
    %262 = vector.shape_cast %261 : vector<8xf32> to vector<1x8xf32>
    %263 = vector.broadcast %262 : vector<1x8xf32> to vector<256x8xf32>
    %264 = arith.mulf %259, %263 : vector<256x8xf32>
    %265 = arith.addf %258, %264 : vector<256x8xf32>
    %266 = vector.extract_strided_slice %245 {offsets = [48, 0], sizes = [256, 8], strides = [1, 1]} : vector<320x8xf32> to vector<256x8xf32>
    %267 = vector.extract_strided_slice %38 {offsets = [3, 4, 0], sizes = [1, 1, 8], strides = [1, 1, 1]} : vector<5x5x8xf32> to vector<1x1x8xf32>
    %268 = vector.shape_cast %267 : vector<1x1x8xf32> to vector<8xf32>
    %269 = vector.shape_cast %268 : vector<8xf32> to vector<1x8xf32>
    %270 = vector.broadcast %269 : vector<1x8xf32> to vector<256x8xf32>
    %271 = arith.mulf %266, %270 : vector<256x8xf32>
    %272 = arith.addf %265, %271 : vector<256x8xf32>
    %273 = vector.extract_strided_slice %245 {offsets = [64, 0], sizes = [256, 8], strides = [1, 1]} : vector<320x8xf32> to vector<256x8xf32>
    %274 = vector.extract_strided_slice %38 {offsets = [4, 4, 0], sizes = [1, 1, 8], strides = [1, 1, 1]} : vector<5x5x8xf32> to vector<1x1x8xf32>
    %275 = vector.shape_cast %274 : vector<1x1x8xf32> to vector<8xf32>
    %276 = vector.shape_cast %275 : vector<8xf32> to vector<1x8xf32>
    %277 = vector.broadcast %276 : vector<1x8xf32> to vector<256x8xf32>
    %278 = arith.mulf %273, %277 : vector<256x8xf32>
    %279 = arith.addf %272, %278 : vector<256x8xf32>
    %c2_i32 = arith.constant 2 : i32
    %280 = vector.broadcast %c2_i32 : i32 to vector<256x1xi32>
    %281 = arith.addi %55, %280 : vector<256x1xi32>
    %c0_i32_47 = arith.constant 0 : i32
    %282 = vector.broadcast %c0_i32_47 : i32 to vector<256x1xi32>
    %283 = arith.cmpi sge, %281, %282 : vector<256x1xi32>
    %c2_i32_48 = arith.constant 2 : i32
    %284 = vector.broadcast %c2_i32_48 : i32 to vector<256x1xi32>
    %285 = arith.addi %55, %284 : vector<256x1xi32>
    %c16_i32_49 = arith.constant 16 : i32
    %286 = vector.broadcast %c16_i32_49 : i32 to vector<256x1xi32>
    %287 = arith.cmpi slt, %285, %286 : vector<256x1xi32>
    %288 = arith.andi %283, %287 : vector<256x1xi1>
    %cst_50 = arith.constant 0.000000e+00 : f32
    %289 = vector.shape_cast %288 : vector<256x1xi1> to vector<256x1xi1>
    %290 = vector.broadcast %289 : vector<256x1xi1> to vector<256x8xi1>
    %291 = vector.broadcast %cst_50 : f32 to vector<256x8xf32>
    %292 = arith.select %290, %279, %291 : vector<256x8xi1>, vector<256x8xf32>
    %293 = arith.addf %243, %292 : vector<256x8xf32>
    %c0_51 = arith.constant 0 : index
    %c0_52 = arith.constant 0 : index
    %294 = vector.load %arg7[%c0_51, %c0_52] : memref<1x8xf32, #tpu.memory_space<vmem>>, vector<1x8xf32>
    %295 = vector.broadcast %294 : vector<1x8xf32> to vector<256x8xf32>
    %296 = arith.addf %293, %295 : vector<256x8xf32>
    %297 = arith.truncf %296 : vector<256x8xf32> to vector<256x8xbf16>
    %c0_53 = arith.constant 0 : index
    %c0_54 = arith.constant 0 : index
    %c0_55 = arith.constant 0 : index
    %298 = vector.load %arg8[%c0_53, %c0_54, %c0_55] : memref<1x256x8xbf16, #tpu.memory_space<vmem>>, vector<1x256x8xbf16>
    %299 = vector.shape_cast %298 : vector<1x256x8xbf16> to vector<256x8xbf16>
    %300 = vector.shape_cast %297 : vector<256x8xbf16> to vector<1x256x8xbf16>
    tpu.vector_store %arg8[%c0_53, %c0_54, %c0_55], %300 {strides = array<i32>} : memref<1x256x8xbf16, #tpu.memory_space<vmem>>, vector<1x256x8xbf16>,
    return
  }
  func.func @transform_0(%arg0: i32) -> (i32, i32, i32) {
    %c0_i32 = arith.constant 0 : i32
    %c0_i32_0 = arith.constant 0 : i32
    %c0_i32_1 = arith.constant 0 : i32
    return %arg0, %c0_i32, %c0_i32_0 : i32, i32, i32
  }
  func.func @transform_1(%arg0: i32) -> (i32, i32) {
    %c0_i32 = arith.constant 0 : i32
    %c0_i32_0 = arith.constant 0 : i32
    %c0_i32_1 = arith.constant 0 : i32
    return %c0_i32, %c0_i32_0 : i32, i32
  }
  func.func @transform_2(%arg0: i32) -> (i32, i32) {
    %c0_i32 = arith.constant 0 : i32
    %c0_i32_0 = arith.constant 0 : i32
    %c0_i32_1 = arith.constant 0 : i32
    return %c0_i32, %c0_i32_0 : i32, i32
  }
  func.func @transform_3(%arg0: i32) -> (i32, i32) {
    %c0_i32 = arith.constant 0 : i32
    %c0_i32_0 = arith.constant 0 : i32
    %c0_i32_1 = arith.constant 0 : i32
    return %c0_i32, %c0_i32_0 : i32, i32
  }
  func.func @transform_4(%arg0: i32) -> (i32, i32) {
    %c0_i32 = arith.constant 0 : i32
    %c0_i32_0 = arith.constant 0 : i32
    %c0_i32_1 = arith.constant 0 : i32
    return %c0_i32, %c0_i32_0 : i32, i32
  }
  func.func @transform_5(%arg0: i32) -> (i32, i32, i32) {
    %c0_i32 = arith.constant 0 : i32
    %c0_i32_0 = arith.constant 0 : i32
    %c0_i32_1 = arith.constant 0 : i32
    %c0_i32_2 = arith.constant 0 : i32
    return %c0_i32, %c0_i32_0, %c0_i32_1 : i32, i32, i32
  }
  func.func @transform_6(%arg0: i32) -> (i32, i32) {
    %c0_i32 = arith.constant 0 : i32
    %c0_i32_0 = arith.constant 0 : i32
    %c0_i32_1 = arith.constant 0 : i32
    return %c0_i32, %c0_i32_0 : i32, i32
  }
  func.func @transform_7(%arg0: i32) -> (i32, i32, i32) {
    %c0_i32 = arith.constant 0 : i32
    %c0_i32_0 = arith.constant 0 : i32
    %c0_i32_1 = arith.constant 0 : i32
    return %arg0, %c0_i32, %c0_i32_0 : i32, i32, i32
  }
}

</mosaic_0001>

<llo_original>
// kernel: cblock_forward_nhwc.3
$region0: #{cblock_forward_nhwc.3}
  #allocation0 [shape = 'u32[]', space=smem, size = 0x4, offset = 0x4, fixed_abs, tag = 'smem constant byte address 0x4 - core index']
  #allocation1 [shape = 'u32[144,128]{1,0:T(1,128)}', space=vmem, size = 0x12000, scoped, tag = 'internal scratch']
  %s0 = inlined_call_operand.vmem [shape: f32[2,256,8], index: 0, kind: input, shape index: {}]
  %s1 = inlined_call_operand.vmem [shape: bf16[2,256,8], index: 1, kind: input, shape index: {}]
  %s2 = inlined_call_operand.vmem [shape: bf16[8,8], index: 2, kind: input, shape index: {}]
  %s3 = inlined_call_operand.vmem [shape: f32[1,8], index: 3, kind: input, shape index: {}]
  %s4 = inlined_call_operand.vmem [shape: f32[1,8], index: 4, kind: input, shape index: {}]
  %s5 = inlined_call_operand.vmem [shape: f32[1,8], index: 5, kind: input, shape index: {}]
  %s6 = inlined_call_operand.vmem [shape: bf16[8,32], index: 6, kind: input, shape index: {}]
  %s7 = inlined_call_operand.vmem [shape: f32[1,32], index: 7, kind: input, shape index: {}]
  %s8 = inlined_call_operand.vmem [shape: bf16[32,8], index: 8, kind: input, shape index: {}]
  %s9 = inlined_call_operand.vmem [shape: f32[1,8], index: 9, kind: input, shape index: {}]
  %s10 = inlined_call_operand.vmem [shape: f32[2,256,8], index: 10, kind: output, shape index: {}]
  %s11 = sld [smem:[#allocation0]]
  $region73: #{cblock_forward_nhwc.3} parent=0
    _
  %s13 = ssub.s32 1, %s11
  %s14 = scalar_select 0, %s13, %s11
  loop: start=0, step=1, limit=10
  $region2: #{cblock_forward_nhwc.3} parent=0 // loop_pre_header
    _
  $region3: #{cblock_forward_nhwc.3} parent=0 // loop_header
    %s16 = sphi 0, %s20
    %p17 = scmp.ge.s32.totalorder %s16, 10
    %s23 = sphi 0, %s35
    %s24 = sphi 0, %s31
    %s25 = sphi 0, %s23
    %s26 = sphi 0, %s24
    %s27 = sphi 0, %s25
    %s28 = sphi 0, %s26
    %s40 = sphi 0, %s42
    %s43 = sphi 0, %s40
    %s44 = sphi 0, %s43
    %s60 = sphi 0, %s44
    %s68 = sphi 0, %s70
    %s71 = sphi 0, %s68
    %s72 = sphi 0, %s71
    %s88 = sphi 0, %s72
    %s92 = sphi 0, %s92
    %s94 = sphi 0, %s92
    %s95 = sphi 0, %s94
    %s109 = sphi 0, %s95
    %s113 = sphi 0, %s113
    %s115 = sphi 0, %s113
    %s116 = sphi 0, %s115
    %s130 = sphi 0, %s116
    %s134 = sphi 0, %s134
    %s136 = sphi 0, %s134
    %s137 = sphi 0, %s136
    %s151 = sphi 0, %s137
    %s155 = sphi 0, %s155
    %s157 = sphi 0, %s155
    %s158 = sphi 0, %s157
    %s172 = sphi 0, %s158
    %s176 = sphi 0, %s176
    %s178 = sphi 0, %s176
    %s179 = sphi 0, %s178
    %s193 = sphi 0, %s179
    %s197 = sphi 0, %s197
    %s199 = sphi 0, %s197
    %s200 = sphi 0, %s199
    %s214 = sphi 0, %s200
    %s218 = sphi 0, %s218
    %s220 = sphi 0, %s218
    %s221 = sphi 0, %s220
    %s235 = sphi 0, %s221
    %s239 = sphi 0, %s239
    %s241 = sphi 0, %s239
    %s242 = sphi 0, %s241
    %s256 = sphi 0, %s242
    %s264 = sphi 0, %s266
    %s267 = sphi 0, %s264
    %s268 = sphi 0, %s267
    %s284 = sphi 0, %s268
  $region4: #{cblock_forward_nhwc.3} parent=0 // loop_header_branch
    %19 = sbr.rel (%p17) target = $region8
  $region5: #{cblock_forward_nhwc.3} parent=0 // loop_body
    %s21 = ssub.s32 %s16, 1
    %s22 = ssub.s32 %s16, 2
    %s29 = sadd.s32 1, %s24
    %p30 = scmp.ge.s32.totalorder %s29, 4
    %s31 = scalar_select %p30, 0, %s29
    %s32 = sadd.s32 1, %s23
    %s33 = scalar_select %p30, %s32, %s23
    %p34 = scmp.ge.s32.totalorder %s33, 2
    %s35 = scalar_select %p34, 0, %s33
    %s36 = ssub.s32 %s23, %s35
    %s37 = ssub.s32 %s24, %s31
    %s38 = sor.u32 %s36, %s37
    %p39 = scmp.eq.s32.totalorder %s38, 0
    %s41 = sadd.s32 %s40, 1
    %s42 = scalar_select %p39, %s40, %s41
    %p45 = pneg %p39
    %p46 = scmp.eq.s32.totalorder %s16, 7
    %p47 = por %p45, %p46
    %p48 = scmp.ne.s32.totalorder %s40, %s43
    %p49 = scmp.eq.s32.totalorder %s16, 0
    %p50 = por %p48, %p49
    %p51 = scmp.ne.s32.totalorder %s40, %s43
    %p52 = scmp.eq.s32.totalorder %s21, 7
    %p53 = por %p51, %p52
    %p54 = scmp.ne.s32.totalorder %s43, %s44
    %p55 = scmp.eq.s32.totalorder %s21, 0
    %p56 = por %p54, %p55
    %p57 = scmp.ne.s32.totalorder %s43, %s44
    %p58 = scmp.eq.s32.totalorder %s22, 7
    %p59 = por %p57, %p58
    %p61 = scmp.ne.s32.totalorder %s44, %s60
    %p62 = scmp.eq.s32.totalorder %s22, 0
    %p63 = por %p61, %p62
    %s64 = ssub.s32 %s23, %s35
    %s65 = ssub.s32 %s24, %s31
    %s66 = sor.u32 %s64, %s65
    %p67 = scmp.eq.s32.totalorder %s66, 0
    %s69 = sadd.s32 %s68, 1
    %s70 = scalar_select %p67, %s68, %s69
    %p73 = pneg %p67
    %p74 = scmp.eq.s32.totalorder %s16, 7
    %p75 = por %p73, %p74
    %p76 = scmp.ne.s32.totalorder %s68, %s71
    %p77 = scmp.eq.s32.totalorder %s16, 0
    %p78 = por %p76, %p77
    %p79 = scmp.ne.s32.totalorder %s68, %s71
    %p80 = scmp.eq.s32.totalorder %s21, 7
    %p81 = por %p79, %p80
    %p82 = scmp.ne.s32.totalorder %s71, %s72
    %p83 = scmp.eq.s32.totalorder %s21, 0
    %p84 = por %p82, %p83
    %p85 = scmp.ne.s32.totalorder %s71, %s72
    %p86 = scmp.eq.s32.totalorder %s22, 7
    %p87 = por %p85, %p86
    %p89 = scmp.ne.s32.totalorder %s72, %s88
    %p90 = scmp.eq.s32.totalorder %s22, 0
    %p91 = por %p89, %p90
    %s93 = sadd.s32 %s92, 1
    %p96 = scmp.eq.s32.totalorder %s16, 7
    %p97 = scmp.ne.s32.totalorder %s92, %s94
    %p98 = scmp.eq.s32.totalorder %s16, 0
    %p99 = por %p97, %p98
    %p100 = scmp.ne.s32.totalorder %s92, %s94
    %p101 = scmp.eq.s32.totalorder %s21, 7
    %p102 = por %p100, %p101
    %p103 = scmp.ne.s32.totalorder %s94, %s95
    %p104 = scmp.eq.s32.totalorder %s21, 0
    %p105 = por %p103, %p104
    %p106 = scmp.ne.s32.totalorder %s94, %s95
    %p107 = scmp.eq.s32.totalorder %s22, 7
    %p108 = por %p106, %p107
    %p110 = scmp.ne.s32.totalorder %s95, %s109
    %p111 = scmp.eq.s32.totalorder %s22, 0
    %p112 = por %p110, %p111
    %s114 = sadd.s32 %s113, 1
    %p117 = scmp.eq.s32.totalorder %s16, 7
    %p118 = scmp.ne.s32.totalorder %s113, %s115
    %p119 = scmp.eq.s32.totalorder %s16, 0
    %p120 = por %p118, %p119
    %p121 = scmp.ne.s32.totalorder %s113, %s115
    %p122 = scmp.eq.s32.totalorder %s21, 7
    %p123 = por %p121, %p122
    %p124 = scmp.ne.s32.totalorder %s115, %s116
    %p125 = scmp.eq.s32.totalorder %s21, 0
    %p126 = por %p124, %p125
    %p127 = scmp.ne.s32.totalorder %s115, %s116
    %p128 = scmp.eq.s32.totalorder %s22, 7
    %p129 = por %p127, %p128
    %p131 = scmp.ne.s32.totalorder %s116, %s130
    %p132 = scmp.eq.s32.totalorder %s22, 0
    %p133 = por %p131, %p132
    %s135 = sadd.s32 %s134, 1
    %p138 = scmp.eq.s32.totalorder %s16, 7
    %p139 = scmp.ne.s32.totalorder %s134, %s136
    %p140 = scmp.eq.s32.totalorder %s16, 0
    %p141 = por %p139, %p140
    %p142 = scmp.ne.s32.totalorder %s134, %s136
    %p143 = scmp.eq.s32.totalorder %s21, 7
    %p144 = por %p142, %p143
    %p145 = scmp.ne.s32.totalorder %s136, %s137
    %p146 = scmp.eq.s32.totalorder %s21, 0
    %p147 = por %p145, %p146
    %p148 = scmp.ne.s32.totalorder %s136, %s137
    %p149 = scmp.eq.s32.totalorder %s22, 7
    %p150 = por %p148, %p149
    %p152 = scmp.ne.s32.totalorder %s137, %s151
    %p153 = scmp.eq.s32.totalorder %s22, 0
    %p154 = por %p152, %p153
    %s156 = sadd.s32 %s155, 1
    %p159 = scmp.eq.s32.totalorder %s16, 7
    %p160 = scmp.ne.s32.totalorder %s155, %s157
    %p161 = scmp.eq.s32.totalorder %s16, 0
    %p162 = por %p160, %p161
    %p163 = scmp.ne.s32.totalorder %s155, %s157
    %p164 = scmp.eq.s32.totalorder %s21, 7
    %p165 = por %p163, %p164
    %p166 = scmp.ne.s32.totalorder %s157, %s158
    %p167 = scmp.eq.s32.totalorder %s21, 0
    %p168 = por %p166, %p167
    %p169 = scmp.ne.s32.totalorder %s157, %s158
    %p170 = scmp.eq.s32.totalorder %s22, 7
    %p171 = por %p169, %p170
    %p173 = scmp.ne.s32.totalorder %s158, %s172
    %p174 = scmp.eq.s32.totalorder %s22, 0
    %p175 = por %p173, %p174
    %s177 = sadd.s32 %s176, 1
    %p180 = scmp.eq.s32.totalorder %s16, 7
    %p181 = scmp.ne.s32.totalorder %s176, %s178
    %p182 = scmp.eq.s32.totalorder %s16, 0
    %p183 = por %p181, %p182
    %p184 = scmp.ne.s32.totalorder %s176, %s178
    %p185 = scmp.eq.s32.totalorder %s21, 7
    %p186 = por %p184, %p185
    %p187 = scmp.ne.s32.totalorder %s178, %s179
    %p188 = scmp.eq.s32.totalorder %s21, 0
    %p189 = por %p187, %p188
    %p190 = scmp.ne.s32.totalorder %s178, %s179
    %p191 = scmp.eq.s32.totalorder %s22, 7
    %p192 = por %p190, %p191
    %p194 = scmp.ne.s32.totalorder %s179, %s193
    %p195 = scmp.eq.s32.totalorder %s22, 0
    %p196 = por %p194, %p195
    %s198 = sadd.s32 %s197, 1
    %p201 = scmp.eq.s32.totalorder %s16, 7
    %p202 = scmp.ne.s32.totalorder %s197, %s199
    %p203 = scmp.eq.s32.totalorder %s16, 0
    %p204 = por %p202, %p203
    %p205 = scmp.ne.s32.totalorder %s197, %s199
    %p206 = scmp.eq.s32.totalorder %s21, 7
    %p207 = por %p205, %p206
    %p208 = scmp.ne.s32.totalorder %s199, %s200
    %p209 = scmp.eq.s32.totalorder %s21, 0
    %p210 = por %p208, %p209
    %p211 = scmp.ne.s32.totalorder %s199, %s200
    %p212 = scmp.eq.s32.totalorder %s22, 7
    %p213 = por %p211, %p212
    %p215 = scmp.ne.s32.totalorder %s200, %s214
    %p216 = scmp.eq.s32.totalorder %s22, 0
    %p217 = por %p215, %p216
    %s219 = sadd.s32 %s218, 1
    %p222 = scmp.eq.s32.totalorder %s16, 7
    %p223 = scmp.ne.s32.totalorder %s218, %s220
    %p224 = scmp.eq.s32.totalorder %s16, 0
    %p225 = por %p223, %p224
    %p226 = scmp.ne.s32.totalorder %s218, %s220
    %p227 = scmp.eq.s32.totalorder %s21, 7
    %p228 = por %p226, %p227
    %p229 = scmp.ne.s32.totalorder %s220, %s221
    %p230 = scmp.eq.s32.totalorder %s21, 0
    %p231 = por %p229, %p230
    %p232 = scmp.ne.s32.totalorder %s220, %s221
    %p233 = scmp.eq.s32.totalorder %s22, 7
    %p234 = por %p232, %p233
    %p236 = scmp.ne.s32.totalorder %s221, %s235
    %p237 = scmp.eq.s32.totalorder %s22, 0
    %p238 = por %p236, %p237
    %s240 = sadd.s32 %s239, 1
    %p243 = scmp.eq.s32.totalorder %s16, 7
    %p244 = scmp.ne.s32.totalorder %s239, %s241
    %p245 = scmp.eq.s32.totalorder %s16, 0
    %p246 = por %p244, %p245
    %p247 = scmp.ne.s32.totalorder %s239, %s241
    %p248 = scmp.eq.s32.totalorder %s21, 7
    %p249 = por %p247, %p248
    %p250 = scmp.ne.s32.totalorder %s241, %s242
    %p251 = scmp.eq.s32.totalorder %s21, 0
    %p252 = por %p250, %p251
    %p253 = scmp.ne.s32.totalorder %s241, %s242
    %p254 = scmp.eq.s32.totalorder %s22, 7
    %p255 = por %p253, %p254
    %p257 = scmp.ne.s32.totalorder %s242, %s256
    %p258 = scmp.eq.s32.totalorder %s22, 0
    %p259 = por %p257, %p258
    %s260 = ssub.s32 %s23, %s35
    %s261 = ssub.s32 %s24, %s31
    %s262 = sor.u32 %s260, %s261
    %p263 = scmp.eq.s32.totalorder %s262, 0
    %s265 = sadd.s32 %s264, 1
    %s266 = scalar_select %p263, %s264, %s265
    %p269 = pneg %p263
    %p270 = scmp.eq.s32.totalorder %s16, 7
    %p271 = por %p269, %p270
    %p272 = scmp.ne.s32.totalorder %s264, %s267
    %p273 = scmp.eq.s32.totalorder %s16, 0
    %p274 = por %p272, %p273
    %p275 = scmp.ne.s32.totalorder %s264, %s267
    %p276 = scmp.eq.s32.totalorder %s21, 7
    %p277 = por %p275, %p276
    %p278 = scmp.ne.s32.totalorder %s267, %s268
    %p279 = scmp.eq.s32.totalorder %s21, 0
    %p280 = por %p278, %p279
    %p281 = scmp.ne.s32.totalorder %s267, %s268
    %p282 = scmp.eq.s32.totalorder %s22, 7
    %p283 = por %p281, %p282
    %p285 = scmp.ne.s32.totalorder %s268, %s284
    %p286 = scmp.eq.s32.totalorder %s22, 0
    %p287 = por %p285, %p286
    %p288 = scmp.le.s32.totalorder 1, %s16
    %p289 = scmp.lt.s32.totalorder %s16, 9
    %p290 = pnand %p288, %p289
    %p291 = pneg %p290
    // Predicated region
    $region9: #{cblock_forward_nhwc.3} parent=5 // pred_check
      _
    $region10: #{cblock_forward_nhwc.3} parent=5 // pred_check_branch
      %293 = sbr.rel (%p290) target = $region12
    $region11: #{cblock_forward_nhwc.3} parent=5 // pred_region
      %s294 = ssub.s32 %s16, 1
      // Predicated region
      $region13: #{cblock_forward_nhwc.3} parent=11 // pred_check
        %p295 = pneg %p105
      $region14: #{cblock_forward_nhwc.3} parent=11 // pred_check_branch
        %297 = sbr.rel (%p295) target = $region16
      $region15: #{cblock_forward_nhwc.3} parent=11 // pred_region
        _
      $region16: #{cblock_forward_nhwc.3} parent=11 // pred_fallthru
        _
      // Predicated region
      $region17: #{cblock_forward_nhwc.3} parent=11 // pred_check
        %p298 = pneg %p126
      $region18: #{cblock_forward_nhwc.3} parent=11 // pred_check_branch
        %300 = sbr.rel (%p298) target = $region20
      $region19: #{cblock_forward_nhwc.3} parent=11 // pred_region
        _
      $region20: #{cblock_forward_nhwc.3} parent=11 // pred_fallthru
        _
      // Predicated region
      $region21: #{cblock_forward_nhwc.3} parent=11 // pred_check
        %p301 = pneg %p147
      $region22: #{cblock_forward_nhwc.3} parent=11 // pred_check_branch
        %303 = sbr.rel (%p301) target = $region24
      $region23: #{cblock_forward_nhwc.3} parent=11 // pred_region
        _
      $region24: #{cblock_forward_nhwc.3} parent=11 // pred_fallthru
        _
      // Predicated region
      $region25: #{cblock_forward_nhwc.3} parent=11 // pred_check
        %p304 = pneg %p168
      $region26: #{cblock_forward_nhwc.3} parent=11 // pred_check_branch
        %306 = sbr.rel (%p304) target = $region28
      $region27: #{cblock_forward_nhwc.3} parent=11 // pred_region
        _
      $region28: #{cblock_forward_nhwc.3} parent=11 // pred_fallthru
        _
      // Predicated region
      $region29: #{cblock_forward_nhwc.3} parent=11 // pred_check
        %p307 = pneg %p189
      $region30: #{cblock_forward_nhwc.3} parent=11 // pred_check_branch
        %309 = sbr.rel (%p307) target = $region32
      $region31: #{cblock_forward_nhwc.3} parent=11 // pred_region
        _
      $region32: #{cblock_forward_nhwc.3} parent=11 // pred_fallthru
        _
      // Predicated region
      $region33: #{cblock_forward_nhwc.3} parent=11 // pred_check
        %p310 = pneg %p210
      $region34: #{cblock_forward_nhwc.3} parent=11 // pred_check_branch
        %312 = sbr.rel (%p310) target = $region36
      $region35: #{cblock_forward_nhwc.3} parent=11 // pred_region
        _
      $region36: #{cblock_forward_nhwc.3} parent=11 // pred_fallthru
        _
      // Predicated region
      $region37: #{cblock_forward_nhwc.3} parent=11 // pred_check
        %p313 = pneg %p231
      $region38: #{cblock_forward_nhwc.3} parent=11 // pred_check_branch
        %315 = sbr.rel (%p313) target = $region40
      $region39: #{cblock_forward_nhwc.3} parent=11 // pred_region
        _
      $region40: #{cblock_forward_nhwc.3} parent=11 // pred_fallthru
        _
      // Predicated region
      $region41: #{cblock_forward_nhwc.3} parent=11 // pred_check
        %p316 = pneg %p252
      $region42: #{cblock_forward_nhwc.3} parent=11 // pred_check_branch
        %318 = sbr.rel (%p316) target = $region44
      $region43: #{cblock_forward_nhwc.3} parent=11 // pred_region
        _
      $region44: #{cblock_forward_nhwc.3} parent=11 // pred_fallthru
        _
    $region12: #{cblock_forward_nhwc.3} parent=5 // pred_fallthru
      _
    %p319 = scmp.lt.s32.totalorder %s16, 8
    // Predicated region
    $region45: #{cblock_forward_nhwc.3} parent=5 // pred_check
      %p320 = pneg %p319
    $region46: #{cblock_forward_nhwc.3} parent=5 // pred_check_branch
      %322 = sbr.rel (%p320) target = $region48
    $region47: #{cblock_forward_nhwc.3} parent=5 // pred_region
      // Predicated region
      $region49: #{cblock_forward_nhwc.3} parent=47 // pred_check
        %p323 = pneg %p50
      $region50: #{cblock_forward_nhwc.3} parent=47 // pred_check_branch
        %325 = sbr.rel (%p323) target = $region52
      $region51: #{cblock_forward_nhwc.3} parent=47 // pred_region
        %s326 = smul.u32 8, %s24
        %p327 = scmp.lt.s32.totalorder %s23, 1
        %s328 = scalar_select %p327, %s23, 1
        %p329 = scmp.lt.s32.totalorder %s326, 31
        %s330 = scalar_select %p329, %s326, 31
        %s331 = smul.addr %s328, 32
        %s332 = sadd.s32 %s330, %s331
        %s333 = smul.addr %s332, 8
        %s334 = scalar_lea.vmem %s0, %s333
        %s335 = smul.u32 8, %s24
      $region52: #{cblock_forward_nhwc.3} parent=47 // pred_fallthru
        _
      // Predicated region
      $region53: #{cblock_forward_nhwc.3} parent=47 // pred_check
        %p336 = pneg %p78
      $region54: #{cblock_forward_nhwc.3} parent=47 // pred_check_branch
        %338 = sbr.rel (%p336) target = $region56
      $region55: #{cblock_forward_nhwc.3} parent=47 // pred_region
        %s339 = smul.u32 8, %s24
        %p340 = scmp.lt.s32.totalorder %s23, 1
        %s341 = scalar_select %p340, %s23, 1
        %p342 = scmp.lt.s32.totalorder %s339, 31
        %s343 = scalar_select %p342, %s339, 31
        %s344 = smul.addr %s341, 32
        %s345 = sadd.s32 %s343, %s344
        %s346 = smul.addr %s345, 4
        %s347 = scalar_lea.vmem %s1, %s346
        %s348 = smul.u32 8, %s24
      $region56: #{cblock_forward_nhwc.3} parent=47 // pred_fallthru
        _
    $region48: #{cblock_forward_nhwc.3} parent=5 // pred_fallthru
      _
    %p349 = scmp.le.s32.totalorder 1, %s16
    %p350 = scmp.lt.s32.totalorder %s16, 9
    %p351 = pnand %p349, %p350
    %p352 = pneg %p351
    // Predicated region
    $region57: #{cblock_forward_nhwc.3} parent=5 // pred_check
      _
    $region58: #{cblock_forward_nhwc.3} parent=5 // pred_check_branch
      %354 = sbr.rel (%p351) target = $region60
    $region59: #{cblock_forward_nhwc.3} parent=5 // pred_region
      %s355 = ssub.s32 %s16, 1
      %s356 = smul.u32 8, %s26
      %p357 = scmp.lt.s32.totalorder %s25, 1
      %s358 = scalar_select %p357, %s25, 1
      %p359 = scmp.lt.s32.totalorder %s356, 31
      %s360 = scalar_select %p359, %s356, 31
      %s361 = smul.addr %s358, 32
      %s362 = sadd.s32 %s360, %s361
      %s363 = smul.addr %s362, 8
      %s364 = scalar_lea.vmem %s0, %s363
      %p365 = pneg %p56
      %p366 = pneg %p53
      %s367 = smul.u32 8, %s26
      %p368 = scmp.lt.s32.totalorder %s25, 1
      %s369 = scalar_select %p368, %s25, 1
      %p370 = scmp.lt.s32.totalorder %s367, 31
      %s371 = scalar_select %p370, %s367, 31
      %s372 = smul.addr %s369, 32
      %s373 = sadd.s32 %s371, %s372
      %s374 = smul.addr %s373, 4
      %s375 = scalar_lea.vmem %s1, %s374
      %p376 = pneg %p84
      %p377 = pneg %p81
      %p378 = pneg %p105
      %p379 = pneg %p102
      %p380 = pneg %p126
      %p381 = pneg %p123
      %p382 = pneg %p147
      %p383 = pneg %p144
      %p384 = pneg %p168
      %p385 = pneg %p165
      %p386 = pneg %p189
      %p387 = pneg %p186
      %p388 = pneg %p210
      %p389 = pneg %p207
      %p390 = pneg %p231
      %p391 = pneg %p228
      %p392 = pneg %p252
      %p393 = pneg %p249
      %p394 = pneg %p280
      %p395 = pneg %p277
      %s396 = smul.u32 8, %s26
      %p397 = scmp.lt.s32.totalorder %s25, 1
      %s398 = scalar_select %p397, %s25, 1
      %p399 = scmp.lt.s32.totalorder %s396, 31
      %s400 = scalar_select %p399, %s396, 31
      %s401 = smul.addr %s398, 32
      %s402 = sadd.s32 %s400, %s401
      %s403 = smul.addr %s402, 8
      %s404 = scalar_lea.vmem %s10, %s403
      %s405 = smul.u32 8, %s26
      %p406 = scmp.lt.s32.totalorder %s25, 1
      %s407 = scalar_select %p406, %s25, 1
      %p408 = scmp.lt.s32.totalorder %s405, 31
      %s409 = scalar_select %p408, %s405, 31
      %s410 = smul.addr %s407, 32
      %s411 = sadd.s32 %s409, %s410
      %s412 = smul.addr %s411, 8
      %s413 = scalar_lea.vmem %s0, %s412
      %s414 = smul.u32 8, %s26
      %s415 = smul.u32 8, %s26
      %p416 = scmp.lt.s32.totalorder %s25, 1
      %s417 = scalar_select %p416, %s25, 1
      %p418 = scmp.lt.s32.totalorder %s415, 31
      %s419 = scalar_select %p418, %s415, 31
      %s420 = smul.addr %s417, 32
      %s421 = sadd.s32 %s419, %s420
      %s422 = smul.addr %s421, 4
      %s423 = scalar_lea.vmem %s1, %s422
      %s424 = smul.u32 8, %s26
      %s425 = smul.u32 8, %s26
      %p426 = scmp.lt.s32.totalorder %s25, 1
      %s427 = scalar_select %p426, %s25, 1
      %p428 = scmp.lt.s32.totalorder %s425, 31
      %s429 = scalar_select %p428, %s425, 31
      %s430 = smul.addr %s427, 32
      %s431 = sadd.s32 %s429, %s430
      %s432 = smul.addr %s431, 8
      %s433 = scalar_lea.vmem %s10, %s432
      %s434 = smul.u32 8, %s26
      %v436 = vld [vmem:[%s413] sm:$0xff]
      %v437 = vld [vmem:[%s413 + $0x8] sm:$0xff]
      %v438 = vld [vmem:[%s413 + $0x10] sm:$0xff]
      %v439 = vld [vmem:[%s413 + $0x18] sm:$0xff]
      %v440 = vld [vmem:[%s413 + $0x20] sm:$0xff]
      %v441 = vld [vmem:[%s413 + $0x28] sm:$0xff]
      %v442 = vld [vmem:[%s413 + $0x30] sm:$0xff]
      %v443 = vld [vmem:[%s413 + $0x38] sm:$0xff]
      %v444 = vld [vmem:[%s423] sm:$0xf]
      %v445 = vld [vmem:[%s423 + $0x4] sm:$0xf]
      %v446 = vld [vmem:[%s423 + $0x8] sm:$0xf]
      %v447 = vld [vmem:[%s423 + $0xc] sm:$0xf]
      %v448 = vld [vmem:[%s423 + $0x10] sm:$0xf]
      %v449 = vld [vmem:[%s423 + $0x14] sm:$0xf]
      %v450 = vld [vmem:[%s423 + $0x18] sm:$0xf]
      %v451 = vld [vmem:[%s423 + $0x1c] sm:$0xf]
      %v452 = vld [vmem:[%s2] sm:$0xf]
      %v461 = vunpack.c.l.b16 %v444
      %v462 = vunpack.c.l.b16 %v445
      %v463 = vunpack.c.l.b16 %v446
      %v464 = vunpack.c.l.b16 %v447
      %v465 = vunpack.c.l.b16 %v448
      %v466 = vunpack.c.l.b16 %v449
      %v467 = vunpack.c.l.b16 %v450
      %v468 = vunpack.c.l.b16 %v451
      %v469 = vpack.c.b16 %v462, %v461
      %v470 = vpack.c.b16 %v464, %v463
      %v471 = vpack.c.b16 %v466, %v465
      %v472 = vpack.c.b16 %v468, %v467
      %vm473 = vcmask 64512
      %v475 = vsel %vm473, %v469, 0
      %v478 = vsel %vm473, %v470, 0
      %v481 = vsel %vm473, %v471, 0
      %v484 = vsel %vm473, %v472, 0
      %vm486 = vcmask 1043456
      %v488 = vsel %vm486, %v452, 0
      %490 = vmatprep.subr.bf16.mxu0 0
      %491 = vmatpush1.bf16.msra.mxu0 %v488
      %492 = vmatprep.subr.bf16.mxu0 0
      %493 = vmatpush1.bf16.msra.mxu0 0
      %494 = vmatprep.subr.bf16.mxu0 0
      %495 = vmatpush1.bf16.msra.mxu0 0
      %496 = vmatprep.subr.bf16.mxu0 0
      %497 = vmatpush1.bf16.msra.mxu0 0
      %498 = vmatprep.subr.bf16.mxu0 0
      %499 = vmatpush1.bf16.msra.mxu0 0
      %500 = vmatprep.subr.bf16.mxu0 0
      %501 = vmatpush1.bf16.msra.mxu0 0
      %502 = vmatprep.subr.bf16.mxu0 0
      %503 = vmatpush1.bf16.msra.mxu0 0
      %504 = vmatprep.subr.bf16.mxu0 0
      %505 = vmatpush1.bf16.msra.mxu0 0
      %506 = vmatprep.subr.bf16.mxu0 0
      %507 = vmatpush1.bf16.msra.mxu0 0
      %508 = vmatprep.subr.bf16.mxu0 0
      %509 = vmatpush1.bf16.msra.mxu0 0
      %510 = vmatprep.subr.bf16.mxu0 0
      %511 = vmatpush1.bf16.msra.mxu0 0
      %512 = vmatprep.subr.bf16.mxu0 0
      %513 = vmatpush1.bf16.msra.mxu0 0
      %514 = vmatprep.subr.bf16.mxu0 0
      %515 = vmatpush1.bf16.msra.mxu0 0
      %516 = vmatprep.subr.bf16.mxu0 0
      %517 = vmatpush1.bf16.msra.mxu0 0
      %518 = vmatprep.subr.bf16.mxu0 0
      %519 = vmatpush1.bf16.msra.mxu0 0
      %520 = vmatprep.subr.bf16.mxu0 0
      %521 = vmatpush1.bf16.msra.mxu0 0
      %522 = vmatprep.mubr.bf16.mxu0 0
      %523 = vmatmul.mubr.bf16.gmra.mrb[0].mxu0 %v475
      %v524 = vpop.f32.mrb[0].mxu0
      %v525 = vadd.f32 0.0, %v524
      %v526 = vpop.f32.mrb[0].mxu0
      %v527 = vpop.f32.mrb[0].mxu0
      %v528 = vadd.f32 0.0, %v527
      %v529 = vpop.f32.mrb[0].mxu0
      %530 = vmatprep.mubr.bf16.mxu0 0
      %531 = vmatmul.mubr.bf16.gmra.mrb[0].mxu0 %v478
      %v532 = vpop.f32.mrb[0].mxu0
      %v533 = vadd.f32 0.0, %v532
      %v534 = vpop.f32.mrb[0].mxu0
      %v535 = vpop.f32.mrb[0].mxu0
      %v536 = vadd.f32 0.0, %v535
      %v537 = vpop.f32.mrb[0].mxu0
      %538 = vmatprep.mubr.bf16.mxu0 0
      %539 = vmatmul.mubr.bf16.gmra.mrb[0].mxu0 %v481
      %v540 = vpop.f32.mrb[0].mxu0
      %v541 = vadd.f32 0.0, %v540
      %v542 = vpop.f32.mrb[0].mxu0
      %v543 = vpop.f32.mrb[0].mxu0
      %v544 = vadd.f32 0.0, %v543
      %v545 = vpop.f32.mrb[0].mxu0
      %546 = vmatprep.mubr.bf16.mxu0 0
      %547 = vmatmul.mubr.bf16.gmra.mrb[0].mxu0 %v484
      %v548 = vpop.f32.mrb[0].mxu0
      %v549 = vadd.f32 0.0, %v548
      %v550 = vpop.f32.mrb[0].mxu0
      %v551 = vpop.f32.mrb[0].mxu0
      %v552 = vadd.f32 0.0, %v551
      %v553 = vpop.f32.mrb[0].mxu0
      %554 = vdwg.mxu0
      %v555 = vadd.f32 %v436, %v525
      %v556 = vadd.f32 %v437, %v528
      %v557 = vadd.f32 %v438, %v533
      %v558 = vadd.f32 %v439, %v536
      %v559 = vadd.f32 %v440, %v541
      %v560 = vadd.f32 %v441, %v544
      %v561 = vadd.f32 %v442, %v549
      %v562 = vadd.f32 %v443, %v552
      %v563 = vld [vmem:[%s3] sm:$0x1]
      %v565 = vlaneseq
      %v566 = vshrl.u32 %v565, 7
      %v567 = vsub.s32 0, %v566
      %v568 = vrot.slane %v563, %v567
      %v570 = vadd.f32 %v555, %v568
      %v571 = vadd.f32 %v556, %v568
      %v572 = vadd.f32 %v557, %v568
      %v573 = vadd.f32 %v558, %v568
      %v574 = vadd.f32 %v559, %v568
      %v575 = vadd.f32 %v560, %v568
      %v576 = vadd.f32 %v561, %v568
      %v577 = vadd.f32 %v562, %v568
      %v578 = vsel %vm473, %v570, 0.0
      %579 = vadd.xlane.f32.xlu0 %v578
      %v580 = vpop.xlane.xlu0 %579
      %v581 = vsel %vm473, %v571, 0.0
      %582 = vadd.xlane.f32.xlu0 %v581
      %v583 = vpop.xlane.xlu0 %582
      %v584 = vsel %vm473, %v572, 0.0
      %585 = vadd.xlane.f32.xlu0 %v584
      %v586 = vpop.xlane.xlu0 %585
      %v587 = vsel %vm473, %v573, 0.0
      %588 = vadd.xlane.f32.xlu0 %v587
      %v589 = vpop.xlane.xlu0 %588
      %v590 = vsel %vm473, %v574, 0.0
      %591 = vadd.xlane.f32.xlu0 %v590
      %v592 = vpop.xlane.xlu0 %591
      %v593 = vsel %vm473, %v575, 0.0
      %594 = vadd.xlane.f32.xlu0 %v593
      %v595 = vpop.xlane.xlu0 %594
      %v596 = vsel %vm473, %v576, 0.0
      %597 = vadd.xlane.f32.xlu0 %v596
      %v598 = vpop.xlane.xlu0 %597
      %v599 = vsel %vm473, %v577, 0.0
      %600 = vadd.xlane.f32.xlu0 %v599
      %v601 = vpop.xlane.xlu0 %600
      %v602 = vrcp.pop 8.0
      %v603 = vmul.f32 %v580, %v602
      %v604 = vmul.f32 %v583, %v602
      %v605 = vmul.f32 %v586, %v602
      %v606 = vmul.f32 %v589, %v602
      %v607 = vmul.f32 %v592, %v602
      %v608 = vmul.f32 %v595, %v602
      %v609 = vmul.f32 %v598, %v602
      %v610 = vmul.f32 %v601, %v602
      %v611 = vsub.f32 %v570, %v603
      %v612 = vsub.f32 %v571, %v604
      %v613 = vsub.f32 %v572, %v605
      %v614 = vsub.f32 %v573, %v606
      %v615 = vsub.f32 %v574, %v607
      %v616 = vsub.f32 %v575, %v608
      %v617 = vsub.f32 %v576, %v609
      %v618 = vsub.f32 %v577, %v610
      %v619 = vmul.f32 %v611, %v611
      %v620 = vmul.f32 %v612, %v612
      %v621 = vmul.f32 %v613, %v613
      %v622 = vmul.f32 %v614, %v614
      %v623 = vmul.f32 %v615, %v615
      %v624 = vmul.f32 %v616, %v616
      %v625 = vmul.f32 %v617, %v617
      %v626 = vmul.f32 %v618, %v618
      %v627 = vsel %vm473, %v619, 0.0
      %628 = vadd.xlane.f32.xlu0 %v627
      %v629 = vpop.xlane.xlu0 %628
      %v630 = vsel %vm473, %v620, 0.0
      %631 = vadd.xlane.f32.xlu0 %v630
      %v632 = vpop.xlane.xlu0 %631
      %v633 = vsel %vm473, %v621, 0.0
      %634 = vadd.xlane.f32.xlu0 %v633
      %v635 = vpop.xlane.xlu0 %634
      %v636 = vsel %vm473, %v622, 0.0
      %637 = vadd.xlane.f32.xlu0 %v636
      %v638 = vpop.xlane.xlu0 %637
      %v639 = vsel %vm473, %v623, 0.0
      %640 = vadd.xlane.f32.xlu0 %v639
      %v641 = vpop.xlane.xlu0 %640
      %v642 = vsel %vm473, %v624, 0.0
      %643 = vadd.xlane.f32.xlu0 %v642
      %v644 = vpop.xlane.xlu0 %643
      %v645 = vsel %vm473, %v625, 0.0
      %646 = vadd.xlane.f32.xlu0 %v645
      %v647 = vpop.xlane.xlu0 %646
      %v648 = vsel %vm473, %v626, 0.0
      %649 = vadd.xlane.f32.xlu0 %v648
      %v650 = vpop.xlane.xlu0 %649
      %v651 = vmul.f32 %v629, %v602
      %v652 = vmul.f32 %v632, %v602
      %v653 = vmul.f32 %v635, %v602
      %v654 = vmul.f32 %v638, %v602
      %v655 = vmul.f32 %v641, %v602
      %v656 = vmul.f32 %v644, %v602
      %v657 = vmul.f32 %v647, %v602
      %v658 = vmul.f32 %v650, %v602
      %v659 = vadd.f32 %v651, 1e-05
      %v660 = vadd.f32 %v652, 1e-05
      %v661 = vadd.f32 %v653, 1e-05
      %v662 = vadd.f32 %v654, 1e-05
      %v663 = vadd.f32 %v655, 1e-05
      %v664 = vadd.f32 %v656, 1e-05
      %v665 = vadd.f32 %v657, 1e-05
      %v666 = vadd.f32 %v658, 1e-05
      %v667 = vrsqrt.pop %v659
      %v668 = vrsqrt.pop %v660
      %v669 = vrsqrt.pop %v661
      %v670 = vrsqrt.pop %v662
      %v671 = vrsqrt.pop %v663
      %v672 = vrsqrt.pop %v664
      %v673 = vrsqrt.pop %v665
      %v674 = vrsqrt.pop %v666
      %v675 = vmul.f32 %v611, %v667
      %v676 = vmul.f32 %v612, %v668
      %v677 = vmul.f32 %v613, %v669
      %v678 = vmul.f32 %v614, %v670
      %v679 = vmul.f32 %v615, %v671
      %v680 = vmul.f32 %v616, %v672
      %v681 = vmul.f32 %v617, %v673
      %v682 = vmul.f32 %v618, %v674
      %v683 = vld [vmem:[%s4] sm:$0x1]
      %v685 = vlaneseq
      %v686 = vshrl.u32 %v685, 7
      %v687 = vsub.s32 0, %v686
      %v688 = vrot.slane %v683, %v687
      %v690 = vmul.f32 %v675, %v688
      %v691 = vmul.f32 %v676, %v688
      %v692 = vmul.f32 %v677, %v688
      %v693 = vmul.f32 %v678, %v688
      %v694 = vmul.f32 %v679, %v688
      %v695 = vmul.f32 %v680, %v688
      %v696 = vmul.f32 %v681, %v688
      %v697 = vmul.f32 %v682, %v688
      %v698 = vld [vmem:[%s5] sm:$0x1]
      %v700 = vlaneseq
      %v701 = vshrl.u32 %v700, 7
      %v702 = vsub.s32 0, %v701
      %v703 = vrot.slane %v698, %v702
      %v705 = vadd.f32 %v690, %v703
      %v706 = vadd.f32 %v691, %v703
      %v707 = vadd.f32 %v692, %v703
      %v708 = vadd.f32 %v693, %v703
      %v709 = vadd.f32 %v694, %v703
      %v710 = vadd.f32 %v695, %v703
      %v711 = vadd.f32 %v696, %v703
      %v712 = vadd.f32 %v697, %v703
      %v713 = vpack.c.bf16 %v706, %v705
      %v714 = vpack.c.bf16 %v708, %v707
      %v715 = vpack.c.bf16 %v710, %v709
      %v716 = vpack.c.bf16 %v712, %v711
      %v717 = vld [vmem:[%s6] sm:$0xf]
      %v718 = vld [vmem:[%s7] sm:$0x1]
      %v720 = vlaneseq
      %v721 = vshrl.u32 %v720, 7
      %v722 = vsub.s32 0, %v721
      %v723 = vrot.slane %v718, %v722
      %v726 = vsel %vm473, %v713, 0
      %v729 = vsel %vm473, %v714, 0
      %v732 = vsel %vm473, %v715, 0
      %v735 = vsel %vm473, %v716, 0
      %v738 = vsel %vm486, %v717, 0
      %740 = vmatprep.subr.bf16.mxu0 0
      %741 = vmatpush1.bf16.msra.mxu0 %v738
      %742 = vmatprep.subr.bf16.mxu0 0
      %743 = vmatpush1.bf16.msra.mxu0 0
      %744 = vmatprep.subr.bf16.mxu0 0
      %745 = vmatpush1.bf16.msra.mxu0 0
      %746 = vmatprep.subr.bf16.mxu0 0
      %747 = vmatpush1.bf16.msra.mxu0 0
      %748 = vmatprep.subr.bf16.mxu0 0
      %749 = vmatpush1.bf16.msra.mxu0 0
      %750 = vmatprep.subr.bf16.mxu0 0
      %751 = vmatpush1.bf16.msra.mxu0 0
      %752 = vmatprep.subr.bf16.mxu0 0
      %753 = vmatpush1.bf16.msra.mxu0 0
      %754 = vmatprep.subr.bf16.mxu0 0
      %755 = vmatpush1.bf16.msra.mxu0 0
      %756 = vmatprep.subr.bf16.mxu0 0
      %757 = vmatpush1.bf16.msra.mxu0 0
      %758 = vmatprep.subr.bf16.mxu0 0
      %759 = vmatpush1.bf16.msra.mxu0 0
      %760 = vmatprep.subr.bf16.mxu0 0
      %761 = vmatpush1.bf16.msra.mxu0 0
      %762 = vmatprep.subr.bf16.mxu0 0
      %763 = vmatpush1.bf16.msra.mxu0 0
      %764 = vmatprep.subr.bf16.mxu0 0
      %765 = vmatpush1.bf16.msra.mxu0 0
      %766 = vmatprep.subr.bf16.mxu0 0
      %767 = vmatpush1.bf16.msra.mxu0 0
      %768 = vmatprep.subr.bf16.mxu0 0
      %769 = vmatpush1.bf16.msra.mxu0 0
      %770 = vmatprep.subr.bf16.mxu0 0
      %771 = vmatpush1.bf16.msra.mxu0 0
      %772 = vmatprep.mubr.bf16.mxu0 0
      %773 = vmatmul.mubr.bf16.gmra.mrb[0].mxu0 %v726
      %v774 = vpop.f32.mrb[0].mxu0
      %v775 = vadd.f32 %v723, %v774
      %v776 = vpop.f32.mrb[0].mxu0
      %v777 = vpop.f32.mrb[0].mxu0
      %v778 = vadd.f32 %v723, %v777
      %v779 = vpop.f32.mrb[0].mxu0
      %780 = vmatprep.mubr.bf16.mxu0 0
      %781 = vmatmul.mubr.bf16.gmra.mrb[0].mxu0 %v729
      %v782 = vpop.f32.mrb[0].mxu0
      %v783 = vadd.f32 %v723, %v782
      %v784 = vpop.f32.mrb[0].mxu0
      %v785 = vpop.f32.mrb[0].mxu0
      %v786 = vadd.f32 %v723, %v785
      %v787 = vpop.f32.mrb[0].mxu0
      %788 = vmatprep.mubr.bf16.mxu0 0
      %789 = vmatmul.mubr.bf16.gmra.mrb[0].mxu0 %v732
      %v790 = vpop.f32.mrb[0].mxu0
      %v791 = vadd.f32 %v723, %v790
      %v792 = vpop.f32.mrb[0].mxu0
      %v793 = vpop.f32.mrb[0].mxu0
      %v794 = vadd.f32 %v723, %v793
      %v795 = vpop.f32.mrb[0].mxu0
      %796 = vmatprep.mubr.bf16.mxu0 0
      %797 = vmatmul.mubr.bf16.gmra.mrb[0].mxu0 %v735
      %v798 = vpop.f32.mrb[0].mxu0
      %v799 = vadd.f32 %v723, %v798
      %v800 = vpop.f32.mrb[0].mxu0
      %v801 = vpop.f32.mrb[0].mxu0
      %v802 = vadd.f32 %v723, %v801
      %v803 = vpop.f32.mrb[0].mxu0
      %804 = vdwg.mxu0
      %v805 = vmul.f32 %v775, 0.5
      %v806 = vmul.f32 %v778, 0.5
      %v807 = vmul.f32 %v783, 0.5
      %v808 = vmul.f32 %v786, 0.5
      %v809 = vmul.f32 %v791, 0.5
      %v810 = vmul.f32 %v794, 0.5
      %v811 = vmul.f32 %v799, 0.5
      %v812 = vmul.f32 %v802, 0.5
      %v813 = vmul.f32 %v775, 0.044715
      %v814 = vmul.f32 %v778, 0.044715
      %v815 = vmul.f32 %v783, 0.044715
      %v816 = vmul.f32 %v786, 0.044715
      %v817 = vmul.f32 %v791, 0.044715
      %v818 = vmul.f32 %v794, 0.044715
      %v819 = vmul.f32 %v799, 0.044715
      %v820 = vmul.f32 %v802, 0.044715
      %v821 = vmul.f32 %v813, %v775
      %v822 = vmul.f32 %v814, %v778
      %v823 = vmul.f32 %v815, %v783
      %v824 = vmul.f32 %v816, %v786
      %v825 = vmul.f32 %v817, %v791
      %v826 = vmul.f32 %v818, %v794
      %v827 = vmul.f32 %v819, %v799
      %v828 = vmul.f32 %v820, %v802
      %v829 = vmul.f32 %v821, %v775
      %v830 = vmul.f32 %v822, %v778
      %v831 = vmul.f32 %v823, %v783
      %v832 = vmul.f32 %v824, %v786
      %v833 = vmul.f32 %v825, %v791
      %v834 = vmul.f32 %v826, %v794
      %v835 = vmul.f32 %v827, %v799
      %v836 = vmul.f32 %v828, %v802
      %v837 = vadd.f32 %v775, %v829
      %v838 = vadd.f32 %v778, %v830
      %v839 = vadd.f32 %v783, %v831
      %v840 = vadd.f32 %v786, %v832
      %v841 = vadd.f32 %v791, %v833
      %v842 = vadd.f32 %v794, %v834
      %v843 = vadd.f32 %v799, %v835
      %v844 = vadd.f32 %v802, %v836
      %v845 = vmul.f32 %v837, 0.7978846
      %v846 = vmul.f32 %v838, 0.7978846
      %v847 = vmul.f32 %v839, 0.7978846
      %v848 = vmul.f32 %v840, 0.7978846
      %v849 = vmul.f32 %v841, 0.7978846
      %v850 = vmul.f32 %v842, 0.7978846
      %v851 = vmul.f32 %v843, 0.7978846
      %v852 = vmul.f32 %v844, 0.7978846
      %v853 = vtanh.pop %v845
      %v854 = vtanh.pop %v846
      %v855 = vtanh.pop %v847
      %v856 = vtanh.pop %v848
      %v857 = vtanh.pop %v849
      %v858 = vtanh.pop %v850
      %v859 = vtanh.pop %v851
      %v860 = vtanh.pop %v852
      %v861 = vadd.f32 %v853, 1.0
      %v862 = vadd.f32 %v854, 1.0
      %v863 = vadd.f32 %v855, 1.0
      %v864 = vadd.f32 %v856, 1.0
      %v865 = vadd.f32 %v857, 1.0
      %v866 = vadd.f32 %v858, 1.0
      %v867 = vadd.f32 %v859, 1.0
      %v868 = vadd.f32 %v860, 1.0
      %v869 = vmul.f32 %v805, %v861
      %v870 = vmul.f32 %v806, %v862
      %v871 = vmul.f32 %v807, %v863
      %v872 = vmul.f32 %v808, %v864
      %v873 = vmul.f32 %v809, %v865
      %v874 = vmul.f32 %v810, %v866
      %v875 = vmul.f32 %v811, %v867
      %v876 = vmul.f32 %v812, %v868
      %v877 = vpack.c.bf16 %v870, %v869
      %v878 = vpack.c.bf16 %v872, %v871
      %v879 = vpack.c.bf16 %v874, %v873
      %v880 = vpack.c.bf16 %v876, %v875
      %v881 = vld [vmem:[%s8] sm:$0xf]
      %v882 = vld [vmem:[%s8 + $0x4] sm:$0xf]
      %v883 = vld [vmem:[%s8 + $0x8] sm:$0xf]
      %v884 = vld [vmem:[%s8 + $0xc] sm:$0xf]
      %v889 = vunpack.c.l.b16 %v881
      %v890 = vunpack.c.l.b16 %v882
      %v891 = vunpack.c.l.b16 %v883
      %v892 = vunpack.c.l.b16 %v884
      %v893 = vpack.c.b16 %v890, %v889
      %v894 = vpack.c.b16 %v892, %v891
      %vm897 = vcmask 261120
      %v899 = vsel %vm897, %v877, 0
      %v902 = vsel %vm897, %v878, 0
      %v905 = vsel %vm897, %v879, 0
      %v908 = vsel %vm897, %v880, 0
      %910 = vmatprep.subr.bf16.mxu0 0
      %911 = vmatpush1.bf16.msra.mxu0 %v893
      %912 = vmatprep.subr.bf16.mxu0 0
      %913 = vmatpush1.bf16.msra.mxu0 %v894
      %914 = vmatprep.subr.bf16.mxu0 0
      %915 = vmatpush1.bf16.msra.mxu0 0
      %916 = vmatprep.subr.bf16.mxu0 0
      %917 = vmatpush1.bf16.msra.mxu0 0
      %918 = vmatprep.subr.bf16.mxu0 0
      %919 = vmatpush1.bf16.msra.mxu0 0
      %920 = vmatprep.subr.bf16.mxu0 0
      %921 = vmatpush1.bf16.msra.mxu0 0
      %922 = vmatprep.subr.bf16.mxu0 0
      %923 = vmatpush1.bf16.msra.mxu0 0
      %924 = vmatprep.subr.bf16.mxu0 0
      %925 = vmatpush1.bf16.msra.mxu0 0
      %926 = vmatprep.subr.bf16.mxu0 0
      %927 = vmatpush1.bf16.msra.mxu0 0
      %928 = vmatprep.subr.bf16.mxu0 0
      %929 = vmatpush1.bf16.msra.mxu0 0
      %930 = vmatprep.subr.bf16.mxu0 0
      %931 = vmatpush1.bf16.msra.mxu0 0
      %932 = vmatprep.subr.bf16.mxu0 0
      %933 = vmatpush1.bf16.msra.mxu0 0
      %934 = vmatprep.subr.bf16.mxu0 0
      %935 = vmatpush1.bf16.msra.mxu0 0
      %936 = vmatprep.subr.bf16.mxu0 0
      %937 = vmatpush1.bf16.msra.mxu0 0
      %938 = vmatprep.subr.bf16.mxu0 0
      %939 = vmatpush1.bf16.msra.mxu0 0
      %940 = vmatprep.subr.bf16.mxu0 0
      %941 = vmatpush1.bf16.msra.mxu0 0
      %942 = vmatprep.mubr.bf16.mxu0 0
      %943 = vmatmul.mubr.bf16.gmra.mrb[0].mxu0 %v899
      %v944 = vpop.f32.mrb[0].mxu0
      %v945 = vadd.f32 0.0, %v944
      %v946 = vpop.f32.mrb[0].mxu0
      %v947 = vpop.f32.mrb[0].mxu0
      %v948 = vadd.f32 0.0, %v947
      %v949 = vpop.f32.mrb[0].mxu0
      %950 = vmatprep.mubr.bf16.mxu0 0
      %951 = vmatmul.mubr.bf16.gmra.mrb[0].mxu0 %v902
      %v952 = vpop.f32.mrb[0].mxu0
      %v953 = vadd.f32 0.0, %v952
      %v954 = vpop.f32.mrb[0].mxu0
      %v955 = vpop.f32.mrb[0].mxu0
      %v956 = vadd.f32 0.0, %v955
      %v957 = vpop.f32.mrb[0].mxu0
      %958 = vmatprep.mubr.bf16.mxu0 0
      %959 = vmatmul.mubr.bf16.gmra.mrb[0].mxu0 %v905
      %v960 = vpop.f32.mrb[0].mxu0
      %v961 = vadd.f32 0.0, %v960
      %v962 = vpop.f32.mrb[0].mxu0
      %v963 = vpop.f32.mrb[0].mxu0
      %v964 = vadd.f32 0.0, %v963
      %v965 = vpop.f32.mrb[0].mxu0
      %966 = vmatprep.mubr.bf16.mxu0 0
      %967 = vmatmul.mubr.bf16.gmra.mrb[0].mxu0 %v908
      %v968 = vpop.f32.mrb[0].mxu0
      %v969 = vadd.f32 0.0, %v968
      %v970 = vpop.f32.mrb[0].mxu0
      %v971 = vpop.f32.mrb[0].mxu0
      %v972 = vadd.f32 0.0, %v971
      %v973 = vpop.f32.mrb[0].mxu0
      %974 = vdwg.mxu0
      %v975 = vadd.f32 %v570, %v945
      %v976 = vadd.f32 %v571, %v948
      %v977 = vadd.f32 %v572, %v953
      %v978 = vadd.f32 %v573, %v956
      %v979 = vadd.f32 %v574, %v961
      %v980 = vadd.f32 %v575, %v964
      %v981 = vadd.f32 %v576, %v969
      %v982 = vadd.f32 %v577, %v972
      %v983 = vld [vmem:[%s9] sm:$0x1]
      %v985 = vlaneseq
      %v986 = vshrl.u32 %v985, 7
      %v987 = vsub.s32 0, %v986
      %v988 = vrot.slane %v983, %v987
      %v990 = vadd.f32 %v975, %v988
      %v991 = vadd.f32 %v976, %v988
      %v992 = vadd.f32 %v977, %v988
      %v993 = vadd.f32 %v978, %v988
      %v994 = vadd.f32 %v979, %v988
      %v995 = vadd.f32 %v980, %v988
      %v996 = vadd.f32 %v981, %v988
      %v997 = vadd.f32 %v982, %v988
      %998 = vst.msk [vmem:[%s433] sm:$0xff] %vm473, %v990
      %999 = vst.msk [vmem:[%s433 + $0x8] sm:$0xff] %vm473, %v991
      %1000 = vst.msk [vmem:[%s433 + $0x10] sm:$0xff] %vm473, %v992
      %1001 = vst.msk [vmem:[%s433 + $0x18] sm:$0xff] %vm473, %v993
      %1002 = vst.msk [vmem:[%s433 + $0x20] sm:$0xff] %vm473, %v994
      %1003 = vst.msk [vmem:[%s433 + $0x28] sm:$0xff] %vm473, %v995
      %1004 = vst.msk [vmem:[%s433 + $0x30] sm:$0xff] %vm473, %v996
      %1005 = vst.msk [vmem:[%s433 + $0x38] sm:$0xff] %vm473, %v997
      %s1006 = smul.u32 8, %s26
      %p1007 = scmp.lt.s32.totalorder %s25, 1
      %s1008 = scalar_select %p1007, %s25, 1
      %p1009 = scmp.lt.s32.totalorder %s1006, 31
      %s1010 = scalar_select %p1009, %s1006, 31
      %s1011 = smul.addr %s1008, 32
      %s1012 = sadd.s32 %s1010, %s1011
      %s1013 = smul.addr %s1012, 8
      %s1014 = scalar_lea.vmem %s10, %s1013
      // Predicated region
      $region61: #{cblock_forward_nhwc.3} parent=59 // pred_check
        %p1015 = pneg %p277
      $region62: #{cblock_forward_nhwc.3} parent=59 // pred_check_branch
        %1017 = sbr.rel (%p1015) target = $region64
      $region63: #{cblock_forward_nhwc.3} parent=59 // pred_region
        %s1018 = smul.u32 8, %s26
      $region64: #{cblock_forward_nhwc.3} parent=59 // pred_fallthru
        _
    $region60: #{cblock_forward_nhwc.3} parent=5 // pred_fallthru
      _
    %p1019 = scmp.le.s32.totalorder 2, %s16
    // Predicated region
    $region65: #{cblock_forward_nhwc.3} parent=5 // pred_check
      %p1020 = pneg %p1019
    $region66: #{cblock_forward_nhwc.3} parent=5 // pred_check_branch
      %1022 = sbr.rel (%p1020) target = $region68
    $region67: #{cblock_forward_nhwc.3} parent=5 // pred_region
      %s1023 = ssub.s32 %s16, 2
      // Predicated region
      $region69: #{cblock_forward_nhwc.3} parent=67 // pred_check
        %p1024 = pneg %p283
      $region70: #{cblock_forward_nhwc.3} parent=67 // pred_check_branch
        %1026 = sbr.rel (%p1024) target = $region72
      $region71: #{cblock_forward_nhwc.3} parent=67 // pred_region
        %s1027 = smul.u32 8, %s28
        %p1028 = scmp.lt.s32.totalorder %s27, 1
        %s1029 = scalar_select %p1028, %s27, 1
        %p1030 = scmp.lt.s32.totalorder %s1027, 31
        %s1031 = scalar_select %p1030, %s1027, 31
        %s1032 = smul.addr %s1029, 32
        %s1033 = sadd.s32 %s1031, %s1032
        %s1034 = smul.addr %s1033, 8
        %s1035 = scalar_lea.vmem %s10, %s1034
      $region72: #{cblock_forward_nhwc.3} parent=67 // pred_fallthru
        _
    $region68: #{cblock_forward_nhwc.3} parent=5 // pred_fallthru
      _
  $region6: #{cblock_forward_nhwc.3} parent=0 // loop_footer
    %s20 = sadd.s32 1, %s16
  $region7: #{cblock_forward_nhwc.3} parent=0 // loop_footer_branch
    %15 = sbr.rel target = $region3
  $region8: #{cblock_forward_nhwc.3} parent=0 // loop_exit
    _

// kernel: cblock_forward_nhwc.2
$region0: #{cblock_forward_nhwc.2}
  #allocation0 [shape = 'u32[]', space=smem, size = 0x4, offset = 0x4, fixed_abs, tag = 'smem constant byte address 0x4 - core index']
  #allocation1 [shape = 'u32[144,128]{1,0:T(1,128)}', space=vmem, size = 0x12000, scoped, tag = 'internal scratch']
  #allocation2 [shape = 'bf16[324,8]{1,0:T(8,128)(2,1)}', space=vmem, size = 0x14800, scoped, tag = 'scratch operand']
  %s0 = inlined_call_operand.vmem [shape: f32[2,256,8], index: 0, kind: input, shape index: {}]
  %s1 = inlined_call_operand.vmem [shape: f32[1,8], index: 1, kind: input, shape index: {}]
  %s2 = inlined_call_operand.vmem [shape: f32[1,8], index: 2, kind: input, shape index: {}]
  %s3 = inlined_call_operand.vmem [shape: bf16[8,8], index: 3, kind: input, shape index: {}]
  %s4 = inlined_call_operand.vmem [shape: f32[1,8], index: 4, kind: input, shape index: {}]
  %s5 = inlined_call_operand.vmem [shape: f32[5,5,8], index: 5, kind: input, shape index: {}]
  %s6 = inlined_call_operand.vmem [shape: f32[1,8], index: 6, kind: input, shape index: {}]
  %s7 = inlined_call_operand.vmem [shape: bf16[2,256,8], index: 7, kind: output, shape index: {}]
  %s8 = sld [smem:[#allocation0]]
  $region61: #{cblock_forward_nhwc.2} parent=0
    _
  %s10 = ssub.s32 1, %s8
  %s11 = scalar_select 0, %s10, %s8
  loop: start=0, step=1, limit=4
  $region2: #{cblock_forward_nhwc.2} parent=0 // loop_pre_header
    _
  $region3: #{cblock_forward_nhwc.2} parent=0 // loop_header
    %s13 = sphi 0, %s17
    %p14 = scmp.ge.s32.totalorder %s13, 4
    %s23 = sphi 0, %s25
    %s26 = sphi 0, %s23
    %s27 = sphi 0, %s26
    %s43 = sphi 0, %s27
    %s47 = sphi 0, %s47
    %s49 = sphi 0, %s47
    %s50 = sphi 0, %s49
    %s64 = sphi 0, %s50
    %s68 = sphi 0, %s68
    %s70 = sphi 0, %s68
    %s71 = sphi 0, %s70
    %s85 = sphi 0, %s71
    %s89 = sphi 0, %s89
    %s91 = sphi 0, %s89
    %s92 = sphi 0, %s91
    %s106 = sphi 0, %s92
    %s110 = sphi 0, %s110
    %s112 = sphi 0, %s110
    %s113 = sphi 0, %s112
    %s127 = sphi 0, %s113
    %s131 = sphi 0, %s131
    %s133 = sphi 0, %s131
    %s134 = sphi 0, %s133
    %s148 = sphi 0, %s134
    %s152 = sphi 0, %s152
    %s154 = sphi 0, %s152
    %s155 = sphi 0, %s154
    %s169 = sphi 0, %s155
    %s175 = sphi 0, %s177
    %s178 = sphi 0, %s175
    %s179 = sphi 0, %s178
    %s195 = sphi 0, %s179
  $region4: #{cblock_forward_nhwc.2} parent=0 // loop_header_branch
    %16 = sbr.rel (%p14) target = $region8
  $region5: #{cblock_forward_nhwc.2} parent=0 // loop_body
    %s18 = ssub.s32 %s13, 1
    %s19 = ssub.s32 %s13, 2
    %s20 = sadd.s32 %s13, 1
    %s21 = ssub.s32 %s13, %s20
    %p22 = scmp.eq.s32.totalorder %s21, 0
    %s24 = sadd.s32 %s23, 1
    %s25 = scalar_select %p22, %s23, %s24
    %p28 = pneg %p22
    %p29 = scmp.eq.s32.totalorder %s13, 1
    %p30 = por %p28, %p29
    %p31 = scmp.ne.s32.totalorder %s23, %s26
    %p32 = scmp.eq.s32.totalorder %s13, 0
    %p33 = por %p31, %p32
    %p34 = scmp.ne.s32.totalorder %s23, %s26
    %p35 = scmp.eq.s32.totalorder %s18, 1
    %p36 = por %p34, %p35
    %p37 = scmp.ne.s32.totalorder %s26, %s27
    %p38 = scmp.eq.s32.totalorder %s18, 0
    %p39 = por %p37, %p38
    %p40 = scmp.ne.s32.totalorder %s26, %s27
    %p41 = scmp.eq.s32.totalorder %s19, 1
    %p42 = por %p40, %p41
    %p44 = scmp.ne.s32.totalorder %s27, %s43
    %p45 = scmp.eq.s32.totalorder %s19, 0
    %p46 = por %p44, %p45
    %s48 = sadd.s32 %s47, 1
    %p51 = scmp.eq.s32.totalorder %s13, 1
    %p52 = scmp.ne.s32.totalorder %s47, %s49
    %p53 = scmp.eq.s32.totalorder %s13, 0
    %p54 = por %p52, %p53
    %p55 = scmp.ne.s32.totalorder %s47, %s49
    %p56 = scmp.eq.s32.totalorder %s18, 1
    %p57 = por %p55, %p56
    %p58 = scmp.ne.s32.totalorder %s49, %s50
    %p59 = scmp.eq.s32.totalorder %s18, 0
    %p60 = por %p58, %p59
    %p61 = scmp.ne.s32.totalorder %s49, %s50
    %p62 = scmp.eq.s32.totalorder %s19, 1
    %p63 = por %p61, %p62
    %p65 = scmp.ne.s32.totalorder %s50, %s64
    %p66 = scmp.eq.s32.totalorder %s19, 0
    %p67 = por %p65, %p66
    %s69 = sadd.s32 %s68, 1
    %p72 = scmp.eq.s32.totalorder %s13, 1
    %p73 = scmp.ne.s32.totalorder %s68, %s70
    %p74 = scmp.eq.s32.totalorder %s13, 0
    %p75 = por %p73, %p74
    %p76 = scmp.ne.s32.totalorder %s68, %s70
    %p77 = scmp.eq.s32.totalorder %s18, 1
    %p78 = por %p76, %p77
    %p79 = scmp.ne.s32.totalorder %s70, %s71
    %p80 = scmp.eq.s32.totalorder %s18, 0
    %p81 = por %p79, %p80
    %p82 = scmp.ne.s32.totalorder %s70, %s71
    %p83 = scmp.eq.s32.totalorder %s19, 1
    %p84 = por %p82, %p83
    %p86 = scmp.ne.s32.totalorder %s71, %s85
    %p87 = scmp.eq.s32.totalorder %s19, 0
    %p88 = por %p86, %p87
    %s90 = sadd.s32 %s89, 1
    %p93 = scmp.eq.s32.totalorder %s13, 1
    %p94 = scmp.ne.s32.totalorder %s89, %s91
    %p95 = scmp.eq.s32.totalorder %s13, 0
    %p96 = por %p94, %p95
    %p97 = scmp.ne.s32.totalorder %s89, %s91
    %p98 = scmp.eq.s32.totalorder %s18, 1
    %p99 = por %p97, %p98
    %p100 = scmp.ne.s32.totalorder %s91, %s92
    %p101 = scmp.eq.s32.totalorder %s18, 0
    %p102 = por %p100, %p101
    %p103 = scmp.ne.s32.totalorder %s91, %s92
    %p104 = scmp.eq.s32.totalorder %s19, 1
    %p105 = por %p103, %p104
    %p107 = scmp.ne.s32.totalorder %s92, %s106
    %p108 = scmp.eq.s32.totalorder %s19, 0
    %p109 = por %p107, %p108
    %s111 = sadd.s32 %s110, 1
    %p114 = scmp.eq.s32.totalorder %s13, 1
    %p115 = scmp.ne.s32.totalorder %s110, %s112
    %p116 = scmp.eq.s32.totalorder %s13, 0
    %p117 = por %p115, %p116
    %p118 = scmp.ne.s32.totalorder %s110, %s112
    %p119 = scmp.eq.s32.totalorder %s18, 1
    %p120 = por %p118, %p119
    %p121 = scmp.ne.s32.totalorder %s112, %s113
    %p122 = scmp.eq.s32.totalorder %s18, 0
    %p123 = por %p121, %p122
    %p124 = scmp.ne.s32.totalorder %s112, %s113
    %p125 = scmp.eq.s32.totalorder %s19, 1
    %p126 = por %p124, %p125
    %p128 = scmp.ne.s32.totalorder %s113, %s127
    %p129 = scmp.eq.s32.totalorder %s19, 0
    %p130 = por %p128, %p129
    %s132 = sadd.s32 %s131, 1
    %p135 = scmp.eq.s32.totalorder %s13, 1
    %p136 = scmp.ne.s32.totalorder %s131, %s133
    %p137 = scmp.eq.s32.totalorder %s13, 0
    %p138 = por %p136, %p137
    %p139 = scmp.ne.s32.totalorder %s131, %s133
    %p140 = scmp.eq.s32.totalorder %s18, 1
    %p141 = por %p139, %p140
    %p142 = scmp.ne.s32.totalorder %s133, %s134
    %p143 = scmp.eq.s32.totalorder %s18, 0
    %p144 = por %p142, %p143
    %p145 = scmp.ne.s32.totalorder %s133, %s134
    %p146 = scmp.eq.s32.totalorder %s19, 1
    %p147 = por %p145, %p146
    %p149 = scmp.ne.s32.totalorder %s134, %s148
    %p150 = scmp.eq.s32.totalorder %s19, 0
    %p151 = por %p149, %p150
    %s153 = sadd.s32 %s152, 1
    %p156 = scmp.eq.s32.totalorder %s13, 1
    %p157 = scmp.ne.s32.totalorder %s152, %s154
    %p158 = scmp.eq.s32.totalorder %s13, 0
    %p159 = por %p157, %p158
    %p160 = scmp.ne.s32.totalorder %s152, %s154
    %p161 = scmp.eq.s32.totalorder %s18, 1
    %p162 = por %p160, %p161
    %p163 = scmp.ne.s32.totalorder %s154, %s155
    %p164 = scmp.eq.s32.totalorder %s18, 0
    %p165 = por %p163, %p164
    %p166 = scmp.ne.s32.totalorder %s154, %s155
    %p167 = scmp.eq.s32.totalorder %s19, 1
    %p168 = por %p166, %p167
    %p170 = scmp.ne.s32.totalorder %s155, %s169
    %p171 = scmp.eq.s32.totalorder %s19, 0
    %p172 = por %p170, %p171
    %s173 = ssub.s32 %s13, %s20
    %p174 = scmp.eq.s32.totalorder %s173, 0
    %s176 = sadd.s32 %s175, 1
    %s177 = scalar_select %p174, %s175, %s176
    %p180 = pneg %p174
    %p181 = scmp.eq.s32.totalorder %s13, 1
    %p182 = por %p180, %p181
    %p183 = scmp.ne.s32.totalorder %s175, %s178
    %p184 = scmp.eq.s32.totalorder %s13, 0
    %p185 = por %p183, %p184
    %p186 = scmp.ne.s32.totalorder %s175, %s178
    %p187 = scmp.eq.s32.totalorder %s18, 1
    %p188 = por %p186, %p187
    %p189 = scmp.ne.s32.totalorder %s178, %s179
    %p190 = scmp.eq.s32.totalorder %s18, 0
    %p191 = por %p189, %p190
    %p192 = scmp.ne.s32.totalorder %s178, %s179
    %p193 = scmp.eq.s32.totalorder %s19, 1
    %p194 = por %p192, %p193
    %p196 = scmp.ne.s32.totalorder %s179, %s195
    %p197 = scmp.eq.s32.totalorder %s19, 0
    %p198 = por %p196, %p197
    %p199 = scmp.le.s32.totalorder 1, %s13
    %p200 = scmp.lt.s32.totalorder %s13, 3
    %p201 = pnand %p199, %p200
    %p202 = pneg %p201
    // Predicated region
    $region9: #{cblock_forward_nhwc.2} parent=5 // pred_check
      _
    $region10: #{cblock_forward_nhwc.2} parent=5 // pred_check_branch
      %204 = sbr.rel (%p201) target = $region12
    $region11: #{cblock_forward_nhwc.2} parent=5 // pred_region
      %s205 = ssub.s32 %s13, 1
      // Predicated region
      $region13: #{cblock_forward_nhwc.2} parent=11 // pred_check
        %p206 = pneg %p60
      $region14: #{cblock_forward_nhwc.2} parent=11 // pred_check_branch
        %208 = sbr.rel (%p206) target = $region16
      $region15: #{cblock_forward_nhwc.2} parent=11 // pred_region
        _
      $region16: #{cblock_forward_nhwc.2} parent=11 // pred_fallthru
        _
      // Predicated region
      $region17: #{cblock_forward_nhwc.2} parent=11 // pred_check
        %p209 = pneg %p81
      $region18: #{cblock_forward_nhwc.2} parent=11 // pred_check_branch
        %211 = sbr.rel (%p209) target = $region20
      $region19: #{cblock_forward_nhwc.2} parent=11 // pred_region
        _
      $region20: #{cblock_forward_nhwc.2} parent=11 // pred_fallthru
        _
      // Predicated region
      $region21: #{cblock_forward_nhwc.2} parent=11 // pred_check
        %p212 = pneg %p102
      $region22: #{cblock_forward_nhwc.2} parent=11 // pred_check_branch
        %214 = sbr.rel (%p212) target = $region24
      $region23: #{cblock_forward_nhwc.2} parent=11 // pred_region
        _
      $region24: #{cblock_forward_nhwc.2} parent=11 // pred_fallthru
        _
      // Predicated region
      $region25: #{cblock_forward_nhwc.2} parent=11 // pred_check
        %p215 = pneg %p123
      $region26: #{cblock_forward_nhwc.2} parent=11 // pred_check_branch
        %217 = sbr.rel (%p215) target = $region28
      $region27: #{cblock_forward_nhwc.2} parent=11 // pred_region
        _
      $region28: #{cblock_forward_nhwc.2} parent=11 // pred_fallthru
        _
      // Predicated region
      $region29: #{cblock_forward_nhwc.2} parent=11 // pred_check
        %p218 = pneg %p144
      $region30: #{cblock_forward_nhwc.2} parent=11 // pred_check_branch
        %220 = sbr.rel (%p218) target = $region32
      $region31: #{cblock_forward_nhwc.2} parent=11 // pred_region
        _
      $region32: #{cblock_forward_nhwc.2} parent=11 // pred_fallthru
        _
      // Predicated region
      $region33: #{cblock_forward_nhwc.2} parent=11 // pred_check
        %p221 = pneg %p165
      $region34: #{cblock_forward_nhwc.2} parent=11 // pred_check_branch
        %223 = sbr.rel (%p221) target = $region36
      $region35: #{cblock_forward_nhwc.2} parent=11 // pred_region
        _
      $region36: #{cblock_forward_nhwc.2} parent=11 // pred_fallthru
        _
    $region12: #{cblock_forward_nhwc.2} parent=5 // pred_fallthru
      _
    %p224 = scmp.lt.s32.totalorder %s13, 2
    // Predicated region
    $region37: #{cblock_forward_nhwc.2} parent=5 // pred_check
      %p225 = pneg %p224
    $region38: #{cblock_forward_nhwc.2} parent=5 // pred_check_branch
      %227 = sbr.rel (%p225) target = $region40
    $region39: #{cblock_forward_nhwc.2} parent=5 // pred_region
      // Predicated region
      $region41: #{cblock_forward_nhwc.2} parent=39 // pred_check
        %p228 = pneg %p33
      $region42: #{cblock_forward_nhwc.2} parent=39 // pred_check_branch
        %230 = sbr.rel (%p228) target = $region44
      $region43: #{cblock_forward_nhwc.2} parent=39 // pred_region
        %p231 = scmp.lt.s32.totalorder %s13, 1
        %s232 = scalar_select %p231, %s13, 1
        %s233 = smul.addr %s232, 32
        %s234 = smul.addr %s233, 8
        %s235 = scalar_lea.vmem %s0, %s234
      $region44: #{cblock_forward_nhwc.2} parent=39 // pred_fallthru
        _
    $region40: #{cblock_forward_nhwc.2} parent=5 // pred_fallthru
      _
    %p236 = scmp.le.s32.totalorder 1, %s13
    %p237 = scmp.lt.s32.totalorder %s13, 3
    %p238 = pnand %p236, %p237
    %p239 = pneg %p238
    // Predicated region
    $region45: #{cblock_forward_nhwc.2} parent=5 // pred_check
      _
    $region46: #{cblock_forward_nhwc.2} parent=5 // pred_check_branch
      %241 = sbr.rel (%p238) target = $region48
    $region47: #{cblock_forward_nhwc.2} parent=5 // pred_region
      %s242 = ssub.s32 %s13, 1
      %p243 = scmp.lt.s32.totalorder %s18, 1
      %s244 = scalar_select %p243, %s18, 1
      %s245 = smul.addr %s244, 32
      %s246 = smul.addr %s245, 8
      %s247 = scalar_lea.vmem %s0, %s246
      %p248 = pneg %p39
      %p249 = pneg %p36
      %p250 = pneg %p60
      %p251 = pneg %p57
      %p252 = pneg %p81
      %p253 = pneg %p78
      %p254 = pneg %p102
      %p255 = pneg %p99
      %p256 = pneg %p123
      %p257 = pneg %p120
      %p258 = pneg %p144
      %p259 = pneg %p141
      %p260 = pneg %p165
      %p261 = pneg %p162
      %p262 = pneg %p191
      %p263 = pneg %p188
      %p264 = scmp.lt.s32.totalorder %s18, 1
      %s265 = scalar_select %p264, %s18, 1
      %s266 = smul.addr %s265, 32
      %s267 = smul.addr %s266, 4
      %s268 = scalar_lea.vmem %s7, %s267
      %p269 = scmp.lt.s32.totalorder %s18, 1
      %s270 = scalar_select %p269, %s18, 1
      %s271 = smul.addr %s270, 32
      %s272 = smul.addr %s271, 8
      %s273 = scalar_lea.vmem %s0, %s272
      %p274 = scmp.lt.s32.totalorder %s18, 1
      %s275 = scalar_select %p274, %s18, 1
      %s276 = smul.addr %s275, 32
      %s277 = smul.addr %s276, 4
      %s278 = scalar_lea.vmem %s7, %s277
      %v280 = vld [vmem:[%s273] sm:$0xff]
      %v281 = vld [vmem:[%s273 + $0x8] sm:$0xff]
      %v282 = vld [vmem:[%s273 + $0x10] sm:$0xff]
      %v283 = vld [vmem:[%s273 + $0x18] sm:$0xff]
      %v284 = vld [vmem:[%s273 + $0x20] sm:$0xff]
      %v285 = vld [vmem:[%s273 + $0x28] sm:$0xff]
      %v286 = vld [vmem:[%s273 + $0x30] sm:$0xff]
      %v287 = vld [vmem:[%s273 + $0x38] sm:$0xff]
      %v288 = vld [vmem:[%s273 + $0x40] sm:$0xff]
      %v289 = vld [vmem:[%s273 + $0x48] sm:$0xff]
      %v290 = vld [vmem:[%s273 + $0x50] sm:$0xff]
      %v291 = vld [vmem:[%s273 + $0x58] sm:$0xff]
      %v292 = vld [vmem:[%s273 + $0x60] sm:$0xff]
      %v293 = vld [vmem:[%s273 + $0x68] sm:$0xff]
      %v294 = vld [vmem:[%s273 + $0x70] sm:$0xff]
      %v295 = vld [vmem:[%s273 + $0x78] sm:$0xff]
      %v296 = vld [vmem:[%s273 + $0x80] sm:$0xff]
      %v297 = vld [vmem:[%s273 + $0x88] sm:$0xff]
      %v298 = vld [vmem:[%s273 + $0x90] sm:$0xff]
      %v299 = vld [vmem:[%s273 + $0x98] sm:$0xff]
      %v300 = vld [vmem:[%s273 + $0xa0] sm:$0xff]
      %v301 = vld [vmem:[%s273 + $0xa8] sm:$0xff]
      %v302 = vld [vmem:[%s273 + $0xb0] sm:$0xff]
      %v303 = vld [vmem:[%s273 + $0xb8] sm:$0xff]
      %v304 = vld [vmem:[%s273 + $0xc0] sm:$0xff]
      %v305 = vld [vmem:[%s273 + $0xc8] sm:$0xff]
      %v306 = vld [vmem:[%s273 + $0xd0] sm:$0xff]
      %v307 = vld [vmem:[%s273 + $0xd8] sm:$0xff]
      %v308 = vld [vmem:[%s273 + $0xe0] sm:$0xff]
      %v309 = vld [vmem:[%s273 + $0xe8] sm:$0xff]
      %v310 = vld [vmem:[%s273 + $0xf0] sm:$0xff]
      %v311 = vld [vmem:[%s273 + $0xf8] sm:$0xff]
      %vm312 = vcmask 64512
      %v313 = vsel %vm312, %v280, 0.0
      %314 = vadd.xlane.f32.xlu0 %v313
      %v315 = vpop.xlane.xlu0 %314
      %v316 = vsel %vm312, %v281, 0.0
      %317 = vadd.xlane.f32.xlu0 %v316
      %v318 = vpop.xlane.xlu0 %317
      %v319 = vsel %vm312, %v282, 0.0
      %320 = vadd.xlane.f32.xlu0 %v319
      %v321 = vpop.xlane.xlu0 %320
      %v322 = vsel %vm312, %v283, 0.0
      %323 = vadd.xlane.f32.xlu0 %v322
      %v324 = vpop.xlane.xlu0 %323
      %v325 = vsel %vm312, %v284, 0.0
      %326 = vadd.xlane.f32.xlu0 %v325
      %v327 = vpop.xlane.xlu0 %326
      %v328 = vsel %vm312, %v285, 0.0
      %329 = vadd.xlane.f32.xlu0 %v328
      %v330 = vpop.xlane.xlu0 %329
      %v331 = vsel %vm312, %v286, 0.0
      %332 = vadd.xlane.f32.xlu0 %v331
      %v333 = vpop.xlane.xlu0 %332
      %v334 = vsel %vm312, %v287, 0.0
      %335 = vadd.xlane.f32.xlu0 %v334
      %v336 = vpop.xlane.xlu0 %335
      %v337 = vsel %vm312, %v288, 0.0
      %338 = vadd.xlane.f32.xlu0 %v337
      %v339 = vpop.xlane.xlu0 %338
      %v340 = vsel %vm312, %v289, 0.0
      %341 = vadd.xlane.f32.xlu0 %v340
      %v342 = vpop.xlane.xlu0 %341
      %v343 = vsel %vm312, %v290, 0.0
      %344 = vadd.xlane.f32.xlu0 %v343
      %v345 = vpop.xlane.xlu0 %344
      %v346 = vsel %vm312, %v291, 0.0
      %347 = vadd.xlane.f32.xlu0 %v346
      %v348 = vpop.xlane.xlu0 %347
      %v349 = vsel %vm312, %v292, 0.0
      %350 = vadd.xlane.f32.xlu0 %v349
      %v351 = vpop.xlane.xlu0 %350
      %v352 = vsel %vm312, %v293, 0.0
      %353 = vadd.xlane.f32.xlu0 %v352
      %v354 = vpop.xlane.xlu0 %353
      %v355 = vsel %vm312, %v294, 0.0
      %356 = vadd.xlane.f32.xlu0 %v355
      %v357 = vpop.xlane.xlu0 %356
      %v358 = vsel %vm312, %v295, 0.0
      %359 = vadd.xlane.f32.xlu0 %v358
      %v360 = vpop.xlane.xlu0 %359
      %v361 = vsel %vm312, %v296, 0.0
      %362 = vadd.xlane.f32.xlu0 %v361
      %v363 = vpop.xlane.xlu0 %362
      %v364 = vsel %vm312, %v297, 0.0
      %365 = vadd.xlane.f32.xlu0 %v364
      %v366 = vpop.xlane.xlu0 %365
      %v367 = vsel %vm312, %v298, 0.0
      %368 = vadd.xlane.f32.xlu0 %v367
      %v369 = vpop.xlane.xlu0 %368
      %v370 = vsel %vm312, %v299, 0.0
      %371 = vadd.xlane.f32.xlu0 %v370
      %v372 = vpop.xlane.xlu0 %371
      %v373 = vsel %vm312, %v300, 0.0
      %374 = vadd.xlane.f32.xlu0 %v373
      %v375 = vpop.xlane.xlu0 %374
      %v376 = vsel %vm312, %v301, 0.0
      %377 = vadd.xlane.f32.xlu0 %v376
      %v378 = vpop.xlane.xlu0 %377
      %v379 = vsel %vm312, %v302, 0.0
      %380 = vadd.xlane.f32.xlu0 %v379
      %v381 = vpop.xlane.xlu0 %380
      %v382 = vsel %vm312, %v303, 0.0
      %383 = vadd.xlane.f32.xlu0 %v382
      %v384 = vpop.xlane.xlu0 %383
      %v385 = vsel %vm312, %v304, 0.0
      %386 = vadd.xlane.f32.xlu0 %v385
      %v387 = vpop.xlane.xlu0 %386
      %v388 = vsel %vm312, %v305, 0.0
      %389 = vadd.xlane.f32.xlu0 %v388
      %v390 = vpop.xlane.xlu0 %389
      %v391 = vsel %vm312, %v306, 0.0
      %392 = vadd.xlane.f32.xlu0 %v391
      %v393 = vpop.xlane.xlu0 %392
      %v394 = vsel %vm312, %v307, 0.0
      %395 = vadd.xlane.f32.xlu0 %v394
      %v396 = vpop.xlane.xlu0 %395
      %v397 = vsel %vm312, %v308, 0.0
      %398 = vadd.xlane.f32.xlu0 %v397
      %v399 = vpop.xlane.xlu0 %398
      %v400 = vsel %vm312, %v309, 0.0
      %401 = vadd.xlane.f32.xlu0 %v400
      %v402 = vpop.xlane.xlu0 %401
      %v403 = vsel %vm312, %v310, 0.0
      %404 = vadd.xlane.f32.xlu0 %v403
      %v405 = vpop.xlane.xlu0 %404
      %v406 = vsel %vm312, %v311, 0.0
      %407 = vadd.xlane.f32.xlu0 %v406
      %v408 = vpop.xlane.xlu0 %407
      %v409 = vrcp.pop 8.0
      %v410 = vmul.f32 %v315, %v409
      %v411 = vmul.f32 %v318, %v409
      %v412 = vmul.f32 %v321, %v409
      %v413 = vmul.f32 %v324, %v409
      %v414 = vmul.f32 %v327, %v409
      %v415 = vmul.f32 %v330, %v409
      %v416 = vmul.f32 %v333, %v409
      %v417 = vmul.f32 %v336, %v409
      %v418 = vmul.f32 %v339, %v409
      %v419 = vmul.f32 %v342, %v409
      %v420 = vmul.f32 %v345, %v409
      %v421 = vmul.f32 %v348, %v409
      %v422 = vmul.f32 %v351, %v409
      %v423 = vmul.f32 %v354, %v409
      %v424 = vmul.f32 %v357, %v409
      %v425 = vmul.f32 %v360, %v409
      %v426 = vmul.f32 %v363, %v409
      %v427 = vmul.f32 %v366, %v409
      %v428 = vmul.f32 %v369, %v409
      %v429 = vmul.f32 %v372, %v409
      %v430 = vmul.f32 %v375, %v409
      %v431 = vmul.f32 %v378, %v409
      %v432 = vmul.f32 %v381, %v409
      %v433 = vmul.f32 %v384, %v409
      %v434 = vmul.f32 %v387, %v409
      %v435 = vmul.f32 %v390, %v409
      %v436 = vmul.f32 %v393, %v409
      %v437 = vmul.f32 %v396, %v409
      %v438 = vmul.f32 %v399, %v409
      %v439 = vmul.f32 %v402, %v409
      %v440 = vmul.f32 %v405, %v409
      %v441 = vmul.f32 %v408, %v409
      %v442 = vsub.f32 %v280, %v410
      %v443 = vsub.f32 %v281, %v411
      %v444 = vsub.f32 %v282, %v412
      %v445 = vsub.f32 %v283, %v413
      %v446 = vsub.f32 %v284, %v414
      %v447 = vsub.f32 %v285, %v415
      %v448 = vsub.f32 %v286, %v416
      %v449 = vsub.f32 %v287, %v417
      %v450 = vsub.f32 %v288, %v418
      %v451 = vsub.f32 %v289, %v419
      %v452 = vsub.f32 %v290, %v420
      %v453 = vsub.f32 %v291, %v421
      %v454 = vsub.f32 %v292, %v422
      %v455 = vsub.f32 %v293, %v423
      %v456 = vsub.f32 %v294, %v424
      %v457 = vsub.f32 %v295, %v425
      %v458 = vsub.f32 %v296, %v426
      %v459 = vsub.f32 %v297, %v427
      %v460 = vsub.f32 %v298, %v428
      %v461 = vsub.f32 %v299, %v429
      %v462 = vsub.f32 %v300, %v430
      %v463 = vsub.f32 %v301, %v431
      %v464 = vsub.f32 %v302, %v432
      %v465 = vsub.f32 %v303, %v433
      %v466 = vsub.f32 %v304, %v434
      %v467 = vsub.f32 %v305, %v435
      %v468 = vsub.f32 %v306, %v436
      %v469 = vsub.f32 %v307, %v437
      %v470 = vsub.f32 %v308, %v438
      %v471 = vsub.f32 %v309, %v439
      %v472 = vsub.f32 %v310, %v440
      %v473 = vsub.f32 %v311, %v441
      %v474 = vmul.f32 %v442, %v442
      %v475 = vmul.f32 %v443, %v443
      %v476 = vmul.f32 %v444, %v444
      %v477 = vmul.f32 %v445, %v445
      %v478 = vmul.f32 %v446, %v446
      %v479 = vmul.f32 %v447, %v447
      %v480 = vmul.f32 %v448, %v448
      %v481 = vmul.f32 %v449, %v449
      %v482 = vmul.f32 %v450, %v450
      %v483 = vmul.f32 %v451, %v451
      %v484 = vmul.f32 %v452, %v452
      %v485 = vmul.f32 %v453, %v453
      %v486 = vmul.f32 %v454, %v454
      %v487 = vmul.f32 %v455, %v455
      %v488 = vmul.f32 %v456, %v456
      %v489 = vmul.f32 %v457, %v457
      %v490 = vmul.f32 %v458, %v458
      %v491 = vmul.f32 %v459, %v459
      %v492 = vmul.f32 %v460, %v460
      %v493 = vmul.f32 %v461, %v461
      %v494 = vmul.f32 %v462, %v462
      %v495 = vmul.f32 %v463, %v463
      %v496 = vmul.f32 %v464, %v464
      %v497 = vmul.f32 %v465, %v465
      %v498 = vmul.f32 %v466, %v466
      %v499 = vmul.f32 %v467, %v467
      %v500 = vmul.f32 %v468, %v468
      %v501 = vmul.f32 %v469, %v469
      %v502 = vmul.f32 %v470, %v470
      %v503 = vmul.f32 %v471, %v471
      %v504 = vmul.f32 %v472, %v472
      %v505 = vmul.f32 %v473, %v473
      %v506 = vsel %vm312, %v474, 0.0
      %507 = vadd.xlane.f32.xlu0 %v506
      %v508 = vpop.xlane.xlu0 %507
      %v509 = vsel %vm312, %v475, 0.0
      %510 = vadd.xlane.f32.xlu0 %v509
      %v511 = vpop.xlane.xlu0 %510
      %v512 = vsel %vm312, %v476, 0.0
      %513 = vadd.xlane.f32.xlu0 %v512
      %v514 = vpop.xlane.xlu0 %513
      %v515 = vsel %vm312, %v477, 0.0
      %516 = vadd.xlane.f32.xlu0 %v515
      %v517 = vpop.xlane.xlu0 %516
      %v518 = vsel %vm312, %v478, 0.0
      %519 = vadd.xlane.f32.xlu0 %v518
      %v520 = vpop.xlane.xlu0 %519
      %v521 = vsel %vm312, %v479, 0.0
      %522 = vadd.xlane.f32.xlu0 %v521
      %v523 = vpop.xlane.xlu0 %522
      %v524 = vsel %vm312, %v480, 0.0
      %525 = vadd.xlane.f32.xlu0 %v524
      %v526 = vpop.xlane.xlu0 %525
      %v527 = vsel %vm312, %v481, 0.0
      %528 = vadd.xlane.f32.xlu0 %v527
      %v529 = vpop.xlane.xlu0 %528
      %v530 = vsel %vm312, %v482, 0.0
      %531 = vadd.xlane.f32.xlu0 %v530
      %v532 = vpop.xlane.xlu0 %531
      %v533 = vsel %vm312, %v483, 0.0
      %534 = vadd.xlane.f32.xlu0 %v533
      %v535 = vpop.xlane.xlu0 %534
      %v536 = vsel %vm312, %v484, 0.0
      %537 = vadd.xlane.f32.xlu0 %v536
      %v538 = vpop.xlane.xlu0 %537
      %v539 = vsel %vm312, %v485, 0.0
      %540 = vadd.xlane.f32.xlu0 %v539
      %v541 = vpop.xlane.xlu0 %540
      %v542 = vsel %vm312, %v486, 0.0
      %543 = vadd.xlane.f32.xlu0 %v542
      %v544 = vpop.xlane.xlu0 %543
      %v545 = vsel %vm312, %v487, 0.0
      %546 = vadd.xlane.f32.xlu0 %v545
      %v547 = vpop.xlane.xlu0 %546
      %v548 = vsel %vm312, %v488, 0.0
      %549 = vadd.xlane.f32.xlu0 %v548
      %v550 = vpop.xlane.xlu0 %549
      %v551 = vsel %vm312, %v489, 0.0
      %552 = vadd.xlane.f32.xlu0 %v551
      %v553 = vpop.xlane.xlu0 %552
      %v554 = vsel %vm312, %v490, 0.0
      %555 = vadd.xlane.f32.xlu0 %v554
      %v556 = vpop.xlane.xlu0 %555
      %v557 = vsel %vm312, %v491, 0.0
      %558 = vadd.xlane.f32.xlu0 %v557
      %v559 = vpop.xlane.xlu0 %558
      %v560 = vsel %vm312, %v492, 0.0
      %561 = vadd.xlane.f32.xlu0 %v560
      %v562 = vpop.xlane.xlu0 %561
      %v563 = vsel %vm312, %v493, 0.0
      %564 = vadd.xlane.f32.xlu0 %v563
      %v565 = vpop.xlane.xlu0 %564
      %v566 = vsel %vm312, %v494, 0.0
      %567 = vadd.xlane.f32.xlu0 %v566
      %v568 = vpop.xlane.xlu0 %567
      %v569 = vsel %vm312, %v495, 0.0
      %570 = vadd.xlane.f32.xlu0 %v569
      %v571 = vpop.xlane.xlu0 %570
      %v572 = vsel %vm312, %v496, 0.0
      %573 = vadd.xlane.f32.xlu0 %v572
      %v574 = vpop.xlane.xlu0 %573
      %v575 = vsel %vm312, %v497, 0.0
      %576 = vadd.xlane.f32.xlu0 %v575
      %v577 = vpop.xlane.xlu0 %576
      %v578 = vsel %vm312, %v498, 0.0
      %579 = vadd.xlane.f32.xlu0 %v578
      %v580 = vpop.xlane.xlu0 %579
      %v581 = vsel %vm312, %v499, 0.0
      %582 = vadd.xlane.f32.xlu0 %v581
      %v583 = vpop.xlane.xlu0 %582
      %v584 = vsel %vm312, %v500, 0.0
      %585 = vadd.xlane.f32.xlu0 %v584
      %v586 = vpop.xlane.xlu0 %585
      %v587 = vsel %vm312, %v501, 0.0
      %588 = vadd.xlane.f32.xlu0 %v587
      %v589 = vpop.xlane.xlu0 %588
      %v590 = vsel %vm312, %v502, 0.0
      %591 = vadd.xlane.f32.xlu0 %v590
      %v592 = vpop.xlane.xlu0 %591
      %v593 = vsel %vm312, %v503, 0.0
      %594 = vadd.xlane.f32.xlu0 %v593
      %v595 = vpop.xlane.xlu0 %594
      %v596 = vsel %vm312, %v504, 0.0
      %597 = vadd.xlane.f32.xlu0 %v596
      %v598 = vpop.xlane.xlu0 %597
      %v599 = vsel %vm312, %v505, 0.0
      %600 = vadd.xlane.f32.xlu0 %v599
      %v601 = vpop.xlane.xlu0 %600
      %v602 = vmul.f32 %v508, %v409
      %v603 = vmul.f32 %v511, %v409
      %v604 = vmul.f32 %v514, %v409
      %v605 = vmul.f32 %v517, %v409
      %v606 = vmul.f32 %v520, %v409
      %v607 = vmul.f32 %v523, %v409
      %v608 = vmul.f32 %v526, %v409
      %v609 = vmul.f32 %v529, %v409
      %v610 = vmul.f32 %v532, %v409
      %v611 = vmul.f32 %v535, %v409
      %v612 = vmul.f32 %v538, %v409
      %v613 = vmul.f32 %v541, %v409
      %v614 = vmul.f32 %v544, %v409
      %v615 = vmul.f32 %v547, %v409
      %v616 = vmul.f32 %v550, %v409
      %v617 = vmul.f32 %v553, %v409
      %v618 = vmul.f32 %v556, %v409
      %v619 = vmul.f32 %v559, %v409
      %v620 = vmul.f32 %v562, %v409
      %v621 = vmul.f32 %v565, %v409
      %v622 = vmul.f32 %v568, %v409
      %v623 = vmul.f32 %v571, %v409
      %v624 = vmul.f32 %v574, %v409
      %v625 = vmul.f32 %v577, %v409
      %v626 = vmul.f32 %v580, %v409
      %v627 = vmul.f32 %v583, %v409
      %v628 = vmul.f32 %v586, %v409
      %v629 = vmul.f32 %v589, %v409
      %v630 = vmul.f32 %v592, %v409
      %v631 = vmul.f32 %v595, %v409
      %v632 = vmul.f32 %v598, %v409
      %v633 = vmul.f32 %v601, %v409
      %v634 = vadd.f32 %v602, 1e-05
      %v635 = vadd.f32 %v603, 1e-05
      %v636 = vadd.f32 %v604, 1e-05
      %v637 = vadd.f32 %v605, 1e-05
      %v638 = vadd.f32 %v606, 1e-05
      %v639 = vadd.f32 %v607, 1e-05
      %v640 = vadd.f32 %v608, 1e-05
      %v641 = vadd.f32 %v609, 1e-05
      %v642 = vadd.f32 %v610, 1e-05
      %v643 = vadd.f32 %v611, 1e-05
      %v644 = vadd.f32 %v612, 1e-05
      %v645 = vadd.f32 %v613, 1e-05
      %v646 = vadd.f32 %v614, 1e-05
      %v647 = vadd.f32 %v615, 1e-05
      %v648 = vadd.f32 %v616, 1e-05
      %v649 = vadd.f32 %v617, 1e-05
      %v650 = vadd.f32 %v618, 1e-05
      %v651 = vadd.f32 %v619, 1e-05
      %v652 = vadd.f32 %v620, 1e-05
      %v653 = vadd.f32 %v621, 1e-05
      %v654 = vadd.f32 %v622, 1e-05
      %v655 = vadd.f32 %v623, 1e-05
      %v656 = vadd.f32 %v624, 1e-05
      %v657 = vadd.f32 %v625, 1e-05
      %v658 = vadd.f32 %v626, 1e-05
      %v659 = vadd.f32 %v627, 1e-05
      %v660 = vadd.f32 %v628, 1e-05
      %v661 = vadd.f32 %v629, 1e-05
      %v662 = vadd.f32 %v630, 1e-05
      %v663 = vadd.f32 %v631, 1e-05
      %v664 = vadd.f32 %v632, 1e-05
      %v665 = vadd.f32 %v633, 1e-05
      %v666 = vrsqrt.pop %v634
      %v667 = vrsqrt.pop %v635
      %v668 = vrsqrt.pop %v636
      %v669 = vrsqrt.pop %v637
      %v670 = vrsqrt.pop %v638
      %v671 = vrsqrt.pop %v639
      %v672 = vrsqrt.pop %v640
      %v673 = vrsqrt.pop %v641
      %v674 = vrsqrt.pop %v642
      %v675 = vrsqrt.pop %v643
      %v676 = vrsqrt.pop %v644
      %v677 = vrsqrt.pop %v645
      %v678 = vrsqrt.pop %v646
      %v679 = vrsqrt.pop %v647
      %v680 = vrsqrt.pop %v648
      %v681 = vrsqrt.pop %v649
      %v682 = vrsqrt.pop %v650
      %v683 = vrsqrt.pop %v651
      %v684 = vrsqrt.pop %v652
      %v685 = vrsqrt.pop %v653
      %v686 = vrsqrt.pop %v654
      %v687 = vrsqrt.pop %v655
      %v688 = vrsqrt.pop %v656
      %v689 = vrsqrt.pop %v657
      %v690 = vrsqrt.pop %v658
      %v691 = vrsqrt.pop %v659
      %v692 = vrsqrt.pop %v660
      %v693 = vrsqrt.pop %v661
      %v694 = vrsqrt.pop %v662
      %v695 = vrsqrt.pop %v663
      %v696 = vrsqrt.pop %v664
      %v697 = vrsqrt.pop %v665
      %v698 = vmul.f32 %v442, %v666
      %v699 = vmul.f32 %v443, %v667
      %v700 = vmul.f32 %v444, %v668
      %v701 = vmul.f32 %v445, %v669
      %v702 = vmul.f32 %v446, %v670
      %v703 = vmul.f32 %v447, %v671
      %v704 = vmul.f32 %v448, %v672
      %v705 = vmul.f32 %v449, %v673
      %v706 = vmul.f32 %v450, %v674
      %v707 = vmul.f32 %v451, %v675
      %v708 = vmul.f32 %v452, %v676
      %v709 = vmul.f32 %v453, %v677
      %v710 = vmul.f32 %v454, %v678
      %v711 = vmul.f32 %v455, %v679
      %v712 = vmul.f32 %v456, %v680
      %v713 = vmul.f32 %v457, %v681
      %v714 = vmul.f32 %v458, %v682
      %v715 = vmul.f32 %v459, %v683
      %v716 = vmul.f32 %v460, %v684
      %v717 = vmul.f32 %v461, %v685
      %v718 = vmul.f32 %v462, %v686
      %v719 = vmul.f32 %v463, %v687
      %v720 = vmul.f32 %v464, %v688
      %v721 = vmul.f32 %v465, %v689
      %v722 = vmul.f32 %v466, %v690
      %v723 = vmul.f32 %v467, %v691
      %v724 = vmul.f32 %v468, %v692
      %v725 = vmul.f32 %v469, %v693
      %v726 = vmul.f32 %v470, %v694
      %v727 = vmul.f32 %v471, %v695
      %v728 = vmul.f32 %v472, %v696
      %v729 = vmul.f32 %v473, %v697
      %v730 = vld [vmem:[%s1] sm:$0x1]
      %v732 = vlaneseq
      %v733 = vshrl.u32 %v732, 7
      %v734 = vsub.s32 0, %v733
      %v735 = vrot.slane %v730, %v734
      %v737 = vmul.f32 %v698, %v735
      %v738 = vmul.f32 %v699, %v735
      %v739 = vmul.f32 %v700, %v735
      %v740 = vmul.f32 %v701, %v735
      %v741 = vmul.f32 %v702, %v735
      %v742 = vmul.f32 %v703, %v735
      %v743 = vmul.f32 %v704, %v735
      %v744 = vmul.f32 %v705, %v735
      %v745 = vmul.f32 %v706, %v735
      %v746 = vmul.f32 %v707, %v735
      %v747 = vmul.f32 %v708, %v735
      %v748 = vmul.f32 %v709, %v735
      %v749 = vmul.f32 %v710, %v735
      %v750 = vmul.f32 %v711, %v735
      %v751 = vmul.f32 %v712, %v735
      %v752 = vmul.f32 %v713, %v735
      %v753 = vmul.f32 %v714, %v735
      %v754 = vmul.f32 %v715, %v735
      %v755 = vmul.f32 %v716, %v735
      %v756 = vmul.f32 %v717, %v735
      %v757 = vmul.f32 %v718, %v735
      %v758 = vmul.f32 %v719, %v735
      %v759 = vmul.f32 %v720, %v735
      %v760 = vmul.f32 %v721, %v735
      %v761 = vmul.f32 %v722, %v735
      %v762 = vmul.f32 %v723, %v735
      %v763 = vmul.f32 %v724, %v735
      %v764 = vmul.f32 %v725, %v735
      %v765 = vmul.f32 %v726, %v735
      %v766 = vmul.f32 %v727, %v735
      %v767 = vmul.f32 %v728, %v735
      %v768 = vmul.f32 %v729, %v735
      %v769 = vld [vmem:[%s2] sm:$0x1]
      %v771 = vlaneseq
      %v772 = vshrl.u32 %v771, 7
      %v773 = vsub.s32 0, %v772
      %v774 = vrot.slane %v769, %v773
      %v776 = vadd.f32 %v737, %v774
      %v777 = vadd.f32 %v738, %v774
      %v778 = vadd.f32 %v739, %v774
      %v779 = vadd.f32 %v740, %v774
      %v780 = vadd.f32 %v741, %v774
      %v781 = vadd.f32 %v742, %v774
      %v782 = vadd.f32 %v743, %v774
      %v783 = vadd.f32 %v744, %v774
      %v784 = vadd.f32 %v745, %v774
      %v785 = vadd.f32 %v746, %v774
      %v786 = vadd.f32 %v747, %v774
      %v787 = vadd.f32 %v748, %v774
      %v788 = vadd.f32 %v749, %v774
      %v789 = vadd.f32 %v750, %v774
      %v790 = vadd.f32 %v751, %v774
      %v791 = vadd.f32 %v752, %v774
      %v792 = vadd.f32 %v753, %v774
      %v793 = vadd.f32 %v754, %v774
      %v794 = vadd.f32 %v755, %v774
      %v795 = vadd.f32 %v756, %v774
      %v796 = vadd.f32 %v757, %v774
      %v797 = vadd.f32 %v758, %v774
      %v798 = vadd.f32 %v759, %v774
      %v799 = vadd.f32 %v760, %v774
      %v800 = vadd.f32 %v761, %v774
      %v801 = vadd.f32 %v762, %v774
      %v802 = vadd.f32 %v763, %v774
      %v803 = vadd.f32 %v764, %v774
      %v804 = vadd.f32 %v765, %v774
      %v805 = vadd.f32 %v766, %v774
      %v806 = vadd.f32 %v767, %v774
      %v807 = vadd.f32 %v768, %v774
      %v808 = vpack.c.bf16 %v777, %v776
      %v809 = vpack.c.bf16 %v779, %v778
      %v810 = vpack.c.bf16 %v781, %v780
      %v811 = vpack.c.bf16 %v783, %v782
      %v812 = vpack.c.bf16 %v785, %v784
      %v813 = vpack.c.bf16 %v787, %v786
      %v814 = vpack.c.bf16 %v789, %v788
      %v815 = vpack.c.bf16 %v791, %v790
      %v816 = vpack.c.bf16 %v793, %v792
      %v817 = vpack.c.bf16 %v795, %v794
      %v818 = vpack.c.bf16 %v797, %v796
      %v819 = vpack.c.bf16 %v799, %v798
      %v820 = vpack.c.bf16 %v801, %v800
      %v821 = vpack.c.bf16 %v803, %v802
      %v822 = vpack.c.bf16 %v805, %v804
      %v823 = vpack.c.bf16 %v807, %v806
      %v824 = vld [vmem:[%s3] sm:$0xf]
      %v825 = vld [vmem:[%s4] sm:$0x1]
      %v827 = vlaneseq
      %v828 = vshrl.u32 %v827, 7
      %v829 = vsub.s32 0, %v828
      %v830 = vrot.slane %v825, %v829
      %v833 = vsel %vm312, %v808, 0
      %v836 = vsel %vm312, %v809, 0
      %v839 = vsel %vm312, %v810, 0
      %v842 = vsel %vm312, %v811, 0
      %v845 = vsel %vm312, %v812, 0
      %v848 = vsel %vm312, %v813, 0
      %v851 = vsel %vm312, %v814, 0
      %v854 = vsel %vm312, %v815, 0
      %v857 = vsel %vm312, %v816, 0
      %v860 = vsel %vm312, %v817, 0
      %v863 = vsel %vm312, %v818, 0
      %v866 = vsel %vm312, %v819, 0
      %v869 = vsel %vm312, %v820, 0
      %v872 = vsel %vm312, %v821, 0
      %v875 = vsel %vm312, %v822, 0
      %v878 = vsel %vm312, %v823, 0
      %vm880 = vcmask 1043456
      %v882 = vsel %vm880, %v824, 0
      %884 = vmatprep.subr.bf16.mxu0 0
      %885 = vmatpush1.bf16.msra.mxu0 %v882
      %886 = vmatprep.subr.bf16.mxu0 0
      %887 = vmatpush1.bf16.msra.mxu0 0
      %888 = vmatprep.subr.bf16.mxu0 0
      %889 = vmatpush1.bf16.msra.mxu0 0
      %890 = vmatprep.subr.bf16.mxu0 0
      %891 = vmatpush1.bf16.msra.mxu0 0
      %892 = vmatprep.subr.bf16.mxu0 0
      %893 = vmatpush1.bf16.msra.mxu0 0
      %894 = vmatprep.subr.bf16.mxu0 0
      %895 = vmatpush1.bf16.msra.mxu0 0
      %896 = vmatprep.subr.bf16.mxu0 0
      %897 = vmatpush1.bf16.msra.mxu0 0
      %898 = vmatprep.subr.bf16.mxu0 0
      %899 = vmatpush1.bf16.msra.mxu0 0
      %900 = vmatprep.subr.bf16.mxu0 0
      %901 = vmatpush1.bf16.msra.mxu0 0
      %902 = vmatprep.subr.bf16.mxu0 0
      %903 = vmatpush1.bf16.msra.mxu0 0
      %904 = vmatprep.subr.bf16.mxu0 0
      %905 = vmatpush1.bf16.msra.mxu0 0
      %906 = vmatprep.subr.bf16.mxu0 0
      %907 = vmatpush1.bf16.msra.mxu0 0
      %908 = vmatprep.subr.bf16.mxu0 0
      %909 = vmatpush1.bf16.msra.mxu0 0
      %910 = vmatprep.subr.bf16.mxu0 0
      %911 = vmatpush1.bf16.msra.mxu0 0
      %912 = vmatprep.subr.bf16.mxu0 0
      %913 = vmatpush1.bf16.msra.mxu0 0
      %914 = vmatprep.subr.bf16.mxu0 0
      %915 = vmatpush1.bf16.msra.mxu0 0
      %916 = vmatprep.mubr.bf16.mxu0 0
      %917 = vmatmul.mubr.bf16.gmra.mrb[0].mxu0 %v833
      %v918 = vpop.f32.mrb[0].mxu0
      %v919 = vadd.f32 %v830, %v918
      %v920 = vpop.f32.mrb[0].mxu0
      %v921 = vpop.f32.mrb[0].mxu0
      %v922 = vadd.f32 %v830, %v921
      %v923 = vpop.f32.mrb[0].mxu0
      %924 = vmatprep.mubr.bf16.mxu0 0
      %925 = vmatmul.mubr.bf16.gmra.mrb[0].mxu0 %v836
      %v926 = vpop.f32.mrb[0].mxu0
      %v927 = vadd.f32 %v830, %v926
      %v928 = vpop.f32.mrb[0].mxu0
      %v929 = vpop.f32.mrb[0].mxu0
      %v930 = vadd.f32 %v830, %v929
      %v931 = vpop.f32.mrb[0].mxu0
      %932 = vmatprep.mubr.bf16.mxu0 0
      %933 = vmatmul.mubr.bf16.gmra.mrb[0].mxu0 %v839
      %v934 = vpop.f32.mrb[0].mxu0
      %v935 = vadd.f32 %v830, %v934
      %v936 = vpop.f32.mrb[0].mxu0
      %v937 = vpop.f32.mrb[0].mxu0
      %v938 = vadd.f32 %v830, %v937
      %v939 = vpop.f32.mrb[0].mxu0
      %940 = vmatprep.mubr.bf16.mxu0 0
      %941 = vmatmul.mubr.bf16.gmra.mrb[0].mxu0 %v842
      %v942 = vpop.f32.mrb[0].mxu0
      %v943 = vadd.f32 %v830, %v942
      %v944 = vpop.f32.mrb[0].mxu0
      %v945 = vpop.f32.mrb[0].mxu0
      %v946 = vadd.f32 %v830, %v945
      %v947 = vpop.f32.mrb[0].mxu0
      %948 = vmatprep.mubr.bf16.mxu0 0
      %949 = vmatmul.mubr.bf16.gmra.mrb[0].mxu0 %v845
      %v950 = vpop.f32.mrb[0].mxu0
      %v951 = vadd.f32 %v830, %v950
      %v952 = vpop.f32.mrb[0].mxu0
      %v953 = vpop.f32.mrb[0].mxu0
      %v954 = vadd.f32 %v830, %v953
      %v955 = vpop.f32.mrb[0].mxu0
      %956 = vmatprep.mubr.bf16.mxu0 0
      %957 = vmatmul.mubr.bf16.gmra.mrb[0].mxu0 %v848
      %v958 = vpop.f32.mrb[0].mxu0
      %v959 = vadd.f32 %v830, %v958
      %v960 = vpop.f32.mrb[0].mxu0
      %v961 = vpop.f32.mrb[0].mxu0
      %v962 = vadd.f32 %v830, %v961
      %v963 = vpop.f32.mrb[0].mxu0
      %964 = vmatprep.mubr.bf16.mxu0 0
      %965 = vmatmul.mubr.bf16.gmra.mrb[0].mxu0 %v851
      %v966 = vpop.f32.mrb[0].mxu0
      %v967 = vadd.f32 %v830, %v966
      %v968 = vpop.f32.mrb[0].mxu0
      %v969 = vpop.f32.mrb[0].mxu0
      %v970 = vadd.f32 %v830, %v969
      %v971 = vpop.f32.mrb[0].mxu0
      %972 = vmatprep.mubr.bf16.mxu0 0
      %973 = vmatmul.mubr.bf16.gmra.mrb[0].mxu0 %v854
      %v974 = vpop.f32.mrb[0].mxu0
      %v975 = vadd.f32 %v830, %v974
      %v976 = vpop.f32.mrb[0].mxu0
      %v977 = vpop.f32.mrb[0].mxu0
      %v978 = vadd.f32 %v830, %v977
      %v979 = vpop.f32.mrb[0].mxu0
      %980 = vmatprep.mubr.bf16.mxu0 0
      %981 = vmatmul.mubr.bf16.gmra.mrb[0].mxu0 %v857
      %v982 = vpop.f32.mrb[0].mxu0
      %v983 = vadd.f32 %v830, %v982
      %v984 = vpop.f32.mrb[0].mxu0
      %v985 = vpop.f32.mrb[0].mxu0
      %v986 = vadd.f32 %v830, %v985
      %v987 = vpop.f32.mrb[0].mxu0
      %988 = vmatprep.mubr.bf16.mxu0 0
      %989 = vmatmul.mubr.bf16.gmra.mrb[0].mxu0 %v860
      %v990 = vpop.f32.mrb[0].mxu0
      %v991 = vadd.f32 %v830, %v990
      %v992 = vpop.f32.mrb[0].mxu0
      %v993 = vpop.f32.mrb[0].mxu0
      %v994 = vadd.f32 %v830, %v993
      %v995 = vpop.f32.mrb[0].mxu0
      %996 = vmatprep.mubr.bf16.mxu0 0
      %997 = vmatmul.mubr.bf16.gmra.mrb[0].mxu0 %v863
      %v998 = vpop.f32.mrb[0].mxu0
      %v999 = vadd.f32 %v830, %v998
      %v1000 = vpop.f32.mrb[0].mxu0
      %v1001 = vpop.f32.mrb[0].mxu0
      %v1002 = vadd.f32 %v830, %v1001
      %v1003 = vpop.f32.mrb[0].mxu0
      %1004 = vmatprep.mubr.bf16.mxu0 0
      %1005 = vmatmul.mubr.bf16.gmra.mrb[0].mxu0 %v866
      %v1006 = vpop.f32.mrb[0].mxu0
      %v1007 = vadd.f32 %v830, %v1006
      %v1008 = vpop.f32.mrb[0].mxu0
      %v1009 = vpop.f32.mrb[0].mxu0
      %v1010 = vadd.f32 %v830, %v1009
      %v1011 = vpop.f32.mrb[0].mxu0
      %1012 = vmatprep.mubr.bf16.mxu0 0
      %1013 = vmatmul.mubr.bf16.gmra.mrb[0].mxu0 %v869
      %v1014 = vpop.f32.mrb[0].mxu0
      %v1015 = vadd.f32 %v830, %v1014
      %v1016 = vpop.f32.mrb[0].mxu0
      %v1017 = vpop.f32.mrb[0].mxu0
      %v1018 = vadd.f32 %v830, %v1017
      %v1019 = vpop.f32.mrb[0].mxu0
      %1020 = vmatprep.mubr.bf16.mxu0 0
      %1021 = vmatmul.mubr.bf16.gmra.mrb[0].mxu0 %v872
      %v1022 = vpop.f32.mrb[0].mxu0
      %v1023 = vadd.f32 %v830, %v1022
      %v1024 = vpop.f32.mrb[0].mxu0
      %v1025 = vpop.f32.mrb[0].mxu0
      %v1026 = vadd.f32 %v830, %v1025
      %v1027 = vpop.f32.mrb[0].mxu0
      %1028 = vmatprep.mubr.bf16.mxu0 0
      %1029 = vmatmul.mubr.bf16.gmra.mrb[0].mxu0 %v875
      %v1030 = vpop.f32.mrb[0].mxu0
      %v1031 = vadd.f32 %v830, %v1030
      %v1032 = vpop.f32.mrb[0].mxu0
      %v1033 = vpop.f32.mrb[0].mxu0
      %v1034 = vadd.f32 %v830, %v1033
      %v1035 = vpop.f32.mrb[0].mxu0
      %1036 = vmatprep.mubr.bf16.mxu0 0
      %1037 = vmatmul.mubr.bf16.gmra.mrb[0].mxu0 %v878
      %v1038 = vpop.f32.mrb[0].mxu0
      %v1039 = vadd.f32 %v830, %v1038
      %v1040 = vpop.f32.mrb[0].mxu0
      %v1041 = vpop.f32.mrb[0].mxu0
      %v1042 = vadd.f32 %v830, %v1041
      %v1043 = vpop.f32.mrb[0].mxu0
      %1044 = vdwg.mxu0
      %vm1045 = vcmask 60416
      %1046 = vst.msk [vmem:[#allocation2] sm:$0xf] %vm1045, 0
      %1047 = vst.msk [vmem:[#allocation2 + $0x4] sm:$0xf] %vm1045, 0
      %1048 = vst.msk [vmem:[#allocation2 + $0x8] sm:$0xf] %vm1045, 0
      %1049 = vst.msk [vmem:[#allocation2 + $0xc] sm:$0xf] %vm1045, 0
      %vm1050 = vcmask 57344
      %1051 = vst.msk [vmem:[#allocation2 + $0x10] sm:$0x1] %vm1050, 0
      %vm1052 = vcmask 60417
      %1053 = vst.msk [vmem:[#allocation2 + $0x90] sm:$0xe] %vm1052, 0
      %1054 = vst.msk [vmem:[#allocation2 + $0x94] sm:$0xf] %vm1045, 0
      %1055 = vst.msk [vmem:[#allocation2 + $0x98] sm:$0xf] %vm1045, 0
      %1056 = vst.msk [vmem:[#allocation2 + $0x9c] sm:$0xf] %vm1045, 0
      %vm1057 = vcmask 58368
      %1058 = vst.msk [vmem:[#allocation2 + $0xa0] sm:$0x3] %vm1057, 0
      %v1059 = vpack.c.bf16 %v922, %v919
      %v1060 = vpack.c.bf16 %v930, %v927
      %v1061 = vpack.c.bf16 %v938, %v935
      %v1062 = vpack.c.bf16 %v946, %v943
      %v1063 = vpack.c.bf16 %v954, %v951
      %v1064 = vpack.c.bf16 %v962, %v959
      %v1065 = vpack.c.bf16 %v970, %v967
      %v1066 = vpack.c.bf16 %v978, %v975
      %v1067 = vpack.c.bf16 %v986, %v983
      %v1068 = vpack.c.bf16 %v994, %v991
      %v1069 = vpack.c.bf16 %v1002, %v999
      %v1070 = vpack.c.bf16 %v1010, %v1007
      %v1071 = vpack.c.bf16 %v1018, %v1015
      %v1072 = vpack.c.bf16 %v1026, %v1023
      %v1073 = vpack.c.bf16 %v1034, %v1031
      %v1074 = vpack.c.bf16 %v1042, %v1039
      %v1091 = vunpack.c.l.b16 %v1059
      %v1092 = vunpack.c.h.b16 %v1059
      %v1093 = vunpack.c.l.b16 %v1060
      %v1094 = vunpack.c.h.b16 %v1060
      %v1095 = vunpack.c.l.b16 %v1061
      %v1096 = vunpack.c.h.b16 %v1061
      %v1097 = vunpack.c.l.b16 %v1062
      %v1098 = vunpack.c.h.b16 %v1062
      %v1099 = vunpack.c.l.b16 %v1063
      %v1100 = vunpack.c.h.b16 %v1063
      %v1101 = vunpack.c.l.b16 %v1064
      %v1102 = vunpack.c.h.b16 %v1064
      %v1103 = vunpack.c.l.b16 %v1065
      %v1104 = vunpack.c.h.b16 %v1065
      %v1105 = vunpack.c.l.b16 %v1066
      %v1106 = vunpack.c.h.b16 %v1066
      %v1107 = vunpack.c.l.b16 %v1067
      %v1108 = vunpack.c.h.b16 %v1067
      %v1109 = vunpack.c.l.b16 %v1068
      %v1110 = vunpack.c.h.b16 %v1068
      %v1111 = vunpack.c.l.b16 %v1069
      %v1112 = vunpack.c.h.b16 %v1069
      %v1113 = vunpack.c.l.b16 %v1070
      %v1114 = vunpack.c.h.b16 %v1070
      %v1115 = vunpack.c.l.b16 %v1071
      %v1116 = vunpack.c.h.b16 %v1071
      %v1117 = vunpack.c.l.b16 %v1072
      %v1118 = vunpack.c.h.b16 %v1072
      %v1119 = vunpack.c.l.b16 %v1073
      %v1120 = vunpack.c.h.b16 %v1073
      %v1121 = vunpack.c.l.b16 %v1074
      %v1122 = vunpack.c.h.b16 %v1074
      %v1123 = vpack.c.b16 %v1091, %v1091
      %v1124 = vpack.c.b16 %v1092, %v1092
      %v1125 = vpack.c.b16 %v1093, %v1093
      %v1126 = vpack.c.b16 %v1094, %v1094
      %v1127 = vpack.c.b16 %v1095, %v1095
      %v1128 = vpack.c.b16 %v1096, %v1096
      %v1129 = vpack.c.b16 %v1097, %v1097
      %v1130 = vpack.c.b16 %v1098, %v1098
      %v1131 = vpack.c.b16 %v1099, %v1099
      %v1132 = vpack.c.b16 %v1100, %v1100
      %v1133 = vpack.c.b16 %v1101, %v1101
      %v1134 = vpack.c.b16 %v1102, %v1102
      %v1135 = vpack.c.b16 %v1103, %v1103
      %v1136 = vpack.c.b16 %v1104, %v1104
      %v1137 = vpack.c.b16 %v1105, %v1105
      %v1138 = vpack.c.b16 %v1106, %v1106
      %v1139 = vpack.c.b16 %v1107, %v1107
      %v1140 = vpack.c.b16 %v1108, %v1108
      %v1141 = vpack.c.b16 %v1109, %v1109
      %v1142 = vpack.c.b16 %v1110, %v1110
      %v1143 = vpack.c.b16 %v1111, %v1111
      %v1144 = vpack.c.b16 %v1112, %v1112
      %v1145 = vpack.c.b16 %v1113, %v1113
      %v1146 = vpack.c.b16 %v1114, %v1114
      %v1147 = vpack.c.b16 %v1115, %v1115
      %v1148 = vpack.c.b16 %v1116, %v1116
      %v1149 = vpack.c.b16 %v1117, %v1117
      %v1150 = vpack.c.b16 %v1118, %v1118
      %v1151 = vpack.c.b16 %v1119, %v1119
      %v1152 = vpack.c.b16 %v1120, %v1120
      %v1153 = vpack.c.b16 %v1121, %v1121
      %v1154 = vpack.c.b16 %v1122, %v1122
      %vm1155 = vcmask 1040384
      %vm1156 = vcmask 1044484
      %vm1157 = vmor %vm1155, %vm1156
      %v1158 = vrot.slane %v1123, 7
      %v1159 = vrot.slane %v1158, 4
      %v1160 = vrot.slane %v1124, 7
      %v1161 = vsel %vm1157, %v1159, %v1160
      %v1162 = vrot.slane %v1160, 4
      %v1163 = vrot.slane %v1125, 7
      %v1164 = vsel %vm1157, %v1162, %v1163
      %v1165 = vrot.slane %v1163, 4
      %v1166 = vrot.slane %v1126, 7
      %v1167 = vsel %vm1157, %v1165, %v1166
      %v1168 = vrot.slane %v1166, 4
      %v1169 = vrot.slane %v1127, 7
      %v1170 = vsel %vm1157, %v1168, %v1169
      %v1171 = vrot.slane %v1169, 4
      %v1172 = vrot.slane %v1128, 7
      %v1173 = vsel %vm1157, %v1171, %v1172
      %v1174 = vrot.slane %v1172, 4
      %v1175 = vrot.slane %v1129, 7
      %v1176 = vsel %vm1157, %v1174, %v1175
      %v1177 = vrot.slane %v1175, 4
      %v1178 = vrot.slane %v1130, 7
      %v1179 = vsel %vm1157, %v1177, %v1178
      %v1180 = vrot.slane %v1178, 4
      %v1181 = vrot.slane %v1131, 7
      %v1182 = vsel %vm1157, %v1180, %v1181
      %v1183 = vrot.slane %v1181, 4
      %v1184 = vrot.slane %v1132, 7
      %v1185 = vsel %vm1157, %v1183, %v1184
      %v1186 = vrot.slane %v1184, 4
      %v1187 = vrot.slane %v1133, 7
      %v1188 = vsel %vm1157, %v1186, %v1187
      %v1189 = vrot.slane %v1187, 4
      %v1190 = vrot.slane %v1134, 7
      %v1191 = vsel %vm1157, %v1189, %v1190
      %v1192 = vrot.slane %v1190, 4
      %v1193 = vrot.slane %v1135, 7
      %v1194 = vsel %vm1157, %v1192, %v1193
      %v1195 = vrot.slane %v1193, 4
      %v1196 = vrot.slane %v1136, 7
      %v1197 = vsel %vm1157, %v1195, %v1196
      %v1198 = vrot.slane %v1196, 4
      %v1199 = vrot.slane %v1137, 7
      %v1200 = vsel %vm1157, %v1198, %v1199
      %v1201 = vrot.slane %v1199, 4
      %v1202 = vrot.slane %v1138, 7
      %v1203 = vsel %vm1157, %v1201, %v1202
      %v1204 = vrot.slane %v1202, 4
      %v1205 = vrot.slane %v1139, 7
      %v1206 = vsel %vm1157, %v1204, %v1205
      %v1207 = vrot.slane %v1205, 4
      %v1208 = vrot.slane %v1140, 7
      %v1209 = vsel %vm1157, %v1207, %v1208
      %v1210 = vrot.slane %v1208, 4
      %v1211 = vrot.slane %v1141, 7
      %v1212 = vsel %vm1157, %v1210, %v1211
      %v1213 = vrot.slane %v1211, 4
      %v1214 = vrot.slane %v1142, 7
      %v1215 = vsel %vm1157, %v1213, %v1214
      %v1216 = vrot.slane %v1214, 4
      %v1217 = vrot.slane %v1143, 7
      %v1218 = vsel %vm1157, %v1216, %v1217
      %v1219 = vrot.slane %v1217, 4
      %v1220 = vrot.slane %v1144, 7
      %v1221 = vsel %vm1157, %v1219, %v1220
      %v1222 = vrot.slane %v1220, 4
      %v1223 = vrot.slane %v1145, 7
      %v1224 = vsel %vm1157, %v1222, %v1223
      %v1225 = vrot.slane %v1223, 4
      %v1226 = vrot.slane %v1146, 7
      %v1227 = vsel %vm1157, %v1225, %v1226
      %v1228 = vrot.slane %v1226, 4
      %v1229 = vrot.slane %v1147, 7
      %v1230 = vsel %vm1157, %v1228, %v1229
      %v1231 = vrot.slane %v1229, 4
      %v1232 = vrot.slane %v1148, 7
      %v1233 = vsel %vm1157, %v1231, %v1232
      %v1234 = vrot.slane %v1232, 4
      %v1235 = vrot.slane %v1149, 7
      %v1236 = vsel %vm1157, %v1234, %v1235
      %v1237 = vrot.slane %v1235, 4
      %v1238 = vrot.slane %v1150, 7
      %v1239 = vsel %vm1157, %v1237, %v1238
      %v1240 = vrot.slane %v1238, 4
      %v1241 = vrot.slane %v1151, 7
      %v1242 = vsel %vm1157, %v1240, %v1241
      %v1243 = vrot.slane %v1241, 4
      %v1244 = vrot.slane %v1152, 7
      %v1245 = vsel %vm1157, %v1243, %v1244
      %v1246 = vrot.slane %v1244, 4
      %v1247 = vrot.slane %v1153, 7
      %v1248 = vsel %vm1157, %v1246, %v1247
      %v1249 = vrot.slane %v1247, 4
      %v1250 = vrot.slane %v1154, 7
      %v1251 = vsel %vm1157, %v1249, %v1250
      %v1252 = vrot.slane %v1250, 4
      %1286 = vst.msk [vmem:[#allocation2 + $0x10] sm:$0xe] %vm1052, %v1158
      %1287 = vst.msk [vmem:[#allocation2 + $0x14] sm:$0xf] %vm1045, %v1161
      %1288 = vst.msk [vmem:[#allocation2 + $0x18] sm:$0xf] %vm1045, %v1164
      %1289 = vst.msk [vmem:[#allocation2 + $0x1c] sm:$0xf] %vm1045, %v1167
      %1290 = vst.msk [vmem:[#allocation2 + $0x20] sm:$0xf] %vm1045, %v1170
      %1291 = vst.msk [vmem:[#allocation2 + $0x24] sm:$0xf] %vm1045, %v1173
      %1292 = vst.msk [vmem:[#allocation2 + $0x28] sm:$0xf] %vm1045, %v1176
      %1293 = vst.msk [vmem:[#allocation2 + $0x2c] sm:$0xf] %vm1045, %v1179
      %1294 = vst.msk [vmem:[#allocation2 + $0x30] sm:$0xf] %vm1045, %v1182
      %1295 = vst.msk [vmem:[#allocation2 + $0x34] sm:$0xf] %vm1045, %v1185
      %1296 = vst.msk [vmem:[#allocation2 + $0x38] sm:$0xf] %vm1045, %v1188
      %1297 = vst.msk [vmem:[#allocation2 + $0x3c] sm:$0xf] %vm1045, %v1191
      %1298 = vst.msk [vmem:[#allocation2 + $0x40] sm:$0xf] %vm1045, %v1194
      %1299 = vst.msk [vmem:[#allocation2 + $0x44] sm:$0xf] %vm1045, %v1197
      %1300 = vst.msk [vmem:[#allocation2 + $0x48] sm:$0xf] %vm1045, %v1200
      %1301 = vst.msk [vmem:[#allocation2 + $0x4c] sm:$0xf] %vm1045, %v1203
      %1302 = vst.msk [vmem:[#allocation2 + $0x50] sm:$0xf] %vm1045, %v1206
      %1303 = vst.msk [vmem:[#allocation2 + $0x54] sm:$0xf] %vm1045, %v1209
      %1304 = vst.msk [vmem:[#allocation2 + $0x58] sm:$0xf] %vm1045, %v1212
      %1305 = vst.msk [vmem:[#allocation2 + $0x5c] sm:$0xf] %vm1045, %v1215
      %1306 = vst.msk [vmem:[#allocation2 + $0x60] sm:$0xf] %vm1045, %v1218
      %1307 = vst.msk [vmem:[#allocation2 + $0x64] sm:$0xf] %vm1045, %v1221
      %1308 = vst.msk [vmem:[#allocation2 + $0x68] sm:$0xf] %vm1045, %v1224
      %1309 = vst.msk [vmem:[#allocation2 + $0x6c] sm:$0xf] %vm1045, %v1227
      %1310 = vst.msk [vmem:[#allocation2 + $0x70] sm:$0xf] %vm1045, %v1230
      %1311 = vst.msk [vmem:[#allocation2 + $0x74] sm:$0xf] %vm1045, %v1233
      %1312 = vst.msk [vmem:[#allocation2 + $0x78] sm:$0xf] %vm1045, %v1236
      %1313 = vst.msk [vmem:[#allocation2 + $0x7c] sm:$0xf] %vm1045, %v1239
      %1314 = vst.msk [vmem:[#allocation2 + $0x80] sm:$0xf] %vm1045, %v1242
      %1315 = vst.msk [vmem:[#allocation2 + $0x84] sm:$0xf] %vm1045, %v1245
      %1316 = vst.msk [vmem:[#allocation2 + $0x88] sm:$0xf] %vm1045, %v1248
      %1317 = vst.msk [vmem:[#allocation2 + $0x8c] sm:$0xf] %vm1045, %v1251
      %1318 = vst.msk [vmem:[#allocation2 + $0x90] sm:$0x1] %vm1050, %v1252
      %v1319 = vld [vmem:[%s5] sm:$0x1f]
      %v1320 = vld [vmem:[%s5 + $0x8] sm:$0x1f]
      %v1321 = vld [vmem:[%s5 + $0x10] sm:$0x1f]
      %v1322 = vld [vmem:[%s5 + $0x18] sm:$0x1f]
      %v1323 = vld [vmem:[%s5 + $0x20] sm:$0x1f]
      %v1324 = vlaneseq
      %v1325 = vshrl.u32 %v1324, 7
      %v1326 = vadd.s32 %v1325, 8
      %v1327 = vadd.s32 %v1325, 16
      %v1328 = vadd.s32 %v1325, 24
      %v1329 = vadd.s32 %v1325, 32
      %v1330 = vadd.s32 %v1325, 40
      %v1331 = vadd.s32 %v1325, 48
      %v1332 = vadd.s32 %v1325, 56
      %v1333 = vadd.s32 %v1325, 64
      %v1334 = vadd.s32 %v1325, 72
      %v1335 = vadd.s32 %v1325, 80
      %v1336 = vadd.s32 %v1325, 88
      %v1337 = vadd.s32 %v1325, 96
      %v1338 = vadd.s32 %v1325, 104
      %v1339 = vadd.s32 %v1325, 112
      %v1340 = vadd.s32 %v1325, 120
      %v1341 = vadd.s32 %v1325, 128
      %v1342 = vadd.s32 %v1325, 136
      %v1343 = vadd.s32 %v1325, 144
      %v1344 = vadd.s32 %v1325, 152
      %v1345 = vadd.s32 %v1325, 160
      %v1346 = vadd.s32 %v1325, 168
      %v1347 = vadd.s32 %v1325, 176
      %v1348 = vadd.s32 %v1325, 184
      %v1349 = vadd.s32 %v1325, 192
      %v1350 = vadd.s32 %v1325, 200
      %v1351 = vadd.s32 %v1325, 208
      %v1352 = vadd.s32 %v1325, 216
      %v1353 = vadd.s32 %v1325, 224
      %v1354 = vadd.s32 %v1325, 232
      %v1355 = vadd.s32 %v1325, 240
      %v1356 = vadd.s32 %v1325, 248
      %vm1357 = vcmp.lt.s32.totalorder %v1325, 0
      %v1358 = vsub.s32 0, %v1325
      %v1359 = vsel %vm1357, %v1358, %v1325
      %v1360 = vshrl.u32 %v1359, 4
      %v1361 = vand.u32 %v1359, 15
      %v1362 = vsub.s32 0, %v1361
      %v1363 = vsel %vm1357, %v1362, %v1361
      %vm1364 = vcmp.lt.s32.totalorder %v1326, 0
      %v1365 = vsub.s32 0, %v1326
      %v1366 = vsel %vm1364, %v1365, %v1326
      %v1367 = vshrl.u32 %v1366, 4
      %v1368 = vand.u32 %v1366, 15
      %v1369 = vsub.s32 0, %v1368
      %v1370 = vsel %vm1364, %v1369, %v1368
      %vm1371 = vcmp.lt.s32.totalorder %v1327, 0
      %v1372 = vsub.s32 0, %v1327
      %v1373 = vsel %vm1371, %v1372, %v1327
      %v1374 = vshrl.u32 %v1373, 4
      %v1375 = vand.u32 %v1373, 15
      %v1376 = vsub.s32 0, %v1375
      %v1377 = vsel %vm1371, %v1376, %v1375
      %vm1378 = vcmp.lt.s32.totalorder %v1328, 0
      %v1379 = vsub.s32 0, %v1328
      %v1380 = vsel %vm1378, %v1379, %v1328
      %v1381 = vshrl.u32 %v1380, 4
      %v1382 = vand.u32 %v1380, 15
      %v1383 = vsub.s32 0, %v1382
      %v1384 = vsel %vm1378, %v1383, %v1382
      %vm1385 = vcmp.lt.s32.totalorder %v1329, 0
      %v1386 = vsub.s32 0, %v1329
      %v1387 = vsel %vm1385, %v1386, %v1329
      %v1388 = vshrl.u32 %v1387, 4
      %v1389 = vand.u32 %v1387, 15
      %v1390 = vsub.s32 0, %v1389
      %v1391 = vsel %vm1385, %v1390, %v1389
      %vm1392 = vcmp.lt.s32.totalorder %v1330, 0
      %v1393 = vsub.s32 0, %v1330
      %v1394 = vsel %vm1392, %v1393, %v1330
      %v1395 = vshrl.u32 %v1394, 4
      %v1396 = vand.u32 %v1394, 15
      %v1397 = vsub.s32 0, %v1396
      %v1398 = vsel %vm1392, %v1397, %v1396
      %vm1399 = vcmp.lt.s32.totalorder %v1331, 0
      %v1400 = vsub.s32 0, %v1331
      %v1401 = vsel %vm1399, %v1400, %v1331
      %v1402 = vshrl.u32 %v1401, 4
      %v1403 = vand.u32 %v1401, 15
      %v1404 = vsub.s32 0, %v1403
      %v1405 = vsel %vm1399, %v1404, %v1403
      %vm1406 = vcmp.lt.s32.totalorder %v1332, 0
      %v1407 = vsub.s32 0, %v1332
      %v1408 = vsel %vm1406, %v1407, %v1332
      %v1409 = vshrl.u32 %v1408, 4
      %v1410 = vand.u32 %v1408, 15
      %v1411 = vsub.s32 0, %v1410
      %v1412 = vsel %vm1406, %v1411, %v1410
      %vm1413 = vcmp.lt.s32.totalorder %v1333, 0
      %v1414 = vsub.s32 0, %v1333
      %v1415 = vsel %vm1413, %v1414, %v1333
      %v1416 = vshrl.u32 %v1415, 4
      %v1417 = vand.u32 %v1415, 15
      %v1418 = vsub.s32 0, %v1417
      %v1419 = vsel %vm1413, %v1418, %v1417
      %vm1420 = vcmp.lt.s32.totalorder %v1334, 0
      %v1421 = vsub.s32 0, %v1334
      %v1422 = vsel %vm1420, %v1421, %v1334
      %v1423 = vshrl.u32 %v1422, 4
      %v1424 = vand.u32 %v1422, 15
      %v1425 = vsub.s32 0, %v1424
      %v1426 = vsel %vm1420, %v1425, %v1424
      %vm1427 = vcmp.lt.s32.totalorder %v1335, 0
      %v1428 = vsub.s32 0, %v1335
      %v1429 = vsel %vm1427, %v1428, %v1335
      %v1430 = vshrl.u32 %v1429, 4
      %v1431 = vand.u32 %v1429, 15
      %v1432 = vsub.s32 0, %v1431
      %v1433 = vsel %vm1427, %v1432, %v1431
      %vm1434 = vcmp.lt.s32.totalorder %v1336, 0
      %v1435 = vsub.s32 0, %v1336
      %v1436 = vsel %vm1434, %v1435, %v1336
      %v1437 = vshrl.u32 %v1436, 4
      %v1438 = vand.u32 %v1436, 15
      %v1439 = vsub.s32 0, %v1438
      %v1440 = vsel %vm1434, %v1439, %v1438
      %vm1441 = vcmp.lt.s32.totalorder %v1337, 0
      %v1442 = vsub.s32 0, %v1337
      %v1443 = vsel %vm1441, %v1442, %v1337
      %v1444 = vshrl.u32 %v1443, 4
      %v1445 = vand.u32 %v1443, 15
      %v1446 = vsub.s32 0, %v1445
      %v1447 = vsel %vm1441, %v1446, %v1445
      %vm1448 = vcmp.lt.s32.totalorder %v1338, 0
      %v1449 = vsub.s32 0, %v1338
      %v1450 = vsel %vm1448, %v1449, %v1338
      %v1451 = vshrl.u32 %v1450, 4
      %v1452 = vand.u32 %v1450, 15
      %v1453 = vsub.s32 0, %v1452
      %v1454 = vsel %vm1448, %v1453, %v1452
      %vm1455 = vcmp.lt.s32.totalorder %v1339, 0
      %v1456 = vsub.s32 0, %v1339
      %v1457 = vsel %vm1455, %v1456, %v1339
      %v1458 = vshrl.u32 %v1457, 4
      %v1459 = vand.u32 %v1457, 15
      %v1460 = vsub.s32 0, %v1459
      %v1461 = vsel %vm1455, %v1460, %v1459
      %vm1462 = vcmp.lt.s32.totalorder %v1340, 0
      %v1463 = vsub.s32 0, %v1340
      %v1464 = vsel %vm1462, %v1463, %v1340
      %v1465 = vshrl.u32 %v1464, 4
      %v1466 = vand.u32 %v1464, 15
      %v1467 = vsub.s32 0, %v1466
      %v1468 = vsel %vm1462, %v1467, %v1466
      %vm1469 = vcmp.lt.s32.totalorder %v1341, 0
      %v1470 = vsub.s32 0, %v1341
      %v1471 = vsel %vm1469, %v1470, %v1341
      %v1472 = vshrl.u32 %v1471, 4
      %v1473 = vand.u32 %v1471, 15
      %v1474 = vsub.s32 0, %v1473
      %v1475 = vsel %vm1469, %v1474, %v1473
      %vm1476 = vcmp.lt.s32.totalorder %v1342, 0
      %v1477 = vsub.s32 0, %v1342
      %v1478 = vsel %vm1476, %v1477, %v1342
      %v1479 = vshrl.u32 %v1478, 4
      %v1480 = vand.u32 %v1478, 15
      %v1481 = vsub.s32 0, %v1480
      %v1482 = vsel %vm1476, %v1481, %v1480
      %vm1483 = vcmp.lt.s32.totalorder %v1343, 0
      %v1484 = vsub.s32 0, %v1343
      %v1485 = vsel %vm1483, %v1484, %v1343
      %v1486 = vshrl.u32 %v1485, 4
      %v1487 = vand.u32 %v1485, 15
      %v1488 = vsub.s32 0, %v1487
      %v1489 = vsel %vm1483, %v1488, %v1487
      %vm1490 = vcmp.lt.s32.totalorder %v1344, 0
      %v1491 = vsub.s32 0, %v1344
      %v1492 = vsel %vm1490, %v1491, %v1344
      %v1493 = vshrl.u32 %v1492, 4
      %v1494 = vand.u32 %v1492, 15
      %v1495 = vsub.s32 0, %v1494
      %v1496 = vsel %vm1490, %v1495, %v1494
      %vm1497 = vcmp.lt.s32.totalorder %v1345, 0
      %v1498 = vsub.s32 0, %v1345
      %v1499 = vsel %vm1497, %v1498, %v1345
      %v1500 = vshrl.u32 %v1499, 4
      %v1501 = vand.u32 %v1499, 15
      %v1502 = vsub.s32 0, %v1501
      %v1503 = vsel %vm1497, %v1502, %v1501
      %vm1504 = vcmp.lt.s32.totalorder %v1346, 0
      %v1505 = vsub.s32 0, %v1346
      %v1506 = vsel %vm1504, %v1505, %v1346
      %v1507 = vshrl.u32 %v1506, 4
      %v1508 = vand.u32 %v1506, 15
      %v1509 = vsub.s32 0, %v1508
      %v1510 = vsel %vm1504, %v1509, %v1508
      %vm1511 = vcmp.lt.s32.totalorder %v1347, 0
      %v1512 = vsub.s32 0, %v1347
      %v1513 = vsel %vm1511, %v1512, %v1347
      %v1514 = vshrl.u32 %v1513, 4
      %v1515 = vand.u32 %v1513, 15
      %v1516 = vsub.s32 0, %v1515
      %v1517 = vsel %vm1511, %v1516, %v1515
      %vm1518 = vcmp.lt.s32.totalorder %v1348, 0
      %v1519 = vsub.s32 0, %v1348
      %v1520 = vsel %vm1518, %v1519, %v1348
      %v1521 = vshrl.u32 %v1520, 4
      %v1522 = vand.u32 %v1520, 15
      %v1523 = vsub.s32 0, %v1522
      %v1524 = vsel %vm1518, %v1523, %v1522
      %vm1525 = vcmp.lt.s32.totalorder %v1349, 0
      %v1526 = vsub.s32 0, %v1349
      %v1527 = vsel %vm1525, %v1526, %v1349
      %v1528 = vshrl.u32 %v1527, 4
      %v1529 = vand.u32 %v1527, 15
      %v1530 = vsub.s32 0, %v1529
      %v1531 = vsel %vm1525, %v1530, %v1529
      %vm1532 = vcmp.lt.s32.totalorder %v1350, 0
      %v1533 = vsub.s32 0, %v1350
      %v1534 = vsel %vm1532, %v1533, %v1350
      %v1535 = vshrl.u32 %v1534, 4
      %v1536 = vand.u32 %v1534, 15
      %v1537 = vsub.s32 0, %v1536
      %v1538 = vsel %vm1532, %v1537, %v1536
      %vm1539 = vcmp.lt.s32.totalorder %v1351, 0
      %v1540 = vsub.s32 0, %v1351
      %v1541 = vsel %vm1539, %v1540, %v1351
      %v1542 = vshrl.u32 %v1541, 4
      %v1543 = vand.u32 %v1541, 15
      %v1544 = vsub.s32 0, %v1543
      %v1545 = vsel %vm1539, %v1544, %v1543
      %vm1546 = vcmp.lt.s32.totalorder %v1352, 0
      %v1547 = vsub.s32 0, %v1352
      %v1548 = vsel %vm1546, %v1547, %v1352
      %v1549 = vshrl.u32 %v1548, 4
      %v1550 = vand.u32 %v1548, 15
      %v1551 = vsub.s32 0, %v1550
      %v1552 = vsel %vm1546, %v1551, %v1550
      %vm1553 = vcmp.lt.s32.totalorder %v1353, 0
      %v1554 = vsub.s32 0, %v1353
      %v1555 = vsel %vm1553, %v1554, %v1353
      %v1556 = vshrl.u32 %v1555, 4
      %v1557 = vand.u32 %v1555, 15
      %v1558 = vsub.s32 0, %v1557
      %v1559 = vsel %vm1553, %v1558, %v1557
      %vm1560 = vcmp.lt.s32.totalorder %v1354, 0
      %v1561 = vsub.s32 0, %v1354
      %v1562 = vsel %vm1560, %v1561, %v1354
      %v1563 = vshrl.u32 %v1562, 4
      %v1564 = vand.u32 %v1562, 15
      %v1565 = vsub.s32 0, %v1564
      %v1566 = vsel %vm1560, %v1565, %v1564
      %vm1567 = vcmp.lt.s32.totalorder %v1355, 0
      %v1568 = vsub.s32 0, %v1355
      %v1569 = vsel %vm1567, %v1568, %v1355
      %v1570 = vshrl.u32 %v1569, 4
      %v1571 = vand.u32 %v1569, 15
      %v1572 = vsub.s32 0, %v1571
      %v1573 = vsel %vm1567, %v1572, %v1571
      %vm1574 = vcmp.lt.s32.totalorder %v1356, 0
      %v1575 = vsub.s32 0, %v1356
      %v1576 = vsel %vm1574, %v1575, %v1356
      %v1577 = vshrl.u32 %v1576, 4
      %v1578 = vand.u32 %v1576, 15
      %v1579 = vsub.s32 0, %v1578
      %v1580 = vsel %vm1574, %v1579, %v1578
      %vm1581 = vcmp.ne.s32.totalorder %v1363, 0
      %vm1582 = vcmp.ne.s32.totalorder %v1370, 0
      %vm1583 = vcmp.ne.s32.totalorder %v1377, 0
      %vm1584 = vcmp.ne.s32.totalorder %v1384, 0
      %vm1585 = vcmp.ne.s32.totalorder %v1391, 0
      %vm1586 = vcmp.ne.s32.totalorder %v1398, 0
      %vm1587 = vcmp.ne.s32.totalorder %v1405, 0
      %vm1588 = vcmp.ne.s32.totalorder %v1412, 0
      %vm1589 = vcmp.ne.s32.totalorder %v1419, 0
      %vm1590 = vcmp.ne.s32.totalorder %v1426, 0
      %vm1591 = vcmp.ne.s32.totalorder %v1433, 0
      %vm1592 = vcmp.ne.s32.totalorder %v1440, 0
      %vm1593 = vcmp.ne.s32.totalorder %v1447, 0
      %vm1594 = vcmp.ne.s32.totalorder %v1454, 0
      %vm1595 = vcmp.ne.s32.totalorder %v1461, 0
      %vm1596 = vcmp.ne.s32.totalorder %v1468, 0
      %vm1597 = vcmp.ne.s32.totalorder %v1475, 0
      %vm1598 = vcmp.ne.s32.totalorder %v1482, 0
      %vm1599 = vcmp.ne.s32.totalorder %v1489, 0
      %vm1600 = vcmp.ne.s32.totalorder %v1496, 0
      %vm1601 = vcmp.ne.s32.totalorder %v1503, 0
      %vm1602 = vcmp.ne.s32.totalorder %v1510, 0
      %vm1603 = vcmp.ne.s32.totalorder %v1517, 0
      %vm1604 = vcmp.ne.s32.totalorder %v1524, 0
      %vm1605 = vcmp.ne.s32.totalorder %v1531, 0
      %vm1606 = vcmp.ne.s32.totalorder %v1538, 0
      %vm1607 = vcmp.ne.s32.totalorder %v1545, 0
      %vm1608 = vcmp.ne.s32.totalorder %v1552, 0
      %vm1609 = vcmp.ne.s32.totalorder %v1559, 0
      %vm1610 = vcmp.ne.s32.totalorder %v1566, 0
      %vm1611 = vcmp.ne.s32.totalorder %v1573, 0
      %vm1612 = vcmp.ne.s32.totalorder %v1580, 0
      %vm1613 = vcmp.lt.s32.totalorder %v1363, 0
      %vm1614 = vcmp.lt.s32.totalorder %v1370, 0
      %vm1615 = vcmp.lt.s32.totalorder %v1377, 0
      %vm1616 = vcmp.lt.s32.totalorder %v1384, 0
      %vm1617 = vcmp.lt.s32.totalorder %v1391, 0
      %vm1618 = vcmp.lt.s32.totalorder %v1398, 0
      %vm1619 = vcmp.lt.s32.totalorder %v1405, 0
      %vm1620 = vcmp.lt.s32.totalorder %v1412, 0
      %vm1621 = vcmp.lt.s32.totalorder %v1419, 0
      %vm1622 = vcmp.lt.s32.totalorder %v1426, 0
      %vm1623 = vcmp.lt.s32.totalorder %v1433, 0
      %vm1624 = vcmp.lt.s32.totalorder %v1440, 0
      %vm1625 = vcmp.lt.s32.totalorder %v1447, 0
      %vm1626 = vcmp.lt.s32.totalorder %v1454, 0
      %vm1627 = vcmp.lt.s32.totalorder %v1461, 0
      %vm1628 = vcmp.lt.s32.totalorder %v1468, 0
      %vm1629 = vcmp.lt.s32.totalorder %v1475, 0
      %vm1630 = vcmp.lt.s32.totalorder %v1482, 0
      %vm1631 = vcmp.lt.s32.totalorder %v1489, 0
      %vm1632 = vcmp.lt.s32.totalorder %v1496, 0
      %vm1633 = vcmp.lt.s32.totalorder %v1503, 0
      %vm1634 = vcmp.lt.s32.totalorder %v1510, 0
      %vm1635 = vcmp.lt.s32.totalorder %v1517, 0
      %vm1636 = vcmp.lt.s32.totalorder %v1524, 0
      %vm1637 = vcmp.lt.s32.totalorder %v1531, 0
      %vm1638 = vcmp.lt.s32.totalorder %v1538, 0
      %vm1639 = vcmp.lt.s32.totalorder %v1545, 0
      %vm1640 = vcmp.lt.s32.totalorder %v1552, 0
      %vm1641 = vcmp.lt.s32.totalorder %v1559, 0
      %vm1642 = vcmp.lt.s32.totalorder %v1566, 0
      %vm1643 = vcmp.lt.s32.totalorder %v1573, 0
      %vm1644 = vcmp.lt.s32.totalorder %v1580, 0
      %vm1645 = vmand %vm1613, %vm1581
      %vm1646 = vmand %vm1614, %vm1582
      %vm1647 = vmand %vm1615, %vm1583
      %vm1648 = vmand %vm1616, %vm1584
      %vm1649 = vmand %vm1617, %vm1585
      %vm1650 = vmand %vm1618, %vm1586
      %vm1651 = vmand %vm1619, %vm1587
      %vm1652 = vmand %vm1620, %vm1588
      %vm1653 = vmand %vm1621, %vm1589
      %vm1654 = vmand %vm1622, %vm1590
      %vm1655 = vmand %vm1623, %vm1591
      %vm1656 = vmand %vm1624, %vm1592
      %vm1657 = vmand %vm1625, %vm1593
      %vm1658 = vmand %vm1626, %vm1594
      %vm1659 = vmand %vm1627, %vm1595
      %vm1660 = vmand %vm1628, %vm1596
      %vm1661 = vmand %vm1629, %vm1597
      %vm1662 = vmand %vm1630, %vm1598
      %vm1663 = vmand %vm1631, %vm1599
      %vm1664 = vmand %vm1632, %vm1600
      %vm1665 = vmand %vm1633, %vm1601
      %vm1666 = vmand %vm1634, %vm1602
      %vm1667 = vmand %vm1635, %vm1603
      %vm1668 = vmand %vm1636, %vm1604
      %vm1669 = vmand %vm1637, %vm1605
      %vm1670 = vmand %vm1638, %vm1606
      %vm1671 = vmand %vm1639, %vm1607
      %vm1672 = vmand %vm1640, %vm1608
      %vm1673 = vmand %vm1641, %vm1609
      %vm1674 = vmand %vm1642, %vm1610
      %vm1675 = vmand %vm1643, %vm1611
      %vm1676 = vmand %vm1644, %vm1612
      %v1677 = vadd.s32 %v1363, 16
      %v1678 = vadd.s32 %v1370, 16
      %v1679 = vadd.s32 %v1377, 16
      %v1680 = vadd.s32 %v1384, 16
      %v1681 = vadd.s32 %v1391, 16
      %v1682 = vadd.s32 %v1398, 16
      %v1683 = vadd.s32 %v1405, 16
      %v1684 = vadd.s32 %v1412, 16
      %v1685 = vadd.s32 %v1419, 16
      %v1686 = vadd.s32 %v1426, 16
      %v1687 = vadd.s32 %v1433, 16
      %v1688 = vadd.s32 %v1440, 16
      %v1689 = vadd.s32 %v1447, 16
      %v1690 = vadd.s32 %v1454, 16
      %v1691 = vadd.s32 %v1461, 16
      %v1692 = vadd.s32 %v1468, 16
      %v1693 = vadd.s32 %v1475, 16
      %v1694 = vadd.s32 %v1482, 16
      %v1695 = vadd.s32 %v1489, 16
      %v1696 = vadd.s32 %v1496, 16
      %v1697 = vadd.s32 %v1503, 16
      %v1698 = vadd.s32 %v1510, 16
      %v1699 = vadd.s32 %v1517, 16
      %v1700 = vadd.s32 %v1524, 16
      %v1701 = vadd.s32 %v1531, 16
      %v1702 = vadd.s32 %v1538, 16
      %v1703 = vadd.s32 %v1545, 16
      %v1704 = vadd.s32 %v1552, 16
      %v1705 = vadd.s32 %v1559, 16
      %v1706 = vadd.s32 %v1566, 16
      %v1707 = vadd.s32 %v1573, 16
      %v1708 = vadd.s32 %v1580, 16
      %v1709 = vsel %vm1645, %v1677, %v1363
      %v1710 = vsel %vm1646, %v1678, %v1370
      %v1711 = vsel %vm1647, %v1679, %v1377
      %v1712 = vsel %vm1648, %v1680, %v1384
      %v1713 = vsel %vm1649, %v1681, %v1391
      %v1714 = vsel %vm1650, %v1682, %v1398
      %v1715 = vsel %vm1651, %v1683, %v1405
      %v1716 = vsel %vm1652, %v1684, %v1412
      %v1717 = vsel %vm1653, %v1685, %v1419
      %v1718 = vsel %vm1654, %v1686, %v1426
      %v1719 = vsel %vm1655, %v1687, %v1433
      %v1720 = vsel %vm1656, %v1688, %v1440
      %v1721 = vsel %vm1657, %v1689, %v1447
      %v1722 = vsel %vm1658, %v1690, %v1454
      %v1723 = vsel %vm1659, %v1691, %v1461
      %v1724 = vsel %vm1660, %v1692, %v1468
      %v1725 = vsel %vm1661, %v1693, %v1475
      %v1726 = vsel %vm1662, %v1694, %v1482
      %v1727 = vsel %vm1663, %v1695, %v1489
      %v1728 = vsel %vm1664, %v1696, %v1496
      %v1729 = vsel %vm1665, %v1697, %v1503
      %v1730 = vsel %vm1666, %v1698, %v1510
      %v1731 = vsel %vm1667, %v1699, %v1517
      %v1732 = vsel %vm1668, %v1700, %v1524
      %v1733 = vsel %vm1669, %v1701, %v1531
      %v1734 = vsel %vm1670, %v1702, %v1538
      %v1735 = vsel %vm1671, %v1703, %v1545
      %v1736 = vsel %vm1672, %v1704, %v1552
      %v1737 = vsel %vm1673, %v1705, %v1559
      %v1738 = vsel %vm1674, %v1706, %v1566
      %v1739 = vsel %vm1675, %v1707, %v1573
      %v1740 = vsel %vm1676, %v1708, %v1580
      %v1741 = vld [vmem:[#allocation2] sm:$0xf]
      %v1742 = vld [vmem:[#allocation2 + $0x4] sm:$0xf]
      %v1743 = vld [vmem:[#allocation2 + $0x8] sm:$0xf]
      %v1744 = vld [vmem:[#allocation2 + $0xc] sm:$0xf]
      %v1745 = vld [vmem:[#allocation2 + $0x10] sm:$0xf]
      %v1746 = vld [vmem:[#allocation2 + $0x14] sm:$0xf]
      %v1747 = vld [vmem:[#allocation2 + $0x18] sm:$0xf]
      %v1748 = vld [vmem:[#allocation2 + $0x1c] sm:$0xf]
      %v1749 = vld [vmem:[#allocation2 + $0x20] sm:$0xf]
      %v1750 = vld [vmem:[#allocation2 + $0x24] sm:$0xf]
      %v1751 = vld [vmem:[#allocation2 + $0x28] sm:$0xf]
      %v1752 = vld [vmem:[#allocation2 + $0x2c] sm:$0xf]
      %v1753 = vld [vmem:[#allocation2 + $0x30] sm:$0xf]
      %v1754 = vld [vmem:[#allocation2 + $0x34] sm:$0xf]
      %v1755 = vld [vmem:[#allocation2 + $0x38] sm:$0xf]
      %v1756 = vld [vmem:[#allocation2 + $0x3c] sm:$0xf]
      %v1757 = vld [vmem:[#allocation2 + $0x40] sm:$0xf]
      %v1758 = vld [vmem:[#allocation2 + $0x44] sm:$0xf]
      %v1759 = vld [vmem:[#allocation2 + $0x48] sm:$0xf]
      %v1760 = vld [vmem:[#allocation2 + $0x4c] sm:$0xf]
      %v1761 = vld [vmem:[#allocation2 + $0x50] sm:$0xf]
      %v1762 = vld [vmem:[#allocation2 + $0x54] sm:$0xf]
      %v1763 = vld [vmem:[#allocation2 + $0x58] sm:$0xf]
      %v1764 = vld [vmem:[#allocation2 + $0x5c] sm:$0xf]
      %v1765 = vld [vmem:[#allocation2 + $0x60] sm:$0xf]
      %v1766 = vld [vmem:[#allocation2 + $0x64] sm:$0xf]
      %v1767 = vld [vmem:[#allocation2 + $0x68] sm:$0xf]
      %v1768 = vld [vmem:[#allocation2 + $0x6c] sm:$0xf]
      %v1769 = vld [vmem:[#allocation2 + $0x70] sm:$0xf]
      %v1770 = vld [vmem:[#allocation2 + $0x74] sm:$0xf]
      %v1771 = vld [vmem:[#allocation2 + $0x78] sm:$0xf]
      %v1772 = vld [vmem:[#allocation2 + $0x7c] sm:$0xf]
      %v1773 = vld [vmem:[#allocation2 + $0x80] sm:$0xf]
      %v1774 = vld [vmem:[#allocation2 + $0x84] sm:$0xf]
      %v1775 = vld [vmem:[#allocation2 + $0x88] sm:$0xf]
      %v1776 = vld [vmem:[#allocation2 + $0x8c] sm:$0xf]
      %v1777 = vld [vmem:[#allocation2 + $0x90] sm:$0xf]
      %v1778 = vld [vmem:[#allocation2 + $0x94] sm:$0xf]
      %v1779 = vld [vmem:[#allocation2 + $0x98] sm:$0xf]
      %v1780 = vld [vmem:[#allocation2 + $0x9c] sm:$0xf]
      %v1781 = vunpack.c.l.bf16 %v1741
      %v1782 = vunpack.c.l.bf16 %v1742
      %v1783 = vunpack.c.l.bf16 %v1743
      %v1784 = vunpack.c.l.bf16 %v1744
      %v1785 = vunpack.c.l.bf16 %v1745
      %v1786 = vunpack.c.l.bf16 %v1746
      %v1787 = vunpack.c.l.bf16 %v1747
      %v1788 = vunpack.c.l.bf16 %v1748
      %v1789 = vunpack.c.l.bf16 %v1749
      %v1790 = vunpack.c.l.bf16 %v1750
      %v1791 = vunpack.c.l.bf16 %v1751
      %v1792 = vunpack.c.l.bf16 %v1752
      %v1793 = vunpack.c.l.bf16 %v1753
      %v1794 = vunpack.c.l.bf16 %v1754
      %v1795 = vunpack.c.l.bf16 %v1755
      %v1796 = vunpack.c.l.bf16 %v1756
      %v1797 = vunpack.c.l.bf16 %v1757
      %v1798 = vunpack.c.l.bf16 %v1758
      %v1799 = vunpack.c.l.bf16 %v1759
      %v1800 = vunpack.c.l.bf16 %v1760
      %v1801 = vunpack.c.l.bf16 %v1761
      %v1802 = vunpack.c.l.bf16 %v1762
      %v1803 = vunpack.c.l.bf16 %v1763
      %v1804 = vunpack.c.l.bf16 %v1764
      %v1805 = vunpack.c.l.bf16 %v1765
      %v1806 = vunpack.c.l.bf16 %v1766
      %v1807 = vunpack.c.l.bf16 %v1767
      %v1808 = vunpack.c.l.bf16 %v1768
      %v1809 = vunpack.c.l.bf16 %v1769
      %v1810 = vunpack.c.l.bf16 %v1770
      %v1811 = vunpack.c.l.bf16 %v1771
      %v1812 = vunpack.c.l.bf16 %v1772
      %v1813 = vunpack.c.l.bf16 %v1773
      %v1814 = vunpack.c.l.bf16 %v1774
      %v1815 = vunpack.c.l.bf16 %v1775
      %v1816 = vunpack.c.l.bf16 %v1776
      %v1817 = vunpack.c.l.bf16 %v1777
      %v1818 = vunpack.c.l.bf16 %v1778
      %v1819 = vunpack.c.l.bf16 %v1779
      %v1820 = vunpack.c.l.bf16 %v1780
      %v1821 = vlaneseq
      %v1822 = vshrl.u32 %v1821, 7
      %v1823 = vsub.s32 0, %v1822
      %v1824 = vrot.slane %v1319, %v1823
      %v1825 = vmul.f32 %v1781, %v1824
      %v1826 = vmul.f32 %v1782, %v1824
      %v1827 = vmul.f32 %v1783, %v1824
      %v1828 = vmul.f32 %v1784, %v1824
      %v1829 = vmul.f32 %v1785, %v1824
      %v1830 = vmul.f32 %v1786, %v1824
      %v1831 = vmul.f32 %v1787, %v1824
      %v1832 = vmul.f32 %v1788, %v1824
      %v1833 = vmul.f32 %v1789, %v1824
      %v1834 = vmul.f32 %v1790, %v1824
      %v1835 = vmul.f32 %v1791, %v1824
      %v1836 = vmul.f32 %v1792, %v1824
      %v1837 = vmul.f32 %v1793, %v1824
      %v1838 = vmul.f32 %v1794, %v1824
      %v1839 = vmul.f32 %v1795, %v1824
      %v1840 = vmul.f32 %v1796, %v1824
      %v1841 = vmul.f32 %v1797, %v1824
      %v1842 = vmul.f32 %v1798, %v1824
      %v1843 = vmul.f32 %v1799, %v1824
      %v1844 = vmul.f32 %v1800, %v1824
      %v1845 = vmul.f32 %v1801, %v1824
      %v1846 = vmul.f32 %v1802, %v1824
      %v1847 = vmul.f32 %v1803, %v1824
      %v1848 = vmul.f32 %v1804, %v1824
      %v1849 = vmul.f32 %v1805, %v1824
      %v1850 = vmul.f32 %v1806, %v1824
      %v1851 = vmul.f32 %v1807, %v1824
      %v1852 = vmul.f32 %v1808, %v1824
      %v1853 = vmul.f32 %v1809, %v1824
      %v1854 = vmul.f32 %v1810, %v1824
      %v1855 = vmul.f32 %v1811, %v1824
      %v1856 = vmul.f32 %v1812, %v1824
      %v1857 = vlaneseq
      %v1858 = vshrl.u32 %v1857, 7
      %v1859 = vsub.s32 0, %v1858
      %v1860 = vrot.slane %v1320, %v1859
      %v1861 = vmul.f32 %v1783, %v1860
      %v1862 = vmul.f32 %v1784, %v1860
      %v1863 = vmul.f32 %v1785, %v1860
      %v1864 = vmul.f32 %v1786, %v1860
      %v1865 = vmul.f32 %v1787, %v1860
      %v1866 = vmul.f32 %v1788, %v1860
      %v1867 = vmul.f32 %v1789, %v1860
      %v1868 = vmul.f32 %v1790, %v1860
      %v1869 = vmul.f32 %v1791, %v1860
      %v1870 = vmul.f32 %v1792, %v1860
      %v1871 = vmul.f32 %v1793, %v1860
      %v1872 = vmul.f32 %v1794, %v1860
      %v1873 = vmul.f32 %v1795, %v1860
      %v1874 = vmul.f32 %v1796, %v1860
      %v1875 = vmul.f32 %v1797, %v1860
      %v1876 = vmul.f32 %v1798, %v1860
      %v1877 = vmul.f32 %v1799, %v1860
      %v1878 = vmul.f32 %v1800, %v1860
      %v1879 = vmul.f32 %v1801, %v1860
      %v1880 = vmul.f32 %v1802, %v1860
      %v1881 = vmul.f32 %v1803, %v1860
      %v1882 = vmul.f32 %v1804, %v1860
      %v1883 = vmul.f32 %v1805, %v1860
      %v1884 = vmul.f32 %v1806, %v1860
      %v1885 = vmul.f32 %v1807, %v1860
      %v1886 = vmul.f32 %v1808, %v1860
      %v1887 = vmul.f32 %v1809, %v1860
      %v1888 = vmul.f32 %v1810, %v1860
      %v1889 = vmul.f32 %v1811, %v1860
      %v1890 = vmul.f32 %v1812, %v1860
      %v1891 = vmul.f32 %v1813, %v1860
      %v1892 = vmul.f32 %v1814, %v1860
      %v1893 = vadd.f32 %v1825, %v1861
      %v1894 = vadd.f32 %v1826, %v1862
      %v1895 = vadd.f32 %v1827, %v1863
      %v1896 = vadd.f32 %v1828, %v1864
      %v1897 = vadd.f32 %v1829, %v1865
      %v1898 = vadd.f32 %v1830, %v1866
      %v1899 = vadd.f32 %v1831, %v1867
      %v1900 = vadd.f32 %v1832, %v1868
      %v1901 = vadd.f32 %v1833, %v1869
      %v1902 = vadd.f32 %v1834, %v1870
      %v1903 = vadd.f32 %v1835, %v1871
      %v1904 = vadd.f32 %v1836, %v1872
      %v1905 = vadd.f32 %v1837, %v1873
      %v1906 = vadd.f32 %v1838, %v1874
      %v1907 = vadd.f32 %v1839, %v1875
      %v1908 = vadd.f32 %v1840, %v1876
      %v1909 = vadd.f32 %v1841, %v1877
      %v1910 = vadd.f32 %v1842, %v1878
      %v1911 = vadd.f32 %v1843, %v1879
      %v1912 = vadd.f32 %v1844, %v1880
      %v1913 = vadd.f32 %v1845, %v1881
      %v1914 = vadd.f32 %v1846, %v1882
      %v1915 = vadd.f32 %v1847, %v1883
      %v1916 = vadd.f32 %v1848, %v1884
      %v1917 = vadd.f32 %v1849, %v1885
      %v1918 = vadd.f32 %v1850, %v1886
      %v1919 = vadd.f32 %v1851, %v1887
      %v1920 = vadd.f32 %v1852, %v1888
      %v1921 = vadd.f32 %v1853, %v1889
      %v1922 = vadd.f32 %v1854, %v1890
      %v1923 = vadd.f32 %v1855, %v1891
      %v1924 = vadd.f32 %v1856, %v1892
      %v1925 = vlaneseq
      %v1926 = vshrl.u32 %v1925, 7
      %v1927 = vsub.s32 0, %v1926
      %v1928 = vrot.slane %v1321, %v1927
      %v1929 = vmul.f32 %v1785, %v1928
      %v1930 = vmul.f32 %v1786, %v1928
      %v1931 = vmul.f32 %v1787, %v1928
      %v1932 = vmul.f32 %v1788, %v1928
      %v1933 = vmul.f32 %v1789, %v1928
      %v1934 = vmul.f32 %v1790, %v1928
      %v1935 = vmul.f32 %v1791, %v1928
      %v1936 = vmul.f32 %v1792, %v1928
      %v1937 = vmul.f32 %v1793, %v1928
      %v1938 = vmul.f32 %v1794, %v1928
      %v1939 = vmul.f32 %v1795, %v1928
      %v1940 = vmul.f32 %v1796, %v1928
      %v1941 = vmul.f32 %v1797, %v1928
      %v1942 = vmul.f32 %v1798, %v1928
      %v1943 = vmul.f32 %v1799, %v1928
      %v1944 = vmul.f32 %v1800, %v1928
      %v1945 = vmul.f32 %v1801, %v1928
      %v1946 = vmul.f32 %v1802, %v1928
      %v1947 = vmul.f32 %v1803, %v1928
      %v1948 = vmul.f32 %v1804, %v1928
      %v1949 = vmul.f32 %v1805, %v1928
      %v1950 = vmul.f32 %v1806, %v1928
      %v1951 = vmul.f32 %v1807, %v1928
      %v1952 = vmul.f32 %v1808, %v1928
      %v1953 = vmul.f32 %v1809, %v1928
      %v1954 = vmul.f32 %v1810, %v1928
      %v1955 = vmul.f32 %v1811, %v1928
      %v1956 = vmul.f32 %v1812, %v1928
      %v1957 = vmul.f32 %v1813, %v1928
      %v1958 = vmul.f32 %v1814, %v1928
      %v1959 = vmul.f32 %v1815, %v1928
      %v1960 = vmul.f32 %v1816, %v1928
      %v1961 = vadd.f32 %v1893, %v1929
      %v1962 = vadd.f32 %v1894, %v1930
      %v1963 = vadd.f32 %v1895, %v1931
      %v1964 = vadd.f32 %v1896, %v1932
      %v1965 = vadd.f32 %v1897, %v1933
      %v1966 = vadd.f32 %v1898, %v1934
      %v1967 = vadd.f32 %v1899, %v1935
      %v1968 = vadd.f32 %v1900, %v1936
      %v1969 = vadd.f32 %v1901, %v1937
      %v1970 = vadd.f32 %v1902, %v1938
      %v1971 = vadd.f32 %v1903, %v1939
      %v1972 = vadd.f32 %v1904, %v1940
      %v1973 = vadd.f32 %v1905, %v1941
      %v1974 = vadd.f32 %v1906, %v1942
      %v1975 = vadd.f32 %v1907, %v1943
      %v1976 = vadd.f32 %v1908, %v1944
      %v1977 = vadd.f32 %v1909, %v1945
      %v1978 = vadd.f32 %v1910, %v1946
      %v1979 = vadd.f32 %v1911, %v1947
      %v1980 = vadd.f32 %v1912, %v1948
      %v1981 = vadd.f32 %v1913, %v1949
      %v1982 = vadd.f32 %v1914, %v1950
      %v1983 = vadd.f32 %v1915, %v1951
      %v1984 = vadd.f32 %v1916, %v1952
      %v1985 = vadd.f32 %v1917, %v1953
      %v1986 = vadd.f32 %v1918, %v1954
      %v1987 = vadd.f32 %v1919, %v1955
      %v1988 = vadd.f32 %v1920, %v1956
      %v1989 = vadd.f32 %v1921, %v1957
      %v1990 = vadd.f32 %v1922, %v1958
      %v1991 = vadd.f32 %v1923, %v1959
      %v1992 = vadd.f32 %v1924, %v1960
      %v1993 = vlaneseq
      %v1994 = vshrl.u32 %v1993, 7
      %v1995 = vsub.s32 0, %v1994
      %v1996 = vrot.slane %v1322, %v1995
      %v1997 = vmul.f32 %v1787, %v1996
      %v1998 = vmul.f32 %v1788, %v1996
      %v1999 = vmul.f32 %v1789, %v1996
      %v2000 = vmul.f32 %v1790, %v1996
      %v2001 = vmul.f32 %v1791, %v1996
      %v2002 = vmul.f32 %v1792, %v1996
      %v2003 = vmul.f32 %v1793, %v1996
      %v2004 = vmul.f32 %v1794, %v1996
      %v2005 = vmul.f32 %v1795, %v1996
      %v2006 = vmul.f32 %v1796, %v1996
      %v2007 = vmul.f32 %v1797, %v1996
      %v2008 = vmul.f32 %v1798, %v1996
      %v2009 = vmul.f32 %v1799, %v1996
      %v2010 = vmul.f32 %v1800, %v1996
      %v2011 = vmul.f32 %v1801, %v1996
      %v2012 = vmul.f32 %v1802, %v1996
      %v2013 = vmul.f32 %v1803, %v1996
      %v2014 = vmul.f32 %v1804, %v1996
      %v2015 = vmul.f32 %v1805, %v1996
      %v2016 = vmul.f32 %v1806, %v1996
      %v2017 = vmul.f32 %v1807, %v1996
      %v2018 = vmul.f32 %v1808, %v1996
      %v2019 = vmul.f32 %v1809, %v1996
      %v2020 = vmul.f32 %v1810, %v1996
      %v2021 = vmul.f32 %v1811, %v1996
      %v2022 = vmul.f32 %v1812, %v1996
      %v2023 = vmul.f32 %v1813, %v1996
      %v2024 = vmul.f32 %v1814, %v1996
      %v2025 = vmul.f32 %v1815, %v1996
      %v2026 = vmul.f32 %v1816, %v1996
      %v2027 = vmul.f32 %v1817, %v1996
      %v2028 = vmul.f32 %v1818, %v1996
      %v2029 = vadd.f32 %v1961, %v1997
      %v2030 = vadd.f32 %v1962, %v1998
      %v2031 = vadd.f32 %v1963, %v1999
      %v2032 = vadd.f32 %v1964, %v2000
      %v2033 = vadd.f32 %v1965, %v2001
      %v2034 = vadd.f32 %v1966, %v2002
      %v2035 = vadd.f32 %v1967, %v2003
      %v2036 = vadd.f32 %v1968, %v2004
      %v2037 = vadd.f32 %v1969, %v2005
      %v2038 = vadd.f32 %v1970, %v2006
      %v2039 = vadd.f32 %v1971, %v2007
      %v2040 = vadd.f32 %v1972, %v2008
      %v2041 = vadd.f32 %v1973, %v2009
      %v2042 = vadd.f32 %v1974, %v2010
      %v2043 = vadd.f32 %v1975, %v2011
      %v2044 = vadd.f32 %v1976, %v2012
      %v2045 = vadd.f32 %v1977, %v2013
      %v2046 = vadd.f32 %v1978, %v2014
      %v2047 = vadd.f32 %v1979, %v2015
      %v2048 = vadd.f32 %v1980, %v2016
      %v2049 = vadd.f32 %v1981, %v2017
      %v2050 = vadd.f32 %v1982, %v2018
      %v2051 = vadd.f32 %v1983, %v2019
      %v2052 = vadd.f32 %v1984, %v2020
      %v2053 = vadd.f32 %v1985, %v2021
      %v2054 = vadd.f32 %v1986, %v2022
      %v2055 = vadd.f32 %v1987, %v2023
      %v2056 = vadd.f32 %v1988, %v2024
      %v2057 = vadd.f32 %v1989, %v2025
      %v2058 = vadd.f32 %v1990, %v2026
      %v2059 = vadd.f32 %v1991, %v2027
      %v2060 = vadd.f32 %v1992, %v2028
      %v2061 = vlaneseq
      %v2062 = vshrl.u32 %v2061, 7
      %v2063 = vsub.s32 0, %v2062
      %v2064 = vrot.slane %v1323, %v2063
      %v2065 = vmul.f32 %v1789, %v2064
      %v2066 = vmul.f32 %v1790, %v2064
      %v2067 = vmul.f32 %v1791, %v2064
      %v2068 = vmul.f32 %v1792, %v2064
      %v2069 = vmul.f32 %v1793, %v2064
      %v2070 = vmul.f32 %v1794, %v2064
      %v2071 = vmul.f32 %v1795, %v2064
      %v2072 = vmul.f32 %v1796, %v2064
      %v2073 = vmul.f32 %v1797, %v2064
      %v2074 = vmul.f32 %v1798, %v2064
      %v2075 = vmul.f32 %v1799, %v2064
      %v2076 = vmul.f32 %v1800, %v2064
      %v2077 = vmul.f32 %v1801, %v2064
      %v2078 = vmul.f32 %v1802, %v2064
      %v2079 = vmul.f32 %v1803, %v2064
      %v2080 = vmul.f32 %v1804, %v2064
      %v2081 = vmul.f32 %v1805, %v2064
      %v2082 = vmul.f32 %v1806, %v2064
      %v2083 = vmul.f32 %v1807, %v2064
      %v2084 = vmul.f32 %v1808, %v2064
      %v2085 = vmul.f32 %v1809, %v2064
      %v2086 = vmul.f32 %v1810, %v2064
      %v2087 = vmul.f32 %v1811, %v2064
      %v2088 = vmul.f32 %v1812, %v2064
      %v2089 = vmul.f32 %v1813, %v2064
      %v2090 = vmul.f32 %v1814, %v2064
      %v2091 = vmul.f32 %v1815, %v2064
      %v2092 = vmul.f32 %v1816, %v2064
      %v2093 = vmul.f32 %v1817, %v2064
      %v2094 = vmul.f32 %v1818, %v2064
      %v2095 = vmul.f32 %v1819, %v2064
      %v2096 = vmul.f32 %v1820, %v2064
      %v2097 = vadd.f32 %v2029, %v2065
      %v2098 = vadd.f32 %v2030, %v2066
      %v2099 = vadd.f32 %v2031, %v2067
      %v2100 = vadd.f32 %v2032, %v2068
      %v2101 = vadd.f32 %v2033, %v2069
      %v2102 = vadd.f32 %v2034, %v2070
      %v2103 = vadd.f32 %v2035, %v2071
      %v2104 = vadd.f32 %v2036, %v2072
      %v2105 = vadd.f32 %v2037, %v2073
      %v2106 = vadd.f32 %v2038, %v2074
      %v2107 = vadd.f32 %v2039, %v2075
      %v2108 = vadd.f32 %v2040, %v2076
      %v2109 = vadd.f32 %v2041, %v2077
      %v2110 = vadd.f32 %v2042, %v2078
      %v2111 = vadd.f32 %v2043, %v2079
      %v2112 = vadd.f32 %v2044, %v2080
      %v2113 = vadd.f32 %v2045, %v2081
      %v2114 = vadd.f32 %v2046, %v2082
      %v2115 = vadd.f32 %v2047, %v2083
      %v2116 = vadd.f32 %v2048, %v2084
      %v2117 = vadd.f32 %v2049, %v2085
      %v2118 = vadd.f32 %v2050, %v2086
      %v2119 = vadd.f32 %v2051, %v2087
      %v2120 = vadd.f32 %v2052, %v2088
      %v2121 = vadd.f32 %v2053, %v2089
      %v2122 = vadd.f32 %v2054, %v2090
      %v2123 = vadd.f32 %v2055, %v2091
      %v2124 = vadd.f32 %v2056, %v2092
      %v2125 = vadd.f32 %v2057, %v2093
      %v2126 = vadd.f32 %v2058, %v2094
      %v2127 = vadd.f32 %v2059, %v2095
      %v2128 = vadd.f32 %v2060, %v2096
      %v2129 = vadd.s32 %v1709, 4294967294
      %v2130 = vadd.s32 %v1710, 4294967294
      %v2131 = vadd.s32 %v1711, 4294967294
      %v2132 = vadd.s32 %v1712, 4294967294
      %v2133 = vadd.s32 %v1713, 4294967294
      %v2134 = vadd.s32 %v1714, 4294967294
      %v2135 = vadd.s32 %v1715, 4294967294
      %v2136 = vadd.s32 %v1716, 4294967294
      %v2137 = vadd.s32 %v1717, 4294967294
      %v2138 = vadd.s32 %v1718, 4294967294
      %v2139 = vadd.s32 %v1719, 4294967294
      %v2140 = vadd.s32 %v1720, 4294967294
      %v2141 = vadd.s32 %v1721, 4294967294
      %v2142 = vadd.s32 %v1722, 4294967294
      %v2143 = vadd.s32 %v1723, 4294967294
      %v2144 = vadd.s32 %v1724, 4294967294
      %v2145 = vadd.s32 %v1725, 4294967294
      %v2146 = vadd.s32 %v1726, 4294967294
      %v2147 = vadd.s32 %v1727, 4294967294
      %v2148 = vadd.s32 %v1728, 4294967294
      %v2149 = vadd.s32 %v1729, 4294967294
      %v2150 = vadd.s32 %v1730, 4294967294
      %v2151 = vadd.s32 %v1731, 4294967294
      %v2152 = vadd.s32 %v1732, 4294967294
      %v2153 = vadd.s32 %v1733, 4294967294
      %v2154 = vadd.s32 %v1734, 4294967294
      %v2155 = vadd.s32 %v1735, 4294967294
      %v2156 = vadd.s32 %v1736, 4294967294
      %v2157 = vadd.s32 %v1737, 4294967294
      %v2158 = vadd.s32 %v1738, 4294967294
      %v2159 = vadd.s32 %v1739, 4294967294
      %v2160 = vadd.s32 %v1740, 4294967294
      %vm2161 = vcmp.ge.s32.totalorder %v2129, 0
      %vm2162 = vcmp.ge.s32.totalorder %v2130, 0
      %vm2163 = vcmp.ge.s32.totalorder %v2131, 0
      %vm2164 = vcmp.ge.s32.totalorder %v2132, 0
      %vm2165 = vcmp.ge.s32.totalorder %v2133, 0
      %vm2166 = vcmp.ge.s32.totalorder %v2134, 0
      %vm2167 = vcmp.ge.s32.totalorder %v2135, 0
      %vm2168 = vcmp.ge.s32.totalorder %v2136, 0
      %vm2169 = vcmp.ge.s32.totalorder %v2137, 0
      %vm2170 = vcmp.ge.s32.totalorder %v2138, 0
      %vm2171 = vcmp.ge.s32.totalorder %v2139, 0
      %vm2172 = vcmp.ge.s32.totalorder %v2140, 0
      %vm2173 = vcmp.ge.s32.totalorder %v2141, 0
      %vm2174 = vcmp.ge.s32.totalorder %v2142, 0
      %vm2175 = vcmp.ge.s32.totalorder %v2143, 0
      %vm2176 = vcmp.ge.s32.totalorder %v2144, 0
      %vm2177 = vcmp.ge.s32.totalorder %v2145, 0
      %vm2178 = vcmp.ge.s32.totalorder %v2146, 0
      %vm2179 = vcmp.ge.s32.totalorder %v2147, 0
      %vm2180 = vcmp.ge.s32.totalorder %v2148, 0
      %vm2181 = vcmp.ge.s32.totalorder %v2149, 0
      %vm2182 = vcmp.ge.s32.totalorder %v2150, 0
      %vm2183 = vcmp.ge.s32.totalorder %v2151, 0
      %vm2184 = vcmp.ge.s32.totalorder %v2152, 0
      %vm2185 = vcmp.ge.s32.totalorder %v2153, 0
      %vm2186 = vcmp.ge.s32.totalorder %v2154, 0
      %vm2187 = vcmp.ge.s32.totalorder %v2155, 0
      %vm2188 = vcmp.ge.s32.totalorder %v2156, 0
      %vm2189 = vcmp.ge.s32.totalorder %v2157, 0
      %vm2190 = vcmp.ge.s32.totalorder %v2158, 0
      %vm2191 = vcmp.ge.s32.totalorder %v2159, 0
      %vm2192 = vcmp.ge.s32.totalorder %v2160, 0
      %vm2193 = vcmp.lt.s32.totalorder %v2129, 16
      %vm2194 = vcmp.lt.s32.totalorder %v2130, 16
      %vm2195 = vcmp.lt.s32.totalorder %v2131, 16
      %vm2196 = vcmp.lt.s32.totalorder %v2132, 16
      %vm2197 = vcmp.lt.s32.totalorder %v2133, 16
      %vm2198 = vcmp.lt.s32.totalorder %v2134, 16
      %vm2199 = vcmp.lt.s32.totalorder %v2135, 16
      %vm2200 = vcmp.lt.s32.totalorder %v2136, 16
      %vm2201 = vcmp.lt.s32.totalorder %v2137, 16
      %vm2202 = vcmp.lt.s32.totalorder %v2138, 16
      %vm2203 = vcmp.lt.s32.totalorder %v2139, 16
      %vm2204 = vcmp.lt.s32.totalorder %v2140, 16
      %vm2205 = vcmp.lt.s32.totalorder %v2141, 16
      %vm2206 = vcmp.lt.s32.totalorder %v2142, 16
      %vm2207 = vcmp.lt.s32.totalorder %v2143, 16
      %vm2208 = vcmp.lt.s32.totalorder %v2144, 16
      %vm2209 = vcmp.lt.s32.totalorder %v2145, 16
      %vm2210 = vcmp.lt.s32.totalorder %v2146, 16
      %vm2211 = vcmp.lt.s32.totalorder %v2147, 16
      %vm2212 = vcmp.lt.s32.totalorder %v2148, 16
      %vm2213 = vcmp.lt.s32.totalorder %v2149, 16
      %vm2214 = vcmp.lt.s32.totalorder %v2150, 16
      %vm2215 = vcmp.lt.s32.totalorder %v2151, 16
      %vm2216 = vcmp.lt.s32.totalorder %v2152, 16
      %vm2217 = vcmp.lt.s32.totalorder %v2153, 16
      %vm2218 = vcmp.lt.s32.totalorder %v2154, 16
      %vm2219 = vcmp.lt.s32.totalorder %v2155, 16
      %vm2220 = vcmp.lt.s32.totalorder %v2156, 16
      %vm2221 = vcmp.lt.s32.totalorder %v2157, 16
      %vm2222 = vcmp.lt.s32.totalorder %v2158, 16
      %vm2223 = vcmp.lt.s32.totalorder %v2159, 16
      %vm2224 = vcmp.lt.s32.totalorder %v2160, 16
      %vm2225 = vmand %vm2161, %vm2193
      %vm2226 = vmand %vm2162, %vm2194
      %vm2227 = vmand %vm2163, %vm2195
      %vm2228 = vmand %vm2164, %vm2196
      %vm2229 = vmand %vm2165, %vm2197
      %vm2230 = vmand %vm2166, %vm2198
      %vm2231 = vmand %vm2167, %vm2199
      %vm2232 = vmand %vm2168, %vm2200
      %vm2233 = vmand %vm2169, %vm2201
      %vm2234 = vmand %vm2170, %vm2202
      %vm2235 = vmand %vm2171, %vm2203
      %vm2236 = vmand %vm2172, %vm2204
      %vm2237 = vmand %vm2173, %vm2205
      %vm2238 = vmand %vm2174, %vm2206
      %vm2239 = vmand %vm2175, %vm2207
      %vm2240 = vmand %vm2176, %vm2208
      %vm2241 = vmand %vm2177, %vm2209
      %vm2242 = vmand %vm2178, %vm2210
      %vm2243 = vmand %vm2179, %vm2211
      %vm2244 = vmand %vm2180, %vm2212
      %vm2245 = vmand %vm2181, %vm2213
      %vm2246 = vmand %vm2182, %vm2214
      %vm2247 = vmand %vm2183, %vm2215
      %vm2248 = vmand %vm2184, %vm2216
      %vm2249 = vmand %vm2185, %vm2217
      %vm2250 = vmand %vm2186, %vm2218
      %vm2251 = vmand %vm2187, %vm2219
      %vm2252 = vmand %vm2188, %vm2220
      %vm2253 = vmand %vm2189, %vm2221
      %vm2254 = vmand %vm2190, %vm2222
      %vm2255 = vmand %vm2191, %vm2223
      %vm2256 = vmand %vm2192, %vm2224
      %v2257 = vsel %vm2225, 1, 0
      %v2258 = vsel %vm2226, 1, 0
      %v2259 = vsel %vm2227, 1, 0
      %v2260 = vsel %vm2228, 1, 0
      %v2261 = vsel %vm2229, 1, 0
      %v2262 = vsel %vm2230, 1, 0
      %v2263 = vsel %vm2231, 1, 0
      %v2264 = vsel %vm2232, 1, 0
      %v2265 = vsel %vm2233, 1, 0
      %v2266 = vsel %vm2234, 1, 0
      %v2267 = vsel %vm2235, 1, 0
      %v2268 = vsel %vm2236, 1, 0
      %v2269 = vsel %vm2237, 1, 0
      %v2270 = vsel %vm2238, 1, 0
      %v2271 = vsel %vm2239, 1, 0
      %v2272 = vsel %vm2240, 1, 0
      %v2273 = vsel %vm2241, 1, 0
      %v2274 = vsel %vm2242, 1, 0
      %v2275 = vsel %vm2243, 1, 0
      %v2276 = vsel %vm2244, 1, 0
      %v2277 = vsel %vm2245, 1, 0
      %v2278 = vsel %vm2246, 1, 0
      %v2279 = vsel %vm2247, 1, 0
      %v2280 = vsel %vm2248, 1, 0
      %v2281 = vsel %vm2249, 1, 0
      %v2282 = vsel %vm2250, 1, 0
      %v2283 = vsel %vm2251, 1, 0
      %v2284 = vsel %vm2252, 1, 0
      %v2285 = vsel %vm2253, 1, 0
      %v2286 = vsel %vm2254, 1, 0
      %v2287 = vsel %vm2255, 1, 0
      %v2288 = vsel %vm2256, 1, 0
      %vm2289 = vcmp.eq.s32.totalorder %v2257, 1
      %vm2290 = vcmp.eq.s32.totalorder %v2258, 1
      %vm2291 = vcmp.eq.s32.totalorder %v2259, 1
      %vm2292 = vcmp.eq.s32.totalorder %v2260, 1
      %vm2293 = vcmp.eq.s32.totalorder %v2261, 1
      %vm2294 = vcmp.eq.s32.totalorder %v2262, 1
      %vm2295 = vcmp.eq.s32.totalorder %v2263, 1
      %vm2296 = vcmp.eq.s32.totalorder %v2264, 1
      %vm2297 = vcmp.eq.s32.totalorder %v2265, 1
      %vm2298 = vcmp.eq.s32.totalorder %v2266, 1
      %vm2299 = vcmp.eq.s32.totalorder %v2267, 1
      %vm2300 = vcmp.eq.s32.totalorder %v2268, 1
      %vm2301 = vcmp.eq.s32.totalorder %v2269, 1
      %vm2302 = vcmp.eq.s32.totalorder %v2270, 1
      %vm2303 = vcmp.eq.s32.totalorder %v2271, 1
      %vm2304 = vcmp.eq.s32.totalorder %v2272, 1
      %vm2305 = vcmp.eq.s32.totalorder %v2273, 1
      %vm2306 = vcmp.eq.s32.totalorder %v2274, 1
      %vm2307 = vcmp.eq.s32.totalorder %v2275, 1
      %vm2308 = vcmp.eq.s32.totalorder %v2276, 1
      %vm2309 = vcmp.eq.s32.totalorder %v2277, 1
      %vm2310 = vcmp.eq.s32.totalorder %v2278, 1
      %vm2311 = vcmp.eq.s32.totalorder %v2279, 1
      %vm2312 = vcmp.eq.s32.totalorder %v2280, 1
      %vm2313 = vcmp.eq.s32.totalorder %v2281, 1
      %vm2314 = vcmp.eq.s32.totalorder %v2282, 1
      %vm2315 = vcmp.eq.s32.totalorder %v2283, 1
      %vm2316 = vcmp.eq.s32.totalorder %v2284, 1
      %vm2317 = vcmp.eq.s32.totalorder %v2285, 1
      %vm2318 = vcmp.eq.s32.totalorder %v2286, 1
      %vm2319 = vcmp.eq.s32.totalorder %v2287, 1
      %vm2320 = vcmp.eq.s32.totalorder %v2288, 1
      %v2321 = vsel %vm2289, %v2097, 0.0
      %v2322 = vsel %vm2290, %v2098, 0.0
      %v2323 = vsel %vm2291, %v2099, 0.0
      %v2324 = vsel %vm2292, %v2100, 0.0
      %v2325 = vsel %vm2293, %v2101, 0.0
      %v2326 = vsel %vm2294, %v2102, 0.0
      %v2327 = vsel %vm2295, %v2103, 0.0
      %v2328 = vsel %vm2296, %v2104, 0.0
      %v2329 = vsel %vm2297, %v2105, 0.0
      %v2330 = vsel %vm2298, %v2106, 0.0
      %v2331 = vsel %vm2299, %v2107, 0.0
      %v2332 = vsel %vm2300, %v2108, 0.0
      %v2333 = vsel %vm2301, %v2109, 0.0
      %v2334 = vsel %vm2302, %v2110, 0.0
      %v2335 = vsel %vm2303, %v2111, 0.0
      %v2336 = vsel %vm2304, %v2112, 0.0
      %v2337 = vsel %vm2305, %v2113, 0.0
      %v2338 = vsel %vm2306, %v2114, 0.0
      %v2339 = vsel %vm2307, %v2115, 0.0
      %v2340 = vsel %vm2308, %v2116, 0.0
      %v2341 = vsel %vm2309, %v2117, 0.0
      %v2342 = vsel %vm2310, %v2118, 0.0
      %v2343 = vsel %vm2311, %v2119, 0.0
      %v2344 = vsel %vm2312, %v2120, 0.0
      %v2345 = vsel %vm2313, %v2121, 0.0
      %v2346 = vsel %vm2314, %v2122, 0.0
      %v2347 = vsel %vm2315, %v2123, 0.0
      %v2348 = vsel %vm2316, %v2124, 0.0
      %v2349 = vsel %vm2317, %v2125, 0.0
      %v2350 = vsel %vm2318, %v2126, 0.0
      %v2351 = vsel %vm2319, %v2127, 0.0
      %v2352 = vsel %vm2320, %v2128, 0.0
      %v2353 = vadd.f32 %v2321, 0.0
      %v2354 = vadd.f32 %v2322, 0.0
      %v2355 = vadd.f32 %v2323, 0.0
      %v2356 = vadd.f32 %v2324, 0.0
      %v2357 = vadd.f32 %v2325, 0.0
      %v2358 = vadd.f32 %v2326, 0.0
      %v2359 = vadd.f32 %v2327, 0.0
      %v2360 = vadd.f32 %v2328, 0.0
      %v2361 = vadd.f32 %v2329, 0.0
      %v2362 = vadd.f32 %v2330, 0.0
      %v2363 = vadd.f32 %v2331, 0.0
      %v2364 = vadd.f32 %v2332, 0.0
      %v2365 = vadd.f32 %v2333, 0.0
      %v2366 = vadd.f32 %v2334, 0.0
      %v2367 = vadd.f32 %v2335, 0.0
      %v2368 = vadd.f32 %v2336, 0.0
      %v2369 = vadd.f32 %v2337, 0.0
      %v2370 = vadd.f32 %v2338, 0.0
      %v2371 = vadd.f32 %v2339, 0.0
      %v2372 = vadd.f32 %v2340, 0.0
      %v2373 = vadd.f32 %v2341, 0.0
      %v2374 = vadd.f32 %v2342, 0.0
      %v2375 = vadd.f32 %v2343, 0.0
      %v2376 = vadd.f32 %v2344, 0.0
      %v2377 = vadd.f32 %v2345, 0.0
      %v2378 = vadd.f32 %v2346, 0.0
      %v2379 = vadd.f32 %v2347, 0.0
      %v2380 = vadd.f32 %v2348, 0.0
      %v2381 = vadd.f32 %v2349, 0.0
      %v2382 = vadd.f32 %v2350, 0.0
      %v2383 = vadd.f32 %v2351, 0.0
      %v2384 = vadd.f32 %v2352, 0.0
      %v2385 = vld [vmem:[#allocation2 + $0xa0] sm:$0x1]
      %v2386 = vunpack.c.l.bf16 %v2385
      %v2387 = vlaneseq
      %v2388 = vshrl.u32 %v2387, 7
      %v2389 = vsub.s32 1, %v2388
      %v2390 = vrot.slane %v1319, %v2389
      %v2391 = vmul.f32 %v1781, %v2390
      %v2392 = vmul.f32 %v1782, %v2390
      %v2393 = vmul.f32 %v1783, %v2390
      %v2394 = vmul.f32 %v1784, %v2390
      %v2395 = vmul.f32 %v1785, %v2390
      %v2396 = vmul.f32 %v1786, %v2390
      %v2397 = vmul.f32 %v1787, %v2390
      %v2398 = vmul.f32 %v1788, %v2390
      %v2399 = vmul.f32 %v1789, %v2390
      %v2400 = vmul.f32 %v1790, %v2390
      %v2401 = vmul.f32 %v1791, %v2390
      %v2402 = vmul.f32 %v1792, %v2390
      %v2403 = vmul.f32 %v1793, %v2390
      %v2404 = vmul.f32 %v1794, %v2390
      %v2405 = vmul.f32 %v1795, %v2390
      %v2406 = vmul.f32 %v1796, %v2390
      %v2407 = vmul.f32 %v1797, %v2390
      %v2408 = vmul.f32 %v1798, %v2390
      %v2409 = vmul.f32 %v1799, %v2390
      %v2410 = vmul.f32 %v1800, %v2390
      %v2411 = vmul.f32 %v1801, %v2390
      %v2412 = vmul.f32 %v1802, %v2390
      %v2413 = vmul.f32 %v1803, %v2390
      %v2414 = vmul.f32 %v1804, %v2390
      %v2415 = vmul.f32 %v1805, %v2390
      %v2416 = vmul.f32 %v1806, %v2390
      %v2417 = vmul.f32 %v1807, %v2390
      %v2418 = vmul.f32 %v1808, %v2390
      %v2419 = vmul.f32 %v1809, %v2390
      %v2420 = vmul.f32 %v1810, %v2390
      %v2421 = vmul.f32 %v1811, %v2390
      %v2422 = vmul.f32 %v1812, %v2390
      %v2423 = vmul.f32 %v1813, %v2390
      %v2424 = vlaneseq
      %v2425 = vshrl.u32 %v2424, 7
      %v2426 = vsub.s32 1, %v2425
      %v2427 = vrot.slane %v1320, %v2426
      %v2428 = vmul.f32 %v1783, %v2427
      %v2429 = vmul.f32 %v1784, %v2427
      %v2430 = vmul.f32 %v1785, %v2427
      %v2431 = vmul.f32 %v1786, %v2427
      %v2432 = vmul.f32 %v1787, %v2427
      %v2433 = vmul.f32 %v1788, %v2427
      %v2434 = vmul.f32 %v1789, %v2427
      %v2435 = vmul.f32 %v1790, %v2427
      %v2436 = vmul.f32 %v1791, %v2427
      %v2437 = vmul.f32 %v1792, %v2427
      %v2438 = vmul.f32 %v1793, %v2427
      %v2439 = vmul.f32 %v1794, %v2427
      %v2440 = vmul.f32 %v1795, %v2427
      %v2441 = vmul.f32 %v1796, %v2427
      %v2442 = vmul.f32 %v1797, %v2427
      %v2443 = vmul.f32 %v1798, %v2427
      %v2444 = vmul.f32 %v1799, %v2427
      %v2445 = vmul.f32 %v1800, %v2427
      %v2446 = vmul.f32 %v1801, %v2427
      %v2447 = vmul.f32 %v1802, %v2427
      %v2448 = vmul.f32 %v1803, %v2427
      %v2449 = vmul.f32 %v1804, %v2427
      %v2450 = vmul.f32 %v1805, %v2427
      %v2451 = vmul.f32 %v1806, %v2427
      %v2452 = vmul.f32 %v1807, %v2427
      %v2453 = vmul.f32 %v1808, %v2427
      %v2454 = vmul.f32 %v1809, %v2427
      %v2455 = vmul.f32 %v1810, %v2427
      %v2456 = vmul.f32 %v1811, %v2427
      %v2457 = vmul.f32 %v1812, %v2427
      %v2458 = vmul.f32 %v1813, %v2427
      %v2459 = vmul.f32 %v1814, %v2427
      %v2460 = vmul.f32 %v1815, %v2427
      %v2461 = vadd.f32 %v2391, %v2428
      %v2462 = vadd.f32 %v2392, %v2429
      %v2463 = vadd.f32 %v2393, %v2430
      %v2464 = vadd.f32 %v2394, %v2431
      %v2465 = vadd.f32 %v2395, %v2432
      %v2466 = vadd.f32 %v2396, %v2433
      %v2467 = vadd.f32 %v2397, %v2434
      %v2468 = vadd.f32 %v2398, %v2435
      %v2469 = vadd.f32 %v2399, %v2436
      %v2470 = vadd.f32 %v2400, %v2437
      %v2471 = vadd.f32 %v2401, %v2438
      %v2472 = vadd.f32 %v2402, %v2439
      %v2473 = vadd.f32 %v2403, %v2440
      %v2474 = vadd.f32 %v2404, %v2441
      %v2475 = vadd.f32 %v2405, %v2442
      %v2476 = vadd.f32 %v2406, %v2443
      %v2477 = vadd.f32 %v2407, %v2444
      %v2478 = vadd.f32 %v2408, %v2445
      %v2479 = vadd.f32 %v2409, %v2446
      %v2480 = vadd.f32 %v2410, %v2447
      %v2481 = vadd.f32 %v2411, %v2448
      %v2482 = vadd.f32 %v2412, %v2449
      %v2483 = vadd.f32 %v2413, %v2450
      %v2484 = vadd.f32 %v2414, %v2451
      %v2485 = vadd.f32 %v2415, %v2452
      %v2486 = vadd.f32 %v2416, %v2453
      %v2487 = vadd.f32 %v2417, %v2454
      %v2488 = vadd.f32 %v2418, %v2455
      %v2489 = vadd.f32 %v2419, %v2456
      %v2490 = vadd.f32 %v2420, %v2457
      %v2491 = vadd.f32 %v2421, %v2458
      %v2492 = vadd.f32 %v2422, %v2459
      %v2493 = vadd.f32 %v2423, %v2460
      %v2494 = vlaneseq
      %v2495 = vshrl.u32 %v2494, 7
      %v2496 = vsub.s32 1, %v2495
      %v2497 = vrot.slane %v1321, %v2496
      %v2498 = vmul.f32 %v1785, %v2497
      %v2499 = vmul.f32 %v1786, %v2497
      %v2500 = vmul.f32 %v1787, %v2497
      %v2501 = vmul.f32 %v1788, %v2497
      %v2502 = vmul.f32 %v1789, %v2497
      %v2503 = vmul.f32 %v1790, %v2497
      %v2504 = vmul.f32 %v1791, %v2497
      %v2505 = vmul.f32 %v1792, %v2497
      %v2506 = vmul.f32 %v1793, %v2497
      %v2507 = vmul.f32 %v1794, %v2497
      %v2508 = vmul.f32 %v1795, %v2497
      %v2509 = vmul.f32 %v1796, %v2497
      %v2510 = vmul.f32 %v1797, %v2497
      %v2511 = vmul.f32 %v1798, %v2497
      %v2512 = vmul.f32 %v1799, %v2497
      %v2513 = vmul.f32 %v1800, %v2497
      %v2514 = vmul.f32 %v1801, %v2497
      %v2515 = vmul.f32 %v1802, %v2497
      %v2516 = vmul.f32 %v1803, %v2497
      %v2517 = vmul.f32 %v1804, %v2497
      %v2518 = vmul.f32 %v1805, %v2497
      %v2519 = vmul.f32 %v1806, %v2497
      %v2520 = vmul.f32 %v1807, %v2497
      %v2521 = vmul.f32 %v1808, %v2497
      %v2522 = vmul.f32 %v1809, %v2497
      %v2523 = vmul.f32 %v1810, %v2497
      %v2524 = vmul.f32 %v1811, %v2497
      %v2525 = vmul.f32 %v1812, %v2497
      %v2526 = vmul.f32 %v1813, %v2497
      %v2527 = vmul.f32 %v1814, %v2497
      %v2528 = vmul.f32 %v1815, %v2497
      %v2529 = vmul.f32 %v1816, %v2497
      %v2530 = vmul.f32 %v1817, %v2497
      %v2531 = vadd.f32 %v2461, %v2498
      %v2532 = vadd.f32 %v2462, %v2499
      %v2533 = vadd.f32 %v2463, %v2500
      %v2534 = vadd.f32 %v2464, %v2501
      %v2535 = vadd.f32 %v2465, %v2502
      %v2536 = vadd.f32 %v2466, %v2503
      %v2537 = vadd.f32 %v2467, %v2504
      %v2538 = vadd.f32 %v2468, %v2505
      %v2539 = vadd.f32 %v2469, %v2506
      %v2540 = vadd.f32 %v2470, %v2507
      %v2541 = vadd.f32 %v2471, %v2508
      %v2542 = vadd.f32 %v2472, %v2509
      %v2543 = vadd.f32 %v2473, %v2510
      %v2544 = vadd.f32 %v2474, %v2511
      %v2545 = vadd.f32 %v2475, %v2512
      %v2546 = vadd.f32 %v2476, %v2513
      %v2547 = vadd.f32 %v2477, %v2514
      %v2548 = vadd.f32 %v2478, %v2515
      %v2549 = vadd.f32 %v2479, %v2516
      %v2550 = vadd.f32 %v2480, %v2517
      %v2551 = vadd.f32 %v2481, %v2518
      %v2552 = vadd.f32 %v2482, %v2519
      %v2553 = vadd.f32 %v2483, %v2520
      %v2554 = vadd.f32 %v2484, %v2521
      %v2555 = vadd.f32 %v2485, %v2522
      %v2556 = vadd.f32 %v2486, %v2523
      %v2557 = vadd.f32 %v2487, %v2524
      %v2558 = vadd.f32 %v2488, %v2525
      %v2559 = vadd.f32 %v2489, %v2526
      %v2560 = vadd.f32 %v2490, %v2527
      %v2561 = vadd.f32 %v2491, %v2528
      %v2562 = vadd.f32 %v2492, %v2529
      %v2563 = vadd.f32 %v2493, %v2530
      %v2564 = vlaneseq
      %v2565 = vshrl.u32 %v2564, 7
      %v2566 = vsub.s32 1, %v2565
      %v2567 = vrot.slane %v1322, %v2566
      %v2568 = vmul.f32 %v1787, %v2567
      %v2569 = vmul.f32 %v1788, %v2567
      %v2570 = vmul.f32 %v1789, %v2567
      %v2571 = vmul.f32 %v1790, %v2567
      %v2572 = vmul.f32 %v1791, %v2567
      %v2573 = vmul.f32 %v1792, %v2567
      %v2574 = vmul.f32 %v1793, %v2567
      %v2575 = vmul.f32 %v1794, %v2567
      %v2576 = vmul.f32 %v1795, %v2567
      %v2577 = vmul.f32 %v1796, %v2567
      %v2578 = vmul.f32 %v1797, %v2567
      %v2579 = vmul.f32 %v1798, %v2567
      %v2580 = vmul.f32 %v1799, %v2567
      %v2581 = vmul.f32 %v1800, %v2567
      %v2582 = vmul.f32 %v1801, %v2567
      %v2583 = vmul.f32 %v1802, %v2567
      %v2584 = vmul.f32 %v1803, %v2567
      %v2585 = vmul.f32 %v1804, %v2567
      %v2586 = vmul.f32 %v1805, %v2567
      %v2587 = vmul.f32 %v1806, %v2567
      %v2588 = vmul.f32 %v1807, %v2567
      %v2589 = vmul.f32 %v1808, %v2567
      %v2590 = vmul.f32 %v1809, %v2567
      %v2591 = vmul.f32 %v1810, %v2567
      %v2592 = vmul.f32 %v1811, %v2567
      %v2593 = vmul.f32 %v1812, %v2567
      %v2594 = vmul.f32 %v1813, %v2567
      %v2595 = vmul.f32 %v1814, %v2567
      %v2596 = vmul.f32 %v1815, %v2567
      %v2597 = vmul.f32 %v1816, %v2567
      %v2598 = vmul.f32 %v1817, %v2567
      %v2599 = vmul.f32 %v1818, %v2567
      %v2600 = vmul.f32 %v1819, %v2567
      %v2601 = vadd.f32 %v2531, %v2568
      %v2602 = vadd.f32 %v2532, %v2569
      %v2603 = vadd.f32 %v2533, %v2570
      %v2604 = vadd.f32 %v2534, %v2571
      %v2605 = vadd.f32 %v2535, %v2572
      %v2606 = vadd.f32 %v2536, %v2573
      %v2607 = vadd.f32 %v2537, %v2574
      %v2608 = vadd.f32 %v2538, %v2575
      %v2609 = vadd.f32 %v2539, %v2576
      %v2610 = vadd.f32 %v2540, %v2577
      %v2611 = vadd.f32 %v2541, %v2578
      %v2612 = vadd.f32 %v2542, %v2579
      %v2613 = vadd.f32 %v2543, %v2580
      %v2614 = vadd.f32 %v2544, %v2581
      %v2615 = vadd.f32 %v2545, %v2582
      %v2616 = vadd.f32 %v2546, %v2583
      %v2617 = vadd.f32 %v2547, %v2584
      %v2618 = vadd.f32 %v2548, %v2585
      %v2619 = vadd.f32 %v2549, %v2586
      %v2620 = vadd.f32 %v2550, %v2587
      %v2621 = vadd.f32 %v2551, %v2588
      %v2622 = vadd.f32 %v2552, %v2589
      %v2623 = vadd.f32 %v2553, %v2590
      %v2624 = vadd.f32 %v2554, %v2591
      %v2625 = vadd.f32 %v2555, %v2592
      %v2626 = vadd.f32 %v2556, %v2593
      %v2627 = vadd.f32 %v2557, %v2594
      %v2628 = vadd.f32 %v2558, %v2595
      %v2629 = vadd.f32 %v2559, %v2596
      %v2630 = vadd.f32 %v2560, %v2597
      %v2631 = vadd.f32 %v2561, %v2598
      %v2632 = vadd.f32 %v2562, %v2599
      %v2633 = vadd.f32 %v2563, %v2600
      %v2634 = vlaneseq
      %v2635 = vshrl.u32 %v2634, 7
      %v2636 = vsub.s32 1, %v2635
      %v2637 = vrot.slane %v1323, %v2636
      %v2638 = vmul.f32 %v1789, %v2637
      %v2639 = vmul.f32 %v1790, %v2637
      %v2640 = vmul.f32 %v1791, %v2637
      %v2641 = vmul.f32 %v1792, %v2637
      %v2642 = vmul.f32 %v1793, %v2637
      %v2643 = vmul.f32 %v1794, %v2637
      %v2644 = vmul.f32 %v1795, %v2637
      %v2645 = vmul.f32 %v1796, %v2637
      %v2646 = vmul.f32 %v1797, %v2637
      %v2647 = vmul.f32 %v1798, %v2637
      %v2648 = vmul.f32 %v1799, %v2637
      %v2649 = vmul.f32 %v1800, %v2637
      %v2650 = vmul.f32 %v1801, %v2637
      %v2651 = vmul.f32 %v1802, %v2637
      %v2652 = vmul.f32 %v1803, %v2637
      %v2653 = vmul.f32 %v1804, %v2637
      %v2654 = vmul.f32 %v1805, %v2637
      %v2655 = vmul.f32 %v1806, %v2637
      %v2656 = vmul.f32 %v1807, %v2637
      %v2657 = vmul.f32 %v1808, %v2637
      %v2658 = vmul.f32 %v1809, %v2637
      %v2659 = vmul.f32 %v1810, %v2637
      %v2660 = vmul.f32 %v1811, %v2637
      %v2661 = vmul.f32 %v1812, %v2637
      %v2662 = vmul.f32 %v1813, %v2637
      %v2663 = vmul.f32 %v1814, %v2637
      %v2664 = vmul.f32 %v1815, %v2637
      %v2665 = vmul.f32 %v1816, %v2637
      %v2666 = vmul.f32 %v1817, %v2637
      %v2667 = vmul.f32 %v1818, %v2637
      %v2668 = vmul.f32 %v1819, %v2637
      %v2669 = vmul.f32 %v1820, %v2637
      %v2670 = vmul.f32 %v2386, %v2637
      %v2671 = vadd.f32 %v2601, %v2638
      %v2672 = vadd.f32 %v2602, %v2639
      %v2673 = vadd.f32 %v2603, %v2640
      %v2674 = vadd.f32 %v2604, %v2641
      %v2675 = vadd.f32 %v2605, %v2642
      %v2676 = vadd.f32 %v2606, %v2643
      %v2677 = vadd.f32 %v2607, %v2644
      %v2678 = vadd.f32 %v2608, %v2645
      %v2679 = vadd.f32 %v2609, %v2646
      %v2680 = vadd.f32 %v2610, %v2647
      %v2681 = vadd.f32 %v2611, %v2648
      %v2682 = vadd.f32 %v2612, %v2649
      %v2683 = vadd.f32 %v2613, %v2650
      %v2684 = vadd.f32 %v2614, %v2651
      %v2685 = vadd.f32 %v2615, %v2652
      %v2686 = vadd.f32 %v2616, %v2653
      %v2687 = vadd.f32 %v2617, %v2654
      %v2688 = vadd.f32 %v2618, %v2655
      %v2689 = vadd.f32 %v2619, %v2656
      %v2690 = vadd.f32 %v2620, %v2657
      %v2691 = vadd.f32 %v2621, %v2658
      %v2692 = vadd.f32 %v2622, %v2659
      %v2693 = vadd.f32 %v2623, %v2660
      %v2694 = vadd.f32 %v2624, %v2661
      %v2695 = vadd.f32 %v2625, %v2662
      %v2696 = vadd.f32 %v2626, %v2663
      %v2697 = vadd.f32 %v2627, %v2664
      %v2698 = vadd.f32 %v2628, %v2665
      %v2699 = vadd.f32 %v2629, %v2666
      %v2700 = vadd.f32 %v2630, %v2667
      %v2701 = vadd.f32 %v2631, %v2668
      %v2702 = vadd.f32 %v2632, %v2669
      %v2703 = vadd.f32 %v2633, %v2670
      %v2704 = vadd.s32 %v1709, 4294967295
      %v2705 = vadd.s32 %v1710, 4294967295
      %v2706 = vadd.s32 %v1711, 4294967295
      %v2707 = vadd.s32 %v1712, 4294967295
      %v2708 = vadd.s32 %v1713, 4294967295
      %v2709 = vadd.s32 %v1714, 4294967295
      %v2710 = vadd.s32 %v1715, 4294967295
      %v2711 = vadd.s32 %v1716, 4294967295
      %v2712 = vadd.s32 %v1717, 4294967295
      %v2713 = vadd.s32 %v1718, 4294967295
      %v2714 = vadd.s32 %v1719, 4294967295
      %v2715 = vadd.s32 %v1720, 4294967295
      %v2716 = vadd.s32 %v1721, 4294967295
      %v2717 = vadd.s32 %v1722, 4294967295
      %v2718 = vadd.s32 %v1723, 4294967295
      %v2719 = vadd.s32 %v1724, 4294967295
      %v2720 = vadd.s32 %v1725, 4294967295
      %v2721 = vadd.s32 %v1726, 4294967295
      %v2722 = vadd.s32 %v1727, 4294967295
      %v2723 = vadd.s32 %v1728, 4294967295
      %v2724 = vadd.s32 %v1729, 4294967295
      %v2725 = vadd.s32 %v1730, 4294967295
      %v2726 = vadd.s32 %v1731, 4294967295
      %v2727 = vadd.s32 %v1732, 4294967295
      %v2728 = vadd.s32 %v1733, 4294967295
      %v2729 = vadd.s32 %v1734, 4294967295
      %v2730 = vadd.s32 %v1735, 4294967295
      %v2731 = vadd.s32 %v1736, 4294967295
      %v2732 = vadd.s32 %v1737, 4294967295
      %v2733 = vadd.s32 %v1738, 4294967295
      %v2734 = vadd.s32 %v1739, 4294967295
      %v2735 = vadd.s32 %v1740, 4294967295
      %vm2736 = vcmp.ge.s32.totalorder %v2704, 0
      %vm2737 = vcmp.ge.s32.totalorder %v2705, 0
      %vm2738 = vcmp.ge.s32.totalorder %v2706, 0
      %vm2739 = vcmp.ge.s32.totalorder %v2707, 0
      %vm2740 = vcmp.ge.s32.totalorder %v2708, 0
      %vm2741 = vcmp.ge.s32.totalorder %v2709, 0
      %vm2742 = vcmp.ge.s32.totalorder %v2710, 0
      %vm2743 = vcmp.ge.s32.totalorder %v2711, 0
      %vm2744 = vcmp.ge.s32.totalorder %v2712, 0
      %vm2745 = vcmp.ge.s32.totalorder %v2713, 0
      %vm2746 = vcmp.ge.s32.totalorder %v2714, 0
      %vm2747 = vcmp.ge.s32.totalorder %v2715, 0
      %vm2748 = vcmp.ge.s32.totalorder %v2716, 0
      %vm2749 = vcmp.ge.s32.totalorder %v2717, 0
      %vm2750 = vcmp.ge.s32.totalorder %v2718, 0
      %vm2751 = vcmp.ge.s32.totalorder %v2719, 0
      %vm2752 = vcmp.ge.s32.totalorder %v2720, 0
      %vm2753 = vcmp.ge.s32.totalorder %v2721, 0
      %vm2754 = vcmp.ge.s32.totalorder %v2722, 0
      %vm2755 = vcmp.ge.s32.totalorder %v2723, 0
      %vm2756 = vcmp.ge.s32.totalorder %v2724, 0
      %vm2757 = vcmp.ge.s32.totalorder %v2725, 0
      %vm2758 = vcmp.ge.s32.totalorder %v2726, 0
      %vm2759 = vcmp.ge.s32.totalorder %v2727, 0
      %vm2760 = vcmp.ge.s32.totalorder %v2728, 0
      %vm2761 = vcmp.ge.s32.totalorder %v2729, 0
      %vm2762 = vcmp.ge.s32.totalorder %v2730, 0
      %vm2763 = vcmp.ge.s32.totalorder %v2731, 0
      %vm2764 = vcmp.ge.s32.totalorder %v2732, 0
      %vm2765 = vcmp.ge.s32.totalorder %v2733, 0
      %vm2766 = vcmp.ge.s32.totalorder %v2734, 0
      %vm2767 = vcmp.ge.s32.totalorder %v2735, 0
      %vm2768 = vcmp.lt.s32.totalorder %v2704, 16
      %vm2769 = vcmp.lt.s32.totalorder %v2705, 16
      %vm2770 = vcmp.lt.s32.totalorder %v2706, 16
      %vm2771 = vcmp.lt.s32.totalorder %v2707, 16
      %vm2772 = vcmp.lt.s32.totalorder %v2708, 16
      %vm2773 = vcmp.lt.s32.totalorder %v2709, 16
      %vm2774 = vcmp.lt.s32.totalorder %v2710, 16
      %vm2775 = vcmp.lt.s32.totalorder %v2711, 16
      %vm2776 = vcmp.lt.s32.totalorder %v2712, 16
      %vm2777 = vcmp.lt.s32.totalorder %v2713, 16
      %vm2778 = vcmp.lt.s32.totalorder %v2714, 16
      %vm2779 = vcmp.lt.s32.totalorder %v2715, 16
      %vm2780 = vcmp.lt.s32.totalorder %v2716, 16
      %vm2781 = vcmp.lt.s32.totalorder %v2717, 16
      %vm2782 = vcmp.lt.s32.totalorder %v2718, 16
      %vm2783 = vcmp.lt.s32.totalorder %v2719, 16
      %vm2784 = vcmp.lt.s32.totalorder %v2720, 16
      %vm2785 = vcmp.lt.s32.totalorder %v2721, 16
      %vm2786 = vcmp.lt.s32.totalorder %v2722, 16
      %vm2787 = vcmp.lt.s32.totalorder %v2723, 16
      %vm2788 = vcmp.lt.s32.totalorder %v2724, 16
      %vm2789 = vcmp.lt.s32.totalorder %v2725, 16
      %vm2790 = vcmp.lt.s32.totalorder %v2726, 16
      %vm2791 = vcmp.lt.s32.totalorder %v2727, 16
      %vm2792 = vcmp.lt.s32.totalorder %v2728, 16
      %vm2793 = vcmp.lt.s32.totalorder %v2729, 16
      %vm2794 = vcmp.lt.s32.totalorder %v2730, 16
      %vm2795 = vcmp.lt.s32.totalorder %v2731, 16
      %vm2796 = vcmp.lt.s32.totalorder %v2732, 16
      %vm2797 = vcmp.lt.s32.totalorder %v2733, 16
      %vm2798 = vcmp.lt.s32.totalorder %v2734, 16
      %vm2799 = vcmp.lt.s32.totalorder %v2735, 16
      %vm2800 = vmand %vm2736, %vm2768
      %vm2801 = vmand %vm2737, %vm2769
      %vm2802 = vmand %vm2738, %vm2770
      %vm2803 = vmand %vm2739, %vm2771
      %vm2804 = vmand %vm2740, %vm2772
      %vm2805 = vmand %vm2741, %vm2773
      %vm2806 = vmand %vm2742, %vm2774
      %vm2807 = vmand %vm2743, %vm2775
      %vm2808 = vmand %vm2744, %vm2776
      %vm2809 = vmand %vm2745, %vm2777
      %vm2810 = vmand %vm2746, %vm2778
      %vm2811 = vmand %vm2747, %vm2779
      %vm2812 = vmand %vm2748, %vm2780
      %vm2813 = vmand %vm2749, %vm2781
      %vm2814 = vmand %vm2750, %vm2782
      %vm2815 = vmand %vm2751, %vm2783
      %vm2816 = vmand %vm2752, %vm2784
      %vm2817 = vmand %vm2753, %vm2785
      %vm2818 = vmand %vm2754, %vm2786
      %vm2819 = vmand %vm2755, %vm2787
      %vm2820 = vmand %vm2756, %vm2788
      %vm2821 = vmand %vm2757, %vm2789
      %vm2822 = vmand %vm2758, %vm2790
      %vm2823 = vmand %vm2759, %vm2791
      %vm2824 = vmand %vm2760, %vm2792
      %vm2825 = vmand %vm2761, %vm2793
      %vm2826 = vmand %vm2762, %vm2794
      %vm2827 = vmand %vm2763, %vm2795
      %vm2828 = vmand %vm2764, %vm2796
      %vm2829 = vmand %vm2765, %vm2797
      %vm2830 = vmand %vm2766, %vm2798
      %vm2831 = vmand %vm2767, %vm2799
      %v2832 = vsel %vm2800, 1, 0
      %v2833 = vsel %vm2801, 1, 0
      %v2834 = vsel %vm2802, 1, 0
      %v2835 = vsel %vm2803, 1, 0
      %v2836 = vsel %vm2804, 1, 0
      %v2837 = vsel %vm2805, 1, 0
      %v2838 = vsel %vm2806, 1, 0
      %v2839 = vsel %vm2807, 1, 0
      %v2840 = vsel %vm2808, 1, 0
      %v2841 = vsel %vm2809, 1, 0
      %v2842 = vsel %vm2810, 1, 0
      %v2843 = vsel %vm2811, 1, 0
      %v2844 = vsel %vm2812, 1, 0
      %v2845 = vsel %vm2813, 1, 0
      %v2846 = vsel %vm2814, 1, 0
      %v2847 = vsel %vm2815, 1, 0
      %v2848 = vsel %vm2816, 1, 0
      %v2849 = vsel %vm2817, 1, 0
      %v2850 = vsel %vm2818, 1, 0
      %v2851 = vsel %vm2819, 1, 0
      %v2852 = vsel %vm2820, 1, 0
      %v2853 = vsel %vm2821, 1, 0
      %v2854 = vsel %vm2822, 1, 0
      %v2855 = vsel %vm2823, 1, 0
      %v2856 = vsel %vm2824, 1, 0
      %v2857 = vsel %vm2825, 1, 0
      %v2858 = vsel %vm2826, 1, 0
      %v2859 = vsel %vm2827, 1, 0
      %v2860 = vsel %vm2828, 1, 0
      %v2861 = vsel %vm2829, 1, 0
      %v2862 = vsel %vm2830, 1, 0
      %v2863 = vsel %vm2831, 1, 0
      %vm2864 = vcmp.eq.s32.totalorder %v2832, 1
      %vm2865 = vcmp.eq.s32.totalorder %v2833, 1
      %vm2866 = vcmp.eq.s32.totalorder %v2834, 1
      %vm2867 = vcmp.eq.s32.totalorder %v2835, 1
      %vm2868 = vcmp.eq.s32.totalorder %v2836, 1
      %vm2869 = vcmp.eq.s32.totalorder %v2837, 1
      %vm2870 = vcmp.eq.s32.totalorder %v2838, 1
      %vm2871 = vcmp.eq.s32.totalorder %v2839, 1
      %vm2872 = vcmp.eq.s32.totalorder %v2840, 1
      %vm2873 = vcmp.eq.s32.totalorder %v2841, 1
      %vm2874 = vcmp.eq.s32.totalorder %v2842, 1
      %vm2875 = vcmp.eq.s32.totalorder %v2843, 1
      %vm2876 = vcmp.eq.s32.totalorder %v2844, 1
      %vm2877 = vcmp.eq.s32.totalorder %v2845, 1
      %vm2878 = vcmp.eq.s32.totalorder %v2846, 1
      %vm2879 = vcmp.eq.s32.totalorder %v2847, 1
      %vm2880 = vcmp.eq.s32.totalorder %v2848, 1
      %vm2881 = vcmp.eq.s32.totalorder %v2849, 1
      %vm2882 = vcmp.eq.s32.totalorder %v2850, 1
      %vm2883 = vcmp.eq.s32.totalorder %v2851, 1
      %vm2884 = vcmp.eq.s32.totalorder %v2852, 1
      %vm2885 = vcmp.eq.s32.totalorder %v2853, 1
      %vm2886 = vcmp.eq.s32.totalorder %v2854, 1
      %vm2887 = vcmp.eq.s32.totalorder %v2855, 1
      %vm2888 = vcmp.eq.s32.totalorder %v2856, 1
      %vm2889 = vcmp.eq.s32.totalorder %v2857, 1
      %vm2890 = vcmp.eq.s32.totalorder %v2858, 1
      %vm2891 = vcmp.eq.s32.totalorder %v2859, 1
      %vm2892 = vcmp.eq.s32.totalorder %v2860, 1
      %vm2893 = vcmp.eq.s32.totalorder %v2861, 1
      %vm2894 = vcmp.eq.s32.totalorder %v2862, 1
      %vm2895 = vcmp.eq.s32.totalorder %v2863, 1
      %vm2929 = vcmask 1046528
      %v2930 = vrot.slane %v2671, 1
      %v2931 = vrot.slane %v2672, 1
      %v2932 = vsel %vm2929, %v2930, %v2931
      %v2933 = vrot.slane %v2673, 1
      %v2934 = vsel %vm2929, %v2931, %v2933
      %v2935 = vrot.slane %v2674, 1
      %v2936 = vsel %vm2929, %v2933, %v2935
      %v2937 = vrot.slane %v2675, 1
      %v2938 = vsel %vm2929, %v2935, %v2937
      %v2939 = vrot.slane %v2676, 1
      %v2940 = vsel %vm2929, %v2937, %v2939
      %v2941 = vrot.slane %v2677, 1
      %v2942 = vsel %vm2929, %v2939, %v2941
      %v2943 = vrot.slane %v2678, 1
      %v2944 = vsel %vm2929, %v2941, %v2943
      %v2945 = vrot.slane %v2679, 1
      %v2946 = vsel %vm2929, %v2943, %v2945
      %v2947 = vrot.slane %v2680, 1
      %v2948 = vsel %vm2929, %v2945, %v2947
      %v2949 = vrot.slane %v2681, 1
      %v2950 = vsel %vm2929, %v2947, %v2949
      %v2951 = vrot.slane %v2682, 1
      %v2952 = vsel %vm2929, %v2949, %v2951
      %v2953 = vrot.slane %v2683, 1
      %v2954 = vsel %vm2929, %v2951, %v2953
      %v2955 = vrot.slane %v2684, 1
      %v2956 = vsel %vm2929, %v2953, %v2955
      %v2957 = vrot.slane %v2685, 1
      %v2958 = vsel %vm2929, %v2955, %v2957
      %v2959 = vrot.slane %v2686, 1
      %v2960 = vsel %vm2929, %v2957, %v2959
      %v2961 = vrot.slane %v2687, 1
      %v2962 = vsel %vm2929, %v2959, %v2961
      %v2963 = vrot.slane %v2688, 1
      %v2964 = vsel %vm2929, %v2961, %v2963
      %v2965 = vrot.slane %v2689, 1
      %v2966 = vsel %vm2929, %v2963, %v2965
      %v2967 = vrot.slane %v2690, 1
      %v2968 = vsel %vm2929, %v2965, %v2967
      %v2969 = vrot.slane %v2691, 1
      %v2970 = vsel %vm2929, %v2967, %v2969
      %v2971 = vrot.slane %v2692, 1
      %v2972 = vsel %vm2929, %v2969, %v2971
      %v2973 = vrot.slane %v2693, 1
      %v2974 = vsel %vm2929, %v2971, %v2973
      %v2975 = vrot.slane %v2694, 1
      %v2976 = vsel %vm2929, %v2973, %v2975
      %v2977 = vrot.slane %v2695, 1
      %v2978 = vsel %vm2929, %v2975, %v2977
      %v2979 = vrot.slane %v2696, 1
      %v2980 = vsel %vm2929, %v2977, %v2979
      %v2981 = vrot.slane %v2697, 1
      %v2982 = vsel %vm2929, %v2979, %v2981
      %v2983 = vrot.slane %v2698, 1
      %v2984 = vsel %vm2929, %v2981, %v2983
      %v2985 = vrot.slane %v2699, 1
      %v2986 = vsel %vm2929, %v2983, %v2985
      %v2987 = vrot.slane %v2700, 1
      %v2988 = vsel %vm2929, %v2985, %v2987
      %v2989 = vrot.slane %v2701, 1
      %v2990 = vsel %vm2929, %v2987, %v2989
      %v2991 = vrot.slane %v2702, 1
      %v2992 = vsel %vm2929, %v2989, %v2991
      %v2993 = vrot.slane %v2703, 1
      %v2994 = vsel %vm2929, %v2991, %v2993
      %v3027 = vsel %vm2864, %v2932, 0.0
      %v3028 = vsel %vm2865, %v2934, 0.0
      %v3029 = vsel %vm2866, %v2936, 0.0
      %v3030 = vsel %vm2867, %v2938, 0.0
      %v3031 = vsel %vm2868, %v2940, 0.0
      %v3032 = vsel %vm2869, %v2942, 0.0
      %v3033 = vsel %vm2870, %v2944, 0.0
      %v3034 = vsel %vm2871, %v2946, 0.0
      %v3035 = vsel %vm2872, %v2948, 0.0
      %v3036 = vsel %vm2873, %v2950, 0.0
      %v3037 = vsel %vm2874, %v2952, 0.0
      %v3038 = vsel %vm2875, %v2954, 0.0
      %v3039 = vsel %vm2876, %v2956, 0.0
      %v3040 = vsel %vm2877, %v2958, 0.0
      %v3041 = vsel %vm2878, %v2960, 0.0
      %v3042 = vsel %vm2879, %v2962, 0.0
      %v3043 = vsel %vm2880, %v2964, 0.0
      %v3044 = vsel %vm2881, %v2966, 0.0
      %v3045 = vsel %vm2882, %v2968, 0.0
      %v3046 = vsel %vm2883, %v2970, 0.0
      %v3047 = vsel %vm2884, %v2972, 0.0
      %v3048 = vsel %vm2885, %v2974, 0.0
      %v3049 = vsel %vm2886, %v2976, 0.0
      %v3050 = vsel %vm2887, %v2978, 0.0
      %v3051 = vsel %vm2888, %v2980, 0.0
      %v3052 = vsel %vm2889, %v2982, 0.0
      %v3053 = vsel %vm2890, %v2984, 0.0
      %v3054 = vsel %vm2891, %v2986, 0.0
      %v3055 = vsel %vm2892, %v2988, 0.0
      %v3056 = vsel %vm2893, %v2990, 0.0
      %v3057 = vsel %vm2894, %v2992, 0.0
      %v3058 = vsel %vm2895, %v2994, 0.0
      %v3059 = vadd.f32 %v2353, %v3027
      %v3060 = vadd.f32 %v2354, %v3028
      %v3061 = vadd.f32 %v2355, %v3029
      %v3062 = vadd.f32 %v2356, %v3030
      %v3063 = vadd.f32 %v2357, %v3031
      %v3064 = vadd.f32 %v2358, %v3032
      %v3065 = vadd.f32 %v2359, %v3033
      %v3066 = vadd.f32 %v2360, %v3034
      %v3067 = vadd.f32 %v2361, %v3035
      %v3068 = vadd.f32 %v2362, %v3036
      %v3069 = vadd.f32 %v2363, %v3037
      %v3070 = vadd.f32 %v2364, %v3038
      %v3071 = vadd.f32 %v2365, %v3039
      %v3072 = vadd.f32 %v2366, %v3040
      %v3073 = vadd.f32 %v2367, %v3041
      %v3074 = vadd.f32 %v2368, %v3042
      %v3075 = vadd.f32 %v2369, %v3043
      %v3076 = vadd.f32 %v2370, %v3044
      %v3077 = vadd.f32 %v2371, %v3045
      %v3078 = vadd.f32 %v2372, %v3046
      %v3079 = vadd.f32 %v2373, %v3047
      %v3080 = vadd.f32 %v2374, %v3048
      %v3081 = vadd.f32 %v2375, %v3049
      %v3082 = vadd.f32 %v2376, %v3050
      %v3083 = vadd.f32 %v2377, %v3051
      %v3084 = vadd.f32 %v2378, %v3052
      %v3085 = vadd.f32 %v2379, %v3053
      %v3086 = vadd.f32 %v2380, %v3054
      %v3087 = vadd.f32 %v2381, %v3055
      %v3088 = vadd.f32 %v2382, %v3056
      %v3089 = vadd.f32 %v2383, %v3057
      %v3090 = vadd.f32 %v2384, %v3058
      %v3091 = vld [vmem:[#allocation2] sm:$0xe]
      %v3092 = vunpack.c.l.bf16 %v3091
      %v3093 = vlaneseq
      %v3094 = vshrl.u32 %v3093, 7
      %v3095 = vsub.s32 2, %v3094
      %v3096 = vrot.slane %v1319, %v3095
      %v3097 = vmul.f32 %v3092, %v3096
      %v3098 = vmul.f32 %v1782, %v3096
      %v3099 = vmul.f32 %v1783, %v3096
      %v3100 = vmul.f32 %v1784, %v3096
      %v3101 = vmul.f32 %v1785, %v3096
      %v3102 = vmul.f32 %v1786, %v3096
      %v3103 = vmul.f32 %v1787, %v3096
      %v3104 = vmul.f32 %v1788, %v3096
      %v3105 = vmul.f32 %v1789, %v3096
      %v3106 = vmul.f32 %v1790, %v3096
      %v3107 = vmul.f32 %v1791, %v3096
      %v3108 = vmul.f32 %v1792, %v3096
      %v3109 = vmul.f32 %v1793, %v3096
      %v3110 = vmul.f32 %v1794, %v3096
      %v3111 = vmul.f32 %v1795, %v3096
      %v3112 = vmul.f32 %v1796, %v3096
      %v3113 = vmul.f32 %v1797, %v3096
      %v3114 = vmul.f32 %v1798, %v3096
      %v3115 = vmul.f32 %v1799, %v3096
      %v3116 = vmul.f32 %v1800, %v3096
      %v3117 = vmul.f32 %v1801, %v3096
      %v3118 = vmul.f32 %v1802, %v3096
      %v3119 = vmul.f32 %v1803, %v3096
      %v3120 = vmul.f32 %v1804, %v3096
      %v3121 = vmul.f32 %v1805, %v3096
      %v3122 = vmul.f32 %v1806, %v3096
      %v3123 = vmul.f32 %v1807, %v3096
      %v3124 = vmul.f32 %v1808, %v3096
      %v3125 = vmul.f32 %v1809, %v3096
      %v3126 = vmul.f32 %v1810, %v3096
      %v3127 = vmul.f32 %v1811, %v3096
      %v3128 = vmul.f32 %v1812, %v3096
      %v3129 = vmul.f32 %v1813, %v3096
      %v3130 = vlaneseq
      %v3131 = vshrl.u32 %v3130, 7
      %v3132 = vsub.s32 2, %v3131
      %v3133 = vrot.slane %v1320, %v3132
      %v3134 = vmul.f32 %v1783, %v3133
      %v3135 = vmul.f32 %v1784, %v3133
      %v3136 = vmul.f32 %v1785, %v3133
      %v3137 = vmul.f32 %v1786, %v3133
      %v3138 = vmul.f32 %v1787, %v3133
      %v3139 = vmul.f32 %v1788, %v3133
      %v3140 = vmul.f32 %v1789, %v3133
      %v3141 = vmul.f32 %v1790, %v3133
      %v3142 = vmul.f32 %v1791, %v3133
      %v3143 = vmul.f32 %v1792, %v3133
      %v3144 = vmul.f32 %v1793, %v3133
      %v3145 = vmul.f32 %v1794, %v3133
      %v3146 = vmul.f32 %v1795, %v3133
      %v3147 = vmul.f32 %v1796, %v3133
      %v3148 = vmul.f32 %v1797, %v3133
      %v3149 = vmul.f32 %v1798, %v3133
      %v3150 = vmul.f32 %v1799, %v3133
      %v3151 = vmul.f32 %v1800, %v3133
      %v3152 = vmul.f32 %v1801, %v3133
      %v3153 = vmul.f32 %v1802, %v3133
      %v3154 = vmul.f32 %v1803, %v3133
      %v3155 = vmul.f32 %v1804, %v3133
      %v3156 = vmul.f32 %v1805, %v3133
      %v3157 = vmul.f32 %v1806, %v3133
      %v3158 = vmul.f32 %v1807, %v3133
      %v3159 = vmul.f32 %v1808, %v3133
      %v3160 = vmul.f32 %v1809, %v3133
      %v3161 = vmul.f32 %v1810, %v3133
      %v3162 = vmul.f32 %v1811, %v3133
      %v3163 = vmul.f32 %v1812, %v3133
      %v3164 = vmul.f32 %v1813, %v3133
      %v3165 = vmul.f32 %v1814, %v3133
      %v3166 = vmul.f32 %v1815, %v3133
      %v3167 = vadd.f32 %v3097, %v3134
      %v3168 = vadd.f32 %v3098, %v3135
      %v3169 = vadd.f32 %v3099, %v3136
      %v3170 = vadd.f32 %v3100, %v3137
      %v3171 = vadd.f32 %v3101, %v3138
      %v3172 = vadd.f32 %v3102, %v3139
      %v3173 = vadd.f32 %v3103, %v3140
      %v3174 = vadd.f32 %v3104, %v3141
      %v3175 = vadd.f32 %v3105, %v3142
      %v3176 = vadd.f32 %v3106, %v3143
      %v3177 = vadd.f32 %v3107, %v3144
      %v3178 = vadd.f32 %v3108, %v3145
      %v3179 = vadd.f32 %v3109, %v3146
      %v3180 = vadd.f32 %v3110, %v3147
      %v3181 = vadd.f32 %v3111, %v3148
      %v3182 = vadd.f32 %v3112, %v3149
      %v3183 = vadd.f32 %v3113, %v3150
      %v3184 = vadd.f32 %v3114, %v3151
      %v3185 = vadd.f32 %v3115, %v3152
      %v3186 = vadd.f32 %v3116, %v3153
      %v3187 = vadd.f32 %v3117, %v3154
      %v3188 = vadd.f32 %v3118, %v3155
      %v3189 = vadd.f32 %v3119, %v3156
      %v3190 = vadd.f32 %v3120, %v3157
      %v3191 = vadd.f32 %v3121, %v3158
      %v3192 = vadd.f32 %v3122, %v3159
      %v3193 = vadd.f32 %v3123, %v3160
      %v3194 = vadd.f32 %v3124, %v3161
      %v3195 = vadd.f32 %v3125, %v3162
      %v3196 = vadd.f32 %v3126, %v3163
      %v3197 = vadd.f32 %v3127, %v3164
      %v3198 = vadd.f32 %v3128, %v3165
      %v3199 = vadd.f32 %v3129, %v3166
      %v3200 = vlaneseq
      %v3201 = vshrl.u32 %v3200, 7
      %v3202 = vsub.s32 2, %v3201
      %v3203 = vrot.slane %v1321, %v3202
      %v3204 = vmul.f32 %v1785, %v3203
      %v3205 = vmul.f32 %v1786, %v3203
      %v3206 = vmul.f32 %v1787, %v3203
      %v3207 = vmul.f32 %v1788, %v3203
      %v3208 = vmul.f32 %v1789, %v3203
      %v3209 = vmul.f32 %v1790, %v3203
      %v3210 = vmul.f32 %v1791, %v3203
      %v3211 = vmul.f32 %v1792, %v3203
      %v3212 = vmul.f32 %v1793, %v3203
      %v3213 = vmul.f32 %v1794, %v3203
      %v3214 = vmul.f32 %v1795, %v3203
      %v3215 = vmul.f32 %v1796, %v3203
      %v3216 = vmul.f32 %v1797, %v3203
      %v3217 = vmul.f32 %v1798, %v3203
      %v3218 = vmul.f32 %v1799, %v3203
      %v3219 = vmul.f32 %v1800, %v3203
      %v3220 = vmul.f32 %v1801, %v3203
      %v3221 = vmul.f32 %v1802, %v3203
      %v3222 = vmul.f32 %v1803, %v3203
      %v3223 = vmul.f32 %v1804, %v3203
      %v3224 = vmul.f32 %v1805, %v3203
      %v3225 = vmul.f32 %v1806, %v3203
      %v3226 = vmul.f32 %v1807, %v3203
      %v3227 = vmul.f32 %v1808, %v3203
      %v3228 = vmul.f32 %v1809, %v3203
      %v3229 = vmul.f32 %v1810, %v3203
      %v3230 = vmul.f32 %v1811, %v3203
      %v3231 = vmul.f32 %v1812, %v3203
      %v3232 = vmul.f32 %v1813, %v3203
      %v3233 = vmul.f32 %v1814, %v3203
      %v3234 = vmul.f32 %v1815, %v3203
      %v3235 = vmul.f32 %v1816, %v3203
      %v3236 = vmul.f32 %v1817, %v3203
      %v3237 = vadd.f32 %v3167, %v3204
      %v3238 = vadd.f32 %v3168, %v3205
      %v3239 = vadd.f32 %v3169, %v3206
      %v3240 = vadd.f32 %v3170, %v3207
      %v3241 = vadd.f32 %v3171, %v3208
      %v3242 = vadd.f32 %v3172, %v3209
      %v3243 = vadd.f32 %v3173, %v3210
      %v3244 = vadd.f32 %v3174, %v3211
      %v3245 = vadd.f32 %v3175, %v3212
      %v3246 = vadd.f32 %v3176, %v3213
      %v3247 = vadd.f32 %v3177, %v3214
      %v3248 = vadd.f32 %v3178, %v3215
      %v3249 = vadd.f32 %v3179, %v3216
      %v3250 = vadd.f32 %v3180, %v3217
      %v3251 = vadd.f32 %v3181, %v3218
      %v3252 = vadd.f32 %v3182, %v3219
      %v3253 = vadd.f32 %v3183, %v3220
      %v3254 = vadd.f32 %v3184, %v3221
      %v3255 = vadd.f32 %v3185, %v3222
      %v3256 = vadd.f32 %v3186, %v3223
      %v3257 = vadd.f32 %v3187, %v3224
      %v3258 = vadd.f32 %v3188, %v3225
      %v3259 = vadd.f32 %v3189, %v3226
      %v3260 = vadd.f32 %v3190, %v3227
      %v3261 = vadd.f32 %v3191, %v3228
      %v3262 = vadd.f32 %v3192, %v3229
      %v3263 = vadd.f32 %v3193, %v3230
      %v3264 = vadd.f32 %v3194, %v3231
      %v3265 = vadd.f32 %v3195, %v3232
      %v3266 = vadd.f32 %v3196, %v3233
      %v3267 = vadd.f32 %v3197, %v3234
      %v3268 = vadd.f32 %v3198, %v3235
      %v3269 = vadd.f32 %v3199, %v3236
      %v3270 = vlaneseq
      %v3271 = vshrl.u32 %v3270, 7
      %v3272 = vsub.s32 2, %v3271
      %v3273 = vrot.slane %v1322, %v3272
      %v3274 = vmul.f32 %v1787, %v3273
      %v3275 = vmul.f32 %v1788, %v3273
      %v3276 = vmul.f32 %v1789, %v3273
      %v3277 = vmul.f32 %v1790, %v3273
      %v3278 = vmul.f32 %v1791, %v3273
      %v3279 = vmul.f32 %v1792, %v3273
      %v3280 = vmul.f32 %v1793, %v3273
      %v3281 = vmul.f32 %v1794, %v3273
      %v3282 = vmul.f32 %v1795, %v3273
      %v3283 = vmul.f32 %v1796, %v3273
      %v3284 = vmul.f32 %v1797, %v3273
      %v3285 = vmul.f32 %v1798, %v3273
      %v3286 = vmul.f32 %v1799, %v3273
      %v3287 = vmul.f32 %v1800, %v3273
      %v3288 = vmul.f32 %v1801, %v3273
      %v3289 = vmul.f32 %v1802, %v3273
      %v3290 = vmul.f32 %v1803, %v3273
      %v3291 = vmul.f32 %v1804, %v3273
      %v3292 = vmul.f32 %v1805, %v3273
      %v3293 = vmul.f32 %v1806, %v3273
      %v3294 = vmul.f32 %v1807, %v3273
      %v3295 = vmul.f32 %v1808, %v3273
      %v3296 = vmul.f32 %v1809, %v3273
      %v3297 = vmul.f32 %v1810, %v3273
      %v3298 = vmul.f32 %v1811, %v3273
      %v3299 = vmul.f32 %v1812, %v3273
      %v3300 = vmul.f32 %v1813, %v3273
      %v3301 = vmul.f32 %v1814, %v3273
      %v3302 = vmul.f32 %v1815, %v3273
      %v3303 = vmul.f32 %v1816, %v3273
      %v3304 = vmul.f32 %v1817, %v3273
      %v3305 = vmul.f32 %v1818, %v3273
      %v3306 = vmul.f32 %v1819, %v3273
      %v3307 = vadd.f32 %v3237, %v3274
      %v3308 = vadd.f32 %v3238, %v3275
      %v3309 = vadd.f32 %v3239, %v3276
      %v3310 = vadd.f32 %v3240, %v3277
      %v3311 = vadd.f32 %v3241, %v3278
      %v3312 = vadd.f32 %v3242, %v3279
      %v3313 = vadd.f32 %v3243, %v3280
      %v3314 = vadd.f32 %v3244, %v3281
      %v3315 = vadd.f32 %v3245, %v3282
      %v3316 = vadd.f32 %v3246, %v3283
      %v3317 = vadd.f32 %v3247, %v3284
      %v3318 = vadd.f32 %v3248, %v3285
      %v3319 = vadd.f32 %v3249, %v3286
      %v3320 = vadd.f32 %v3250, %v3287
      %v3321 = vadd.f32 %v3251, %v3288
      %v3322 = vadd.f32 %v3252, %v3289
      %v3323 = vadd.f32 %v3253, %v3290
      %v3324 = vadd.f32 %v3254, %v3291
      %v3325 = vadd.f32 %v3255, %v3292
      %v3326 = vadd.f32 %v3256, %v3293
      %v3327 = vadd.f32 %v3257, %v3294
      %v3328 = vadd.f32 %v3258, %v3295
      %v3329 = vadd.f32 %v3259, %v3296
      %v3330 = vadd.f32 %v3260, %v3297
      %v3331 = vadd.f32 %v3261, %v3298
      %v3332 = vadd.f32 %v3262, %v3299
      %v3333 = vadd.f32 %v3263, %v3300
      %v3334 = vadd.f32 %v3264, %v3301
      %v3335 = vadd.f32 %v3265, %v3302
      %v3336 = vadd.f32 %v3266, %v3303
      %v3337 = vadd.f32 %v3267, %v3304
      %v3338 = vadd.f32 %v3268, %v3305
      %v3339 = vadd.f32 %v3269, %v3306
      %v3340 = vlaneseq
      %v3341 = vshrl.u32 %v3340, 7
      %v3342 = vsub.s32 2, %v3341
      %v3343 = vrot.slane %v1323, %v3342
      %v3344 = vmul.f32 %v1789, %v3343
      %v3345 = vmul.f32 %v1790, %v3343
      %v3346 = vmul.f32 %v1791, %v3343
      %v3347 = vmul.f32 %v1792, %v3343
      %v3348 = vmul.f32 %v1793, %v3343
      %v3349 = vmul.f32 %v1794, %v3343
      %v3350 = vmul.f32 %v1795, %v3343
      %v3351 = vmul.f32 %v1796, %v3343
      %v3352 = vmul.f32 %v1797, %v3343
      %v3353 = vmul.f32 %v1798, %v3343
      %v3354 = vmul.f32 %v1799, %v3343
      %v3355 = vmul.f32 %v1800, %v3343
      %v3356 = vmul.f32 %v1801, %v3343
      %v3357 = vmul.f32 %v1802, %v3343
      %v3358 = vmul.f32 %v1803, %v3343
      %v3359 = vmul.f32 %v1804, %v3343
      %v3360 = vmul.f32 %v1805, %v3343
      %v3361 = vmul.f32 %v1806, %v3343
      %v3362 = vmul.f32 %v1807, %v3343
      %v3363 = vmul.f32 %v1808, %v3343
      %v3364 = vmul.f32 %v1809, %v3343
      %v3365 = vmul.f32 %v1810, %v3343
      %v3366 = vmul.f32 %v1811, %v3343
      %v3367 = vmul.f32 %v1812, %v3343
      %v3368 = vmul.f32 %v1813, %v3343
      %v3369 = vmul.f32 %v1814, %v3343
      %v3370 = vmul.f32 %v1815, %v3343
      %v3371 = vmul.f32 %v1816, %v3343
      %v3372 = vmul.f32 %v1817, %v3343
      %v3373 = vmul.f32 %v1818, %v3343
      %v3374 = vmul.f32 %v1819, %v3343
      %v3375 = vmul.f32 %v1820, %v3343
      %v3376 = vmul.f32 %v2386, %v3343
      %v3377 = vadd.f32 %v3307, %v3344
      %v3378 = vadd.f32 %v3308, %v3345
      %v3379 = vadd.f32 %v3309, %v3346
      %v3380 = vadd.f32 %v3310, %v3347
      %v3381 = vadd.f32 %v3311, %v3348
      %v3382 = vadd.f32 %v3312, %v3349
      %v3383 = vadd.f32 %v3313, %v3350
      %v3384 = vadd.f32 %v3314, %v3351
      %v3385 = vadd.f32 %v3315, %v3352
      %v3386 = vadd.f32 %v3316, %v3353
      %v3387 = vadd.f32 %v3317, %v3354
      %v3388 = vadd.f32 %v3318, %v3355
      %v3389 = vadd.f32 %v3319, %v3356
      %v3390 = vadd.f32 %v3320, %v3357
      %v3391 = vadd.f32 %v3321, %v3358
      %v3392 = vadd.f32 %v3322, %v3359
      %v3393 = vadd.f32 %v3323, %v3360
      %v3394 = vadd.f32 %v3324, %v3361
      %v3395 = vadd.f32 %v3325, %v3362
      %v3396 = vadd.f32 %v3326, %v3363
      %v3397 = vadd.f32 %v3327, %v3364
      %v3398 = vadd.f32 %v3328, %v3365
      %v3399 = vadd.f32 %v3329, %v3366
      %v3400 = vadd.f32 %v3330, %v3367
      %v3401 = vadd.f32 %v3331, %v3368
      %v3402 = vadd.f32 %v3332, %v3369
      %v3403 = vadd.f32 %v3333, %v3370
      %v3404 = vadd.f32 %v3334, %v3371
      %v3405 = vadd.f32 %v3335, %v3372
      %v3406 = vadd.f32 %v3336, %v3373
      %v3407 = vadd.f32 %v3337, %v3374
      %v3408 = vadd.f32 %v3338, %v3375
      %v3409 = vadd.f32 %v3339, %v3376
      %vm3443 = vcmask 1045504
      %v3444 = vrot.slane %v3377, 2
      %v3445 = vrot.slane %v3378, 2
      %v3446 = vsel %vm3443, %v3444, %v3445
      %v3447 = vrot.slane %v3379, 2
      %v3448 = vsel %vm3443, %v3445, %v3447
      %v3449 = vrot.slane %v3380, 2
      %v3450 = vsel %vm3443, %v3447, %v3449
      %v3451 = vrot.slane %v3381, 2
      %v3452 = vsel %vm3443, %v3449, %v3451
      %v3453 = vrot.slane %v3382, 2
      %v3454 = vsel %vm3443, %v3451, %v3453
      %v3455 = vrot.slane %v3383, 2
      %v3456 = vsel %vm3443, %v3453, %v3455
      %v3457 = vrot.slane %v3384, 2
      %v3458 = vsel %vm3443, %v3455, %v3457
      %v3459 = vrot.slane %v3385, 2
      %v3460 = vsel %vm3443, %v3457, %v3459
      %v3461 = vrot.slane %v3386, 2
      %v3462 = vsel %vm3443, %v3459, %v3461
      %v3463 = vrot.slane %v3387, 2
      %v3464 = vsel %vm3443, %v3461, %v3463
      %v3465 = vrot.slane %v3388, 2
      %v3466 = vsel %vm3443, %v3463, %v3465
      %v3467 = vrot.slane %v3389, 2
      %v3468 = vsel %vm3443, %v3465, %v3467
      %v3469 = vrot.slane %v3390, 2
      %v3470 = vsel %vm3443, %v3467, %v3469
      %v3471 = vrot.slane %v3391, 2
      %v3472 = vsel %vm3443, %v3469, %v3471
      %v3473 = vrot.slane %v3392, 2
      %v3474 = vsel %vm3443, %v3471, %v3473
      %v3475 = vrot.slane %v3393, 2
      %v3476 = vsel %vm3443, %v3473, %v3475
      %v3477 = vrot.slane %v3394, 2
      %v3478 = vsel %vm3443, %v3475, %v3477
      %v3479 = vrot.slane %v3395, 2
      %v3480 = vsel %vm3443, %v3477, %v3479
      %v3481 = vrot.slane %v3396, 2
      %v3482 = vsel %vm3443, %v3479, %v3481
      %v3483 = vrot.slane %v3397, 2
      %v3484 = vsel %vm3443, %v3481, %v3483
      %v3485 = vrot.slane %v3398, 2
      %v3486 = vsel %vm3443, %v3483, %v3485
      %v3487 = vrot.slane %v3399, 2
      %v3488 = vsel %vm3443, %v3485, %v3487
      %v3489 = vrot.slane %v3400, 2
      %v3490 = vsel %vm3443, %v3487, %v3489
      %v3491 = vrot.slane %v3401, 2
      %v3492 = vsel %vm3443, %v3489, %v3491
      %v3493 = vrot.slane %v3402, 2
      %v3494 = vsel %vm3443, %v3491, %v3493
      %v3495 = vrot.slane %v3403, 2
      %v3496 = vsel %vm3443, %v3493, %v3495
      %v3497 = vrot.slane %v3404, 2
      %v3498 = vsel %vm3443, %v3495, %v3497
      %v3499 = vrot.slane %v3405, 2
      %v3500 = vsel %vm3443, %v3497, %v3499
      %v3501 = vrot.slane %v3406, 2
      %v3502 = vsel %vm3443, %v3499, %v3501
      %v3503 = vrot.slane %v3407, 2
      %v3504 = vsel %vm3443, %v3501, %v3503
      %v3505 = vrot.slane %v3408, 2
      %v3506 = vsel %vm3443, %v3503, %v3505
      %v3507 = vrot.slane %v3409, 2
      %v3508 = vsel %vm3443, %v3505, %v3507
      %v3541 = vadd.f32 %v3059, %v3446
      %v3542 = vadd.f32 %v3060, %v3448
      %v3543 = vadd.f32 %v3061, %v3450
      %v3544 = vadd.f32 %v3062, %v3452
      %v3545 = vadd.f32 %v3063, %v3454
      %v3546 = vadd.f32 %v3064, %v3456
      %v3547 = vadd.f32 %v3065, %v3458
      %v3548 = vadd.f32 %v3066, %v3460
      %v3549 = vadd.f32 %v3067, %v3462
      %v3550 = vadd.f32 %v3068, %v3464
      %v3551 = vadd.f32 %v3069, %v3466
      %v3552 = vadd.f32 %v3070, %v3468
      %v3553 = vadd.f32 %v3071, %v3470
      %v3554 = vadd.f32 %v3072, %v3472
      %v3555 = vadd.f32 %v3073, %v3474
      %v3556 = vadd.f32 %v3074, %v3476
      %v3557 = vadd.f32 %v3075, %v3478
      %v3558 = vadd.f32 %v3076, %v3480
      %v3559 = vadd.f32 %v3077, %v3482
      %v3560 = vadd.f32 %v3078, %v3484
      %v3561 = vadd.f32 %v3079, %v3486
      %v3562 = vadd.f32 %v3080, %v3488
      %v3563 = vadd.f32 %v3081, %v3490
      %v3564 = vadd.f32 %v3082, %v3492
      %v3565 = vadd.f32 %v3083, %v3494
      %v3566 = vadd.f32 %v3084, %v3496
      %v3567 = vadd.f32 %v3085, %v3498
      %v3568 = vadd.f32 %v3086, %v3500
      %v3569 = vadd.f32 %v3087, %v3502
      %v3570 = vadd.f32 %v3088, %v3504
      %v3571 = vadd.f32 %v3089, %v3506
      %v3572 = vadd.f32 %v3090, %v3508
      %v3573 = vld [vmem:[#allocation2 + $0xa0] sm:$0x3]
      %v3574 = vunpack.c.l.bf16 %v3573
      %v3575 = vlaneseq
      %v3576 = vshrl.u32 %v3575, 7
      %v3577 = vsub.s32 3, %v3576
      %v3578 = vrot.slane %v1319, %v3577
      %v3579 = vmul.f32 %v3092, %v3578
      %v3580 = vmul.f32 %v1782, %v3578
      %v3581 = vmul.f32 %v1783, %v3578
      %v3582 = vmul.f32 %v1784, %v3578
      %v3583 = vmul.f32 %v1785, %v3578
      %v3584 = vmul.f32 %v1786, %v3578
      %v3585 = vmul.f32 %v1787, %v3578
      %v3586 = vmul.f32 %v1788, %v3578
      %v3587 = vmul.f32 %v1789, %v3578
      %v3588 = vmul.f32 %v1790, %v3578
      %v3589 = vmul.f32 %v1791, %v3578
      %v3590 = vmul.f32 %v1792, %v3578
      %v3591 = vmul.f32 %v1793, %v3578
      %v3592 = vmul.f32 %v1794, %v3578
      %v3593 = vmul.f32 %v1795, %v3578
      %v3594 = vmul.f32 %v1796, %v3578
      %v3595 = vmul.f32 %v1797, %v3578
      %v3596 = vmul.f32 %v1798, %v3578
      %v3597 = vmul.f32 %v1799, %v3578
      %v3598 = vmul.f32 %v1800, %v3578
      %v3599 = vmul.f32 %v1801, %v3578
      %v3600 = vmul.f32 %v1802, %v3578
      %v3601 = vmul.f32 %v1803, %v3578
      %v3602 = vmul.f32 %v1804, %v3578
      %v3603 = vmul.f32 %v1805, %v3578
      %v3604 = vmul.f32 %v1806, %v3578
      %v3605 = vmul.f32 %v1807, %v3578
      %v3606 = vmul.f32 %v1808, %v3578
      %v3607 = vmul.f32 %v1809, %v3578
      %v3608 = vmul.f32 %v1810, %v3578
      %v3609 = vmul.f32 %v1811, %v3578
      %v3610 = vmul.f32 %v1812, %v3578
      %v3611 = vmul.f32 %v1813, %v3578
      %v3612 = vlaneseq
      %v3613 = vshrl.u32 %v3612, 7
      %v3614 = vsub.s32 3, %v3613
      %v3615 = vrot.slane %v1320, %v3614
      %v3616 = vmul.f32 %v1783, %v3615
      %v3617 = vmul.f32 %v1784, %v3615
      %v3618 = vmul.f32 %v1785, %v3615
      %v3619 = vmul.f32 %v1786, %v3615
      %v3620 = vmul.f32 %v1787, %v3615
      %v3621 = vmul.f32 %v1788, %v3615
      %v3622 = vmul.f32 %v1789, %v3615
      %v3623 = vmul.f32 %v1790, %v3615
      %v3624 = vmul.f32 %v1791, %v3615
      %v3625 = vmul.f32 %v1792, %v3615
      %v3626 = vmul.f32 %v1793, %v3615
      %v3627 = vmul.f32 %v1794, %v3615
      %v3628 = vmul.f32 %v1795, %v3615
      %v3629 = vmul.f32 %v1796, %v3615
      %v3630 = vmul.f32 %v1797, %v3615
      %v3631 = vmul.f32 %v1798, %v3615
      %v3632 = vmul.f32 %v1799, %v3615
      %v3633 = vmul.f32 %v1800, %v3615
      %v3634 = vmul.f32 %v1801, %v3615
      %v3635 = vmul.f32 %v1802, %v3615
      %v3636 = vmul.f32 %v1803, %v3615
      %v3637 = vmul.f32 %v1804, %v3615
      %v3638 = vmul.f32 %v1805, %v3615
      %v3639 = vmul.f32 %v1806, %v3615
      %v3640 = vmul.f32 %v1807, %v3615
      %v3641 = vmul.f32 %v1808, %v3615
      %v3642 = vmul.f32 %v1809, %v3615
      %v3643 = vmul.f32 %v1810, %v3615
      %v3644 = vmul.f32 %v1811, %v3615
      %v3645 = vmul.f32 %v1812, %v3615
      %v3646 = vmul.f32 %v1813, %v3615
      %v3647 = vmul.f32 %v1814, %v3615
      %v3648 = vmul.f32 %v1815, %v3615
      %v3649 = vadd.f32 %v3579, %v3616
      %v3650 = vadd.f32 %v3580, %v3617
      %v3651 = vadd.f32 %v3581, %v3618
      %v3652 = vadd.f32 %v3582, %v3619
      %v3653 = vadd.f32 %v3583, %v3620
      %v3654 = vadd.f32 %v3584, %v3621
      %v3655 = vadd.f32 %v3585, %v3622
      %v3656 = vadd.f32 %v3586, %v3623
      %v3657 = vadd.f32 %v3587, %v3624
      %v3658 = vadd.f32 %v3588, %v3625
      %v3659 = vadd.f32 %v3589, %v3626
      %v3660 = vadd.f32 %v3590, %v3627
      %v3661 = vadd.f32 %v3591, %v3628
      %v3662 = vadd.f32 %v3592, %v3629
      %v3663 = vadd.f32 %v3593, %v3630
      %v3664 = vadd.f32 %v3594, %v3631
      %v3665 = vadd.f32 %v3595, %v3632
      %v3666 = vadd.f32 %v3596, %v3633
      %v3667 = vadd.f32 %v3597, %v3634
      %v3668 = vadd.f32 %v3598, %v3635
      %v3669 = vadd.f32 %v3599, %v3636
      %v3670 = vadd.f32 %v3600, %v3637
      %v3671 = vadd.f32 %v3601, %v3638
      %v3672 = vadd.f32 %v3602, %v3639
      %v3673 = vadd.f32 %v3603, %v3640
      %v3674 = vadd.f32 %v3604, %v3641
      %v3675 = vadd.f32 %v3605, %v3642
      %v3676 = vadd.f32 %v3606, %v3643
      %v3677 = vadd.f32 %v3607, %v3644
      %v3678 = vadd.f32 %v3608, %v3645
      %v3679 = vadd.f32 %v3609, %v3646
      %v3680 = vadd.f32 %v3610, %v3647
      %v3681 = vadd.f32 %v3611, %v3648
      %v3682 = vlaneseq
      %v3683 = vshrl.u32 %v3682, 7
      %v3684 = vsub.s32 3, %v3683
      %v3685 = vrot.slane %v1321, %v3684
      %v3686 = vmul.f32 %v1785, %v3685
      %v3687 = vmul.f32 %v1786, %v3685
      %v3688 = vmul.f32 %v1787, %v3685
      %v3689 = vmul.f32 %v1788, %v3685
      %v3690 = vmul.f32 %v1789, %v3685
      %v3691 = vmul.f32 %v1790, %v3685
      %v3692 = vmul.f32 %v1791, %v3685
      %v3693 = vmul.f32 %v1792, %v3685
      %v3694 = vmul.f32 %v1793, %v3685
      %v3695 = vmul.f32 %v1794, %v3685
      %v3696 = vmul.f32 %v1795, %v3685
      %v3697 = vmul.f32 %v1796, %v3685
      %v3698 = vmul.f32 %v1797, %v3685
      %v3699 = vmul.f32 %v1798, %v3685
      %v3700 = vmul.f32 %v1799, %v3685
      %v3701 = vmul.f32 %v1800, %v3685
      %v3702 = vmul.f32 %v1801, %v3685
      %v3703 = vmul.f32 %v1802, %v3685
      %v3704 = vmul.f32 %v1803, %v3685
      %v3705 = vmul.f32 %v1804, %v3685
      %v3706 = vmul.f32 %v1805, %v3685
      %v3707 = vmul.f32 %v1806, %v3685
      %v3708 = vmul.f32 %v1807, %v3685
      %v3709 = vmul.f32 %v1808, %v3685
      %v3710 = vmul.f32 %v1809, %v3685
      %v3711 = vmul.f32 %v1810, %v3685
      %v3712 = vmul.f32 %v1811, %v3685
      %v3713 = vmul.f32 %v1812, %v3685
      %v3714 = vmul.f32 %v1813, %v3685
      %v3715 = vmul.f32 %v1814, %v3685
      %v3716 = vmul.f32 %v1815, %v3685
      %v3717 = vmul.f32 %v1816, %v3685
      %v3718 = vmul.f32 %v1817, %v3685
      %v3719 = vadd.f32 %v3649, %v3686
      %v3720 = vadd.f32 %v3650, %v3687
      %v3721 = vadd.f32 %v3651, %v3688
      %v3722 = vadd.f32 %v3652, %v3689
      %v3723 = vadd.f32 %v3653, %v3690
      %v3724 = vadd.f32 %v3654, %v3691
      %v3725 = vadd.f32 %v3655, %v3692
      %v3726 = vadd.f32 %v3656, %v3693
      %v3727 = vadd.f32 %v3657, %v3694
      %v3728 = vadd.f32 %v3658, %v3695
      %v3729 = vadd.f32 %v3659, %v3696
      %v3730 = vadd.f32 %v3660, %v3697
      %v3731 = vadd.f32 %v3661, %v3698
      %v3732 = vadd.f32 %v3662, %v3699
      %v3733 = vadd.f32 %v3663, %v3700
      %v3734 = vadd.f32 %v3664, %v3701
      %v3735 = vadd.f32 %v3665, %v3702
      %v3736 = vadd.f32 %v3666, %v3703
      %v3737 = vadd.f32 %v3667, %v3704
      %v3738 = vadd.f32 %v3668, %v3705
      %v3739 = vadd.f32 %v3669, %v3706
      %v3740 = vadd.f32 %v3670, %v3707
      %v3741 = vadd.f32 %v3671, %v3708
      %v3742 = vadd.f32 %v3672, %v3709
      %v3743 = vadd.f32 %v3673, %v3710
      %v3744 = vadd.f32 %v3674, %v3711
      %v3745 = vadd.f32 %v3675, %v3712
      %v3746 = vadd.f32 %v3676, %v3713
      %v3747 = vadd.f32 %v3677, %v3714
      %v3748 = vadd.f32 %v3678, %v3715
      %v3749 = vadd.f32 %v3679, %v3716
      %v3750 = vadd.f32 %v3680, %v3717
      %v3751 = vadd.f32 %v3681, %v3718
      %v3752 = vlaneseq
      %v3753 = vshrl.u32 %v3752, 7
      %v3754 = vsub.s32 3, %v3753
      %v3755 = vrot.slane %v1322, %v3754
      %v3756 = vmul.f32 %v1787, %v3755
      %v3757 = vmul.f32 %v1788, %v3755
      %v3758 = vmul.f32 %v1789, %v3755
      %v3759 = vmul.f32 %v1790, %v3755
      %v3760 = vmul.f32 %v1791, %v3755
      %v3761 = vmul.f32 %v1792, %v3755
      %v3762 = vmul.f32 %v1793, %v3755
      %v3763 = vmul.f32 %v1794, %v3755
      %v3764 = vmul.f32 %v1795, %v3755
      %v3765 = vmul.f32 %v1796, %v3755
      %v3766 = vmul.f32 %v1797, %v3755
      %v3767 = vmul.f32 %v1798, %v3755
      %v3768 = vmul.f32 %v1799, %v3755
      %v3769 = vmul.f32 %v1800, %v3755
      %v3770 = vmul.f32 %v1801, %v3755
      %v3771 = vmul.f32 %v1802, %v3755
      %v3772 = vmul.f32 %v1803, %v3755
      %v3773 = vmul.f32 %v1804, %v3755
      %v3774 = vmul.f32 %v1805, %v3755
      %v3775 = vmul.f32 %v1806, %v3755
      %v3776 = vmul.f32 %v1807, %v3755
      %v3777 = vmul.f32 %v1808, %v3755
      %v3778 = vmul.f32 %v1809, %v3755
      %v3779 = vmul.f32 %v1810, %v3755
      %v3780 = vmul.f32 %v1811, %v3755
      %v3781 = vmul.f32 %v1812, %v3755
      %v3782 = vmul.f32 %v1813, %v3755
      %v3783 = vmul.f32 %v1814, %v3755
      %v3784 = vmul.f32 %v1815, %v3755
      %v3785 = vmul.f32 %v1816, %v3755
      %v3786 = vmul.f32 %v1817, %v3755
      %v3787 = vmul.f32 %v1818, %v3755
      %v3788 = vmul.f32 %v1819, %v3755
      %v3789 = vadd.f32 %v3719, %v3756
      %v3790 = vadd.f32 %v3720, %v3757
      %v3791 = vadd.f32 %v3721, %v3758
      %v3792 = vadd.f32 %v3722, %v3759
      %v3793 = vadd.f32 %v3723, %v3760
      %v3794 = vadd.f32 %v3724, %v3761
      %v3795 = vadd.f32 %v3725, %v3762
      %v3796 = vadd.f32 %v3726, %v3763
      %v3797 = vadd.f32 %v3727, %v3764
      %v3798 = vadd.f32 %v3728, %v3765
      %v3799 = vadd.f32 %v3729, %v3766
      %v3800 = vadd.f32 %v3730, %v3767
      %v3801 = vadd.f32 %v3731, %v3768
      %v3802 = vadd.f32 %v3732, %v3769
      %v3803 = vadd.f32 %v3733, %v3770
      %v3804 = vadd.f32 %v3734, %v3771
      %v3805 = vadd.f32 %v3735, %v3772
      %v3806 = vadd.f32 %v3736, %v3773
      %v3807 = vadd.f32 %v3737, %v3774
      %v3808 = vadd.f32 %v3738, %v3775
      %v3809 = vadd.f32 %v3739, %v3776
      %v3810 = vadd.f32 %v3740, %v3777
      %v3811 = vadd.f32 %v3741, %v3778
      %v3812 = vadd.f32 %v3742, %v3779
      %v3813 = vadd.f32 %v3743, %v3780
      %v3814 = vadd.f32 %v3744, %v3781
      %v3815 = vadd.f32 %v3745, %v3782
      %v3816 = vadd.f32 %v3746, %v3783
      %v3817 = vadd.f32 %v3747, %v3784
      %v3818 = vadd.f32 %v3748, %v3785
      %v3819 = vadd.f32 %v3749, %v3786
      %v3820 = vadd.f32 %v3750, %v3787
      %v3821 = vadd.f32 %v3751, %v3788
      %v3822 = vlaneseq
      %v3823 = vshrl.u32 %v3822, 7
      %v3824 = vsub.s32 3, %v3823
      %v3825 = vrot.slane %v1323, %v3824
      %v3826 = vmul.f32 %v1789, %v3825
      %v3827 = vmul.f32 %v1790, %v3825
      %v3828 = vmul.f32 %v1791, %v3825
      %v3829 = vmul.f32 %v1792, %v3825
      %v3830 = vmul.f32 %v1793, %v3825
      %v3831 = vmul.f32 %v1794, %v3825
      %v3832 = vmul.f32 %v1795, %v3825
      %v3833 = vmul.f32 %v1796, %v3825
      %v3834 = vmul.f32 %v1797, %v3825
      %v3835 = vmul.f32 %v1798, %v3825
      %v3836 = vmul.f32 %v1799, %v3825
      %v3837 = vmul.f32 %v1800, %v3825
      %v3838 = vmul.f32 %v1801, %v3825
      %v3839 = vmul.f32 %v1802, %v3825
      %v3840 = vmul.f32 %v1803, %v3825
      %v3841 = vmul.f32 %v1804, %v3825
      %v3842 = vmul.f32 %v1805, %v3825
      %v3843 = vmul.f32 %v1806, %v3825
      %v3844 = vmul.f32 %v1807, %v3825
      %v3845 = vmul.f32 %v1808, %v3825
      %v3846 = vmul.f32 %v1809, %v3825
      %v3847 = vmul.f32 %v1810, %v3825
      %v3848 = vmul.f32 %v1811, %v3825
      %v3849 = vmul.f32 %v1812, %v3825
      %v3850 = vmul.f32 %v1813, %v3825
      %v3851 = vmul.f32 %v1814, %v3825
      %v3852 = vmul.f32 %v1815, %v3825
      %v3853 = vmul.f32 %v1816, %v3825
      %v3854 = vmul.f32 %v1817, %v3825
      %v3855 = vmul.f32 %v1818, %v3825
      %v3856 = vmul.f32 %v1819, %v3825
      %v3857 = vmul.f32 %v1820, %v3825
      %v3858 = vmul.f32 %v3574, %v3825
      %v3859 = vadd.f32 %v3789, %v3826
      %v3860 = vadd.f32 %v3790, %v3827
      %v3861 = vadd.f32 %v3791, %v3828
      %v3862 = vadd.f32 %v3792, %v3829
      %v3863 = vadd.f32 %v3793, %v3830
      %v3864 = vadd.f32 %v3794, %v3831
      %v3865 = vadd.f32 %v3795, %v3832
      %v3866 = vadd.f32 %v3796, %v3833
      %v3867 = vadd.f32 %v3797, %v3834
      %v3868 = vadd.f32 %v3798, %v3835
      %v3869 = vadd.f32 %v3799, %v3836
      %v3870 = vadd.f32 %v3800, %v3837
      %v3871 = vadd.f32 %v3801, %v3838
      %v3872 = vadd.f32 %v3802, %v3839
      %v3873 = vadd.f32 %v3803, %v3840
      %v3874 = vadd.f32 %v3804, %v3841
      %v3875 = vadd.f32 %v3805, %v3842
      %v3876 = vadd.f32 %v3806, %v3843
      %v3877 = vadd.f32 %v3807, %v3844
      %v3878 = vadd.f32 %v3808, %v3845
      %v3879 = vadd.f32 %v3809, %v3846
      %v3880 = vadd.f32 %v3810, %v3847
      %v3881 = vadd.f32 %v3811, %v3848
      %v3882 = vadd.f32 %v3812, %v3849
      %v3883 = vadd.f32 %v3813, %v3850
      %v3884 = vadd.f32 %v3814, %v3851
      %v3885 = vadd.f32 %v3815, %v3852
      %v3886 = vadd.f32 %v3816, %v3853
      %v3887 = vadd.f32 %v3817, %v3854
      %v3888 = vadd.f32 %v3818, %v3855
      %v3889 = vadd.f32 %v3819, %v3856
      %v3890 = vadd.f32 %v3820, %v3857
      %v3891 = vadd.f32 %v3821, %v3858
      %v3892 = vadd.s32 %v1709, 1
      %v3893 = vadd.s32 %v1710, 1
      %v3894 = vadd.s32 %v1711, 1
      %v3895 = vadd.s32 %v1712, 1
      %v3896 = vadd.s32 %v1713, 1
      %v3897 = vadd.s32 %v1714, 1
      %v3898 = vadd.s32 %v1715, 1
      %v3899 = vadd.s32 %v1716, 1
      %v3900 = vadd.s32 %v1717, 1
      %v3901 = vadd.s32 %v1718, 1
      %v3902 = vadd.s32 %v1719, 1
      %v3903 = vadd.s32 %v1720, 1
      %v3904 = vadd.s32 %v1721, 1
      %v3905 = vadd.s32 %v1722, 1
      %v3906 = vadd.s32 %v1723, 1
      %v3907 = vadd.s32 %v1724, 1
      %v3908 = vadd.s32 %v1725, 1
      %v3909 = vadd.s32 %v1726, 1
      %v3910 = vadd.s32 %v1727, 1
      %v3911 = vadd.s32 %v1728, 1
      %v3912 = vadd.s32 %v1729, 1
      %v3913 = vadd.s32 %v1730, 1
      %v3914 = vadd.s32 %v1731, 1
      %v3915 = vadd.s32 %v1732, 1
      %v3916 = vadd.s32 %v1733, 1
      %v3917 = vadd.s32 %v1734, 1
      %v3918 = vadd.s32 %v1735, 1
      %v3919 = vadd.s32 %v1736, 1
      %v3920 = vadd.s32 %v1737, 1
      %v3921 = vadd.s32 %v1738, 1
      %v3922 = vadd.s32 %v1739, 1
      %v3923 = vadd.s32 %v1740, 1
      %vm3924 = vcmp.ge.s32.totalorder %v3892, 0
      %vm3925 = vcmp.ge.s32.totalorder %v3893, 0
      %vm3926 = vcmp.ge.s32.totalorder %v3894, 0
      %vm3927 = vcmp.ge.s32.totalorder %v3895, 0
      %vm3928 = vcmp.ge.s32.totalorder %v3896, 0
      %vm3929 = vcmp.ge.s32.totalorder %v3897, 0
      %vm3930 = vcmp.ge.s32.totalorder %v3898, 0
      %vm3931 = vcmp.ge.s32.totalorder %v3899, 0
      %vm3932 = vcmp.ge.s32.totalorder %v3900, 0
      %vm3933 = vcmp.ge.s32.totalorder %v3901, 0
      %vm3934 = vcmp.ge.s32.totalorder %v3902, 0
      %vm3935 = vcmp.ge.s32.totalorder %v3903, 0
      %vm3936 = vcmp.ge.s32.totalorder %v3904, 0
      %vm3937 = vcmp.ge.s32.totalorder %v3905, 0
      %vm3938 = vcmp.ge.s32.totalorder %v3906, 0
      %vm3939 = vcmp.ge.s32.totalorder %v3907, 0
      %vm3940 = vcmp.ge.s32.totalorder %v3908, 0
      %vm3941 = vcmp.ge.s32.totalorder %v3909, 0
      %vm3942 = vcmp.ge.s32.totalorder %v3910, 0
      %vm3943 = vcmp.ge.s32.totalorder %v3911, 0
      %vm3944 = vcmp.ge.s32.totalorder %v3912, 0
      %vm3945 = vcmp.ge.s32.totalorder %v3913, 0
      %vm3946 = vcmp.ge.s32.totalorder %v3914, 0
      %vm3947 = vcmp.ge.s32.totalorder %v3915, 0
      %vm3948 = vcmp.ge.s32.totalorder %v3916, 0
      %vm3949 = vcmp.ge.s32.totalorder %v3917, 0
      %vm3950 = vcmp.ge.s32.totalorder %v3918, 0
      %vm3951 = vcmp.ge.s32.totalorder %v3919, 0
      %vm3952 = vcmp.ge.s32.totalorder %v3920, 0
      %vm3953 = vcmp.ge.s32.totalorder %v3921, 0
      %vm3954 = vcmp.ge.s32.totalorder %v3922, 0
      %vm3955 = vcmp.ge.s32.totalorder %v3923, 0
      %vm3956 = vcmp.lt.s32.totalorder %v3892, 16
      %vm3957 = vcmp.lt.s32.totalorder %v3893, 16
      %vm3958 = vcmp.lt.s32.totalorder %v3894, 16
      %vm3959 = vcmp.lt.s32.totalorder %v3895, 16
      %vm3960 = vcmp.lt.s32.totalorder %v3896, 16
      %vm3961 = vcmp.lt.s32.totalorder %v3897, 16
      %vm3962 = vcmp.lt.s32.totalorder %v3898, 16
      %vm3963 = vcmp.lt.s32.totalorder %v3899, 16
      %vm3964 = vcmp.lt.s32.totalorder %v3900, 16
      %vm3965 = vcmp.lt.s32.totalorder %v3901, 16
      %vm3966 = vcmp.lt.s32.totalorder %v3902, 16
      %vm3967 = vcmp.lt.s32.totalorder %v3903, 16
      %vm3968 = vcmp.lt.s32.totalorder %v3904, 16
      %vm3969 = vcmp.lt.s32.totalorder %v3905, 16
      %vm3970 = vcmp.lt.s32.totalorder %v3906, 16
      %vm3971 = vcmp.lt.s32.totalorder %v3907, 16
      %vm3972 = vcmp.lt.s32.totalorder %v3908, 16
      %vm3973 = vcmp.lt.s32.totalorder %v3909, 16
      %vm3974 = vcmp.lt.s32.totalorder %v3910, 16
      %vm3975 = vcmp.lt.s32.totalorder %v3911, 16
      %vm3976 = vcmp.lt.s32.totalorder %v3912, 16
      %vm3977 = vcmp.lt.s32.totalorder %v3913, 16
      %vm3978 = vcmp.lt.s32.totalorder %v3914, 16
      %vm3979 = vcmp.lt.s32.totalorder %v3915, 16
      %vm3980 = vcmp.lt.s32.totalorder %v3916, 16
      %vm3981 = vcmp.lt.s32.totalorder %v3917, 16
      %vm3982 = vcmp.lt.s32.totalorder %v3918, 16
      %vm3983 = vcmp.lt.s32.totalorder %v3919, 16
      %vm3984 = vcmp.lt.s32.totalorder %v3920, 16
      %vm3985 = vcmp.lt.s32.totalorder %v3921, 16
      %vm3986 = vcmp.lt.s32.totalorder %v3922, 16
      %vm3987 = vcmp.lt.s32.totalorder %v3923, 16
      %vm3988 = vmand %vm3924, %vm3956
      %vm3989 = vmand %vm3925, %vm3957
      %vm3990 = vmand %vm3926, %vm3958
      %vm3991 = vmand %vm3927, %vm3959
      %vm3992 = vmand %vm3928, %vm3960
      %vm3993 = vmand %vm3929, %vm3961
      %vm3994 = vmand %vm3930, %vm3962
      %vm3995 = vmand %vm3931, %vm3963
      %vm3996 = vmand %vm3932, %vm3964
      %vm3997 = vmand %vm3933, %vm3965
      %vm3998 = vmand %vm3934, %vm3966
      %vm3999 = vmand %vm3935, %vm3967
      %vm4000 = vmand %vm3936, %vm3968
      %vm4001 = vmand %vm3937, %vm3969
      %vm4002 = vmand %vm3938, %vm3970
      %vm4003 = vmand %vm3939, %vm3971
      %vm4004 = vmand %vm3940, %vm3972
      %vm4005 = vmand %vm3941, %vm3973
      %vm4006 = vmand %vm3942, %vm3974
      %vm4007 = vmand %vm3943, %vm3975
      %vm4008 = vmand %vm3944, %vm3976
      %vm4009 = vmand %vm3945, %vm3977
      %vm4010 = vmand %vm3946, %vm3978
      %vm4011 = vmand %vm3947, %vm3979
      %vm4012 = vmand %vm3948, %vm3980
      %vm4013 = vmand %vm3949, %vm3981
      %vm4014 = vmand %vm3950, %vm3982
      %vm4015 = vmand %vm3951, %vm3983
      %vm4016 = vmand %vm3952, %vm3984
      %vm4017 = vmand %vm3953, %vm3985
      %vm4018 = vmand %vm3954, %vm3986
      %vm4019 = vmand %vm3955, %vm3987
      %v4020 = vsel %vm3988, 1, 0
      %v4021 = vsel %vm3989, 1, 0
      %v4022 = vsel %vm3990, 1, 0
      %v4023 = vsel %vm3991, 1, 0
      %v4024 = vsel %vm3992, 1, 0
      %v4025 = vsel %vm3993, 1, 0
      %v4026 = vsel %vm3994, 1, 0
      %v4027 = vsel %vm3995, 1, 0
      %v4028 = vsel %vm3996, 1, 0
      %v4029 = vsel %vm3997, 1, 0
      %v4030 = vsel %vm3998, 1, 0
      %v4031 = vsel %vm3999, 1, 0
      %v4032 = vsel %vm4000, 1, 0
      %v4033 = vsel %vm4001, 1, 0
      %v4034 = vsel %vm4002, 1, 0
      %v4035 = vsel %vm4003, 1, 0
      %v4036 = vsel %vm4004, 1, 0
      %v4037 = vsel %vm4005, 1, 0
      %v4038 = vsel %vm4006, 1, 0
      %v4039 = vsel %vm4007, 1, 0
      %v4040 = vsel %vm4008, 1, 0
      %v4041 = vsel %vm4009, 1, 0
      %v4042 = vsel %vm4010, 1, 0
      %v4043 = vsel %vm4011, 1, 0
      %v4044 = vsel %vm4012, 1, 0
      %v4045 = vsel %vm4013, 1, 0
      %v4046 = vsel %vm4014, 1, 0
      %v4047 = vsel %vm4015, 1, 0
      %v4048 = vsel %vm4016, 1, 0
      %v4049 = vsel %vm4017, 1, 0
      %v4050 = vsel %vm4018, 1, 0
      %v4051 = vsel %vm4019, 1, 0
      %vm4052 = vcmp.eq.s32.totalorder %v4020, 1
      %vm4053 = vcmp.eq.s32.totalorder %v4021, 1
      %vm4054 = vcmp.eq.s32.totalorder %v4022, 1
      %vm4055 = vcmp.eq.s32.totalorder %v4023, 1
      %vm4056 = vcmp.eq.s32.totalorder %v4024, 1
      %vm4057 = vcmp.eq.s32.totalorder %v4025, 1
      %vm4058 = vcmp.eq.s32.totalorder %v4026, 1
      %vm4059 = vcmp.eq.s32.totalorder %v4027, 1
      %vm4060 = vcmp.eq.s32.totalorder %v4028, 1
      %vm4061 = vcmp.eq.s32.totalorder %v4029, 1
      %vm4062 = vcmp.eq.s32.totalorder %v4030, 1
      %vm4063 = vcmp.eq.s32.totalorder %v4031, 1
      %vm4064 = vcmp.eq.s32.totalorder %v4032, 1
      %vm4065 = vcmp.eq.s32.totalorder %v4033, 1
      %vm4066 = vcmp.eq.s32.totalorder %v4034, 1
      %vm4067 = vcmp.eq.s32.totalorder %v4035, 1
      %vm4068 = vcmp.eq.s32.totalorder %v4036, 1
      %vm4069 = vcmp.eq.s32.totalorder %v4037, 1
      %vm4070 = vcmp.eq.s32.totalorder %v4038, 1
      %vm4071 = vcmp.eq.s32.totalorder %v4039, 1
      %vm4072 = vcmp.eq.s32.totalorder %v4040, 1
      %vm4073 = vcmp.eq.s32.totalorder %v4041, 1
      %vm4074 = vcmp.eq.s32.totalorder %v4042, 1
      %vm4075 = vcmp.eq.s32.totalorder %v4043, 1
      %vm4076 = vcmp.eq.s32.totalorder %v4044, 1
      %vm4077 = vcmp.eq.s32.totalorder %v4045, 1
      %vm4078 = vcmp.eq.s32.totalorder %v4046, 1
      %vm4079 = vcmp.eq.s32.totalorder %v4047, 1
      %vm4080 = vcmp.eq.s32.totalorder %v4048, 1
      %vm4081 = vcmp.eq.s32.totalorder %v4049, 1
      %vm4082 = vcmp.eq.s32.totalorder %v4050, 1
      %vm4083 = vcmp.eq.s32.totalorder %v4051, 1
      %vm4117 = vcmask 1044480
      %v4118 = vrot.slane %v3859, 3
      %v4119 = vrot.slane %v3860, 3
      %v4120 = vsel %vm4117, %v4118, %v4119
      %v4121 = vrot.slane %v3861, 3
      %v4122 = vsel %vm4117, %v4119, %v4121
      %v4123 = vrot.slane %v3862, 3
      %v4124 = vsel %vm4117, %v4121, %v4123
      %v4125 = vrot.slane %v3863, 3
      %v4126 = vsel %vm4117, %v4123, %v4125
      %v4127 = vrot.slane %v3864, 3
      %v4128 = vsel %vm4117, %v4125, %v4127
      %v4129 = vrot.slane %v3865, 3
      %v4130 = vsel %vm4117, %v4127, %v4129
      %v4131 = vrot.slane %v3866, 3
      %v4132 = vsel %vm4117, %v4129, %v4131
      %v4133 = vrot.slane %v3867, 3
      %v4134 = vsel %vm4117, %v4131, %v4133
      %v4135 = vrot.slane %v3868, 3
      %v4136 = vsel %vm4117, %v4133, %v4135
      %v4137 = vrot.slane %v3869, 3
      %v4138 = vsel %vm4117, %v4135, %v4137
      %v4139 = vrot.slane %v3870, 3
      %v4140 = vsel %vm4117, %v4137, %v4139
      %v4141 = vrot.slane %v3871, 3
      %v4142 = vsel %vm4117, %v4139, %v4141
      %v4143 = vrot.slane %v3872, 3
      %v4144 = vsel %vm4117, %v4141, %v4143
      %v4145 = vrot.slane %v3873, 3
      %v4146 = vsel %vm4117, %v4143, %v4145
      %v4147 = vrot.slane %v3874, 3
      %v4148 = vsel %vm4117, %v4145, %v4147
      %v4149 = vrot.slane %v3875, 3
      %v4150 = vsel %vm4117, %v4147, %v4149
      %v4151 = vrot.slane %v3876, 3
      %v4152 = vsel %vm4117, %v4149, %v4151
      %v4153 = vrot.slane %v3877, 3
      %v4154 = vsel %vm4117, %v4151, %v4153
      %v4155 = vrot.slane %v3878, 3
      %v4156 = vsel %vm4117, %v4153, %v4155
      %v4157 = vrot.slane %v3879, 3
      %v4158 = vsel %vm4117, %v4155, %v4157
      %v4159 = vrot.slane %v3880, 3
      %v4160 = vsel %vm4117, %v4157, %v4159
      %v4161 = vrot.slane %v3881, 3
      %v4162 = vsel %vm4117, %v4159, %v4161
      %v4163 = vrot.slane %v3882, 3
      %v4164 = vsel %vm4117, %v4161, %v4163
      %v4165 = vrot.slane %v3883, 3
      %v4166 = vsel %vm4117, %v4163, %v4165
      %v4167 = vrot.slane %v3884, 3
      %v4168 = vsel %vm4117, %v4165, %v4167
      %v4169 = vrot.slane %v3885, 3
      %v4170 = vsel %vm4117, %v4167, %v4169
      %v4171 = vrot.slane %v3886, 3
      %v4172 = vsel %vm4117, %v4169, %v4171
      %v4173 = vrot.slane %v3887, 3
      %v4174 = vsel %vm4117, %v4171, %v4173
      %v4175 = vrot.slane %v3888, 3
      %v4176 = vsel %vm4117, %v4173, %v4175
      %v4177 = vrot.slane %v3889, 3
      %v4178 = vsel %vm4117, %v4175, %v4177
      %v4179 = vrot.slane %v3890, 3
      %v4180 = vsel %vm4117, %v4177, %v4179
      %v4181 = vrot.slane %v3891, 3
      %v4182 = vsel %vm4117, %v4179, %v4181
      %v4215 = vsel %vm4052, %v4120, 0.0
      %v4216 = vsel %vm4053, %v4122, 0.0
      %v4217 = vsel %vm4054, %v4124, 0.0
      %v4218 = vsel %vm4055, %v4126, 0.0
      %v4219 = vsel %vm4056, %v4128, 0.0
      %v4220 = vsel %vm4057, %v4130, 0.0
      %v4221 = vsel %vm4058, %v4132, 0.0
      %v4222 = vsel %vm4059, %v4134, 0.0
      %v4223 = vsel %vm4060, %v4136, 0.0
      %v4224 = vsel %vm4061, %v4138, 0.0
      %v4225 = vsel %vm4062, %v4140, 0.0
      %v4226 = vsel %vm4063, %v4142, 0.0
      %v4227 = vsel %vm4064, %v4144, 0.0
      %v4228 = vsel %vm4065, %v4146, 0.0
      %v4229 = vsel %vm4066, %v4148, 0.0
      %v4230 = vsel %vm4067, %v4150, 0.0
      %v4231 = vsel %vm4068, %v4152, 0.0
      %v4232 = vsel %vm4069, %v4154, 0.0
      %v4233 = vsel %vm4070, %v4156, 0.0
      %v4234 = vsel %vm4071, %v4158, 0.0
      %v4235 = vsel %vm4072, %v4160, 0.0
      %v4236 = vsel %vm4073, %v4162, 0.0
      %v4237 = vsel %vm4074, %v4164, 0.0
      %v4238 = vsel %vm4075, %v4166, 0.0
      %v4239 = vsel %vm4076, %v4168, 0.0
      %v4240 = vsel %vm4077, %v4170, 0.0
      %v4241 = vsel %vm4078, %v4172, 0.0
      %v4242 = vsel %vm4079, %v4174, 0.0
      %v4243 = vsel %vm4080, %v4176, 0.0
      %v4244 = vsel %vm4081, %v4178, 0.0
      %v4245 = vsel %vm4082, %v4180, 0.0
      %v4246 = vsel %vm4083, %v4182, 0.0
      %v4247 = vadd.f32 %v3541, %v4215
      %v4248 = vadd.f32 %v3542, %v4216
      %v4249 = vadd.f32 %v3543, %v4217
      %v4250 = vadd.f32 %v3544, %v4218
      %v4251 = vadd.f32 %v3545, %v4219
      %v4252 = vadd.f32 %v3546, %v4220
      %v4253 = vadd.f32 %v3547, %v4221
      %v4254 = vadd.f32 %v3548, %v4222
      %v4255 = vadd.f32 %v3549, %v4223
      %v4256 = vadd.f32 %v3550, %v4224
      %v4257 = vadd.f32 %v3551, %v4225
      %v4258 = vadd.f32 %v3552, %v4226
      %v4259 = vadd.f32 %v3553, %v4227
      %v4260 = vadd.f32 %v3554, %v4228
      %v4261 = vadd.f32 %v3555, %v4229
      %v4262 = vadd.f32 %v3556, %v4230
      %v4263 = vadd.f32 %v3557, %v4231
      %v4264 = vadd.f32 %v3558, %v4232
      %v4265 = vadd.f32 %v3559, %v4233
      %v4266 = vadd.f32 %v3560, %v4234
      %v4267 = vadd.f32 %v3561, %v4235
      %v4268 = vadd.f32 %v3562, %v4236
      %v4269 = vadd.f32 %v3563, %v4237
      %v4270 = vadd.f32 %v3564, %v4238
      %v4271 = vadd.f32 %v3565, %v4239
      %v4272 = vadd.f32 %v3566, %v4240
      %v4273 = vadd.f32 %v3567, %v4241
      %v4274 = vadd.f32 %v3568, %v4242
      %v4275 = vadd.f32 %v3569, %v4243
      %v4276 = vadd.f32 %v3570, %v4244
      %v4277 = vadd.f32 %v3571, %v4245
      %v4278 = vadd.f32 %v3572, %v4246
      %v4279 = vld [vmem:[#allocation2] sm:$0xc]
      %v4280 = vunpack.c.l.bf16 %v4279
      %v4281 = vlaneseq
      %v4282 = vshrl.u32 %v4281, 7
      %v4283 = vsub.s32 4, %v4282
      %v4284 = vrot.slane %v1319, %v4283
      %v4285 = vmul.f32 %v4280, %v4284
      %v4286 = vmul.f32 %v1782, %v4284
      %v4287 = vmul.f32 %v1783, %v4284
      %v4288 = vmul.f32 %v1784, %v4284
      %v4289 = vmul.f32 %v1785, %v4284
      %v4290 = vmul.f32 %v1786, %v4284
      %v4291 = vmul.f32 %v1787, %v4284
      %v4292 = vmul.f32 %v1788, %v4284
      %v4293 = vmul.f32 %v1789, %v4284
      %v4294 = vmul.f32 %v1790, %v4284
      %v4295 = vmul.f32 %v1791, %v4284
      %v4296 = vmul.f32 %v1792, %v4284
      %v4297 = vmul.f32 %v1793, %v4284
      %v4298 = vmul.f32 %v1794, %v4284
      %v4299 = vmul.f32 %v1795, %v4284
      %v4300 = vmul.f32 %v1796, %v4284
      %v4301 = vmul.f32 %v1797, %v4284
      %v4302 = vmul.f32 %v1798, %v4284
      %v4303 = vmul.f32 %v1799, %v4284
      %v4304 = vmul.f32 %v1800, %v4284
      %v4305 = vmul.f32 %v1801, %v4284
      %v4306 = vmul.f32 %v1802, %v4284
      %v4307 = vmul.f32 %v1803, %v4284
      %v4308 = vmul.f32 %v1804, %v4284
      %v4309 = vmul.f32 %v1805, %v4284
      %v4310 = vmul.f32 %v1806, %v4284
      %v4311 = vmul.f32 %v1807, %v4284
      %v4312 = vmul.f32 %v1808, %v4284
      %v4313 = vmul.f32 %v1809, %v4284
      %v4314 = vmul.f32 %v1810, %v4284
      %v4315 = vmul.f32 %v1811, %v4284
      %v4316 = vmul.f32 %v1812, %v4284
      %v4317 = vmul.f32 %v1813, %v4284
      %v4318 = vlaneseq
      %v4319 = vshrl.u32 %v4318, 7
      %v4320 = vsub.s32 4, %v4319
      %v4321 = vrot.slane %v1320, %v4320
      %v4322 = vmul.f32 %v1783, %v4321
      %v4323 = vmul.f32 %v1784, %v4321
      %v4324 = vmul.f32 %v1785, %v4321
      %v4325 = vmul.f32 %v1786, %v4321
      %v4326 = vmul.f32 %v1787, %v4321
      %v4327 = vmul.f32 %v1788, %v4321
      %v4328 = vmul.f32 %v1789, %v4321
      %v4329 = vmul.f32 %v1790, %v4321
      %v4330 = vmul.f32 %v1791, %v4321
      %v4331 = vmul.f32 %v1792, %v4321
      %v4332 = vmul.f32 %v1793, %v4321
      %v4333 = vmul.f32 %v1794, %v4321
      %v4334 = vmul.f32 %v1795, %v4321
      %v4335 = vmul.f32 %v1796, %v4321
      %v4336 = vmul.f32 %v1797, %v4321
      %v4337 = vmul.f32 %v1798, %v4321
      %v4338 = vmul.f32 %v1799, %v4321
      %v4339 = vmul.f32 %v1800, %v4321
      %v4340 = vmul.f32 %v1801, %v4321
      %v4341 = vmul.f32 %v1802, %v4321
      %v4342 = vmul.f32 %v1803, %v4321
      %v4343 = vmul.f32 %v1804, %v4321
      %v4344 = vmul.f32 %v1805, %v4321
      %v4345 = vmul.f32 %v1806, %v4321
      %v4346 = vmul.f32 %v1807, %v4321
      %v4347 = vmul.f32 %v1808, %v4321
      %v4348 = vmul.f32 %v1809, %v4321
      %v4349 = vmul.f32 %v1810, %v4321
      %v4350 = vmul.f32 %v1811, %v4321
      %v4351 = vmul.f32 %v1812, %v4321
      %v4352 = vmul.f32 %v1813, %v4321
      %v4353 = vmul.f32 %v1814, %v4321
      %v4354 = vmul.f32 %v1815, %v4321
      %v4355 = vadd.f32 %v4285, %v4322
      %v4356 = vadd.f32 %v4286, %v4323
      %v4357 = vadd.f32 %v4287, %v4324
      %v4358 = vadd.f32 %v4288, %v4325
      %v4359 = vadd.f32 %v4289, %v4326
      %v4360 = vadd.f32 %v4290, %v4327
      %v4361 = vadd.f32 %v4291, %v4328
      %v4362 = vadd.f32 %v4292, %v4329
      %v4363 = vadd.f32 %v4293, %v4330
      %v4364 = vadd.f32 %v4294, %v4331
      %v4365 = vadd.f32 %v4295, %v4332
      %v4366 = vadd.f32 %v4296, %v4333
      %v4367 = vadd.f32 %v4297, %v4334
      %v4368 = vadd.f32 %v4298, %v4335
      %v4369 = vadd.f32 %v4299, %v4336
      %v4370 = vadd.f32 %v4300, %v4337
      %v4371 = vadd.f32 %v4301, %v4338
      %v4372 = vadd.f32 %v4302, %v4339
      %v4373 = vadd.f32 %v4303, %v4340
      %v4374 = vadd.f32 %v4304, %v4341
      %v4375 = vadd.f32 %v4305, %v4342
      %v4376 = vadd.f32 %v4306, %v4343
      %v4377 = vadd.f32 %v4307, %v4344
      %v4378 = vadd.f32 %v4308, %v4345
      %v4379 = vadd.f32 %v4309, %v4346
      %v4380 = vadd.f32 %v4310, %v4347
      %v4381 = vadd.f32 %v4311, %v4348
      %v4382 = vadd.f32 %v4312, %v4349
      %v4383 = vadd.f32 %v4313, %v4350
      %v4384 = vadd.f32 %v4314, %v4351
      %v4385 = vadd.f32 %v4315, %v4352
      %v4386 = vadd.f32 %v4316, %v4353
      %v4387 = vadd.f32 %v4317, %v4354
      %v4388 = vlaneseq
      %v4389 = vshrl.u32 %v4388, 7
      %v4390 = vsub.s32 4, %v4389
      %v4391 = vrot.slane %v1321, %v4390
      %v4392 = vmul.f32 %v1785, %v4391
      %v4393 = vmul.f32 %v1786, %v4391
      %v4394 = vmul.f32 %v1787, %v4391
      %v4395 = vmul.f32 %v1788, %v4391
      %v4396 = vmul.f32 %v1789, %v4391
      %v4397 = vmul.f32 %v1790, %v4391
      %v4398 = vmul.f32 %v1791, %v4391
      %v4399 = vmul.f32 %v1792, %v4391
      %v4400 = vmul.f32 %v1793, %v4391
      %v4401 = vmul.f32 %v1794, %v4391
      %v4402 = vmul.f32 %v1795, %v4391
      %v4403 = vmul.f32 %v1796, %v4391
      %v4404 = vmul.f32 %v1797, %v4391
      %v4405 = vmul.f32 %v1798, %v4391
      %v4406 = vmul.f32 %v1799, %v4391
      %v4407 = vmul.f32 %v1800, %v4391
      %v4408 = vmul.f32 %v1801, %v4391
      %v4409 = vmul.f32 %v1802, %v4391
      %v4410 = vmul.f32 %v1803, %v4391
      %v4411 = vmul.f32 %v1804, %v4391
      %v4412 = vmul.f32 %v1805, %v4391
      %v4413 = vmul.f32 %v1806, %v4391
      %v4414 = vmul.f32 %v1807, %v4391
      %v4415 = vmul.f32 %v1808, %v4391
      %v4416 = vmul.f32 %v1809, %v4391
      %v4417 = vmul.f32 %v1810, %v4391
      %v4418 = vmul.f32 %v1811, %v4391
      %v4419 = vmul.f32 %v1812, %v4391
      %v4420 = vmul.f32 %v1813, %v4391
      %v4421 = vmul.f32 %v1814, %v4391
      %v4422 = vmul.f32 %v1815, %v4391
      %v4423 = vmul.f32 %v1816, %v4391
      %v4424 = vmul.f32 %v1817, %v4391
      %v4425 = vadd.f32 %v4355, %v4392
      %v4426 = vadd.f32 %v4356, %v4393
      %v4427 = vadd.f32 %v4357, %v4394
      %v4428 = vadd.f32 %v4358, %v4395
      %v4429 = vadd.f32 %v4359, %v4396
      %v4430 = vadd.f32 %v4360, %v4397
      %v4431 = vadd.f32 %v4361, %v4398
      %v4432 = vadd.f32 %v4362, %v4399
      %v4433 = vadd.f32 %v4363, %v4400
      %v4434 = vadd.f32 %v4364, %v4401
      %v4435 = vadd.f32 %v4365, %v4402
      %v4436 = vadd.f32 %v4366, %v4403
      %v4437 = vadd.f32 %v4367, %v4404
      %v4438 = vadd.f32 %v4368, %v4405
      %v4439 = vadd.f32 %v4369, %v4406
      %v4440 = vadd.f32 %v4370, %v4407
      %v4441 = vadd.f32 %v4371, %v4408
      %v4442 = vadd.f32 %v4372, %v4409
      %v4443 = vadd.f32 %v4373, %v4410
      %v4444 = vadd.f32 %v4374, %v4411
      %v4445 = vadd.f32 %v4375, %v4412
      %v4446 = vadd.f32 %v4376, %v4413
      %v4447 = vadd.f32 %v4377, %v4414
      %v4448 = vadd.f32 %v4378, %v4415
      %v4449 = vadd.f32 %v4379, %v4416
      %v4450 = vadd.f32 %v4380, %v4417
      %v4451 = vadd.f32 %v4381, %v4418
      %v4452 = vadd.f32 %v4382, %v4419
      %v4453 = vadd.f32 %v4383, %v4420
      %v4454 = vadd.f32 %v4384, %v4421
      %v4455 = vadd.f32 %v4385, %v4422
      %v4456 = vadd.f32 %v4386, %v4423
      %v4457 = vadd.f32 %v4387, %v4424
      %v4458 = vlaneseq
      %v4459 = vshrl.u32 %v4458, 7
      %v4460 = vsub.s32 4, %v4459
      %v4461 = vrot.slane %v1322, %v4460
      %v4462 = vmul.f32 %v1787, %v4461
      %v4463 = vmul.f32 %v1788, %v4461
      %v4464 = vmul.f32 %v1789, %v4461
      %v4465 = vmul.f32 %v1790, %v4461
      %v4466 = vmul.f32 %v1791, %v4461
      %v4467 = vmul.f32 %v1792, %v4461
      %v4468 = vmul.f32 %v1793, %v4461
      %v4469 = vmul.f32 %v1794, %v4461
      %v4470 = vmul.f32 %v1795, %v4461
      %v4471 = vmul.f32 %v1796, %v4461
      %v4472 = vmul.f32 %v1797, %v4461
      %v4473 = vmul.f32 %v1798, %v4461
      %v4474 = vmul.f32 %v1799, %v4461
      %v4475 = vmul.f32 %v1800, %v4461
      %v4476 = vmul.f32 %v1801, %v4461
      %v4477 = vmul.f32 %v1802, %v4461
      %v4478 = vmul.f32 %v1803, %v4461
      %v4479 = vmul.f32 %v1804, %v4461
      %v4480 = vmul.f32 %v1805, %v4461
      %v4481 = vmul.f32 %v1806, %v4461
      %v4482 = vmul.f32 %v1807, %v4461
      %v4483 = vmul.f32 %v1808, %v4461
      %v4484 = vmul.f32 %v1809, %v4461
      %v4485 = vmul.f32 %v1810, %v4461
      %v4486 = vmul.f32 %v1811, %v4461
      %v4487 = vmul.f32 %v1812, %v4461
      %v4488 = vmul.f32 %v1813, %v4461
      %v4489 = vmul.f32 %v1814, %v4461
      %v4490 = vmul.f32 %v1815, %v4461
      %v4491 = vmul.f32 %v1816, %v4461
      %v4492 = vmul.f32 %v1817, %v4461
      %v4493 = vmul.f32 %v1818, %v4461
      %v4494 = vmul.f32 %v1819, %v4461
      %v4495 = vadd.f32 %v4425, %v4462
      %v4496 = vadd.f32 %v4426, %v4463
      %v4497 = vadd.f32 %v4427, %v4464
      %v4498 = vadd.f32 %v4428, %v4465
      %v4499 = vadd.f32 %v4429, %v4466
      %v4500 = vadd.f32 %v4430, %v4467
      %v4501 = vadd.f32 %v4431, %v4468
      %v4502 = vadd.f32 %v4432, %v4469
      %v4503 = vadd.f32 %v4433, %v4470
      %v4504 = vadd.f32 %v4434, %v4471
      %v4505 = vadd.f32 %v4435, %v4472
      %v4506 = vadd.f32 %v4436, %v4473
      %v4507 = vadd.f32 %v4437, %v4474
      %v4508 = vadd.f32 %v4438, %v4475
      %v4509 = vadd.f32 %v4439, %v4476
      %v4510 = vadd.f32 %v4440, %v4477
      %v4511 = vadd.f32 %v4441, %v4478
      %v4512 = vadd.f32 %v4442, %v4479
      %v4513 = vadd.f32 %v4443, %v4480
      %v4514 = vadd.f32 %v4444, %v4481
      %v4515 = vadd.f32 %v4445, %v4482
      %v4516 = vadd.f32 %v4446, %v4483
      %v4517 = vadd.f32 %v4447, %v4484
      %v4518 = vadd.f32 %v4448, %v4485
      %v4519 = vadd.f32 %v4449, %v4486
      %v4520 = vadd.f32 %v4450, %v4487
      %v4521 = vadd.f32 %v4451, %v4488
      %v4522 = vadd.f32 %v4452, %v4489
      %v4523 = vadd.f32 %v4453, %v4490
      %v4524 = vadd.f32 %v4454, %v4491
      %v4525 = vadd.f32 %v4455, %v4492
      %v4526 = vadd.f32 %v4456, %v4493
      %v4527 = vadd.f32 %v4457, %v4494
      %v4528 = vlaneseq
      %v4529 = vshrl.u32 %v4528, 7
      %v4530 = vsub.s32 4, %v4529
      %v4531 = vrot.slane %v1323, %v4530
      %v4532 = vmul.f32 %v1789, %v4531
      %v4533 = vmul.f32 %v1790, %v4531
      %v4534 = vmul.f32 %v1791, %v4531
      %v4535 = vmul.f32 %v1792, %v4531
      %v4536 = vmul.f32 %v1793, %v4531
      %v4537 = vmul.f32 %v1794, %v4531
      %v4538 = vmul.f32 %v1795, %v4531
      %v4539 = vmul.f32 %v1796, %v4531
      %v4540 = vmul.f32 %v1797, %v4531
      %v4541 = vmul.f32 %v1798, %v4531
      %v4542 = vmul.f32 %v1799, %v4531
      %v4543 = vmul.f32 %v1800, %v4531
      %v4544 = vmul.f32 %v1801, %v4531
      %v4545 = vmul.f32 %v1802, %v4531
      %v4546 = vmul.f32 %v1803, %v4531
      %v4547 = vmul.f32 %v1804, %v4531
      %v4548 = vmul.f32 %v1805, %v4531
      %v4549 = vmul.f32 %v1806, %v4531
      %v4550 = vmul.f32 %v1807, %v4531
      %v4551 = vmul.f32 %v1808, %v4531
      %v4552 = vmul.f32 %v1809, %v4531
      %v4553 = vmul.f32 %v1810, %v4531
      %v4554 = vmul.f32 %v1811, %v4531
      %v4555 = vmul.f32 %v1812, %v4531
      %v4556 = vmul.f32 %v1813, %v4531
      %v4557 = vmul.f32 %v1814, %v4531
      %v4558 = vmul.f32 %v1815, %v4531
      %v4559 = vmul.f32 %v1816, %v4531
      %v4560 = vmul.f32 %v1817, %v4531
      %v4561 = vmul.f32 %v1818, %v4531
      %v4562 = vmul.f32 %v1819, %v4531
      %v4563 = vmul.f32 %v1820, %v4531
      %v4564 = vmul.f32 %v3574, %v4531
      %v4565 = vadd.f32 %v4495, %v4532
      %v4566 = vadd.f32 %v4496, %v4533
      %v4567 = vadd.f32 %v4497, %v4534
      %v4568 = vadd.f32 %v4498, %v4535
      %v4569 = vadd.f32 %v4499, %v4536
      %v4570 = vadd.f32 %v4500, %v4537
      %v4571 = vadd.f32 %v4501, %v4538
      %v4572 = vadd.f32 %v4502, %v4539
      %v4573 = vadd.f32 %v4503, %v4540
      %v4574 = vadd.f32 %v4504, %v4541
      %v4575 = vadd.f32 %v4505, %v4542
      %v4576 = vadd.f32 %v4506, %v4543
      %v4577 = vadd.f32 %v4507, %v4544
      %v4578 = vadd.f32 %v4508, %v4545
      %v4579 = vadd.f32 %v4509, %v4546
      %v4580 = vadd.f32 %v4510, %v4547
      %v4581 = vadd.f32 %v4511, %v4548
      %v4582 = vadd.f32 %v4512, %v4549
      %v4583 = vadd.f32 %v4513, %v4550
      %v4584 = vadd.f32 %v4514, %v4551
      %v4585 = vadd.f32 %v4515, %v4552
      %v4586 = vadd.f32 %v4516, %v4553
      %v4587 = vadd.f32 %v4517, %v4554
      %v4588 = vadd.f32 %v4518, %v4555
      %v4589 = vadd.f32 %v4519, %v4556
      %v4590 = vadd.f32 %v4520, %v4557
      %v4591 = vadd.f32 %v4521, %v4558
      %v4592 = vadd.f32 %v4522, %v4559
      %v4593 = vadd.f32 %v4523, %v4560
      %v4594 = vadd.f32 %v4524, %v4561
      %v4595 = vadd.f32 %v4525, %v4562
      %v4596 = vadd.f32 %v4526, %v4563
      %v4597 = vadd.f32 %v4527, %v4564
      %v4598 = vadd.s32 %v1709, 2
      %v4599 = vadd.s32 %v1710, 2
      %v4600 = vadd.s32 %v1711, 2
      %v4601 = vadd.s32 %v1712, 2
      %v4602 = vadd.s32 %v1713, 2
      %v4603 = vadd.s32 %v1714, 2
      %v4604 = vadd.s32 %v1715, 2
      %v4605 = vadd.s32 %v1716, 2
      %v4606 = vadd.s32 %v1717, 2
      %v4607 = vadd.s32 %v1718, 2
      %v4608 = vadd.s32 %v1719, 2
      %v4609 = vadd.s32 %v1720, 2
      %v4610 = vadd.s32 %v1721, 2
      %v4611 = vadd.s32 %v1722, 2
      %v4612 = vadd.s32 %v1723, 2
      %v4613 = vadd.s32 %v1724, 2
      %v4614 = vadd.s32 %v1725, 2
      %v4615 = vadd.s32 %v1726, 2
      %v4616 = vadd.s32 %v1727, 2
      %v4617 = vadd.s32 %v1728, 2
      %v4618 = vadd.s32 %v1729, 2
      %v4619 = vadd.s32 %v1730, 2
      %v4620 = vadd.s32 %v1731, 2
      %v4621 = vadd.s32 %v1732, 2
      %v4622 = vadd.s32 %v1733, 2
      %v4623 = vadd.s32 %v1734, 2
      %v4624 = vadd.s32 %v1735, 2
      %v4625 = vadd.s32 %v1736, 2
      %v4626 = vadd.s32 %v1737, 2
      %v4627 = vadd.s32 %v1738, 2
      %v4628 = vadd.s32 %v1739, 2
      %v4629 = vadd.s32 %v1740, 2
      %vm4630 = vcmp.ge.s32.totalorder %v4598, 0
      %vm4631 = vcmp.ge.s32.totalorder %v4599, 0
      %vm4632 = vcmp.ge.s32.totalorder %v4600, 0
      %vm4633 = vcmp.ge.s32.totalorder %v4601, 0
      %vm4634 = vcmp.ge.s32.totalorder %v4602, 0
      %vm4635 = vcmp.ge.s32.totalorder %v4603, 0
      %vm4636 = vcmp.ge.s32.totalorder %v4604, 0
      %vm4637 = vcmp.ge.s32.totalorder %v4605, 0
      %vm4638 = vcmp.ge.s32.totalorder %v4606, 0
      %vm4639 = vcmp.ge.s32.totalorder %v4607, 0
      %vm4640 = vcmp.ge.s32.totalorder %v4608, 0
      %vm4641 = vcmp.ge.s32.totalorder %v4609, 0
      %vm4642 = vcmp.ge.s32.totalorder %v4610, 0
      %vm4643 = vcmp.ge.s32.totalorder %v4611, 0
      %vm4644 = vcmp.ge.s32.totalorder %v4612, 0
      %vm4645 = vcmp.ge.s32.totalorder %v4613, 0
      %vm4646 = vcmp.ge.s32.totalorder %v4614, 0
      %vm4647 = vcmp.ge.s32.totalorder %v4615, 0
      %vm4648 = vcmp.ge.s32.totalorder %v4616, 0
      %vm4649 = vcmp.ge.s32.totalorder %v4617, 0
      %vm4650 = vcmp.ge.s32.totalorder %v4618, 0
      %vm4651 = vcmp.ge.s32.totalorder %v4619, 0
      %vm4652 = vcmp.ge.s32.totalorder %v4620, 0
      %vm4653 = vcmp.ge.s32.totalorder %v4621, 0
      %vm4654 = vcmp.ge.s32.totalorder %v4622, 0
      %vm4655 = vcmp.ge.s32.totalorder %v4623, 0
      %vm4656 = vcmp.ge.s32.totalorder %v4624, 0
      %vm4657 = vcmp.ge.s32.totalorder %v4625, 0
      %vm4658 = vcmp.ge.s32.totalorder %v4626, 0
      %vm4659 = vcmp.ge.s32.totalorder %v4627, 0
      %vm4660 = vcmp.ge.s32.totalorder %v4628, 0
      %vm4661 = vcmp.ge.s32.totalorder %v4629, 0
      %vm4662 = vcmp.lt.s32.totalorder %v4598, 16
      %vm4663 = vcmp.lt.s32.totalorder %v4599, 16
      %vm4664 = vcmp.lt.s32.totalorder %v4600, 16
      %vm4665 = vcmp.lt.s32.totalorder %v4601, 16
      %vm4666 = vcmp.lt.s32.totalorder %v4602, 16
      %vm4667 = vcmp.lt.s32.totalorder %v4603, 16
      %vm4668 = vcmp.lt.s32.totalorder %v4604, 16
      %vm4669 = vcmp.lt.s32.totalorder %v4605, 16
      %vm4670 = vcmp.lt.s32.totalorder %v4606, 16
      %vm4671 = vcmp.lt.s32.totalorder %v4607, 16
      %vm4672 = vcmp.lt.s32.totalorder %v4608, 16
      %vm4673 = vcmp.lt.s32.totalorder %v4609, 16
      %vm4674 = vcmp.lt.s32.totalorder %v4610, 16
      %vm4675 = vcmp.lt.s32.totalorder %v4611, 16
      %vm4676 = vcmp.lt.s32.totalorder %v4612, 16
      %vm4677 = vcmp.lt.s32.totalorder %v4613, 16
      %vm4678 = vcmp.lt.s32.totalorder %v4614, 16
      %vm4679 = vcmp.lt.s32.totalorder %v4615, 16
      %vm4680 = vcmp.lt.s32.totalorder %v4616, 16
      %vm4681 = vcmp.lt.s32.totalorder %v4617, 16
      %vm4682 = vcmp.lt.s32.totalorder %v4618, 16
      %vm4683 = vcmp.lt.s32.totalorder %v4619, 16
      %vm4684 = vcmp.lt.s32.totalorder %v4620, 16
      %vm4685 = vcmp.lt.s32.totalorder %v4621, 16
      %vm4686 = vcmp.lt.s32.totalorder %v4622, 16
      %vm4687 = vcmp.lt.s32.totalorder %v4623, 16
      %vm4688 = vcmp.lt.s32.totalorder %v4624, 16
      %vm4689 = vcmp.lt.s32.totalorder %v4625, 16
      %vm4690 = vcmp.lt.s32.totalorder %v4626, 16
      %vm4691 = vcmp.lt.s32.totalorder %v4627, 16
      %vm4692 = vcmp.lt.s32.totalorder %v4628, 16
      %vm4693 = vcmp.lt.s32.totalorder %v4629, 16
      %vm4694 = vmand %vm4630, %vm4662
      %vm4695 = vmand %vm4631, %vm4663
      %vm4696 = vmand %vm4632, %vm4664
      %vm4697 = vmand %vm4633, %vm4665
      %vm4698 = vmand %vm4634, %vm4666
      %vm4699 = vmand %vm4635, %vm4667
      %vm4700 = vmand %vm4636, %vm4668
      %vm4701 = vmand %vm4637, %vm4669
      %vm4702 = vmand %vm4638, %vm4670
      %vm4703 = vmand %vm4639, %vm4671
      %vm4704 = vmand %vm4640, %vm4672
      %vm4705 = vmand %vm4641, %vm4673
      %vm4706 = vmand %vm4642, %vm4674
      %vm4707 = vmand %vm4643, %vm4675
      %vm4708 = vmand %vm4644, %vm4676
      %vm4709 = vmand %vm4645, %vm4677
      %vm4710 = vmand %vm4646, %vm4678
      %vm4711 = vmand %vm4647, %vm4679
      %vm4712 = vmand %vm4648, %vm4680
      %vm4713 = vmand %vm4649, %vm4681
      %vm4714 = vmand %vm4650, %vm4682
      %vm4715 = vmand %vm4651, %vm4683
      %vm4716 = vmand %vm4652, %vm4684
      %vm4717 = vmand %vm4653, %vm4685
      %vm4718 = vmand %vm4654, %vm4686
      %vm4719 = vmand %vm4655, %vm4687
      %vm4720 = vmand %vm4656, %vm4688
      %vm4721 = vmand %vm4657, %vm4689
      %vm4722 = vmand %vm4658, %vm4690
      %vm4723 = vmand %vm4659, %vm4691
      %vm4724 = vmand %vm4660, %vm4692
      %vm4725 = vmand %vm4661, %vm4693
      %v4726 = vsel %vm4694, 1, 0
      %v4727 = vsel %vm4695, 1, 0
      %v4728 = vsel %vm4696, 1, 0
      %v4729 = vsel %vm4697, 1, 0
      %v4730 = vsel %vm4698, 1, 0
      %v4731 = vsel %vm4699, 1, 0
      %v4732 = vsel %vm4700, 1, 0
      %v4733 = vsel %vm4701, 1, 0
      %v4734 = vsel %vm4702, 1, 0
      %v4735 = vsel %vm4703, 1, 0
      %v4736 = vsel %vm4704, 1, 0
      %v4737 = vsel %vm4705, 1, 0
      %v4738 = vsel %vm4706, 1, 0
      %v4739 = vsel %vm4707, 1, 0
      %v4740 = vsel %vm4708, 1, 0
      %v4741 = vsel %vm4709, 1, 0
      %v4742 = vsel %vm4710, 1, 0
      %v4743 = vsel %vm4711, 1, 0
      %v4744 = vsel %vm4712, 1, 0
      %v4745 = vsel %vm4713, 1, 0
      %v4746 = vsel %vm4714, 1, 0
      %v4747 = vsel %vm4715, 1, 0
      %v4748 = vsel %vm4716, 1, 0
      %v4749 = vsel %vm4717, 1, 0
      %v4750 = vsel %vm4718, 1, 0
      %v4751 = vsel %vm4719, 1, 0
      %v4752 = vsel %vm4720, 1, 0
      %v4753 = vsel %vm4721, 1, 0
      %v4754 = vsel %vm4722, 1, 0
      %v4755 = vsel %vm4723, 1, 0
      %v4756 = vsel %vm4724, 1, 0
      %v4757 = vsel %vm4725, 1, 0
      %vm4758 = vcmp.eq.s32.totalorder %v4726, 1
      %vm4759 = vcmp.eq.s32.totalorder %v4727, 1
      %vm4760 = vcmp.eq.s32.totalorder %v4728, 1
      %vm4761 = vcmp.eq.s32.totalorder %v4729, 1
      %vm4762 = vcmp.eq.s32.totalorder %v4730, 1
      %vm4763 = vcmp.eq.s32.totalorder %v4731, 1
      %vm4764 = vcmp.eq.s32.totalorder %v4732, 1
      %vm4765 = vcmp.eq.s32.totalorder %v4733, 1
      %vm4766 = vcmp.eq.s32.totalorder %v4734, 1
      %vm4767 = vcmp.eq.s32.totalorder %v4735, 1
      %vm4768 = vcmp.eq.s32.totalorder %v4736, 1
      %vm4769 = vcmp.eq.s32.totalorder %v4737, 1
      %vm4770 = vcmp.eq.s32.totalorder %v4738, 1
      %vm4771 = vcmp.eq.s32.totalorder %v4739, 1
      %vm4772 = vcmp.eq.s32.totalorder %v4740, 1
      %vm4773 = vcmp.eq.s32.totalorder %v4741, 1
      %vm4774 = vcmp.eq.s32.totalorder %v4742, 1
      %vm4775 = vcmp.eq.s32.totalorder %v4743, 1
      %vm4776 = vcmp.eq.s32.totalorder %v4744, 1
      %vm4777 = vcmp.eq.s32.totalorder %v4745, 1
      %vm4778 = vcmp.eq.s32.totalorder %v4746, 1
      %vm4779 = vcmp.eq.s32.totalorder %v4747, 1
      %vm4780 = vcmp.eq.s32.totalorder %v4748, 1
      %vm4781 = vcmp.eq.s32.totalorder %v4749, 1
      %vm4782 = vcmp.eq.s32.totalorder %v4750, 1
      %vm4783 = vcmp.eq.s32.totalorder %v4751, 1
      %vm4784 = vcmp.eq.s32.totalorder %v4752, 1
      %vm4785 = vcmp.eq.s32.totalorder %v4753, 1
      %vm4786 = vcmp.eq.s32.totalorder %v4754, 1
      %vm4787 = vcmp.eq.s32.totalorder %v4755, 1
      %vm4788 = vcmp.eq.s32.totalorder %v4756, 1
      %vm4789 = vcmp.eq.s32.totalorder %v4757, 1
      %v4823 = vrot.slane %v4565, 4
      %v4824 = vrot.slane %v4566, 4
      %v4825 = vsel %vm880, %v4823, %v4824
      %v4826 = vrot.slane %v4567, 4
      %v4827 = vsel %vm880, %v4824, %v4826
      %v4828 = vrot.slane %v4568, 4
      %v4829 = vsel %vm880, %v4826, %v4828
      %v4830 = vrot.slane %v4569, 4
      %v4831 = vsel %vm880, %v4828, %v4830
      %v4832 = vrot.slane %v4570, 4
      %v4833 = vsel %vm880, %v4830, %v4832
      %v4834 = vrot.slane %v4571, 4
      %v4835 = vsel %vm880, %v4832, %v4834
      %v4836 = vrot.slane %v4572, 4
      %v4837 = vsel %vm880, %v4834, %v4836
      %v4838 = vrot.slane %v4573, 4
      %v4839 = vsel %vm880, %v4836, %v4838
      %v4840 = vrot.slane %v4574, 4
      %v4841 = vsel %vm880, %v4838, %v4840
      %v4842 = vrot.slane %v4575, 4
      %v4843 = vsel %vm880, %v4840, %v4842
      %v4844 = vrot.slane %v4576, 4
      %v4845 = vsel %vm880, %v4842, %v4844
      %v4846 = vrot.slane %v4577, 4
      %v4847 = vsel %vm880, %v4844, %v4846
      %v4848 = vrot.slane %v4578, 4
      %v4849 = vsel %vm880, %v4846, %v4848
      %v4850 = vrot.slane %v4579, 4
      %v4851 = vsel %vm880, %v4848, %v4850
      %v4852 = vrot.slane %v4580, 4
      %v4853 = vsel %vm880, %v4850, %v4852
      %v4854 = vrot.slane %v4581, 4
      %v4855 = vsel %vm880, %v4852, %v4854
      %v4856 = vrot.slane %v4582, 4
      %v4857 = vsel %vm880, %v4854, %v4856
      %v4858 = vrot.slane %v4583, 4
      %v4859 = vsel %vm880, %v4856, %v4858
      %v4860 = vrot.slane %v4584, 4
      %v4861 = vsel %vm880, %v4858, %v4860
      %v4862 = vrot.slane %v4585, 4
      %v4863 = vsel %vm880, %v4860, %v4862
      %v4864 = vrot.slane %v4586, 4
      %v4865 = vsel %vm880, %v4862, %v4864
      %v4866 = vrot.slane %v4587, 4
      %v4867 = vsel %vm880, %v4864, %v4866
      %v4868 = vrot.slane %v4588, 4
      %v4869 = vsel %vm880, %v4866, %v4868
      %v4870 = vrot.slane %v4589, 4
      %v4871 = vsel %vm880, %v4868, %v4870
      %v4872 = vrot.slane %v4590, 4
      %v4873 = vsel %vm880, %v4870, %v4872
      %v4874 = vrot.slane %v4591, 4
      %v4875 = vsel %vm880, %v4872, %v4874
      %v4876 = vrot.slane %v4592, 4
      %v4877 = vsel %vm880, %v4874, %v4876
      %v4878 = vrot.slane %v4593, 4
      %v4879 = vsel %vm880, %v4876, %v4878
      %v4880 = vrot.slane %v4594, 4
      %v4881 = vsel %vm880, %v4878, %v4880
      %v4882 = vrot.slane %v4595, 4
      %v4883 = vsel %vm880, %v4880, %v4882
      %v4884 = vrot.slane %v4596, 4
      %v4885 = vsel %vm880, %v4882, %v4884
      %v4886 = vrot.slane %v4597, 4
      %v4887 = vsel %vm880, %v4884, %v4886
      %v4920 = vsel %vm4758, %v4825, 0.0
      %v4921 = vsel %vm4759, %v4827, 0.0
      %v4922 = vsel %vm4760, %v4829, 0.0
      %v4923 = vsel %vm4761, %v4831, 0.0
      %v4924 = vsel %vm4762, %v4833, 0.0
      %v4925 = vsel %vm4763, %v4835, 0.0
      %v4926 = vsel %vm4764, %v4837, 0.0
      %v4927 = vsel %vm4765, %v4839, 0.0
      %v4928 = vsel %vm4766, %v4841, 0.0
      %v4929 = vsel %vm4767, %v4843, 0.0
      %v4930 = vsel %vm4768, %v4845, 0.0
      %v4931 = vsel %vm4769, %v4847, 0.0
      %v4932 = vsel %vm4770, %v4849, 0.0
      %v4933 = vsel %vm4771, %v4851, 0.0
      %v4934 = vsel %vm4772, %v4853, 0.0
      %v4935 = vsel %vm4773, %v4855, 0.0
      %v4936 = vsel %vm4774, %v4857, 0.0
      %v4937 = vsel %vm4775, %v4859, 0.0
      %v4938 = vsel %vm4776, %v4861, 0.0
      %v4939 = vsel %vm4777, %v4863, 0.0
      %v4940 = vsel %vm4778, %v4865, 0.0
      %v4941 = vsel %vm4779, %v4867, 0.0
      %v4942 = vsel %vm4780, %v4869, 0.0
      %v4943 = vsel %vm4781, %v4871, 0.0
      %v4944 = vsel %vm4782, %v4873, 0.0
      %v4945 = vsel %vm4783, %v4875, 0.0
      %v4946 = vsel %vm4784, %v4877, 0.0
      %v4947 = vsel %vm4785, %v4879, 0.0
      %v4948 = vsel %vm4786, %v4881, 0.0
      %v4949 = vsel %vm4787, %v4883, 0.0
      %v4950 = vsel %vm4788, %v4885, 0.0
      %v4951 = vsel %vm4789, %v4887, 0.0
      %v4952 = vadd.f32 %v4247, %v4920
      %v4953 = vadd.f32 %v4248, %v4921
      %v4954 = vadd.f32 %v4249, %v4922
      %v4955 = vadd.f32 %v4250, %v4923
      %v4956 = vadd.f32 %v4251, %v4924
      %v4957 = vadd.f32 %v4252, %v4925
      %v4958 = vadd.f32 %v4253, %v4926
      %v4959 = vadd.f32 %v4254, %v4927
      %v4960 = vadd.f32 %v4255, %v4928
      %v4961 = vadd.f32 %v4256, %v4929
      %v4962 = vadd.f32 %v4257, %v4930
      %v4963 = vadd.f32 %v4258, %v4931
      %v4964 = vadd.f32 %v4259, %v4932
      %v4965 = vadd.f32 %v4260, %v4933
      %v4966 = vadd.f32 %v4261, %v4934
      %v4967 = vadd.f32 %v4262, %v4935
      %v4968 = vadd.f32 %v4263, %v4936
      %v4969 = vadd.f32 %v4264, %v4937
      %v4970 = vadd.f32 %v4265, %v4938
      %v4971 = vadd.f32 %v4266, %v4939
      %v4972 = vadd.f32 %v4267, %v4940
      %v4973 = vadd.f32 %v4268, %v4941
      %v4974 = vadd.f32 %v4269, %v4942
      %v4975 = vadd.f32 %v4270, %v4943
      %v4976 = vadd.f32 %v4271, %v4944
      %v4977 = vadd.f32 %v4272, %v4945
      %v4978 = vadd.f32 %v4273, %v4946
      %v4979 = vadd.f32 %v4274, %v4947
      %v4980 = vadd.f32 %v4275, %v4948
      %v4981 = vadd.f32 %v4276, %v4949
      %v4982 = vadd.f32 %v4277, %v4950
      %v4983 = vadd.f32 %v4278, %v4951
      %v4984 = vld [vmem:[%s6] sm:$0x1]
      %v4986 = vlaneseq
      %v4987 = vshrl.u32 %v4986, 7
      %v4988 = vsub.s32 0, %v4987
      %v4989 = vrot.slane %v4984, %v4988
      %v4991 = vadd.f32 %v4952, %v4989
      %v4992 = vadd.f32 %v4953, %v4989
      %v4993 = vadd.f32 %v4954, %v4989
      %v4994 = vadd.f32 %v4955, %v4989
      %v4995 = vadd.f32 %v4956, %v4989
      %v4996 = vadd.f32 %v4957, %v4989
      %v4997 = vadd.f32 %v4958, %v4989
      %v4998 = vadd.f32 %v4959, %v4989
      %v4999 = vadd.f32 %v4960, %v4989
      %v5000 = vadd.f32 %v4961, %v4989
      %v5001 = vadd.f32 %v4962, %v4989
      %v5002 = vadd.f32 %v4963, %v4989
      %v5003 = vadd.f32 %v4964, %v4989
      %v5004 = vadd.f32 %v4965, %v4989
      %v5005 = vadd.f32 %v4966, %v4989
      %v5006 = vadd.f32 %v4967, %v4989
      %v5007 = vadd.f32 %v4968, %v4989
      %v5008 = vadd.f32 %v4969, %v4989
      %v5009 = vadd.f32 %v4970, %v4989
      %v5010 = vadd.f32 %v4971, %v4989
      %v5011 = vadd.f32 %v4972, %v4989
      %v5012 = vadd.f32 %v4973, %v4989
      %v5013 = vadd.f32 %v4974, %v4989
      %v5014 = vadd.f32 %v4975, %v4989
      %v5015 = vadd.f32 %v4976, %v4989
      %v5016 = vadd.f32 %v4977, %v4989
      %v5017 = vadd.f32 %v4978, %v4989
      %v5018 = vadd.f32 %v4979, %v4989
      %v5019 = vadd.f32 %v4980, %v4989
      %v5020 = vadd.f32 %v4981, %v4989
      %v5021 = vadd.f32 %v4982, %v4989
      %v5022 = vadd.f32 %v4983, %v4989
      %v5023 = vpack.c.bf16 %v4992, %v4991
      %v5024 = vpack.c.bf16 %v4994, %v4993
      %v5025 = vpack.c.bf16 %v4996, %v4995
      %v5026 = vpack.c.bf16 %v4998, %v4997
      %v5027 = vpack.c.bf16 %v5000, %v4999
      %v5028 = vpack.c.bf16 %v5002, %v5001
      %v5029 = vpack.c.bf16 %v5004, %v5003
      %v5030 = vpack.c.bf16 %v5006, %v5005
      %v5031 = vpack.c.bf16 %v5008, %v5007
      %v5032 = vpack.c.bf16 %v5010, %v5009
      %v5033 = vpack.c.bf16 %v5012, %v5011
      %v5034 = vpack.c.bf16 %v5014, %v5013
      %v5035 = vpack.c.bf16 %v5016, %v5015
      %v5036 = vpack.c.bf16 %v5018, %v5017
      %v5037 = vpack.c.bf16 %v5020, %v5019
      %v5038 = vpack.c.bf16 %v5022, %v5021
      %v5055 = vunpack.c.l.b16 %v5023
      %v5056 = vunpack.c.h.b16 %v5023
      %v5057 = vunpack.c.l.b16 %v5024
      %v5058 = vunpack.c.h.b16 %v5024
      %v5059 = vunpack.c.l.b16 %v5025
      %v5060 = vunpack.c.h.b16 %v5025
      %v5061 = vunpack.c.l.b16 %v5026
      %v5062 = vunpack.c.h.b16 %v5026
      %v5063 = vunpack.c.l.b16 %v5027
      %v5064 = vunpack.c.h.b16 %v5027
      %v5065 = vunpack.c.l.b16 %v5028
      %v5066 = vunpack.c.h.b16 %v5028
      %v5067 = vunpack.c.l.b16 %v5029
      %v5068 = vunpack.c.h.b16 %v5029
      %v5069 = vunpack.c.l.b16 %v5030
      %v5070 = vunpack.c.h.b16 %v5030
      %v5071 = vunpack.c.l.b16 %v5031
      %v5072 = vunpack.c.h.b16 %v5031
      %v5073 = vunpack.c.l.b16 %v5032
      %v5074 = vunpack.c.h.b16 %v5032
      %v5075 = vunpack.c.l.b16 %v5033
      %v5076 = vunpack.c.h.b16 %v5033
      %v5077 = vunpack.c.l.b16 %v5034
      %v5078 = vunpack.c.h.b16 %v5034
      %v5079 = vunpack.c.l.b16 %v5035
      %v5080 = vunpack.c.h.b16 %v5035
      %v5081 = vunpack.c.l.b16 %v5036
      %v5082 = vunpack.c.h.b16 %v5036
      %v5083 = vunpack.c.l.b16 %v5037
      %v5084 = vunpack.c.h.b16 %v5037
      %v5085 = vunpack.c.l.b16 %v5038
      %v5086 = vunpack.c.h.b16 %v5038
      %v5087 = vpack.c.b16 %v5055, %v5055
      %v5088 = vpack.c.b16 %v5056, %v5056
      %v5089 = vpack.c.b16 %v5057, %v5057
      %v5090 = vpack.c.b16 %v5058, %v5058
      %v5091 = vpack.c.b16 %v5059, %v5059
      %v5092 = vpack.c.b16 %v5060, %v5060
      %v5093 = vpack.c.b16 %v5061, %v5061
      %v5094 = vpack.c.b16 %v5062, %v5062
      %v5095 = vpack.c.b16 %v5063, %v5063
      %v5096 = vpack.c.b16 %v5064, %v5064
      %v5097 = vpack.c.b16 %v5065, %v5065
      %v5098 = vpack.c.b16 %v5066, %v5066
      %v5099 = vpack.c.b16 %v5067, %v5067
      %v5100 = vpack.c.b16 %v5068, %v5068
      %v5101 = vpack.c.b16 %v5069, %v5069
      %v5102 = vpack.c.b16 %v5070, %v5070
      %v5103 = vpack.c.b16 %v5071, %v5071
      %v5104 = vpack.c.b16 %v5072, %v5072
      %v5105 = vpack.c.b16 %v5073, %v5073
      %v5106 = vpack.c.b16 %v5074, %v5074
      %v5107 = vpack.c.b16 %v5075, %v5075
      %v5108 = vpack.c.b16 %v5076, %v5076
      %v5109 = vpack.c.b16 %v5077, %v5077
      %v5110 = vpack.c.b16 %v5078, %v5078
      %v5111 = vpack.c.b16 %v5079, %v5079
      %v5112 = vpack.c.b16 %v5080, %v5080
      %v5113 = vpack.c.b16 %v5081, %v5081
      %v5114 = vpack.c.b16 %v5082, %v5082
      %v5115 = vpack.c.b16 %v5083, %v5083
      %v5116 = vpack.c.b16 %v5084, %v5084
      %v5117 = vpack.c.b16 %v5085, %v5085
      %v5118 = vpack.c.b16 %v5086, %v5086
      %5151 = vst.msk [vmem:[%s278] sm:$0xf] %vm1045, %v5087
      %5152 = vst.msk [vmem:[%s278 + $0x4] sm:$0xf] %vm1045, %v5088
      %5153 = vst.msk [vmem:[%s278 + $0x8] sm:$0xf] %vm1045, %v5089
      %5154 = vst.msk [vmem:[%s278 + $0xc] sm:$0xf] %vm1045, %v5090
      %5155 = vst.msk [vmem:[%s278 + $0x10] sm:$0xf] %vm1045, %v5091
      %5156 = vst.msk [vmem:[%s278 + $0x14] sm:$0xf] %vm1045, %v5092
      %5157 = vst.msk [vmem:[%s278 + $0x18] sm:$0xf] %vm1045, %v5093
      %5158 = vst.msk [vmem:[%s278 + $0x1c] sm:$0xf] %vm1045, %v5094
      %5159 = vst.msk [vmem:[%s278 + $0x20] sm:$0xf] %vm1045, %v5095
      %5160 = vst.msk [vmem:[%s278 + $0x24] sm:$0xf] %vm1045, %v5096
      %5161 = vst.msk [vmem:[%s278 + $0x28] sm:$0xf] %vm1045, %v5097
      %5162 = vst.msk [vmem:[%s278 + $0x2c] sm:$0xf] %vm1045, %v5098
      %5163 = vst.msk [vmem:[%s278 + $0x30] sm:$0xf] %vm1045, %v5099
      %5164 = vst.msk [vmem:[%s278 + $0x34] sm:$0xf] %vm1045, %v5100
      %5165 = vst.msk [vmem:[%s278 + $0x38] sm:$0xf] %vm1045, %v5101
      %5166 = vst.msk [vmem:[%s278 + $0x3c] sm:$0xf] %vm1045, %v5102
      %5167 = vst.msk [vmem:[%s278 + $0x40] sm:$0xf] %vm1045, %v5103
      %5168 = vst.msk [vmem:[%s278 + $0x44] sm:$0xf] %vm1045, %v5104
      %5169 = vst.msk [vmem:[%s278 + $0x48] sm:$0xf] %vm1045, %v5105
      %5170 = vst.msk [vmem:[%s278 + $0x4c] sm:$0xf] %vm1045, %v5106
      %5171 = vst.msk [vmem:[%s278 + $0x50] sm:$0xf] %vm1045, %v5107
      %5172 = vst.msk [vmem:[%s278 + $0x54] sm:$0xf] %vm1045, %v5108
      %5173 = vst.msk [vmem:[%s278 + $0x58] sm:$0xf] %vm1045, %v5109
      %5174 = vst.msk [vmem:[%s278 + $0x5c] sm:$0xf] %vm1045, %v5110
      %5175 = vst.msk [vmem:[%s278 + $0x60] sm:$0xf] %vm1045, %v5111
      %5176 = vst.msk [vmem:[%s278 + $0x64] sm:$0xf] %vm1045, %v5112
      %5177 = vst.msk [vmem:[%s278 + $0x68] sm:$0xf] %vm1045, %v5113
      %5178 = vst.msk [vmem:[%s278 + $0x6c] sm:$0xf] %vm1045, %v5114
      %5179 = vst.msk [vmem:[%s278 + $0x70] sm:$0xf] %vm1045, %v5115
      %5180 = vst.msk [vmem:[%s278 + $0x74] sm:$0xf] %vm1045, %v5116
      %5181 = vst.msk [vmem:[%s278 + $0x78] sm:$0xf] %vm1045, %v5117
      %5182 = vst.msk [vmem:[%s278 + $0x7c] sm:$0xf] %vm1045, %v5118
      %p5183 = scmp.lt.s32.totalorder %s18, 1
      %s5184 = scalar_select %p5183, %s18, 1
      %s5185 = smul.addr %s5184, 32
      %s5186 = smul.addr %s5185, 4
      %s5187 = scalar_lea.vmem %s7, %s5186
      // Predicated region
      $region49: #{cblock_forward_nhwc.2} parent=47 // pred_check
        %p5188 = pneg %p188
      $region50: #{cblock_forward_nhwc.2} parent=47 // pred_check_branch
        %5190 = sbr.rel (%p5188) target = $region52
      $region51: #{cblock_forward_nhwc.2} parent=47 // pred_region
        _
      $region52: #{cblock_forward_nhwc.2} parent=47 // pred_fallthru
        _
    $region48: #{cblock_forward_nhwc.2} parent=5 // pred_fallthru
      _
    %p5191 = scmp.le.s32.totalorder 2, %s13
    // Predicated region
    $region53: #{cblock_forward_nhwc.2} parent=5 // pred_check
      %p5192 = pneg %p5191
    $region54: #{cblock_forward_nhwc.2} parent=5 // pred_check_branch
      %5194 = sbr.rel (%p5192) target = $region56
    $region55: #{cblock_forward_nhwc.2} parent=5 // pred_region
      %s5195 = ssub.s32 %s13, 2
      // Predicated region
      $region57: #{cblock_forward_nhwc.2} parent=55 // pred_check
        %p5196 = pneg %p194
      $region58: #{cblock_forward_nhwc.2} parent=55 // pred_check_branch
        %5198 = sbr.rel (%p5196) target = $region60
      $region59: #{cblock_forward_nhwc.2} parent=55 // pred_region
        %p5199 = scmp.lt.s32.totalorder %s19, 1
        %s5200 = scalar_select %p5199, %s19, 1
        %s5201 = smul.addr %s5200, 32
        %s5202 = smul.addr %s5201, 4
        %s5203 = scalar_lea.vmem %s7, %s5202
      $region60: #{cblock_forward_nhwc.2} parent=55 // pred_fallthru
        _
    $region56: #{cblock_forward_nhwc.2} parent=5 // pred_fallthru
      _
  $region6: #{cblock_forward_nhwc.2} parent=0 // loop_footer
    %s17 = sadd.s32 1, %s13
  $region7: #{cblock_forward_nhwc.2} parent=0 // loop_footer_branch
    %12 = sbr.rel target = $region3
  $region8: #{cblock_forward_nhwc.2} parent=0 // loop_exit
    _

</llo_original>
